<compile_context>
chip_gen: v5e
topology: v5e:2x2
jax: 0.10.0
libtpu: 0.0.40
codegen_flags: <defaults>
</compile_context>

<pallas_src>
import functools

import jax
import jax.numpy as jnp
from jax.experimental import pallas as pl
from jax.experimental.pallas import tpu as pltpu

_EPS = 1e-8


# ---------------------------------------------------------------------------
# In-kernel helpers (traced inside pallas bodies; operate on VMEM-resident values)
# ---------------------------------------------------------------------------

def _rms_normalize(x, g, eps):
    # torch: x / (||x||_2 * D**-0.5).clamp(min=eps) * g == x / max(sqrt(mean(x^2)), eps) * g
    norm = jnp.sqrt(jnp.mean(x * x, axis=-1, keepdims=True))
    return x / jnp.maximum(norm, eps) * g


def _mm(a, w):
    # MXU matmul: bf16 inputs, f32 accumulation (bf16 MXU path on v5e/v6e/v7x).
    return jnp.dot(a.astype(jnp.bfloat16), w.astype(jnp.bfloat16),
                   preferred_element_type=jnp.float32)


def _heads_attention(q, k, v, num_heads):
    """Multi-head attention core on (Sq, D)/(Sk, D) tiles already in VMEM.

    Heads are sliced on the lane axis in-kernel (no HBM round trip of a
    (B*H, S, hd) layout).  Score / value matmuls stay f32: hd is 2-4 here, far
    below an MXU tile, so bf16 buys nothing and softmax keeps full precision.
    # TODO(synk): for long sequences tile Sk with a flash-style online softmax.
    """
    sq, d = q.shape
    hd = d // num_heads
    scale = float(hd) ** -0.5
    outs = []
    for h in range(num_heads):
        lo = h * hd
        qh = q[:, lo:lo + hd]
        kh = k[:, lo:lo + hd]
        vh = v[:, lo:lo + hd]
        s = jnp.einsum('qd,kd->qk', qh, kh, preferred_element_type=jnp.float32) * scale
        s = s - jnp.max(s, axis=-1, keepdims=True)
        p = jnp.exp(s)
        p = p * pl.reciprocal(jnp.sum(p, axis=-1, keepdims=True), approx=True)
        outs.append(jnp.dot(p, vh, preferred_element_type=jnp.float32))
    return jnp.concatenate(outs, axis=-1)                      # (Sq, D)


def _self_attention(normed, wqkv, bqkv, wo, bo, num_heads):
    d = normed.shape[-1]
    qkv = _mm(normed, wqkv) + bqkv                             # fused QKV projection
    attn = _heads_attention(qkv[:, :d], qkv[:, d:2 * d], qkv[:, 2 * d:], num_heads)
    return _mm(attn, wo) + bo


def _cross_attention(normed, ctx, wq, bq, wkv, bkv, wo, bo, num_heads):
    d = normed.shape[-1]
    q = _mm(normed, wq) + bq
    kv = _mm(ctx, wkv) + bkv                                   # fused KV projection
    attn = _heads_attention(q, kv[:, :d], kv[:, d:], num_heads)
    return _mm(attn, wo) + bo


def _sep_conv(x, w1, b1, wd, bd, w2, b2, kernel_size):
    """SeparableConv1D with causal left pad of K-1 (== F.pad((2*padding, 0)) + Conv1d).

    Conv1d is cross-correlation (no kernel flip):
        y[t, c] = sum_j wd[j, c] * h_pad[t + j, c] = sum_d wd[K-1-d, c] * h[t-d, c]
    with h[<0] = 0, implemented with pltpu.roll (sublane rotate, XLU slot) plus a
    causal mask instead of materializing a zero-padded buffer and K unaligned slices.
    """
    seq = x.shape[0]
    h = _mm(x, w1) + b1                                        # pre point-wise (1x1) conv
    inner = h.shape[-1]
    wd = wd.astype(jnp.float32)
    row = jax.lax.broadcasted_iota(jnp.int32, (seq, inner), 0)
    y = jnp.zeros((seq, inner), jnp.float32) + bd
    for d in range(min(kernel_size, seq)):                     # taps beyond seq are all-zero
        if d == 0:
            tap = h
        else:
            # roll(h, d)[t] == h[(t - d) % seq]; mask kills the wrapped rows (causal edge).
            tap = jnp.where(row >= d, pltpu.roll(h, shift=d, axis=0), 0.0)
        y = y + tap * wd[kernel_size - 1 - d:kernel_size - d, :]
    return _mm(y, w2) + b2                                     # post point-wise (1x1) conv


# ---------------------------------------------------------------------------
# Pallas kernel bodies (one per fused sub-layer)
# ---------------------------------------------------------------------------

def _attn_dual_kernel(x_ref, ctx_ref, g_ref,
                      s_wqkv_ref, s_bqkv_ref, s_wo_ref, s_bo_ref,
                      c_wq_ref, c_bq_ref, c_wkv_ref, c_bkv_ref, c_wo_ref, c_bo_ref,
                      o_ref, *, num_heads_self, num_heads_cross, eps):
    x = x_ref[...].astype(jnp.float32)
    ctx = ctx_ref[...].astype(jnp.float32)
    normed = _rms_normalize(x, g_ref[...].astype(jnp.float32), eps)
    self_out = _self_attention(normed, s_wqkv_ref[...], s_bqkv_ref[...],
                               s_wo_ref[...], s_bo_ref[...], num_heads_self)
    cross_out = _cross_attention(normed, ctx, c_wq_ref[...], c_bq_ref[...],
                                 c_wkv_ref[...], c_bkv_ref[...],
                                 c_wo_ref[...], c_bo_ref[...], num_heads_cross)
    o_ref[...] = (self_out + cross_out + x).astype(o_ref.dtype)


def _self_attn_block_kernel(x_ref, g_ref, wqkv_ref, bqkv_ref, wo_ref, bo_ref, o_ref,
                            *, num_heads, eps):
    x = x_ref[...].astype(jnp.float32)
    normed = _rms_normalize(x, g_ref[...].astype(jnp.float32), eps)
    out = _self_attention(normed, wqkv_ref[...], bqkv_ref[...],
                          wo_ref[...], bo_ref[...], num_heads)
    o_ref[...] = (out + x).astype(o_ref.dtype)


def _cross_attn_block_kernel(x_ref, ctx_ref, g_ref, wq_ref, bq_ref, wkv_ref, bkv_ref,
                             wo_ref, bo_ref, o_ref, *, num_heads, eps):
    x = x_ref[...].astype(jnp.float32)
    ctx = ctx_ref[...].astype(jnp.float32)
    normed = _rms_normalize(x, g_ref[...].astype(jnp.float32), eps)
    out = _cross_attention(normed, ctx, wq_ref[...], bq_ref[...],
                           wkv_ref[...], bkv_ref[...], wo_ref[...], bo_ref[...], num_heads)
    o_ref[...] = (out + x).astype(o_ref.dtype)


def _conv_block_kernel(a_ref, g1_ref, g2_ref,
                       lw1, lb1, lwd, lbd, lw2, lb2,
                       rw1, rb1, rwd, rbd, rw2, rb2,
                       mw1, mb1, mwd, mbd, mw2, mb2,
                       o_ref, *, kl, kr, km, eps):
    a = a_ref[...].astype(jnp.float32)
    normed = _rms_normalize(a, g1_ref[...].astype(jnp.float32), eps)
    sep_l = _sep_conv(normed, lw1[...], lb1[...], lwd[...], lbd[...], lw2[...], lb2[...], kl)
    sep_l = jnp.maximum(sep_l, 0.0)                            # F.relu
    sep_r = _sep_conv(normed, rw1[...], rb1[...], rwd[...], rbd[...], rw2[...], rb2[...], kr)
    mid = _rms_normalize(sep_l + sep_r, g2_ref[...].astype(jnp.float32), eps)
    sep_m = _sep_conv(mid, mw1[...], mb1[...], mwd[...], mbd[...], mw2[...], mb2[...], km)
    o_ref[...] = (sep_m + a).astype(o_ref.dtype)


def _ffn_block_kernel(x_ref, g_ref, w1_ref, b1_ref, w2_ref, b2_ref, o_ref, *, eps):
    x = x_ref[...].astype(jnp.float32)
    normed = _rms_normalize(x, g_ref[...].astype(jnp.float32), eps)
    h = _mm(normed, w1_ref[...]) + b1_ref[...]
    h = h * (1.0 / (1.0 + jnp.exp(-h)))                        # SiLU in f32
    y = _mm(h, w2_ref[...]) + b2_ref[...]
    o_ref[...] = (y + x).astype(o_ref.dtype)


# ---------------------------------------------------------------------------
# pallas_call wrappers
# ---------------------------------------------------------------------------

def _rep2(i):
    return (0, 0)


def attn_dual_block(x, context, g, p_self, p_cross, num_heads_self, num_heads_cross,
                    eps=_EPS):
    B, S, D = x.shape
    Sc = context.shape[1]
    kernel = functools.partial(_attn_dual_kernel, num_heads_self=num_heads_self,
                               num_heads_cross=num_heads_cross, eps=eps)
    return pl.pallas_call(
        kernel,
        out_shape=jax.ShapeDtypeStruct((B, S, D), x.dtype),
        grid=(B,),
        in_specs=[
            pl.BlockSpec((None, S, D), lambda b: (b, 0, 0)),
            pl.BlockSpec((None, Sc, D), lambda b: (b, 0, 0)),
            pl.BlockSpec((1, D), _rep2),
            pl.BlockSpec((D, 3 * D), _rep2), pl.BlockSpec((1, 3 * D), _rep2),
            pl.BlockSpec((D, D), _rep2), pl.BlockSpec((1, D), _rep2),
            pl.BlockSpec((D, D), _rep2), pl.BlockSpec((1, D), _rep2),
            pl.BlockSpec((D, 2 * D), _rep2), pl.BlockSpec((1, 2 * D), _rep2),
            pl.BlockSpec((D, D), _rep2), pl.BlockSpec((1, D), _rep2),
        ],
        out_specs=pl.BlockSpec((None, S, D), lambda b: (b, 0, 0)),
        compiler_params=pltpu.CompilerParams(dimension_semantics=("parallel",)),
    )(x, context, g.reshape(1, D),
      p_self['wqkv_t'], p_self['bqkv'].reshape(1, 3 * D),
      p_self['wo_t'], p_self['bo'].reshape(1, D),
      p_cross['wq_t'], p_cross['bq'].reshape(1, D),
      p_cross['wkv_t'], p_cross['bkv'].reshape(1, 2 * D),
      p_cross['wo_t'], p_cross['bo'].reshape(1, D))


def self_attn_block(x, g, p, num_heads, eps=_EPS):
    B, S, D = x.shape
    kernel = functools.partial(_self_attn_block_kernel, num_heads=num_heads, eps=eps)
    return pl.pallas_call(
        kernel,
        out_shape=jax.ShapeDtypeStruct((B, S, D), x.dtype),
        grid=(B,),
        in_specs=[
            pl.BlockSpec((None, S, D), lambda b: (b, 0, 0)),
            pl.BlockSpec((1, D), _rep2),
            pl.BlockSpec((D, 3 * D), _rep2), pl.BlockSpec((1, 3 * D), _rep2),
            pl.BlockSpec((D, D), _rep2), pl.BlockSpec((1, D), _rep2),
        ],
        out_specs=pl.BlockSpec((None, S, D), lambda b: (b, 0, 0)),
        compiler_params=pltpu.CompilerParams(dimension_semantics=("parallel",)),
    )(x, g.reshape(1, D), p['wqkv_t'], p['bqkv'].reshape(1, 3 * D),
      p['wo_t'], p['bo'].reshape(1, D))


def cross_attn_block(x, context, g, p, num_heads, eps=_EPS):
    B, S, D = x.shape
    Sc = context.shape[1]
    kernel = functools.partial(_cross_attn_block_kernel, num_heads=num_heads, eps=eps)
    return pl.pallas_call(
        kernel,
        out_shape=jax.ShapeDtypeStruct((B, S, D), x.dtype),
        grid=(B,),
        in_specs=[
            pl.BlockSpec((None, S, D), lambda b: (b, 0, 0)),
            pl.BlockSpec((None, Sc, D), lambda b: (b, 0, 0)),
            pl.BlockSpec((1, D), _rep2),
            pl.BlockSpec((D, D), _rep2), pl.BlockSpec((1, D), _rep2),
            pl.BlockSpec((D, 2 * D), _rep2), pl.BlockSpec((1, 2 * D), _rep2),
            pl.BlockSpec((D, D), _rep2), pl.BlockSpec((1, D), _rep2),
        ],
        out_specs=pl.BlockSpec((None, S, D), lambda b: (b, 0, 0)),
        compiler_params=pltpu.CompilerParams(dimension_semantics=("parallel",)),
    )(x, context, g.reshape(1, D),
      p['wq_t'], p['bq'].reshape(1, D),
      p['wkv_t'], p['bkv'].reshape(1, 2 * D),
      p['wo_t'], p['bo'].reshape(1, D))


def conv_block(attended, g1, g2, p_l, p_r, p_m, eps=_EPS):
    B, S, D = attended.shape
    il, ir, im = p_l['w1_t'].shape[1], p_r['w1_t'].shape[1], p_m['w1_t'].shape[1]
    kl, kr, km = p_l['wd'].shape[0], p_r['wd'].shape[0], p_m['wd'].shape[0]
    kernel = functools.partial(_conv_block_kernel, kl=kl, kr=kr, km=km, eps=eps)

    def sep_specs(inner, K):
        return [pl.BlockSpec((D, inner), _rep2), pl.BlockSpec((1, inner), _rep2),
                pl.BlockSpec((K, inner), _rep2), pl.BlockSpec((1, inner), _rep2),
                pl.BlockSpec((inner, D), _rep2), pl.BlockSpec((1, D), _rep2)]

    def sep_args(p, inner):
        return [p['w1_t'], p['b1'].reshape(1, inner), p['wd'], p['bd'].reshape(1, inner),
                p['w2_t'], p['b2'].reshape(1, D)]

    return pl.pallas_call(
        kernel,
        out_shape=jax.ShapeDtypeStruct((B, S, D), attended.dtype),
        grid=(B,),
        in_specs=[pl.BlockSpec((None, S, D), lambda b: (b, 0, 0)),
                  pl.BlockSpec((1, D), _rep2), pl.BlockSpec((1, D), _rep2)]
                 + sep_specs(il, kl) + sep_specs(ir, kr) + sep_specs(im, km),
        out_specs=pl.BlockSpec((None, S, D), lambda b: (b, 0, 0)),
        compiler_params=pltpu.CompilerParams(dimension_semantics=("parallel",)),
    )(attended, g1.reshape(1, D), g2.reshape(1, D),
      *sep_args(p_l, il), *sep_args(p_r, ir), *sep_args(p_m, im))


def _pick_row_tile(n):
    # Largest tile that divides n while keeping >= 2 grid steps (megacore / pipelining)
    # and a bounded VMEM footprint for the FFN intermediate.
    for t in (512, 256, 128, 64, 32, 16, 8):
        if n % t == 0 and n // t >= 2:
            return t
    return n


def ffn_block(x, g, p, eps=_EPS):
    B, S, D = x.shape
    H = p['w1_t'].shape[1]
    N = B * S
    T = _pick_row_tile(N)
    kernel = functools.partial(_ffn_block_kernel, eps=eps)
    y = pl.pallas_call(
        kernel,
        out_shape=jax.ShapeDtypeStruct((N, D), x.dtype),
        grid=(N // T,),
        in_specs=[pl.BlockSpec((T, D), lambda i: (i, 0)),
                  pl.BlockSpec((1, D), _rep2),
                  pl.BlockSpec((D, H), _rep2), pl.BlockSpec((1, H), _rep2),
                  pl.BlockSpec((H, D), _rep2), pl.BlockSpec((1, D), _rep2)],
        out_specs=pl.BlockSpec((T, D), lambda i: (i, 0)),
        compiler_params=pltpu.CompilerParams(dimension_semantics=("parallel",)),
    )(x.reshape(N, D), g.reshape(1, D), p['w1_t'], p['b1'].reshape(1, H),
      p['w2_t'], p['b2'].reshape(1, D))
    return y.reshape(B, S, D)


# ---------------------------------------------------------------------------
# Forward pass mirroring ET_Decoder_Block.forward (5 fused pallas_calls)
# ---------------------------------------------------------------------------

def et_decoder_block(x, context, params, num_heads):
    attended = attn_dual_block(x, context, params['ln'][0],
                               params['self1'], params['cross1'],
                               num_heads_self=num_heads * 2, num_heads_cross=num_heads)
    sep_attended = conv_block(attended, params['ln'][1], params['ln'][2],
                              params['sepl'], params['sepr'], params['sepm'])
    self_attn2 = self_attn_block(sep_attended, params['ln'][3], params['self2'], num_heads)
    cross2 = cross_attn_block(self_attn2, context, params['ln'][4], params['cross2'],
                              num_heads)
    return ffn_block(cross2, params['ln'][5], params['ffn'])


# ---------------------------------------------------------------------------
# Deterministic synthetic parameters (shapes mirror the PyTorch __init__)
# ---------------------------------------------------------------------------

def init_params(key, d_model, ff_hidden):
    keys = iter(jax.random.split(key, 64))

    def w(shape, scale=0.05):
        return jax.random.normal(next(keys), shape, jnp.float32) * scale

    def self_attn_params():
        # QKV fused into one (D, 3D) weight; all weights pre-transposed (in, out).
        return dict(wqkv_t=w((d_model, 3 * d_model)), bqkv=w((3 * d_model,)),
                    wo_t=w((d_model, d_model)), bo=w((d_model,)))

    def cross_attn_params():
        # Q separate (from x), KV fused (from context).
        return dict(wq_t=w((d_model, d_model)), bq=w((d_model,)),
                    wkv_t=w((d_model, 2 * d_model)), bkv=w((2 * d_model,)),
                    wo_t=w((d_model, d_model)), bo=w((d_model,)))

    def sep_params(inner, K):
        return dict(w1_t=w((d_model, inner)), b1=w((inner,)),
                    wd=w((K, inner)), bd=w((inner,)),
                    w2_t=w((inner, d_model)), b2=w((d_model,)))

    return dict(
        self1=self_attn_params(),     # num_heads * 2 heads
        self2=self_attn_params(),
        cross1=cross_attn_params(),
        cross2=cross_attn_params(),
        ln=[jnp.ones((d_model,), jnp.float32) for _ in range(6)],
        sepl=sep_params(2 * d_model, 11),
        sepr=sep_params(d_model // 2, 7),
        sepm=sep_params(d_model, 7),
        ffn=dict(w1_t=w((d_model, d_model * ff_hidden)),
                 b1=w((d_model * ff_hidden,)),
                 w2_t=w((d_model * ff_hidden, d_model)),
                 b2=w((d_model,))),
    )


if __name__ == "__main__":
    d_model, num_heads, ff_hidden = 32, 8, 4
    B, S, S_ctx = 2, 8, 8

    key = jax.random.PRNGKey(0)
    kx, kc, kp = jax.random.split(key, 3)
    x = jax.random.normal(kx, (B, S, d_model), jnp.float32)
    context = jax.random.normal(kc, (B, S_ctx, d_model), jnp.float32)
    params = init_params(kp, d_model, ff_hidden)

    fwd = jax.jit(et_decoder_block, static_argnums=3)
    out = jax.block_until_ready(fwd(x, context, params, num_heads))

    assert out.shape == (B, S, d_model), out.shape
    assert bool(jnp.all(jnp.isfinite(out)))
    print("KERNEL_OK")
</pallas_src>

<mosaic_0001>
module attributes {stable_mosaic.version = 11 : i64} {
  func.func @_conv_block_kernel(%arg0: i32, %arg1: memref<1x8x32xf32, #tpu.memory_space<vmem>>, %arg2: memref<1x32xf32, #tpu.memory_space<vmem>>, %arg3: memref<1x32xf32, #tpu.memory_space<vmem>>, %arg4: memref<32x64xf32, #tpu.memory_space<vmem>>, %arg5: memref<1x64xf32, #tpu.memory_space<vmem>>, %arg6: memref<11x64xf32, #tpu.memory_space<vmem>>, %arg7: memref<1x64xf32, #tpu.memory_space<vmem>>, %arg8: memref<64x32xf32, #tpu.memory_space<vmem>>, %arg9: memref<1x32xf32, #tpu.memory_space<vmem>>, %arg10: memref<32x16xf32, #tpu.memory_space<vmem>>, %arg11: memref<1x16xf32, #tpu.memory_space<vmem>>, %arg12: memref<7x16xf32, #tpu.memory_space<vmem>>, %arg13: memref<1x16xf32, #tpu.memory_space<vmem>>, %arg14: memref<16x32xf32, #tpu.memory_space<vmem>>, %arg15: memref<1x32xf32, #tpu.memory_space<vmem>>, %arg16: memref<32x32xf32, #tpu.memory_space<vmem>>, %arg17: memref<1x32xf32, #tpu.memory_space<vmem>>, %arg18: memref<7x32xf32, #tpu.memory_space<vmem>>, %arg19: memref<1x32xf32, #tpu.memory_space<vmem>>, %arg20: memref<32x32xf32, #tpu.memory_space<vmem>>, %arg21: memref<1x32xf32, #tpu.memory_space<vmem>>, %arg22: memref<1x8x32xf32, #tpu.memory_space<vmem>>) attributes {dimension_semantics = [#tpu.dimension_semantics<parallel>], iteration_bounds = array<i64: 2>, scalar_prefetch = 0 : i64, scratch_operands = 0 : i64, tpu.core_type = #tpu.core_type<tc>, window_params = [{transform_indices = @transform_0, window_bounds = array<i64: 1, 8, 32>}, {pipeline_mode = #tpu.pipeline_mode<synchronous>, transform_indices = @transform_1, window_bounds = array<i64: 1, 32>}, {pipeline_mode = #tpu.pipeline_mode<synchronous>, transform_indices = @transform_2, window_bounds = array<i64: 1, 32>}, {pipeline_mode = #tpu.pipeline_mode<synchronous>, transform_indices = @transform_3, window_bounds = array<i64: 32, 64>}, {pipeline_mode = #tpu.pipeline_mode<synchronous>, transform_indices = @transform_4, window_bounds = array<i64: 1, 64>}, {pipeline_mode = #tpu.pipeline_mode<synchronous>, transform_indices = @transform_5, window_bounds = array<i64: 11, 64>}, {pipeline_mode = #tpu.pipeline_mode<synchronous>, transform_indices = @transform_6, window_bounds = array<i64: 1, 64>}, {pipeline_mode = #tpu.pipeline_mode<synchronous>, transform_indices = @transform_7, window_bounds = array<i64: 64, 32>}, {pipeline_mode = #tpu.pipeline_mode<synchronous>, transform_indices = @transform_8, window_bounds = array<i64: 1, 32>}, {pipeline_mode = #tpu.pipeline_mode<synchronous>, transform_indices = @transform_9, window_bounds = array<i64: 32, 16>}, {pipeline_mode = #tpu.pipeline_mode<synchronous>, transform_indices = @transform_10, window_bounds = array<i64: 1, 16>}, {pipeline_mode = #tpu.pipeline_mode<synchronous>, transform_indices = @transform_11, window_bounds = array<i64: 7, 16>}, {pipeline_mode = #tpu.pipeline_mode<synchronous>, transform_indices = @transform_12, window_bounds = array<i64: 1, 16>}, {pipeline_mode = #tpu.pipeline_mode<synchronous>, transform_indices = @transform_13, window_bounds = array<i64: 16, 32>}, {pipeline_mode = #tpu.pipeline_mode<synchronous>, transform_indices = @transform_14, window_bounds = array<i64: 1, 32>}, {pipeline_mode = #tpu.pipeline_mode<synchronous>, transform_indices = @transform_15, window_bounds = array<i64: 32, 32>}, {pipeline_mode = #tpu.pipeline_mode<synchronous>, transform_indices = @transform_16, window_bounds = array<i64: 1, 32>}, {pipeline_mode = #tpu.pipeline_mode<synchronous>, transform_indices = @transform_17, window_bounds = array<i64: 7, 32>}, {pipeline_mode = #tpu.pipeline_mode<synchronous>, transform_indices = @transform_18, window_bounds = array<i64: 1, 32>}, {pipeline_mode = #tpu.pipeline_mode<synchronous>, transform_indices = @transform_19, window_bounds = array<i64: 32, 32>}, {pipeline_mode = #tpu.pipeline_mode<synchronous>, transform_indices = @transform_20, window_bounds = array<i64: 1, 32>}, {transform_indices = @transform_21, window_bounds = array<i64: 1, 8, 32>}]} {
    %c0 = arith.constant 0 : index
    %c0_0 = arith.constant 0 : index
    %c0_1 = arith.constant 0 : index
    %0 = vector.load %arg1[%c0, %c0_0, %c0_1] : memref<1x8x32xf32, #tpu.memory_space<vmem>>, vector<1x8x32xf32>
    %1 = vector.shape_cast %0 : vector<1x8x32xf32> to vector<8x32xf32>
    %c0_2 = arith.constant 0 : index
    %c0_3 = arith.constant 0 : index
    %2 = vector.load %arg2[%c0_2, %c0_3] : memref<1x32xf32, #tpu.memory_space<vmem>>, vector<1x32xf32>
    %3 = arith.mulf %1, %1 : vector<8x32xf32>
    %cst = arith.constant dense<0.000000e+00> : vector<8xf32>
    %4 = vector.multi_reduction <add>, %3, %cst [1] : vector<8x32xf32> to vector<8xf32>
    %5 = vector.shape_cast %4 : vector<8xf32> to vector<8x1xf32>
    %cst_4 = arith.constant 3.200000e+01 : f32
    %6 = vector.broadcast %cst_4 : f32 to vector<8x1xf32>
    %7 = arith.divf %5, %6 : vector<8x1xf32>
    %8 = math.sqrt %7 : vector<8x1xf32>
    %cst_5 = arith.constant 9.99999993E-9 : f32
    %9 = vector.broadcast %cst_5 : f32 to vector<8x1xf32>
    %10 = arith.maximumf %8, %9 : vector<8x1xf32>
    %11 = vector.broadcast %10 : vector<8x1xf32> to vector<8x32xf32>
    %12 = arith.divf %1, %11 : vector<8x32xf32>
    %13 = vector.broadcast %2 : vector<1x32xf32> to vector<8x32xf32>
    %14 = arith.mulf %12, %13 : vector<8x32xf32>
    %c0_6 = arith.constant 0 : index
    %c0_7 = arith.constant 0 : index
    %15 = vector.load %arg4[%c0_6, %c0_7] : memref<32x64xf32, #tpu.memory_space<vmem>>, vector<32x64xf32>
    %c0_8 = arith.constant 0 : index
    %c0_9 = arith.constant 0 : index
    %16 = vector.load %arg5[%c0_8, %c0_9] : memref<1x64xf32, #tpu.memory_space<vmem>>, vector<1x64xf32>
    %c0_10 = arith.constant 0 : index
    %c0_11 = arith.constant 0 : index
    %17 = vector.load %arg6[%c0_10, %c0_11] : memref<11x64xf32, #tpu.memory_space<vmem>>, vector<11x64xf32>
    %c0_12 = arith.constant 0 : index
    %c0_13 = arith.constant 0 : index
    %18 = vector.load %arg7[%c0_12, %c0_13] : memref<1x64xf32, #tpu.memory_space<vmem>>, vector<1x64xf32>
    %c0_14 = arith.constant 0 : index
    %c0_15 = arith.constant 0 : index
    %19 = vector.load %arg8[%c0_14, %c0_15] : memref<64x32xf32, #tpu.memory_space<vmem>>, vector<64x32xf32>
    %c0_16 = arith.constant 0 : index
    %c0_17 = arith.constant 0 : index
    %20 = vector.load %arg9[%c0_16, %c0_17] : memref<1x32xf32, #tpu.memory_space<vmem>>, vector<1x32xf32>
    %21 = arith.truncf %14 : vector<8x32xf32> to vector<8x32xbf16>
    %22 = arith.truncf %15 : vector<32x64xf32> to vector<32x64xbf16>
    %cst_18 = arith.constant dense<0.000000e+00> : vector<8x64xf32>
    %23 = tpu.matmul %21, %22, %cst_18 {dimension_numbers = #tpu.dot_dimension_numbers<[1], [0], [0], [1], [0, 0, 1, 1], [], []>} : vector<8x32xbf16>, vector<32x64xbf16>, vector<8x64xf32> -> vector<8x64xf32>
    %24 = vector.broadcast %16 : vector<1x64xf32> to vector<8x64xf32>
    %25 = arith.addf %23, %24 : vector<8x64xf32>
    %26 = tpu.iota {dimensions = array<i32: 0>} : vector<8x64xi32>
    %cst_19 = arith.constant 0.000000e+00 : f32
    %27 = vector.broadcast %cst_19 : f32 to vector<8x64xf32>
    %28 = vector.broadcast %18 : vector<1x64xf32> to vector<8x64xf32>
    %29 = arith.addf %27, %28 : vector<8x64xf32>
    %30 = vector.extract_strided_slice %17 {offsets = [10, 0], sizes = [1, 64], strides = [1, 1]} : vector<11x64xf32> to vector<1x64xf32>
    %31 = vector.broadcast %30 : vector<1x64xf32> to vector<8x64xf32>
    %32 = arith.mulf %25, %31 : vector<8x64xf32>
    %33 = arith.addf %29, %32 : vector<8x64xf32>
    %c1_i32 = arith.constant 1 : i32
    %34 = vector.broadcast %c1_i32 : i32 to vector<8x64xi32>
    %35 = arith.cmpi sge, %26, %34 : vector<8x64xi32>
    %c1_i32_20 = arith.constant 1 : i32
    %36 = tpu.dynamic_rotate %25 by %c1_i32_20 dim 0 : vector<8x64xf32>, i32 -> vector<8x64xf32>
    %cst_21 = arith.constant 0.000000e+00 : f32
    %37 = vector.broadcast %cst_21 : f32 to vector<8x64xf32>
    %38 = arith.select %35, %36, %37 : vector<8x64xi1>, vector<8x64xf32>
    %39 = vector.extract_strided_slice %17 {offsets = [9, 0], sizes = [1, 64], strides = [1, 1]} : vector<11x64xf32> to vector<1x64xf32>
    %40 = vector.broadcast %39 : vector<1x64xf32> to vector<8x64xf32>
    %41 = arith.mulf %38, %40 : vector<8x64xf32>
    %42 = arith.addf %33, %41 : vector<8x64xf32>
    %c2_i32 = arith.constant 2 : i32
    %43 = vector.broadcast %c2_i32 : i32 to vector<8x64xi32>
    %44 = arith.cmpi sge, %26, %43 : vector<8x64xi32>
    %c2_i32_22 = arith.constant 2 : i32
    %45 = tpu.dynamic_rotate %25 by %c2_i32_22 dim 0 : vector<8x64xf32>, i32 -> vector<8x64xf32>
    %cst_23 = arith.constant 0.000000e+00 : f32
    %46 = vector.broadcast %cst_23 : f32 to vector<8x64xf32>
    %47 = arith.select %44, %45, %46 : vector<8x64xi1>, vector<8x64xf32>
    %48 = vector.extract_strided_slice %17 {offsets = [8, 0], sizes = [1, 64], strides = [1, 1]} : vector<11x64xf32> to vector<1x64xf32>
    %49 = vector.broadcast %48 : vector<1x64xf32> to vector<8x64xf32>
    %50 = arith.mulf %47, %49 : vector<8x64xf32>
    %51 = arith.addf %42, %50 : vector<8x64xf32>
    %c3_i32 = arith.constant 3 : i32
    %52 = vector.broadcast %c3_i32 : i32 to vector<8x64xi32>
    %53 = arith.cmpi sge, %26, %52 : vector<8x64xi32>
    %c3_i32_24 = arith.constant 3 : i32
    %54 = tpu.dynamic_rotate %25 by %c3_i32_24 dim 0 : vector<8x64xf32>, i32 -> vector<8x64xf32>
    %cst_25 = arith.constant 0.000000e+00 : f32
    %55 = vector.broadcast %cst_25 : f32 to vector<8x64xf32>
    %56 = arith.select %53, %54, %55 : vector<8x64xi1>, vector<8x64xf32>
    %57 = vector.extract_strided_slice %17 {offsets = [7, 0], sizes = [1, 64], strides = [1, 1]} : vector<11x64xf32> to vector<1x64xf32>
    %58 = vector.broadcast %57 : vector<1x64xf32> to vector<8x64xf32>
    %59 = arith.mulf %56, %58 : vector<8x64xf32>
    %60 = arith.addf %51, %59 : vector<8x64xf32>
    %c4_i32 = arith.constant 4 : i32
    %61 = vector.broadcast %c4_i32 : i32 to vector<8x64xi32>
    %62 = arith.cmpi sge, %26, %61 : vector<8x64xi32>
    %c4_i32_26 = arith.constant 4 : i32
    %63 = tpu.dynamic_rotate %25 by %c4_i32_26 dim 0 : vector<8x64xf32>, i32 -> vector<8x64xf32>
    %cst_27 = arith.constant 0.000000e+00 : f32
    %64 = vector.broadcast %cst_27 : f32 to vector<8x64xf32>
    %65 = arith.select %62, %63, %64 : vector<8x64xi1>, vector<8x64xf32>
    %66 = vector.extract_strided_slice %17 {offsets = [6, 0], sizes = [1, 64], strides = [1, 1]} : vector<11x64xf32> to vector<1x64xf32>
    %67 = vector.broadcast %66 : vector<1x64xf32> to vector<8x64xf32>
    %68 = arith.mulf %65, %67 : vector<8x64xf32>
    %69 = arith.addf %60, %68 : vector<8x64xf32>
    %c5_i32 = arith.constant 5 : i32
    %70 = vector.broadcast %c5_i32 : i32 to vector<8x64xi32>
    %71 = arith.cmpi sge, %26, %70 : vector<8x64xi32>
    %c5_i32_28 = arith.constant 5 : i32
    %72 = tpu.dynamic_rotate %25 by %c5_i32_28 dim 0 : vector<8x64xf32>, i32 -> vector<8x64xf32>
    %cst_29 = arith.constant 0.000000e+00 : f32
    %73 = vector.broadcast %cst_29 : f32 to vector<8x64xf32>
    %74 = arith.select %71, %72, %73 : vector<8x64xi1>, vector<8x64xf32>
    %75 = vector.extract_strided_slice %17 {offsets = [5, 0], sizes = [1, 64], strides = [1, 1]} : vector<11x64xf32> to vector<1x64xf32>
    %76 = vector.broadcast %75 : vector<1x64xf32> to vector<8x64xf32>
    %77 = arith.mulf %74, %76 : vector<8x64xf32>
    %78 = arith.addf %69, %77 : vector<8x64xf32>
    %c6_i32 = arith.constant 6 : i32
    %79 = vector.broadcast %c6_i32 : i32 to vector<8x64xi32>
    %80 = arith.cmpi sge, %26, %79 : vector<8x64xi32>
    %c6_i32_30 = arith.constant 6 : i32
    %81 = tpu.dynamic_rotate %25 by %c6_i32_30 dim 0 : vector<8x64xf32>, i32 -> vector<8x64xf32>
    %cst_31 = arith.constant 0.000000e+00 : f32
    %82 = vector.broadcast %cst_31 : f32 to vector<8x64xf32>
    %83 = arith.select %80, %81, %82 : vector<8x64xi1>, vector<8x64xf32>
    %84 = vector.extract_strided_slice %17 {offsets = [4, 0], sizes = [1, 64], strides = [1, 1]} : vector<11x64xf32> to vector<1x64xf32>
    %85 = vector.broadcast %84 : vector<1x64xf32> to vector<8x64xf32>
    %86 = arith.mulf %83, %85 : vector<8x64xf32>
    %87 = arith.addf %78, %86 : vector<8x64xf32>
    %c7_i32 = arith.constant 7 : i32
    %88 = vector.broadcast %c7_i32 : i32 to vector<8x64xi32>
    %89 = arith.cmpi sge, %26, %88 : vector<8x64xi32>
    %c7_i32_32 = arith.constant 7 : i32
    %90 = tpu.dynamic_rotate %25 by %c7_i32_32 dim 0 : vector<8x64xf32>, i32 -> vector<8x64xf32>
    %cst_33 = arith.constant 0.000000e+00 : f32
    %91 = vector.broadcast %cst_33 : f32 to vector<8x64xf32>
    %92 = arith.select %89, %90, %91 : vector<8x64xi1>, vector<8x64xf32>
    %93 = vector.extract_strided_slice %17 {offsets = [3, 0], sizes = [1, 64], strides = [1, 1]} : vector<11x64xf32> to vector<1x64xf32>
    %94 = vector.broadcast %93 : vector<1x64xf32> to vector<8x64xf32>
    %95 = arith.mulf %92, %94 : vector<8x64xf32>
    %96 = arith.addf %87, %95 : vector<8x64xf32>
    %97 = arith.truncf %96 : vector<8x64xf32> to vector<8x64xbf16>
    %98 = arith.truncf %19 : vector<64x32xf32> to vector<64x32xbf16>
    %cst_34 = arith.constant dense<0.000000e+00> : vector<8x32xf32>
    %99 = tpu.matmul %97, %98, %cst_34 {dimension_numbers = #tpu.dot_dimension_numbers<[1], [0], [0], [1], [0, 0, 1, 1], [], []>} : vector<8x64xbf16>, vector<64x32xbf16>, vector<8x32xf32> -> vector<8x32xf32>
    %100 = vector.broadcast %20 : vector<1x32xf32> to vector<8x32xf32>
    %101 = arith.addf %99, %100 : vector<8x32xf32>
    %cst_35 = arith.constant 0.000000e+00 : f32
    %102 = vector.broadcast %cst_35 : f32 to vector<8x32xf32>
    %103 = arith.maximumf %101, %102 : vector<8x32xf32>
    %c0_36 = arith.constant 0 : index
    %c0_37 = arith.constant 0 : index
    %104 = vector.load %arg10[%c0_36, %c0_37] : memref<32x16xf32, #tpu.memory_space<vmem>>, vector<32x16xf32>
    %c0_38 = arith.constant 0 : index
    %c0_39 = arith.constant 0 : index
    %105 = vector.load %arg11[%c0_38, %c0_39] : memref<1x16xf32, #tpu.memory_space<vmem>>, vector<1x16xf32>
    %c0_40 = arith.constant 0 : index
    %c0_41 = arith.constant 0 : index
    %106 = vector.load %arg12[%c0_40, %c0_41] : memref<7x16xf32, #tpu.memory_space<vmem>>, vector<7x16xf32>
    %c0_42 = arith.constant 0 : index
    %c0_43 = arith.constant 0 : index
    %107 = vector.load %arg13[%c0_42, %c0_43] : memref<1x16xf32, #tpu.memory_space<vmem>>, vector<1x16xf32>
    %c0_44 = arith.constant 0 : index
    %c0_45 = arith.constant 0 : index
    %108 = vector.load %arg14[%c0_44, %c0_45] : memref<16x32xf32, #tpu.memory_space<vmem>>, vector<16x32xf32>
    %c0_46 = arith.constant 0 : index
    %c0_47 = arith.constant 0 : index
    %109 = vector.load %arg15[%c0_46, %c0_47] : memref<1x32xf32, #tpu.memory_space<vmem>>, vector<1x32xf32>
    %110 = arith.truncf %14 : vector<8x32xf32> to vector<8x32xbf16>
    %111 = arith.truncf %104 : vector<32x16xf32> to vector<32x16xbf16>
    %cst_48 = arith.constant dense<0.000000e+00> : vector<8x16xf32>
    %112 = tpu.matmul %110, %111, %cst_48 {dimension_numbers = #tpu.dot_dimension_numbers<[1], [0], [0], [1], [0, 0, 1, 1], [], []>} : vector<8x32xbf16>, vector<32x16xbf16>, vector<8x16xf32> -> vector<8x16xf32>
    %113 = vector.broadcast %105 : vector<1x16xf32> to vector<8x16xf32>
    %114 = arith.addf %112, %113 : vector<8x16xf32>
    %115 = tpu.iota {dimensions = array<i32: 0>} : vector<8x16xi32>
    %cst_49 = arith.constant 0.000000e+00 : f32
    %116 = vector.broadcast %cst_49 : f32 to vector<8x16xf32>
    %117 = vector.broadcast %107 : vector<1x16xf32> to vector<8x16xf32>
    %118 = arith.addf %116, %117 : vector<8x16xf32>
    %119 = vector.extract_strided_slice %106 {offsets = [6, 0], sizes = [1, 16], strides = [1, 1]} : vector<7x16xf32> to vector<1x16xf32>
    %120 = vector.broadcast %119 : vector<1x16xf32> to vector<8x16xf32>
    %121 = arith.mulf %114, %120 : vector<8x16xf32>
    %122 = arith.addf %118, %121 : vector<8x16xf32>
    %c1_i32_50 = arith.constant 1 : i32
    %123 = vector.broadcast %c1_i32_50 : i32 to vector<8x16xi32>
    %124 = arith.cmpi sge, %115, %123 : vector<8x16xi32>
    %c1_i32_51 = arith.constant 1 : i32
    %125 = tpu.dynamic_rotate %114 by %c1_i32_51 dim 0 : vector<8x16xf32>, i32 -> vector<8x16xf32>
    %cst_52 = arith.constant 0.000000e+00 : f32
    %126 = vector.broadcast %cst_52 : f32 to vector<8x16xf32>
    %127 = arith.select %124, %125, %126 : vector<8x16xi1>, vector<8x16xf32>
    %128 = vector.extract_strided_slice %106 {offsets = [5, 0], sizes = [1, 16], strides = [1, 1]} : vector<7x16xf32> to vector<1x16xf32>
    %129 = vector.broadcast %128 : vector<1x16xf32> to vector<8x16xf32>
    %130 = arith.mulf %127, %129 : vector<8x16xf32>
    %131 = arith.addf %122, %130 : vector<8x16xf32>
    %c2_i32_53 = arith.constant 2 : i32
    %132 = vector.broadcast %c2_i32_53 : i32 to vector<8x16xi32>
    %133 = arith.cmpi sge, %115, %132 : vector<8x16xi32>
    %c2_i32_54 = arith.constant 2 : i32
    %134 = tpu.dynamic_rotate %114 by %c2_i32_54 dim 0 : vector<8x16xf32>, i32 -> vector<8x16xf32>
    %cst_55 = arith.constant 0.000000e+00 : f32
    %135 = vector.broadcast %cst_55 : f32 to vector<8x16xf32>
    %136 = arith.select %133, %134, %135 : vector<8x16xi1>, vector<8x16xf32>
    %137 = vector.extract_strided_slice %106 {offsets = [4, 0], sizes = [1, 16], strides = [1, 1]} : vector<7x16xf32> to vector<1x16xf32>
    %138 = vector.broadcast %137 : vector<1x16xf32> to vector<8x16xf32>
    %139 = arith.mulf %136, %138 : vector<8x16xf32>
    %140 = arith.addf %131, %139 : vector<8x16xf32>
    %c3_i32_56 = arith.constant 3 : i32
    %141 = vector.broadcast %c3_i32_56 : i32 to vector<8x16xi32>
    %142 = arith.cmpi sge, %115, %141 : vector<8x16xi32>
    %c3_i32_57 = arith.constant 3 : i32
    %143 = tpu.dynamic_rotate %114 by %c3_i32_57 dim 0 : vector<8x16xf32>, i32 -> vector<8x16xf32>
    %cst_58 = arith.constant 0.000000e+00 : f32
    %144 = vector.broadcast %cst_58 : f32 to vector<8x16xf32>
    %145 = arith.select %142, %143, %144 : vector<8x16xi1>, vector<8x16xf32>
    %146 = vector.extract_strided_slice %106 {offsets = [3, 0], sizes = [1, 16], strides = [1, 1]} : vector<7x16xf32> to vector<1x16xf32>
    %147 = vector.broadcast %146 : vector<1x16xf32> to vector<8x16xf32>
    %148 = arith.mulf %145, %147 : vector<8x16xf32>
    %149 = arith.addf %140, %148 : vector<8x16xf32>
    %c4_i32_59 = arith.constant 4 : i32
    %150 = vector.broadcast %c4_i32_59 : i32 to vector<8x16xi32>
    %151 = arith.cmpi sge, %115, %150 : vector<8x16xi32>
    %c4_i32_60 = arith.constant 4 : i32
    %152 = tpu.dynamic_rotate %114 by %c4_i32_60 dim 0 : vector<8x16xf32>, i32 -> vector<8x16xf32>
    %cst_61 = arith.constant 0.000000e+00 : f32
    %153 = vector.broadcast %cst_61 : f32 to vector<8x16xf32>
    %154 = arith.select %151, %152, %153 : vector<8x16xi1>, vector<8x16xf32>
    %155 = vector.extract_strided_slice %106 {offsets = [2, 0], sizes = [1, 16], strides = [1, 1]} : vector<7x16xf32> to vector<1x16xf32>
    %156 = vector.broadcast %155 : vector<1x16xf32> to vector<8x16xf32>
    %157 = arith.mulf %154, %156 : vector<8x16xf32>
    %158 = arith.addf %149, %157 : vector<8x16xf32>
    %c5_i32_62 = arith.constant 5 : i32
    %159 = vector.broadcast %c5_i32_62 : i32 to vector<8x16xi32>
    %160 = arith.cmpi sge, %115, %159 : vector<8x16xi32>
    %c5_i32_63 = arith.constant 5 : i32
    %161 = tpu.dynamic_rotate %114 by %c5_i32_63 dim 0 : vector<8x16xf32>, i32 -> vector<8x16xf32>
    %cst_64 = arith.constant 0.000000e+00 : f32
    %162 = vector.broadcast %cst_64 : f32 to vector<8x16xf32>
    %163 = arith.select %160, %161, %162 : vector<8x16xi1>, vector<8x16xf32>
    %164 = vector.extract_strided_slice %106 {offsets = [1, 0], sizes = [1, 16], strides = [1, 1]} : vector<7x16xf32> to vector<1x16xf32>
    %165 = vector.broadcast %164 : vector<1x16xf32> to vector<8x16xf32>
    %166 = arith.mulf %163, %165 : vector<8x16xf32>
    %167 = arith.addf %158, %166 : vector<8x16xf32>
    %c6_i32_65 = arith.constant 6 : i32
    %168 = vector.broadcast %c6_i32_65 : i32 to vector<8x16xi32>
    %169 = arith.cmpi sge, %115, %168 : vector<8x16xi32>
    %c6_i32_66 = arith.constant 6 : i32
    %170 = tpu.dynamic_rotate %114 by %c6_i32_66 dim 0 : vector<8x16xf32>, i32 -> vector<8x16xf32>
    %cst_67 = arith.constant 0.000000e+00 : f32
    %171 = vector.broadcast %cst_67 : f32 to vector<8x16xf32>
    %172 = arith.select %169, %170, %171 : vector<8x16xi1>, vector<8x16xf32>
    %173 = vector.extract_strided_slice %106 {offsets = [0, 0], sizes = [1, 16], strides = [1, 1]} : vector<7x16xf32> to vector<1x16xf32>
    %174 = vector.broadcast %173 : vector<1x16xf32> to vector<8x16xf32>
    %175 = arith.mulf %172, %174 : vector<8x16xf32>
    %176 = arith.addf %167, %175 : vector<8x16xf32>
    %177 = arith.truncf %176 : vector<8x16xf32> to vector<8x16xbf16>
    %178 = arith.truncf %108 : vector<16x32xf32> to vector<16x32xbf16>
    %cst_68 = arith.constant dense<0.000000e+00> : vector<8x32xf32>
    %179 = tpu.matmul %177, %178, %cst_68 {dimension_numbers = #tpu.dot_dimension_numbers<[1], [0], [0], [1], [0, 0, 1, 1], [], []>} : vector<8x16xbf16>, vector<16x32xbf16>, vector<8x32xf32> -> vector<8x32xf32>
    %180 = vector.broadcast %109 : vector<1x32xf32> to vector<8x32xf32>
    %181 = arith.addf %179, %180 : vector<8x32xf32>
    %182 = arith.addf %103, %181 : vector<8x32xf32>
    %c0_69 = arith.constant 0 : index
    %c0_70 = arith.constant 0 : index
    %183 = vector.load %arg3[%c0_69, %c0_70] : memref<1x32xf32, #tpu.memory_space<vmem>>, vector<1x32xf32>
    %184 = arith.mulf %182, %182 : vector<8x32xf32>
    %cst_71 = arith.constant dense<0.000000e+00> : vector<8xf32>
    %185 = vector.multi_reduction <add>, %184, %cst_71 [1] : vector<8x32xf32> to vector<8xf32>
    %186 = vector.shape_cast %185 : vector<8xf32> to vector<8x1xf32>
    %cst_72 = arith.constant 3.200000e+01 : f32
    %187 = vector.broadcast %cst_72 : f32 to vector<8x1xf32>
    %188 = arith.divf %186, %187 : vector<8x1xf32>
    %189 = math.sqrt %188 : vector<8x1xf32>
    %cst_73 = arith.constant 9.99999993E-9 : f32
    %190 = vector.broadcast %cst_73 : f32 to vector<8x1xf32>
    %191 = arith.maximumf %189, %190 : vector<8x1xf32>
    %192 = vector.broadcast %191 : vector<8x1xf32> to vector<8x32xf32>
    %193 = arith.divf %182, %192 : vector<8x32xf32>
    %194 = vector.broadcast %183 : vector<1x32xf32> to vector<8x32xf32>
    %195 = arith.mulf %193, %194 : vector<8x32xf32>
    %c0_74 = arith.constant 0 : index
    %c0_75 = arith.constant 0 : index
    %196 = vector.load %arg16[%c0_74, %c0_75] : memref<32x32xf32, #tpu.memory_space<vmem>>, vector<32x32xf32>
    %c0_76 = arith.constant 0 : index
    %c0_77 = arith.constant 0 : index
    %197 = vector.load %arg17[%c0_76, %c0_77] : memref<1x32xf32, #tpu.memory_space<vmem>>, vector<1x32xf32>
    %c0_78 = arith.constant 0 : index
    %c0_79 = arith.constant 0 : index
    %198 = vector.load %arg18[%c0_78, %c0_79] : memref<7x32xf32, #tpu.memory_space<vmem>>, vector<7x32xf32>
    %c0_80 = arith.constant 0 : index
    %c0_81 = arith.constant 0 : index
    %199 = vector.load %arg19[%c0_80, %c0_81] : memref<1x32xf32, #tpu.memory_space<vmem>>, vector<1x32xf32>
    %c0_82 = arith.constant 0 : index
    %c0_83 = arith.constant 0 : index
    %200 = vector.load %arg20[%c0_82, %c0_83] : memref<32x32xf32, #tpu.memory_space<vmem>>, vector<32x32xf32>
    %c0_84 = arith.constant 0 : index
    %c0_85 = arith.constant 0 : index
    %201 = vector.load %arg21[%c0_84, %c0_85] : memref<1x32xf32, #tpu.memory_space<vmem>>, vector<1x32xf32>
    %202 = arith.truncf %195 : vector<8x32xf32> to vector<8x32xbf16>
    %203 = arith.truncf %196 : vector<32x32xf32> to vector<32x32xbf16>
    %cst_86 = arith.constant dense<0.000000e+00> : vector<8x32xf32>
    %204 = tpu.matmul %202, %203, %cst_86 {dimension_numbers = #tpu.dot_dimension_numbers<[1], [0], [0], [1], [0, 0, 1, 1], [], []>} : vector<8x32xbf16>, vector<32x32xbf16>, vector<8x32xf32> -> vector<8x32xf32>
    %205 = vector.broadcast %197 : vector<1x32xf32> to vector<8x32xf32>
    %206 = arith.addf %204, %205 : vector<8x32xf32>
    %207 = tpu.iota {dimensions = array<i32: 0>} : vector<8x32xi32>
    %cst_87 = arith.constant 0.000000e+00 : f32
    %208 = vector.broadcast %cst_87 : f32 to vector<8x32xf32>
    %209 = vector.broadcast %199 : vector<1x32xf32> to vector<8x32xf32>
    %210 = arith.addf %208, %209 : vector<8x32xf32>
    %211 = vector.extract_strided_slice %198 {offsets = [6, 0], sizes = [1, 32], strides = [1, 1]} : vector<7x32xf32> to vector<1x32xf32>
    %212 = vector.broadcast %211 : vector<1x32xf32> to vector<8x32xf32>
    %213 = arith.mulf %206, %212 : vector<8x32xf32>
    %214 = arith.addf %210, %213 : vector<8x32xf32>
    %c1_i32_88 = arith.constant 1 : i32
    %215 = vector.broadcast %c1_i32_88 : i32 to vector<8x32xi32>
    %216 = arith.cmpi sge, %207, %215 : vector<8x32xi32>
    %c1_i32_89 = arith.constant 1 : i32
    %217 = tpu.dynamic_rotate %206 by %c1_i32_89 dim 0 : vector<8x32xf32>, i32 -> vector<8x32xf32>
    %cst_90 = arith.constant 0.000000e+00 : f32
    %218 = vector.broadcast %cst_90 : f32 to vector<8x32xf32>
    %219 = arith.select %216, %217, %218 : vector<8x32xi1>, vector<8x32xf32>
    %220 = vector.extract_strided_slice %198 {offsets = [5, 0], sizes = [1, 32], strides = [1, 1]} : vector<7x32xf32> to vector<1x32xf32>
    %221 = vector.broadcast %220 : vector<1x32xf32> to vector<8x32xf32>
    %222 = arith.mulf %219, %221 : vector<8x32xf32>
    %223 = arith.addf %214, %222 : vector<8x32xf32>
    %c2_i32_91 = arith.constant 2 : i32
    %224 = vector.broadcast %c2_i32_91 : i32 to vector<8x32xi32>
    %225 = arith.cmpi sge, %207, %224 : vector<8x32xi32>
    %c2_i32_92 = arith.constant 2 : i32
    %226 = tpu.dynamic_rotate %206 by %c2_i32_92 dim 0 : vector<8x32xf32>, i32 -> vector<8x32xf32>
    %cst_93 = arith.constant 0.000000e+00 : f32
    %227 = vector.broadcast %cst_93 : f32 to vector<8x32xf32>
    %228 = arith.select %225, %226, %227 : vector<8x32xi1>, vector<8x32xf32>
    %229 = vector.extract_strided_slice %198 {offsets = [4, 0], sizes = [1, 32], strides = [1, 1]} : vector<7x32xf32> to vector<1x32xf32>
    %230 = vector.broadcast %229 : vector<1x32xf32> to vector<8x32xf32>
    %231 = arith.mulf %228, %230 : vector<8x32xf32>
    %232 = arith.addf %223, %231 : vector<8x32xf32>
    %c3_i32_94 = arith.constant 3 : i32
    %233 = vector.broadcast %c3_i32_94 : i32 to vector<8x32xi32>
    %234 = arith.cmpi sge, %207, %233 : vector<8x32xi32>
    %c3_i32_95 = arith.constant 3 : i32
    %235 = tpu.dynamic_rotate %206 by %c3_i32_95 dim 0 : vector<8x32xf32>, i32 -> vector<8x32xf32>
    %cst_96 = arith.constant 0.000000e+00 : f32
    %236 = vector.broadcast %cst_96 : f32 to vector<8x32xf32>
    %237 = arith.select %234, %235, %236 : vector<8x32xi1>, vector<8x32xf32>
    %238 = vector.extract_strided_slice %198 {offsets = [3, 0], sizes = [1, 32], strides = [1, 1]} : vector<7x32xf32> to vector<1x32xf32>
    %239 = vector.broadcast %238 : vector<1x32xf32> to vector<8x32xf32>
    %240 = arith.mulf %237, %239 : vector<8x32xf32>
    %241 = arith.addf %232, %240 : vector<8x32xf32>
    %c4_i32_97 = arith.constant 4 : i32
    %242 = vector.broadcast %c4_i32_97 : i32 to vector<8x32xi32>
    %243 = arith.cmpi sge, %207, %242 : vector<8x32xi32>
    %c4_i32_98 = arith.constant 4 : i32
    %244 = tpu.dynamic_rotate %206 by %c4_i32_98 dim 0 : vector<8x32xf32>, i32 -> vector<8x32xf32>
    %cst_99 = arith.constant 0.000000e+00 : f32
    %245 = vector.broadcast %cst_99 : f32 to vector<8x32xf32>
    %246 = arith.select %243, %244, %245 : vector<8x32xi1>, vector<8x32xf32>
    %247 = vector.extract_strided_slice %198 {offsets = [2, 0], sizes = [1, 32], strides = [1, 1]} : vector<7x32xf32> to vector<1x32xf32>
    %248 = vector.broadcast %247 : vector<1x32xf32> to vector<8x32xf32>
    %249 = arith.mulf %246, %248 : vector<8x32xf32>
    %250 = arith.addf %241, %249 : vector<8x32xf32>
    %c5_i32_100 = arith.constant 5 : i32
    %251 = vector.broadcast %c5_i32_100 : i32 to vector<8x32xi32>
    %252 = arith.cmpi sge, %207, %251 : vector<8x32xi32>
    %c5_i32_101 = arith.constant 5 : i32
    %253 = tpu.dynamic_rotate %206 by %c5_i32_101 dim 0 : vector<8x32xf32>, i32 -> vector<8x32xf32>
    %cst_102 = arith.constant 0.000000e+00 : f32
    %254 = vector.broadcast %cst_102 : f32 to vector<8x32xf32>
    %255 = arith.select %252, %253, %254 : vector<8x32xi1>, vector<8x32xf32>
    %256 = vector.extract_strided_slice %198 {offsets = [1, 0], sizes = [1, 32], strides = [1, 1]} : vector<7x32xf32> to vector<1x32xf32>
    %257 = vector.broadcast %256 : vector<1x32xf32> to vector<8x32xf32>
    %258 = arith.mulf %255, %257 : vector<8x32xf32>
    %259 = arith.addf %250, %258 : vector<8x32xf32>
    %c6_i32_103 = arith.constant 6 : i32
    %260 = vector.broadcast %c6_i32_103 : i32 to vector<8x32xi32>
    %261 = arith.cmpi sge, %207, %260 : vector<8x32xi32>
    %c6_i32_104 = arith.constant 6 : i32
    %262 = tpu.dynamic_rotate %206 by %c6_i32_104 dim 0 : vector<8x32xf32>, i32 -> vector<8x32xf32>
    %cst_105 = arith.constant 0.000000e+00 : f32
    %263 = vector.broadcast %cst_105 : f32 to vector<8x32xf32>
    %264 = arith.select %261, %262, %263 : vector<8x32xi1>, vector<8x32xf32>
    %265 = vector.extract_strided_slice %198 {offsets = [0, 0], sizes = [1, 32], strides = [1, 1]} : vector<7x32xf32> to vector<1x32xf32>
    %266 = vector.broadcast %265 : vector<1x32xf32> to vector<8x32xf32>
    %267 = arith.mulf %264, %266 : vector<8x32xf32>
    %268 = arith.addf %259, %267 : vector<8x32xf32>
    %269 = arith.truncf %268 : vector<8x32xf32> to vector<8x32xbf16>
    %270 = arith.truncf %200 : vector<32x32xf32> to vector<32x32xbf16>
    %cst_106 = arith.constant dense<0.000000e+00> : vector<8x32xf32>
    %271 = tpu.matmul %269, %270, %cst_106 {dimension_numbers = #tpu.dot_dimension_numbers<[1], [0], [0], [1], [0, 0, 1, 1], [], []>} : vector<8x32xbf16>, vector<32x32xbf16>, vector<8x32xf32> -> vector<8x32xf32>
    %272 = vector.broadcast %201 : vector<1x32xf32> to vector<8x32xf32>
    %273 = arith.addf %271, %272 : vector<8x32xf32>
    %274 = arith.addf %273, %1 : vector<8x32xf32>
    %c0_107 = arith.constant 0 : index
    %c0_108 = arith.constant 0 : index
    %c0_109 = arith.constant 0 : index
    %275 = vector.load %arg22[%c0_107, %c0_108, %c0_109] : memref<1x8x32xf32, #tpu.memory_space<vmem>>, vector<1x8x32xf32>
    %276 = vector.shape_cast %275 : vector<1x8x32xf32> to vector<8x32xf32>
    %277 = vector.shape_cast %274 : vector<8x32xf32> to vector<1x8x32xf32>
    tpu.vector_store %arg22[%c0_107, %c0_108, %c0_109], %277 {strides = array<i32>} : memref<1x8x32xf32, #tpu.memory_space<vmem>>, vector<1x8x32xf32>,
    return
  }
  func.func @transform_0(%arg0: i32) -> (i32, i32, i32) {
    %c0_i32 = arith.constant 0 : i32
    %c0_i32_0 = arith.constant 0 : i32
    %c0_i32_1 = arith.constant 0 : i32
    return %arg0, %c0_i32, %c0_i32_0 : i32, i32, i32
  }
  func.func @transform_1(%arg0: i32) -> (i32, i32) {
    %c0_i32 = arith.constant 0 : i32
    %c0_i32_0 = arith.constant 0 : i32
    %c0_i32_1 = arith.constant 0 : i32
    return %c0_i32, %c0_i32_0 : i32, i32
  }
  func.func @transform_2(%arg0: i32) -> (i32, i32) {
    %c0_i32 = arith.constant 0 : i32
    %c0_i32_0 = arith.constant 0 : i32
    %c0_i32_1 = arith.constant 0 : i32
    return %c0_i32, %c0_i32_0 : i32, i32
  }
  func.func @transform_3(%arg0: i32) -> (i32, i32) {
    %c0_i32 = arith.constant 0 : i32
    %c0_i32_0 = arith.constant 0 : i32
    %c0_i32_1 = arith.constant 0 : i32
    return %c0_i32, %c0_i32_0 : i32, i32
  }
  func.func @transform_4(%arg0: i32) -> (i32, i32) {
    %c0_i32 = arith.constant 0 : i32
    %c0_i32_0 = arith.constant 0 : i32
    %c0_i32_1 = arith.constant 0 : i32
    return %c0_i32, %c0_i32_0 : i32, i32
  }
  func.func @transform_5(%arg0: i32) -> (i32, i32) {
    %c0_i32 = arith.constant 0 : i32
    %c0_i32_0 = arith.constant 0 : i32
    %c0_i32_1 = arith.constant 0 : i32
    return %c0_i32, %c0_i32_0 : i32, i32
  }
  func.func @transform_6(%arg0: i32) -> (i32, i32) {
    %c0_i32 = arith.constant 0 : i32
    %c0_i32_0 = arith.constant 0 : i32
    %c0_i32_1 = arith.constant 0 : i32
    return %c0_i32, %c0_i32_0 : i32, i32
  }
  func.func @transform_7(%arg0: i32) -> (i32, i32) {
    %c0_i32 = arith.constant 0 : i32
    %c0_i32_0 = arith.constant 0 : i32
    %c0_i32_1 = arith.constant 0 : i32
    return %c0_i32, %c0_i32_0 : i32, i32
  }
  func.func @transform_8(%arg0: i32) -> (i32, i32) {
    %c0_i32 = arith.constant 0 : i32
    %c0_i32_0 = arith.constant 0 : i32
    %c0_i32_1 = arith.constant 0 : i32
    return %c0_i32, %c0_i32_0 : i32, i32
  }
  func.func @transform_9(%arg0: i32) -> (i32, i32) {
    %c0_i32 = arith.constant 0 : i32
    %c0_i32_0 = arith.constant 0 : i32
    %c0_i32_1 = arith.constant 0 : i32
    return %c0_i32, %c0_i32_0 : i32, i32
  }
  func.func @transform_10(%arg0: i32) -> (i32, i32) {
    %c0_i32 = arith.constant 0 : i32
    %c0_i32_0 = arith.constant 0 : i32
    %c0_i32_1 = arith.constant 0 : i32
    return %c0_i32, %c0_i32_0 : i32, i32
  }
  func.func @transform_11(%arg0: i32) -> (i32, i32) {
    %c0_i32 = arith.constant 0 : i32
    %c0_i32_0 = arith.constant 0 : i32
    %c0_i32_1 = arith.constant 0 : i32
    return %c0_i32, %c0_i32_0 : i32, i32
  }
  func.func @transform_12(%arg0: i32) -> (i32, i32) {
    %c0_i32 = arith.constant 0 : i32
    %c0_i32_0 = arith.constant 0 : i32
    %c0_i32_1 = arith.constant 0 : i32
    return %c0_i32, %c0_i32_0 : i32, i32
  }
  func.func @transform_13(%arg0: i32) -> (i32, i32) {
    %c0_i32 = arith.constant 0 : i32
    %c0_i32_0 = arith.constant 0 : i32
    %c0_i32_1 = arith.constant 0 : i32
    return %c0_i32, %c0_i32_0 : i32, i32
  }
  func.func @transform_14(%arg0: i32) -> (i32, i32) {
    %c0_i32 = arith.constant 0 : i32
    %c0_i32_0 = arith.constant 0 : i32
    %c0_i32_1 = arith.constant 0 : i32
    return %c0_i32, %c0_i32_0 : i32, i32
  }
  func.func @transform_15(%arg0: i32) -> (i32, i32) {
    %c0_i32 = arith.constant 0 : i32
    %c0_i32_0 = arith.constant 0 : i32
    %c0_i32_1 = arith.constant 0 : i32
    return %c0_i32, %c0_i32_0 : i32, i32
  }
  func.func @transform_16(%arg0: i32) -> (i32, i32) {
    %c0_i32 = arith.constant 0 : i32
    %c0_i32_0 = arith.constant 0 : i32
    %c0_i32_1 = arith.constant 0 : i32
    return %c0_i32, %c0_i32_0 : i32, i32
  }
  func.func @transform_17(%arg0: i32) -> (i32, i32) {
    %c0_i32 = arith.constant 0 : i32
    %c0_i32_0 = arith.constant 0 : i32
    %c0_i32_1 = arith.constant 0 : i32
    return %c0_i32, %c0_i32_0 : i32, i32
  }
  func.func @transform_18(%arg0: i32) -> (i32, i32) {
    %c0_i32 = arith.constant 0 : i32
    %c0_i32_0 = arith.constant 0 : i32
    %c0_i32_1 = arith.constant 0 : i32
    return %c0_i32, %c0_i32_0 : i32, i32
  }
  func.func @transform_19(%arg0: i32) -> (i32, i32) {
    %c0_i32 = arith.constant 0 : i32
    %c0_i32_0 = arith.constant 0 : i32
    %c0_i32_1 = arith.constant 0 : i32
    return %c0_i32, %c0_i32_0 : i32, i32
  }
  func.func @transform_20(%arg0: i32) -> (i32, i32) {
    %c0_i32 = arith.constant 0 : i32
    %c0_i32_0 = arith.constant 0 : i32
    %c0_i32_1 = arith.constant 0 : i32
    return %c0_i32, %c0_i32_0 : i32, i32
  }
  func.func @transform_21(%arg0: i32) -> (i32, i32, i32) {
    %c0_i32 = arith.constant 0 : i32
    %c0_i32_0 = arith.constant 0 : i32
    %c0_i32_1 = arith.constant 0 : i32
    return %arg0, %c0_i32, %c0_i32_0 : i32, i32, i32
  }
}

module attributes {stable_mosaic.version = 11 : i64} {
  func.func @_attn_dual_kernel(%arg0: i32, %arg1: memref<1x8x32xf32, #tpu.memory_space<vmem>>, %arg2: memref<1x8x32xf32, #tpu.memory_space<vmem>>, %arg3: memref<1x32xf32, #tpu.memory_space<vmem>>, %arg4: memref<32x96xf32, #tpu.memory_space<vmem>>, %arg5: memref<1x96xf32, #tpu.memory_space<vmem>>, %arg6: memref<32x32xf32, #tpu.memory_space<vmem>>, %arg7: memref<1x32xf32, #tpu.memory_space<vmem>>, %arg8: memref<32x32xf32, #tpu.memory_space<vmem>>, %arg9: memref<1x32xf32, #tpu.memory_space<vmem>>, %arg10: memref<32x64xf32, #tpu.memory_space<vmem>>, %arg11: memref<1x64xf32, #tpu.memory_space<vmem>>, %arg12: memref<32x32xf32, #tpu.memory_space<vmem>>, %arg13: memref<1x32xf32, #tpu.memory_space<vmem>>, %arg14: memref<1x8x32xf32, #tpu.memory_space<vmem>>) attributes {dimension_semantics = [#tpu.dimension_semantics<parallel>], iteration_bounds = array<i64: 2>, scalar_prefetch = 0 : i64, scratch_operands = 0 : i64, tpu.core_type = #tpu.core_type<tc>, window_params = [{transform_indices = @transform_0, window_bounds = array<i64: 1, 8, 32>}, {transform_indices = @transform_1, window_bounds = array<i64: 1, 8, 32>}, {pipeline_mode = #tpu.pipeline_mode<synchronous>, transform_indices = @transform_2, window_bounds = array<i64: 1, 32>}, {pipeline_mode = #tpu.pipeline_mode<synchronous>, transform_indices = @transform_3, window_bounds = array<i64: 32, 96>}, {pipeline_mode = #tpu.pipeline_mode<synchronous>, transform_indices = @transform_4, window_bounds = array<i64: 1, 96>}, {pipeline_mode = #tpu.pipeline_mode<synchronous>, transform_indices = @transform_5, window_bounds = array<i64: 32, 32>}, {pipeline_mode = #tpu.pipeline_mode<synchronous>, transform_indices = @transform_6, window_bounds = array<i64: 1, 32>}, {pipeline_mode = #tpu.pipeline_mode<synchronous>, transform_indices = @transform_7, window_bounds = array<i64: 32, 32>}, {pipeline_mode = #tpu.pipeline_mode<synchronous>, transform_indices = @transform_8, window_bounds = array<i64: 1, 32>}, {pipeline_mode = #tpu.pipeline_mode<synchronous>, transform_indices = @transform_9, window_bounds = array<i64: 32, 64>}, {pipeline_mode = #tpu.pipeline_mode<synchronous>, transform_indices = @transform_10, window_bounds = array<i64: 1, 64>}, {pipeline_mode = #tpu.pipeline_mode<synchronous>, transform_indices = @transform_11, window_bounds = array<i64: 32, 32>}, {pipeline_mode = #tpu.pipeline_mode<synchronous>, transform_indices = @transform_12, window_bounds = array<i64: 1, 32>}, {transform_indices = @transform_13, window_bounds = array<i64: 1, 8, 32>}]} {
    %c0 = arith.constant 0 : index
    %c0_0 = arith.constant 0 : index
    %c0_1 = arith.constant 0 : index
    %0 = vector.load %arg1[%c0, %c0_0, %c0_1] : memref<1x8x32xf32, #tpu.memory_space<vmem>>, vector<1x8x32xf32>
    %1 = vector.shape_cast %0 : vector<1x8x32xf32> to vector<8x32xf32>
    %c0_2 = arith.constant 0 : index
    %c0_3 = arith.constant 0 : index
    %c0_4 = arith.constant 0 : index
    %2 = vector.load %arg2[%c0_2, %c0_3, %c0_4] : memref<1x8x32xf32, #tpu.memory_space<vmem>>, vector<1x8x32xf32>
    %3 = vector.shape_cast %2 : vector<1x8x32xf32> to vector<8x32xf32>
    %c0_5 = arith.constant 0 : index
    %c0_6 = arith.constant 0 : index
    %4 = vector.load %arg3[%c0_5, %c0_6] : memref<1x32xf32, #tpu.memory_space<vmem>>, vector<1x32xf32>
    %5 = arith.mulf %1, %1 : vector<8x32xf32>
    %cst = arith.constant dense<0.000000e+00> : vector<8xf32>
    %6 = vector.multi_reduction <add>, %5, %cst [1] : vector<8x32xf32> to vector<8xf32>
    %7 = vector.shape_cast %6 : vector<8xf32> to vector<8x1xf32>
    %cst_7 = arith.constant 3.200000e+01 : f32
    %8 = vector.broadcast %cst_7 : f32 to vector<8x1xf32>
    %9 = arith.divf %7, %8 : vector<8x1xf32>
    %10 = math.sqrt %9 : vector<8x1xf32>
    %cst_8 = arith.constant 9.99999993E-9 : f32
    %11 = vector.broadcast %cst_8 : f32 to vector<8x1xf32>
    %12 = arith.maximumf %10, %11 : vector<8x1xf32>
    %13 = vector.broadcast %12 : vector<8x1xf32> to vector<8x32xf32>
    %14 = arith.divf %1, %13 : vector<8x32xf32>
    %15 = vector.broadcast %4 : vector<1x32xf32> to vector<8x32xf32>
    %16 = arith.mulf %14, %15 : vector<8x32xf32>
    %c0_9 = arith.constant 0 : index
    %c0_10 = arith.constant 0 : index
    %17 = vector.load %arg4[%c0_9, %c0_10] : memref<32x96xf32, #tpu.memory_space<vmem>>, vector<32x96xf32>
    %c0_11 = arith.constant 0 : index
    %c0_12 = arith.constant 0 : index
    %18 = vector.load %arg5[%c0_11, %c0_12] : memref<1x96xf32, #tpu.memory_space<vmem>>, vector<1x96xf32>
    %c0_13 = arith.constant 0 : index
    %c0_14 = arith.constant 0 : index
    %19 = vector.load %arg6[%c0_13, %c0_14] : memref<32x32xf32, #tpu.memory_space<vmem>>, vector<32x32xf32>
    %c0_15 = arith.constant 0 : index
    %c0_16 = arith.constant 0 : index
    %20 = vector.load %arg7[%c0_15, %c0_16] : memref<1x32xf32, #tpu.memory_space<vmem>>, vector<1x32xf32>
    %21 = arith.truncf %16 : vector<8x32xf32> to vector<8x32xbf16>
    %22 = arith.truncf %17 : vector<32x96xf32> to vector<32x96xbf16>
    %cst_17 = arith.constant dense<0.000000e+00> : vector<8x96xf32>
    %23 = tpu.matmul %21, %22, %cst_17 {dimension_numbers = #tpu.dot_dimension_numbers<[1], [0], [0], [1], [0, 0, 1, 1], [], []>} : vector<8x32xbf16>, vector<32x96xbf16>, vector<8x96xf32> -> vector<8x96xf32>
    %24 = vector.broadcast %18 : vector<1x96xf32> to vector<8x96xf32>
    %25 = arith.addf %23, %24 : vector<8x96xf32>
    %26 = vector.extract_strided_slice %25 {offsets = [0, 0], sizes = [8, 32], strides = [1, 1]} : vector<8x96xf32> to vector<8x32xf32>
    %27 = vector.extract_strided_slice %25 {offsets = [0, 32], sizes = [8, 32], strides = [1, 1]} : vector<8x96xf32> to vector<8x32xf32>
    %28 = vector.extract_strided_slice %25 {offsets = [0, 64], sizes = [8, 32], strides = [1, 1]} : vector<8x96xf32> to vector<8x32xf32>
    %29 = vector.extract_strided_slice %26 {offsets = [0, 0], sizes = [8, 2], strides = [1, 1]} : vector<8x32xf32> to vector<8x2xf32>
    %30 = vector.extract_strided_slice %27 {offsets = [0, 0], sizes = [8, 2], strides = [1, 1]} : vector<8x32xf32> to vector<8x2xf32>
    %31 = vector.extract_strided_slice %28 {offsets = [0, 0], sizes = [8, 2], strides = [1, 1]} : vector<8x32xf32> to vector<8x2xf32>
    "tpu.trace_start"() <{level = 10 : i32, message = "qd,kd->qk"}> : () -> ()
    %cst_18 = arith.constant dense<0.000000e+00> : vector<8x8xf32>
    %32 = tpu.matmul %29, %30, %cst_18 {dimension_numbers = #tpu.dot_dimension_numbers<[1], [1], [0], [0], [0, 0, 1, 0], [], []>} : vector<8x2xf32>, vector<8x2xf32>, vector<8x8xf32> -> vector<8x8xf32>
    "tpu.trace_stop"() : () -> ()
    %cst_19 = arith.constant 0.707106769 : f32
    %33 = vector.broadcast %cst_19 : f32 to vector<8x8xf32>
    %34 = arith.mulf %32, %33 : vector<8x8xf32>
    %cst_20 = arith.constant dense<0xFF800000> : vector<8xf32>
    %35 = vector.multi_reduction <maximumf>, %34, %cst_20 [1] : vector<8x8xf32> to vector<8xf32>
    %36 = vector.shape_cast %35 : vector<8xf32> to vector<8x1xf32>
    %37 = vector.broadcast %36 : vector<8x1xf32> to vector<8x8xf32>
    %38 = arith.subf %34, %37 : vector<8x8xf32>
    %39 = math.exp %38 : vector<8x8xf32>
    %cst_21 = arith.constant dense<0.000000e+00> : vector<8xf32>
    %40 = vector.multi_reduction <add>, %39, %cst_21 [1] : vector<8x8xf32> to vector<8xf32>
    %41 = vector.shape_cast %40 : vector<8xf32> to vector<8x1xf32>
    %42 = tpu.reciprocal %41 {approx = true} : vector<8x1xf32> -> vector<8x1xf32>
    %43 = vector.broadcast %42 : vector<8x1xf32> to vector<8x8xf32>
    %44 = arith.mulf %39, %43 : vector<8x8xf32>
    %cst_22 = arith.constant dense<0.000000e+00> : vector<8x2xf32>
    %45 = tpu.matmul %44, %31, %cst_22 {dimension_numbers = #tpu.dot_dimension_numbers<[1], [0], [0], [1], [0, 0, 1, 1], [], []>} : vector<8x8xf32>, vector<8x2xf32>, vector<8x2xf32> -> vector<8x2xf32>
    %46 = vector.extract_strided_slice %26 {offsets = [0, 2], sizes = [8, 2], strides = [1, 1]} : vector<8x32xf32> to vector<8x2xf32>
    %47 = vector.extract_strided_slice %27 {offsets = [0, 2], sizes = [8, 2], strides = [1, 1]} : vector<8x32xf32> to vector<8x2xf32>
    %48 = vector.extract_strided_slice %28 {offsets = [0, 2], sizes = [8, 2], strides = [1, 1]} : vector<8x32xf32> to vector<8x2xf32>
    "tpu.trace_start"() <{level = 10 : i32, message = "qd,kd->qk"}> : () -> ()
    %cst_23 = arith.constant dense<0.000000e+00> : vector<8x8xf32>
    %49 = tpu.matmul %46, %47, %cst_23 {dimension_numbers = #tpu.dot_dimension_numbers<[1], [1], [0], [0], [0, 0, 1, 0], [], []>} : vector<8x2xf32>, vector<8x2xf32>, vector<8x8xf32> -> vector<8x8xf32>
    "tpu.trace_stop"() : () -> ()
    %cst_24 = arith.constant 0.707106769 : f32
    %50 = vector.broadcast %cst_24 : f32 to vector<8x8xf32>
    %51 = arith.mulf %49, %50 : vector<8x8xf32>
    %cst_25 = arith.constant dense<0xFF800000> : vector<8xf32>
    %52 = vector.multi_reduction <maximumf>, %51, %cst_25 [1] : vector<8x8xf32> to vector<8xf32>
    %53 = vector.shape_cast %52 : vector<8xf32> to vector<8x1xf32>
    %54 = vector.broadcast %53 : vector<8x1xf32> to vector<8x8xf32>
    %55 = arith.subf %51, %54 : vector<8x8xf32>
    %56 = math.exp %55 : vector<8x8xf32>
    %cst_26 = arith.constant dense<0.000000e+00> : vector<8xf32>
    %57 = vector.multi_reduction <add>, %56, %cst_26 [1] : vector<8x8xf32> to vector<8xf32>
    %58 = vector.shape_cast %57 : vector<8xf32> to vector<8x1xf32>
    %59 = tpu.reciprocal %58 {approx = true} : vector<8x1xf32> -> vector<8x1xf32>
    %60 = vector.broadcast %59 : vector<8x1xf32> to vector<8x8xf32>
    %61 = arith.mulf %56, %60 : vector<8x8xf32>
    %cst_27 = arith.constant dense<0.000000e+00> : vector<8x2xf32>
    %62 = tpu.matmul %61, %48, %cst_27 {dimension_numbers = #tpu.dot_dimension_numbers<[1], [0], [0], [1], [0, 0, 1, 1], [], []>} : vector<8x8xf32>, vector<8x2xf32>, vector<8x2xf32> -> vector<8x2xf32>
    %63 = vector.extract_strided_slice %26 {offsets = [0, 4], sizes = [8, 2], strides = [1, 1]} : vector<8x32xf32> to vector<8x2xf32>
    %64 = vector.extract_strided_slice %27 {offsets = [0, 4], sizes = [8, 2], strides = [1, 1]} : vector<8x32xf32> to vector<8x2xf32>
    %65 = vector.extract_strided_slice %28 {offsets = [0, 4], sizes = [8, 2], strides = [1, 1]} : vector<8x32xf32> to vector<8x2xf32>
    "tpu.trace_start"() <{level = 10 : i32, message = "qd,kd->qk"}> : () -> ()
    %cst_28 = arith.constant dense<0.000000e+00> : vector<8x8xf32>
    %66 = tpu.matmul %63, %64, %cst_28 {dimension_numbers = #tpu.dot_dimension_numbers<[1], [1], [0], [0], [0, 0, 1, 0], [], []>} : vector<8x2xf32>, vector<8x2xf32>, vector<8x8xf32> -> vector<8x8xf32>
    "tpu.trace_stop"() : () -> ()
    %cst_29 = arith.constant 0.707106769 : f32
    %67 = vector.broadcast %cst_29 : f32 to vector<8x8xf32>
    %68 = arith.mulf %66, %67 : vector<8x8xf32>
    %cst_30 = arith.constant dense<0xFF800000> : vector<8xf32>
    %69 = vector.multi_reduction <maximumf>, %68, %cst_30 [1] : vector<8x8xf32> to vector<8xf32>
    %70 = vector.shape_cast %69 : vector<8xf32> to vector<8x1xf32>
    %71 = vector.broadcast %70 : vector<8x1xf32> to vector<8x8xf32>
    %72 = arith.subf %68, %71 : vector<8x8xf32>
    %73 = math.exp %72 : vector<8x8xf32>
    %cst_31 = arith.constant dense<0.000000e+00> : vector<8xf32>
    %74 = vector.multi_reduction <add>, %73, %cst_31 [1] : vector<8x8xf32> to vector<8xf32>
    %75 = vector.shape_cast %74 : vector<8xf32> to vector<8x1xf32>
    %76 = tpu.reciprocal %75 {approx = true} : vector<8x1xf32> -> vector<8x1xf32>
    %77 = vector.broadcast %76 : vector<8x1xf32> to vector<8x8xf32>
    %78 = arith.mulf %73, %77 : vector<8x8xf32>
    %cst_32 = arith.constant dense<0.000000e+00> : vector<8x2xf32>
    %79 = tpu.matmul %78, %65, %cst_32 {dimension_numbers = #tpu.dot_dimension_numbers<[1], [0], [0], [1], [0, 0, 1, 1], [], []>} : vector<8x8xf32>, vector<8x2xf32>, vector<8x2xf32> -> vector<8x2xf32>
    %80 = vector.extract_strided_slice %26 {offsets = [0, 6], sizes = [8, 2], strides = [1, 1]} : vector<8x32xf32> to vector<8x2xf32>
    %81 = vector.extract_strided_slice %27 {offsets = [0, 6], sizes = [8, 2], strides = [1, 1]} : vector<8x32xf32> to vector<8x2xf32>
    %82 = vector.extract_strided_slice %28 {offsets = [0, 6], sizes = [8, 2], strides = [1, 1]} : vector<8x32xf32> to vector<8x2xf32>
    "tpu.trace_start"() <{level = 10 : i32, message = "qd,kd->qk"}> : () -> ()
    %cst_33 = arith.constant dense<0.000000e+00> : vector<8x8xf32>
    %83 = tpu.matmul %80, %81, %cst_33 {dimension_numbers = #tpu.dot_dimension_numbers<[1], [1], [0], [0], [0, 0, 1, 0], [], []>} : vector<8x2xf32>, vector<8x2xf32>, vector<8x8xf32> -> vector<8x8xf32>
    "tpu.trace_stop"() : () -> ()
    %cst_34 = arith.constant 0.707106769 : f32
    %84 = vector.broadcast %cst_34 : f32 to vector<8x8xf32>
    %85 = arith.mulf %83, %84 : vector<8x8xf32>
    %cst_35 = arith.constant dense<0xFF800000> : vector<8xf32>
    %86 = vector.multi_reduction <maximumf>, %85, %cst_35 [1] : vector<8x8xf32> to vector<8xf32>
    %87 = vector.shape_cast %86 : vector<8xf32> to vector<8x1xf32>
    %88 = vector.broadcast %87 : vector<8x1xf32> to vector<8x8xf32>
    %89 = arith.subf %85, %88 : vector<8x8xf32>
    %90 = math.exp %89 : vector<8x8xf32>
    %cst_36 = arith.constant dense<0.000000e+00> : vector<8xf32>
    %91 = vector.multi_reduction <add>, %90, %cst_36 [1] : vector<8x8xf32> to vector<8xf32>
    %92 = vector.shape_cast %91 : vector<8xf32> to vector<8x1xf32>
    %93 = tpu.reciprocal %92 {approx = true} : vector<8x1xf32> -> vector<8x1xf32>
    %94 = vector.broadcast %93 : vector<8x1xf32> to vector<8x8xf32>
    %95 = arith.mulf %90, %94 : vector<8x8xf32>
    %cst_37 = arith.constant dense<0.000000e+00> : vector<8x2xf32>
    %96 = tpu.matmul %95, %82, %cst_37 {dimension_numbers = #tpu.dot_dimension_numbers<[1], [0], [0], [1], [0, 0, 1, 1], [], []>} : vector<8x8xf32>, vector<8x2xf32>, vector<8x2xf32> -> vector<8x2xf32>
    %97 = vector.extract_strided_slice %26 {offsets = [0, 8], sizes = [8, 2], strides = [1, 1]} : vector<8x32xf32> to vector<8x2xf32>
    %98 = vector.extract_strided_slice %27 {offsets = [0, 8], sizes = [8, 2], strides = [1, 1]} : vector<8x32xf32> to vector<8x2xf32>
    %99 = vector.extract_strided_slice %28 {offsets = [0, 8], sizes = [8, 2], strides = [1, 1]} : vector<8x32xf32> to vector<8x2xf32>
    "tpu.trace_start"() <{level = 10 : i32, message = "qd,kd->qk"}> : () -> ()
    %cst_38 = arith.constant dense<0.000000e+00> : vector<8x8xf32>
    %100 = tpu.matmul %97, %98, %cst_38 {dimension_numbers = #tpu.dot_dimension_numbers<[1], [1], [0], [0], [0, 0, 1, 0], [], []>} : vector<8x2xf32>, vector<8x2xf32>, vector<8x8xf32> -> vector<8x8xf32>
    "tpu.trace_stop"() : () -> ()
    %cst_39 = arith.constant 0.707106769 : f32
    %101 = vector.broadcast %cst_39 : f32 to vector<8x8xf32>
    %102 = arith.mulf %100, %101 : vector<8x8xf32>
    %cst_40 = arith.constant dense<0xFF800000> : vector<8xf32>
    %103 = vector.multi_reduction <maximumf>, %102, %cst_40 [1] : vector<8x8xf32> to vector<8xf32>
    %104 = vector.shape_cast %103 : vector<8xf32> to vector<8x1xf32>
    %105 = vector.broadcast %104 : vector<8x1xf32> to vector<8x8xf32>
    %106 = arith.subf %102, %105 : vector<8x8xf32>
    %107 = math.exp %106 : vector<8x8xf32>
    %cst_41 = arith.constant dense<0.000000e+00> : vector<8xf32>
    %108 = vector.multi_reduction <add>, %107, %cst_41 [1] : vector<8x8xf32> to vector<8xf32>
    %109 = vector.shape_cast %108 : vector<8xf32> to vector<8x1xf32>
    %110 = tpu.reciprocal %109 {approx = true} : vector<8x1xf32> -> vector<8x1xf32>
    %111 = vector.broadcast %110 : vector<8x1xf32> to vector<8x8xf32>
    %112 = arith.mulf %107, %111 : vector<8x8xf32>
    %cst_42 = arith.constant dense<0.000000e+00> : vector<8x2xf32>
    %113 = tpu.matmul %112, %99, %cst_42 {dimension_numbers = #tpu.dot_dimension_numbers<[1], [0], [0], [1], [0, 0, 1, 1], [], []>} : vector<8x8xf32>, vector<8x2xf32>, vector<8x2xf32> -> vector<8x2xf32>
    %114 = vector.extract_strided_slice %26 {offsets = [0, 10], sizes = [8, 2], strides = [1, 1]} : vector<8x32xf32> to vector<8x2xf32>
    %115 = vector.extract_strided_slice %27 {offsets = [0, 10], sizes = [8, 2], strides = [1, 1]} : vector<8x32xf32> to vector<8x2xf32>
    %116 = vector.extract_strided_slice %28 {offsets = [0, 10], sizes = [8, 2], strides = [1, 1]} : vector<8x32xf32> to vector<8x2xf32>
    "tpu.trace_start"() <{level = 10 : i32, message = "qd,kd->qk"}> : () -> ()
    %cst_43 = arith.constant dense<0.000000e+00> : vector<8x8xf32>
    %117 = tpu.matmul %114, %115, %cst_43 {dimension_numbers = #tpu.dot_dimension_numbers<[1], [1], [0], [0], [0, 0, 1, 0], [], []>} : vector<8x2xf32>, vector<8x2xf32>, vector<8x8xf32> -> vector<8x8xf32>
    "tpu.trace_stop"() : () -> ()
    %cst_44 = arith.constant 0.707106769 : f32
    %118 = vector.broadcast %cst_44 : f32 to vector<8x8xf32>
    %119 = arith.mulf %117, %118 : vector<8x8xf32>
    %cst_45 = arith.constant dense<0xFF800000> : vector<8xf32>
    %120 = vector.multi_reduction <maximumf>, %119, %cst_45 [1] : vector<8x8xf32> to vector<8xf32>
    %121 = vector.shape_cast %120 : vector<8xf32> to vector<8x1xf32>
    %122 = vector.broadcast %121 : vector<8x1xf32> to vector<8x8xf32>
    %123 = arith.subf %119, %122 : vector<8x8xf32>
    %124 = math.exp %123 : vector<8x8xf32>
    %cst_46 = arith.constant dense<0.000000e+00> : vector<8xf32>
    %125 = vector.multi_reduction <add>, %124, %cst_46 [1] : vector<8x8xf32> to vector<8xf32>
    %126 = vector.shape_cast %125 : vector<8xf32> to vector<8x1xf32>
    %127 = tpu.reciprocal %126 {approx = true} : vector<8x1xf32> -> vector<8x1xf32>
    %128 = vector.broadcast %127 : vector<8x1xf32> to vector<8x8xf32>
    %129 = arith.mulf %124, %128 : vector<8x8xf32>
    %cst_47 = arith.constant dense<0.000000e+00> : vector<8x2xf32>
    %130 = tpu.matmul %129, %116, %cst_47 {dimension_numbers = #tpu.dot_dimension_numbers<[1], [0], [0], [1], [0, 0, 1, 1], [], []>} : vector<8x8xf32>, vector<8x2xf32>, vector<8x2xf32> -> vector<8x2xf32>
    %131 = vector.extract_strided_slice %26 {offsets = [0, 12], sizes = [8, 2], strides = [1, 1]} : vector<8x32xf32> to vector<8x2xf32>
    %132 = vector.extract_strided_slice %27 {offsets = [0, 12], sizes = [8, 2], strides = [1, 1]} : vector<8x32xf32> to vector<8x2xf32>
    %133 = vector.extract_strided_slice %28 {offsets = [0, 12], sizes = [8, 2], strides = [1, 1]} : vector<8x32xf32> to vector<8x2xf32>
    "tpu.trace_start"() <{level = 10 : i32, message = "qd,kd->qk"}> : () -> ()
    %cst_48 = arith.constant dense<0.000000e+00> : vector<8x8xf32>
    %134 = tpu.matmul %131, %132, %cst_48 {dimension_numbers = #tpu.dot_dimension_numbers<[1], [1], [0], [0], [0, 0, 1, 0], [], []>} : vector<8x2xf32>, vector<8x2xf32>, vector<8x8xf32> -> vector<8x8xf32>
    "tpu.trace_stop"() : () -> ()
    %cst_49 = arith.constant 0.707106769 : f32
    %135 = vector.broadcast %cst_49 : f32 to vector<8x8xf32>
    %136 = arith.mulf %134, %135 : vector<8x8xf32>
    %cst_50 = arith.constant dense<0xFF800000> : vector<8xf32>
    %137 = vector.multi_reduction <maximumf>, %136, %cst_50 [1] : vector<8x8xf32> to vector<8xf32>
    %138 = vector.shape_cast %137 : vector<8xf32> to vector<8x1xf32>
    %139 = vector.broadcast %138 : vector<8x1xf32> to vector<8x8xf32>
    %140 = arith.subf %136, %139 : vector<8x8xf32>
    %141 = math.exp %140 : vector<8x8xf32>
    %cst_51 = arith.constant dense<0.000000e+00> : vector<8xf32>
    %142 = vector.multi_reduction <add>, %141, %cst_51 [1] : vector<8x8xf32> to vector<8xf32>
    %143 = vector.shape_cast %142 : vector<8xf32> to vector<8x1xf32>
    %144 = tpu.reciprocal %143 {approx = true} : vector<8x1xf32> -> vector<8x1xf32>
    %145 = vector.broadcast %144 : vector<8x1xf32> to vector<8x8xf32>
    %146 = arith.mulf %141, %145 : vector<8x8xf32>
    %cst_52 = arith.constant dense<0.000000e+00> : vector<8x2xf32>
    %147 = tpu.matmul %146, %133, %cst_52 {dimension_numbers = #tpu.dot_dimension_numbers<[1], [0], [0], [1], [0, 0, 1, 1], [], []>} : vector<8x8xf32>, vector<8x2xf32>, vector<8x2xf32> -> vector<8x2xf32>
    %148 = vector.extract_strided_slice %26 {offsets = [0, 14], sizes = [8, 2], strides = [1, 1]} : vector<8x32xf32> to vector<8x2xf32>
    %149 = vector.extract_strided_slice %27 {offsets = [0, 14], sizes = [8, 2], strides = [1, 1]} : vector<8x32xf32> to vector<8x2xf32>
    %150 = vector.extract_strided_slice %28 {offsets = [0, 14], sizes = [8, 2], strides = [1, 1]} : vector<8x32xf32> to vector<8x2xf32>
    "tpu.trace_start"() <{level = 10 : i32, message = "qd,kd->qk"}> : () -> ()
    %cst_53 = arith.constant dense<0.000000e+00> : vector<8x8xf32>
    %151 = tpu.matmul %148, %149, %cst_53 {dimension_numbers = #tpu.dot_dimension_numbers<[1], [1], [0], [0], [0, 0, 1, 0], [], []>} : vector<8x2xf32>, vector<8x2xf32>, vector<8x8xf32> -> vector<8x8xf32>
    "tpu.trace_stop"() : () -> ()
    %cst_54 = arith.constant 0.707106769 : f32
    %152 = vector.broadcast %cst_54 : f32 to vector<8x8xf32>
    %153 = arith.mulf %151, %152 : vector<8x8xf32>
    %cst_55 = arith.constant dense<0xFF800000> : vector<8xf32>
    %154 = vector.multi_reduction <maximumf>, %153, %cst_55 [1] : vector<8x8xf32> to vector<8xf32>
    %155 = vector.shape_cast %154 : vector<8xf32> to vector<8x1xf32>
    %156 = vector.broadcast %155 : vector<8x1xf32> to vector<8x8xf32>
    %157 = arith.subf %153, %156 : vector<8x8xf32>
    %158 = math.exp %157 : vector<8x8xf32>
    %cst_56 = arith.constant dense<0.000000e+00> : vector<8xf32>
    %159 = vector.multi_reduction <add>, %158, %cst_56 [1] : vector<8x8xf32> to vector<8xf32>
    %160 = vector.shape_cast %159 : vector<8xf32> to vector<8x1xf32>
    %161 = tpu.reciprocal %160 {approx = true} : vector<8x1xf32> -> vector<8x1xf32>
    %162 = vector.broadcast %161 : vector<8x1xf32> to vector<8x8xf32>
    %163 = arith.mulf %158, %162 : vector<8x8xf32>
    %cst_57 = arith.constant dense<0.000000e+00> : vector<8x2xf32>
    %164 = tpu.matmul %163, %150, %cst_57 {dimension_numbers = #tpu.dot_dimension_numbers<[1], [0], [0], [1], [0, 0, 1, 1], [], []>} : vector<8x8xf32>, vector<8x2xf32>, vector<8x2xf32> -> vector<8x2xf32>
    %165 = vector.extract_strided_slice %26 {offsets = [0, 16], sizes = [8, 2], strides = [1, 1]} : vector<8x32xf32> to vector<8x2xf32>
    %166 = vector.extract_strided_slice %27 {offsets = [0, 16], sizes = [8, 2], strides = [1, 1]} : vector<8x32xf32> to vector<8x2xf32>
    %167 = vector.extract_strided_slice %28 {offsets = [0, 16], sizes = [8, 2], strides = [1, 1]} : vector<8x32xf32> to vector<8x2xf32>
    "tpu.trace_start"() <{level = 10 : i32, message = "qd,kd->qk"}> : () -> ()
    %cst_58 = arith.constant dense<0.000000e+00> : vector<8x8xf32>
    %168 = tpu.matmul %165, %166, %cst_58 {dimension_numbers = #tpu.dot_dimension_numbers<[1], [1], [0], [0], [0, 0, 1, 0], [], []>} : vector<8x2xf32>, vector<8x2xf32>, vector<8x8xf32> -> vector<8x8xf32>
    "tpu.trace_stop"() : () -> ()
    %cst_59 = arith.constant 0.707106769 : f32
    %169 = vector.broadcast %cst_59 : f32 to vector<8x8xf32>
    %170 = arith.mulf %168, %169 : vector<8x8xf32>
    %cst_60 = arith.constant dense<0xFF800000> : vector<8xf32>
    %171 = vector.multi_reduction <maximumf>, %170, %cst_60 [1] : vector<8x8xf32> to vector<8xf32>
    %172 = vector.shape_cast %171 : vector<8xf32> to vector<8x1xf32>
    %173 = vector.broadcast %172 : vector<8x1xf32> to vector<8x8xf32>
    %174 = arith.subf %170, %173 : vector<8x8xf32>
    %175 = math.exp %174 : vector<8x8xf32>
    %cst_61 = arith.constant dense<0.000000e+00> : vector<8xf32>
    %176 = vector.multi_reduction <add>, %175, %cst_61 [1] : vector<8x8xf32> to vector<8xf32>
    %177 = vector.shape_cast %176 : vector<8xf32> to vector<8x1xf32>
    %178 = tpu.reciprocal %177 {approx = true} : vector<8x1xf32> -> vector<8x1xf32>
    %179 = vector.broadcast %178 : vector<8x1xf32> to vector<8x8xf32>
    %180 = arith.mulf %175, %179 : vector<8x8xf32>
    %cst_62 = arith.constant dense<0.000000e+00> : vector<8x2xf32>
    %181 = tpu.matmul %180, %167, %cst_62 {dimension_numbers = #tpu.dot_dimension_numbers<[1], [0], [0], [1], [0, 0, 1, 1], [], []>} : vector<8x8xf32>, vector<8x2xf32>, vector<8x2xf32> -> vector<8x2xf32>
    %182 = vector.extract_strided_slice %26 {offsets = [0, 18], sizes = [8, 2], strides = [1, 1]} : vector<8x32xf32> to vector<8x2xf32>
    %183 = vector.extract_strided_slice %27 {offsets = [0, 18], sizes = [8, 2], strides = [1, 1]} : vector<8x32xf32> to vector<8x2xf32>
    %184 = vector.extract_strided_slice %28 {offsets = [0, 18], sizes = [8, 2], strides = [1, 1]} : vector<8x32xf32> to vector<8x2xf32>
    "tpu.trace_start"() <{level = 10 : i32, message = "qd,kd->qk"}> : () -> ()
    %cst_63 = arith.constant dense<0.000000e+00> : vector<8x8xf32>
    %185 = tpu.matmul %182, %183, %cst_63 {dimension_numbers = #tpu.dot_dimension_numbers<[1], [1], [0], [0], [0, 0, 1, 0], [], []>} : vector<8x2xf32>, vector<8x2xf32>, vector<8x8xf32> -> vector<8x8xf32>
    "tpu.trace_stop"() : () -> ()
    %cst_64 = arith.constant 0.707106769 : f32
    %186 = vector.broadcast %cst_64 : f32 to vector<8x8xf32>
    %187 = arith.mulf %185, %186 : vector<8x8xf32>
    %cst_65 = arith.constant dense<0xFF800000> : vector<8xf32>
    %188 = vector.multi_reduction <maximumf>, %187, %cst_65 [1] : vector<8x8xf32> to vector<8xf32>
    %189 = vector.shape_cast %188 : vector<8xf32> to vector<8x1xf32>
    %190 = vector.broadcast %189 : vector<8x1xf32> to vector<8x8xf32>
    %191 = arith.subf %187, %190 : vector<8x8xf32>
    %192 = math.exp %191 : vector<8x8xf32>
    %cst_66 = arith.constant dense<0.000000e+00> : vector<8xf32>
    %193 = vector.multi_reduction <add>, %192, %cst_66 [1] : vector<8x8xf32> to vector<8xf32>
    %194 = vector.shape_cast %193 : vector<8xf32> to vector<8x1xf32>
    %195 = tpu.reciprocal %194 {approx = true} : vector<8x1xf32> -> vector<8x1xf32>
    %196 = vector.broadcast %195 : vector<8x1xf32> to vector<8x8xf32>
    %197 = arith.mulf %192, %196 : vector<8x8xf32>
    %cst_67 = arith.constant dense<0.000000e+00> : vector<8x2xf32>
    %198 = tpu.matmul %197, %184, %cst_67 {dimension_numbers = #tpu.dot_dimension_numbers<[1], [0], [0], [1], [0, 0, 1, 1], [], []>} : vector<8x8xf32>, vector<8x2xf32>, vector<8x2xf32> -> vector<8x2xf32>
    %199 = vector.extract_strided_slice %26 {offsets = [0, 20], sizes = [8, 2], strides = [1, 1]} : vector<8x32xf32> to vector<8x2xf32>
    %200 = vector.extract_strided_slice %27 {offsets = [0, 20], sizes = [8, 2], strides = [1, 1]} : vector<8x32xf32> to vector<8x2xf32>
    %201 = vector.extract_strided_slice %28 {offsets = [0, 20], sizes = [8, 2], strides = [1, 1]} : vector<8x32xf32> to vector<8x2xf32>
    "tpu.trace_start"() <{level = 10 : i32, message = "qd,kd->qk"}> : () -> ()
    %cst_68 = arith.constant dense<0.000000e+00> : vector<8x8xf32>
    %202 = tpu.matmul %199, %200, %cst_68 {dimension_numbers = #tpu.dot_dimension_numbers<[1], [1], [0], [0], [0, 0, 1, 0], [], []>} : vector<8x2xf32>, vector<8x2xf32>, vector<8x8xf32> -> vector<8x8xf32>
    "tpu.trace_stop"() : () -> ()
    %cst_69 = arith.constant 0.707106769 : f32
    %203 = vector.broadcast %cst_69 : f32 to vector<8x8xf32>
    %204 = arith.mulf %202, %203 : vector<8x8xf32>
    %cst_70 = arith.constant dense<0xFF800000> : vector<8xf32>
    %205 = vector.multi_reduction <maximumf>, %204, %cst_70 [1] : vector<8x8xf32> to vector<8xf32>
    %206 = vector.shape_cast %205 : vector<8xf32> to vector<8x1xf32>
    %207 = vector.broadcast %206 : vector<8x1xf32> to vector<8x8xf32>
    %208 = arith.subf %204, %207 : vector<8x8xf32>
    %209 = math.exp %208 : vector<8x8xf32>
    %cst_71 = arith.constant dense<0.000000e+00> : vector<8xf32>
    %210 = vector.multi_reduction <add>, %209, %cst_71 [1] : vector<8x8xf32> to vector<8xf32>
    %211 = vector.shape_cast %210 : vector<8xf32> to vector<8x1xf32>
    %212 = tpu.reciprocal %211 {approx = true} : vector<8x1xf32> -> vector<8x1xf32>
    %213 = vector.broadcast %212 : vector<8x1xf32> to vector<8x8xf32>
    %214 = arith.mulf %209, %213 : vector<8x8xf32>
    %cst_72 = arith.constant dense<0.000000e+00> : vector<8x2xf32>
    %215 = tpu.matmul %214, %201, %cst_72 {dimension_numbers = #tpu.dot_dimension_numbers<[1], [0], [0], [1], [0, 0, 1, 1], [], []>} : vector<8x8xf32>, vector<8x2xf32>, vector<8x2xf32> -> vector<8x2xf32>
    %216 = vector.extract_strided_slice %26 {offsets = [0, 22], sizes = [8, 2], strides = [1, 1]} : vector<8x32xf32> to vector<8x2xf32>
    %217 = vector.extract_strided_slice %27 {offsets = [0, 22], sizes = [8, 2], strides = [1, 1]} : vector<8x32xf32> to vector<8x2xf32>
    %218 = vector.extract_strided_slice %28 {offsets = [0, 22], sizes = [8, 2], strides = [1, 1]} : vector<8x32xf32> to vector<8x2xf32>
    "tpu.trace_start"() <{level = 10 : i32, message = "qd,kd->qk"}> : () -> ()
    %cst_73 = arith.constant dense<0.000000e+00> : vector<8x8xf32>
    %219 = tpu.matmul %216, %217, %cst_73 {dimension_numbers = #tpu.dot_dimension_numbers<[1], [1], [0], [0], [0, 0, 1, 0], [], []>} : vector<8x2xf32>, vector<8x2xf32>, vector<8x8xf32> -> vector<8x8xf32>
    "tpu.trace_stop"() : () -> ()
    %cst_74 = arith.constant 0.707106769 : f32
    %220 = vector.broadcast %cst_74 : f32 to vector<8x8xf32>
    %221 = arith.mulf %219, %220 : vector<8x8xf32>
    %cst_75 = arith.constant dense<0xFF800000> : vector<8xf32>
    %222 = vector.multi_reduction <maximumf>, %221, %cst_75 [1] : vector<8x8xf32> to vector<8xf32>
    %223 = vector.shape_cast %222 : vector<8xf32> to vector<8x1xf32>
    %224 = vector.broadcast %223 : vector<8x1xf32> to vector<8x8xf32>
    %225 = arith.subf %221, %224 : vector<8x8xf32>
    %226 = math.exp %225 : vector<8x8xf32>
    %cst_76 = arith.constant dense<0.000000e+00> : vector<8xf32>
    %227 = vector.multi_reduction <add>, %226, %cst_76 [1] : vector<8x8xf32> to vector<8xf32>
    %228 = vector.shape_cast %227 : vector<8xf32> to vector<8x1xf32>
    %229 = tpu.reciprocal %228 {approx = true} : vector<8x1xf32> -> vector<8x1xf32>
    %230 = vector.broadcast %229 : vector<8x1xf32> to vector<8x8xf32>
    %231 = arith.mulf %226, %230 : vector<8x8xf32>
    %cst_77 = arith.constant dense<0.000000e+00> : vector<8x2xf32>
    %232 = tpu.matmul %231, %218, %cst_77 {dimension_numbers = #tpu.dot_dimension_numbers<[1], [0], [0], [1], [0, 0, 1, 1], [], []>} : vector<8x8xf32>, vector<8x2xf32>, vector<8x2xf32> -> vector<8x2xf32>
    %233 = vector.extract_strided_slice %26 {offsets = [0, 24], sizes = [8, 2], strides = [1, 1]} : vector<8x32xf32> to vector<8x2xf32>
    %234 = vector.extract_strided_slice %27 {offsets = [0, 24], sizes = [8, 2], strides = [1, 1]} : vector<8x32xf32> to vector<8x2xf32>
    %235 = vector.extract_strided_slice %28 {offsets = [0, 24], sizes = [8, 2], strides = [1, 1]} : vector<8x32xf32> to vector<8x2xf32>
    "tpu.trace_start"() <{level = 10 : i32, message = "qd,kd->qk"}> : () -> ()
    %cst_78 = arith.constant dense<0.000000e+00> : vector<8x8xf32>
    %236 = tpu.matmul %233, %234, %cst_78 {dimension_numbers = #tpu.dot_dimension_numbers<[1], [1], [0], [0], [0, 0, 1, 0], [], []>} : vector<8x2xf32>, vector<8x2xf32>, vector<8x8xf32> -> vector<8x8xf32>
    "tpu.trace_stop"() : () -> ()
    %cst_79 = arith.constant 0.707106769 : f32
    %237 = vector.broadcast %cst_79 : f32 to vector<8x8xf32>
    %238 = arith.mulf %236, %237 : vector<8x8xf32>
    %cst_80 = arith.constant dense<0xFF800000> : vector<8xf32>
    %239 = vector.multi_reduction <maximumf>, %238, %cst_80 [1] : vector<8x8xf32> to vector<8xf32>
    %240 = vector.shape_cast %239 : vector<8xf32> to vector<8x1xf32>
    %241 = vector.broadcast %240 : vector<8x1xf32> to vector<8x8xf32>
    %242 = arith.subf %238, %241 : vector<8x8xf32>
    %243 = math.exp %242 : vector<8x8xf32>
    %cst_81 = arith.constant dense<0.000000e+00> : vector<8xf32>
    %244 = vector.multi_reduction <add>, %243, %cst_81 [1] : vector<8x8xf32> to vector<8xf32>
    %245 = vector.shape_cast %244 : vector<8xf32> to vector<8x1xf32>
    %246 = tpu.reciprocal %245 {approx = true} : vector<8x1xf32> -> vector<8x1xf32>
    %247 = vector.broadcast %246 : vector<8x1xf32> to vector<8x8xf32>
    %248 = arith.mulf %243, %247 : vector<8x8xf32>
    %cst_82 = arith.constant dense<0.000000e+00> : vector<8x2xf32>
    %249 = tpu.matmul %248, %235, %cst_82 {dimension_numbers = #tpu.dot_dimension_numbers<[1], [0], [0], [1], [0, 0, 1, 1], [], []>} : vector<8x8xf32>, vector<8x2xf32>, vector<8x2xf32> -> vector<8x2xf32>
    %250 = vector.extract_strided_slice %26 {offsets = [0, 26], sizes = [8, 2], strides = [1, 1]} : vector<8x32xf32> to vector<8x2xf32>
    %251 = vector.extract_strided_slice %27 {offsets = [0, 26], sizes = [8, 2], strides = [1, 1]} : vector<8x32xf32> to vector<8x2xf32>
    %252 = vector.extract_strided_slice %28 {offsets = [0, 26], sizes = [8, 2], strides = [1, 1]} : vector<8x32xf32> to vector<8x2xf32>
    "tpu.trace_start"() <{level = 10 : i32, message = "qd,kd->qk"}> : () -> ()
    %cst_83 = arith.constant dense<0.000000e+00> : vector<8x8xf32>
    %253 = tpu.matmul %250, %251, %cst_83 {dimension_numbers = #tpu.dot_dimension_numbers<[1], [1], [0], [0], [0, 0, 1, 0], [], []>} : vector<8x2xf32>, vector<8x2xf32>, vector<8x8xf32> -> vector<8x8xf32>
    "tpu.trace_stop"() : () -> ()
    %cst_84 = arith.constant 0.707106769 : f32
    %254 = vector.broadcast %cst_84 : f32 to vector<8x8xf32>
    %255 = arith.mulf %253, %254 : vector<8x8xf32>
    %cst_85 = arith.constant dense<0xFF800000> : vector<8xf32>
    %256 = vector.multi_reduction <maximumf>, %255, %cst_85 [1] : vector<8x8xf32> to vector<8xf32>
    %257 = vector.shape_cast %256 : vector<8xf32> to vector<8x1xf32>
    %258 = vector.broadcast %257 : vector<8x1xf32> to vector<8x8xf32>
    %259 = arith.subf %255, %258 : vector<8x8xf32>
    %260 = math.exp %259 : vector<8x8xf32>
    %cst_86 = arith.constant dense<0.000000e+00> : vector<8xf32>
    %261 = vector.multi_reduction <add>, %260, %cst_86 [1] : vector<8x8xf32> to vector<8xf32>
    %262 = vector.shape_cast %261 : vector<8xf32> to vector<8x1xf32>
    %263 = tpu.reciprocal %262 {approx = true} : vector<8x1xf32> -> vector<8x1xf32>
    %264 = vector.broadcast %263 : vector<8x1xf32> to vector<8x8xf32>
    %265 = arith.mulf %260, %264 : vector<8x8xf32>
    %cst_87 = arith.constant dense<0.000000e+00> : vector<8x2xf32>
    %266 = tpu.matmul %265, %252, %cst_87 {dimension_numbers = #tpu.dot_dimension_numbers<[1], [0], [0], [1], [0, 0, 1, 1], [], []>} : vector<8x8xf32>, vector<8x2xf32>, vector<8x2xf32> -> vector<8x2xf32>
    %267 = vector.extract_strided_slice %26 {offsets = [0, 28], sizes = [8, 2], strides = [1, 1]} : vector<8x32xf32> to vector<8x2xf32>
    %268 = vector.extract_strided_slice %27 {offsets = [0, 28], sizes = [8, 2], strides = [1, 1]} : vector<8x32xf32> to vector<8x2xf32>
    %269 = vector.extract_strided_slice %28 {offsets = [0, 28], sizes = [8, 2], strides = [1, 1]} : vector<8x32xf32> to vector<8x2xf32>
    "tpu.trace_start"() <{level = 10 : i32, message = "qd,kd->qk"}> : () -> ()
    %cst_88 = arith.constant dense<0.000000e+00> : vector<8x8xf32>
    %270 = tpu.matmul %267, %268, %cst_88 {dimension_numbers = #tpu.dot_dimension_numbers<[1], [1], [0], [0], [0, 0, 1, 0], [], []>} : vector<8x2xf32>, vector<8x2xf32>, vector<8x8xf32> -> vector<8x8xf32>
    "tpu.trace_stop"() : () -> ()
    %cst_89 = arith.constant 0.707106769 : f32
    %271 = vector.broadcast %cst_89 : f32 to vector<8x8xf32>
    %272 = arith.mulf %270, %271 : vector<8x8xf32>
    %cst_90 = arith.constant dense<0xFF800000> : vector<8xf32>
    %273 = vector.multi_reduction <maximumf>, %272, %cst_90 [1] : vector<8x8xf32> to vector<8xf32>
    %274 = vector.shape_cast %273 : vector<8xf32> to vector<8x1xf32>
    %275 = vector.broadcast %274 : vector<8x1xf32> to vector<8x8xf32>
    %276 = arith.subf %272, %275 : vector<8x8xf32>
    %277 = math.exp %276 : vector<8x8xf32>
    %cst_91 = arith.constant dense<0.000000e+00> : vector<8xf32>
    %278 = vector.multi_reduction <add>, %277, %cst_91 [1] : vector<8x8xf32> to vector<8xf32>
    %279 = vector.shape_cast %278 : vector<8xf32> to vector<8x1xf32>
    %280 = tpu.reciprocal %279 {approx = true} : vector<8x1xf32> -> vector<8x1xf32>
    %281 = vector.broadcast %280 : vector<8x1xf32> to vector<8x8xf32>
    %282 = arith.mulf %277, %281 : vector<8x8xf32>
    %cst_92 = arith.constant dense<0.000000e+00> : vector<8x2xf32>
    %283 = tpu.matmul %282, %269, %cst_92 {dimension_numbers = #tpu.dot_dimension_numbers<[1], [0], [0], [1], [0, 0, 1, 1], [], []>} : vector<8x8xf32>, vector<8x2xf32>, vector<8x2xf32> -> vector<8x2xf32>
    %284 = vector.extract_strided_slice %26 {offsets = [0, 30], sizes = [8, 2], strides = [1, 1]} : vector<8x32xf32> to vector<8x2xf32>
    %285 = vector.extract_strided_slice %27 {offsets = [0, 30], sizes = [8, 2], strides = [1, 1]} : vector<8x32xf32> to vector<8x2xf32>
    %286 = vector.extract_strided_slice %28 {offsets = [0, 30], sizes = [8, 2], strides = [1, 1]} : vector<8x32xf32> to vector<8x2xf32>
    "tpu.trace_start"() <{level = 10 : i32, message = "qd,kd->qk"}> : () -> ()
    %cst_93 = arith.constant dense<0.000000e+00> : vector<8x8xf32>
    %287 = tpu.matmul %284, %285, %cst_93 {dimension_numbers = #tpu.dot_dimension_numbers<[1], [1], [0], [0], [0, 0, 1, 0], [], []>} : vector<8x2xf32>, vector<8x2xf32>, vector<8x8xf32> -> vector<8x8xf32>
    "tpu.trace_stop"() : () -> ()
    %cst_94 = arith.constant 0.707106769 : f32
    %288 = vector.broadcast %cst_94 : f32 to vector<8x8xf32>
    %289 = arith.mulf %287, %288 : vector<8x8xf32>
    %cst_95 = arith.constant dense<0xFF800000> : vector<8xf32>
    %290 = vector.multi_reduction <maximumf>, %289, %cst_95 [1] : vector<8x8xf32> to vector<8xf32>
    %291 = vector.shape_cast %290 : vector<8xf32> to vector<8x1xf32>
    %292 = vector.broadcast %291 : vector<8x1xf32> to vector<8x8xf32>
    %293 = arith.subf %289, %292 : vector<8x8xf32>
    %294 = math.exp %293 : vector<8x8xf32>
    %cst_96 = arith.constant dense<0.000000e+00> : vector<8xf32>
    %295 = vector.multi_reduction <add>, %294, %cst_96 [1] : vector<8x8xf32> to vector<8xf32>
    %296 = vector.shape_cast %295 : vector<8xf32> to vector<8x1xf32>
    %297 = tpu.reciprocal %296 {approx = true} : vector<8x1xf32> -> vector<8x1xf32>
    %298 = vector.broadcast %297 : vector<8x1xf32> to vector<8x8xf32>
    %299 = arith.mulf %294, %298 : vector<8x8xf32>
    %cst_97 = arith.constant dense<0.000000e+00> : vector<8x2xf32>
    %300 = tpu.matmul %299, %286, %cst_97 {dimension_numbers = #tpu.dot_dimension_numbers<[1], [0], [0], [1], [0, 0, 1, 1], [], []>} : vector<8x8xf32>, vector<8x2xf32>, vector<8x2xf32> -> vector<8x2xf32>
    %301 = tpu.concatenate %45, %62, %79, %96, %113, %130, %147, %164, %181, %198, %215, %232, %249, %266, %283, %300 in 1 : vector<8x2xf32>, vector<8x2xf32>, vector<8x2xf32>, vector<8x2xf32>, vector<8x2xf32>, vector<8x2xf32>, vector<8x2xf32>, vector<8x2xf32>, vector<8x2xf32>, vector<8x2xf32>, vector<8x2xf32>, vector<8x2xf32>, vector<8x2xf32>, vector<8x2xf32>, vector<8x2xf32>, vector<8x2xf32> -> vector<8x32xf32>
    %302 = arith.truncf %301 : vector<8x32xf32> to vector<8x32xbf16>
    %303 = arith.truncf %19 : vector<32x32xf32> to vector<32x32xbf16>
    %cst_98 = arith.constant dense<0.000000e+00> : vector<8x32xf32>
    %304 = tpu.matmul %302, %303, %cst_98 {dimension_numbers = #tpu.dot_dimension_numbers<[1], [0], [0], [1], [0, 0, 1, 1], [], []>} : vector<8x32xbf16>, vector<32x32xbf16>, vector<8x32xf32> -> vector<8x32xf32>
    %305 = vector.broadcast %20 : vector<1x32xf32> to vector<8x32xf32>
    %306 = arith.addf %304, %305 : vector<8x32xf32>
    %c0_99 = arith.constant 0 : index
    %c0_100 = arith.constant 0 : index
    %307 = vector.load %arg8[%c0_99, %c0_100] : memref<32x32xf32, #tpu.memory_space<vmem>>, vector<32x32xf32>
    %c0_101 = arith.constant 0 : index
    %c0_102 = arith.constant 0 : index
    %308 = vector.load %arg9[%c0_101, %c0_102] : memref<1x32xf32, #tpu.memory_space<vmem>>, vector<1x32xf32>
    %c0_103 = arith.constant 0 : index
    %c0_104 = arith.constant 0 : index
    %309 = vector.load %arg10[%c0_103, %c0_104] : memref<32x64xf32, #tpu.memory_space<vmem>>, vector<32x64xf32>
    %c0_105 = arith.constant 0 : index
    %c0_106 = arith.constant 0 : index
    %310 = vector.load %arg11[%c0_105, %c0_106] : memref<1x64xf32, #tpu.memory_space<vmem>>, vector<1x64xf32>
    %c0_107 = arith.constant 0 : index
    %c0_108 = arith.constant 0 : index
    %311 = vector.load %arg12[%c0_107, %c0_108] : memref<32x32xf32, #tpu.memory_space<vmem>>, vector<32x32xf32>
    %c0_109 = arith.constant 0 : index
    %c0_110 = arith.constant 0 : index
    %312 = vector.load %arg13[%c0_109, %c0_110] : memref<1x32xf32, #tpu.memory_space<vmem>>, vector<1x32xf32>
    %313 = arith.truncf %16 : vector<8x32xf32> to vector<8x32xbf16>
    %314 = arith.truncf %307 : vector<32x32xf32> to vector<32x32xbf16>
    %cst_111 = arith.constant dense<0.000000e+00> : vector<8x32xf32>
    %315 = tpu.matmul %313, %314, %cst_111 {dimension_numbers = #tpu.dot_dimension_numbers<[1], [0], [0], [1], [0, 0, 1, 1], [], []>} : vector<8x32xbf16>, vector<32x32xbf16>, vector<8x32xf32> -> vector<8x32xf32>
    %316 = vector.broadcast %308 : vector<1x32xf32> to vector<8x32xf32>
    %317 = arith.addf %315, %316 : vector<8x32xf32>
    %318 = arith.truncf %3 : vector<8x32xf32> to vector<8x32xbf16>
    %319 = arith.truncf %309 : vector<32x64xf32> to vector<32x64xbf16>
    %cst_112 = arith.constant dense<0.000000e+00> : vector<8x64xf32>
    %320 = tpu.matmul %318, %319, %cst_112 {dimension_numbers = #tpu.dot_dimension_numbers<[1], [0], [0], [1], [0, 0, 1, 1], [], []>} : vector<8x32xbf16>, vector<32x64xbf16>, vector<8x64xf32> -> vector<8x64xf32>
    %321 = vector.broadcast %310 : vector<1x64xf32> to vector<8x64xf32>
    %322 = arith.addf %320, %321 : vector<8x64xf32>
    %323 = vector.extract_strided_slice %322 {offsets = [0, 0], sizes = [8, 32], strides = [1, 1]} : vector<8x64xf32> to vector<8x32xf32>
    %324 = vector.extract_strided_slice %322 {offsets = [0, 32], sizes = [8, 32], strides = [1, 1]} : vector<8x64xf32> to vector<8x32xf32>
    %325 = vector.extract_strided_slice %317 {offsets = [0, 0], sizes = [8, 4], strides = [1, 1]} : vector<8x32xf32> to vector<8x4xf32>
    %326 = vector.extract_strided_slice %323 {offsets = [0, 0], sizes = [8, 4], strides = [1, 1]} : vector<8x32xf32> to vector<8x4xf32>
    %327 = vector.extract_strided_slice %324 {offsets = [0, 0], sizes = [8, 4], strides = [1, 1]} : vector<8x32xf32> to vector<8x4xf32>
    "tpu.trace_start"() <{level = 10 : i32, message = "qd,kd->qk"}> : () -> ()
    %cst_113 = arith.constant dense<0.000000e+00> : vector<8x8xf32>
    %328 = tpu.matmul %325, %326, %cst_113 {dimension_numbers = #tpu.dot_dimension_numbers<[1], [1], [0], [0], [0, 0, 1, 0], [], []>} : vector<8x4xf32>, vector<8x4xf32>, vector<8x8xf32> -> vector<8x8xf32>
    "tpu.trace_stop"() : () -> ()
    %cst_114 = arith.constant 5.000000e-01 : f32
    %329 = vector.broadcast %cst_114 : f32 to vector<8x8xf32>
    %330 = arith.mulf %328, %329 : vector<8x8xf32>
    %cst_115 = arith.constant dense<0xFF800000> : vector<8xf32>
    %331 = vector.multi_reduction <maximumf>, %330, %cst_115 [1] : vector<8x8xf32> to vector<8xf32>
    %332 = vector.shape_cast %331 : vector<8xf32> to vector<8x1xf32>
    %333 = vector.broadcast %332 : vector<8x1xf32> to vector<8x8xf32>
    %334 = arith.subf %330, %333 : vector<8x8xf32>
    %335 = math.exp %334 : vector<8x8xf32>
    %cst_116 = arith.constant dense<0.000000e+00> : vector<8xf32>
    %336 = vector.multi_reduction <add>, %335, %cst_116 [1] : vector<8x8xf32> to vector<8xf32>
    %337 = vector.shape_cast %336 : vector<8xf32> to vector<8x1xf32>
    %338 = tpu.reciprocal %337 {approx = true} : vector<8x1xf32> -> vector<8x1xf32>
    %339 = vector.broadcast %338 : vector<8x1xf32> to vector<8x8xf32>
    %340 = arith.mulf %335, %339 : vector<8x8xf32>
    %cst_117 = arith.constant dense<0.000000e+00> : vector<8x4xf32>
    %341 = tpu.matmul %340, %327, %cst_117 {dimension_numbers = #tpu.dot_dimension_numbers<[1], [0], [0], [1], [0, 0, 1, 1], [], []>} : vector<8x8xf32>, vector<8x4xf32>, vector<8x4xf32> -> vector<8x4xf32>
    %342 = vector.extract_strided_slice %317 {offsets = [0, 4], sizes = [8, 4], strides = [1, 1]} : vector<8x32xf32> to vector<8x4xf32>
    %343 = vector.extract_strided_slice %323 {offsets = [0, 4], sizes = [8, 4], strides = [1, 1]} : vector<8x32xf32> to vector<8x4xf32>
    %344 = vector.extract_strided_slice %324 {offsets = [0, 4], sizes = [8, 4], strides = [1, 1]} : vector<8x32xf32> to vector<8x4xf32>
    "tpu.trace_start"() <{level = 10 : i32, message = "qd,kd->qk"}> : () -> ()
    %cst_118 = arith.constant dense<0.000000e+00> : vector<8x8xf32>
    %345 = tpu.matmul %342, %343, %cst_118 {dimension_numbers = #tpu.dot_dimension_numbers<[1], [1], [0], [0], [0, 0, 1, 0], [], []>} : vector<8x4xf32>, vector<8x4xf32>, vector<8x8xf32> -> vector<8x8xf32>
    "tpu.trace_stop"() : () -> ()
    %cst_119 = arith.constant 5.000000e-01 : f32
    %346 = vector.broadcast %cst_119 : f32 to vector<8x8xf32>
    %347 = arith.mulf %345, %346 : vector<8x8xf32>
    %cst_120 = arith.constant dense<0xFF800000> : vector<8xf32>
    %348 = vector.multi_reduction <maximumf>, %347, %cst_120 [1] : vector<8x8xf32> to vector<8xf32>
    %349 = vector.shape_cast %348 : vector<8xf32> to vector<8x1xf32>
    %350 = vector.broadcast %349 : vector<8x1xf32> to vector<8x8xf32>
    %351 = arith.subf %347, %350 : vector<8x8xf32>
    %352 = math.exp %351 : vector<8x8xf32>
    %cst_121 = arith.constant dense<0.000000e+00> : vector<8xf32>
    %353 = vector.multi_reduction <add>, %352, %cst_121 [1] : vector<8x8xf32> to vector<8xf32>
    %354 = vector.shape_cast %353 : vector<8xf32> to vector<8x1xf32>
    %355 = tpu.reciprocal %354 {approx = true} : vector<8x1xf32> -> vector<8x1xf32>
    %356 = vector.broadcast %355 : vector<8x1xf32> to vector<8x8xf32>
    %357 = arith.mulf %352, %356 : vector<8x8xf32>
    %cst_122 = arith.constant dense<0.000000e+00> : vector<8x4xf32>
    %358 = tpu.matmul %357, %344, %cst_122 {dimension_numbers = #tpu.dot_dimension_numbers<[1], [0], [0], [1], [0, 0, 1, 1], [], []>} : vector<8x8xf32>, vector<8x4xf32>, vector<8x4xf32> -> vector<8x4xf32>
    %359 = vector.extract_strided_slice %317 {offsets = [0, 8], sizes = [8, 4], strides = [1, 1]} : vector<8x32xf32> to vector<8x4xf32>
    %360 = vector.extract_strided_slice %323 {offsets = [0, 8], sizes = [8, 4], strides = [1, 1]} : vector<8x32xf32> to vector<8x4xf32>
    %361 = vector.extract_strided_slice %324 {offsets = [0, 8], sizes = [8, 4], strides = [1, 1]} : vector<8x32xf32> to vector<8x4xf32>
    "tpu.trace_start"() <{level = 10 : i32, message = "qd,kd->qk"}> : () -> ()
    %cst_123 = arith.constant dense<0.000000e+00> : vector<8x8xf32>
    %362 = tpu.matmul %359, %360, %cst_123 {dimension_numbers = #tpu.dot_dimension_numbers<[1], [1], [0], [0], [0, 0, 1, 0], [], []>} : vector<8x4xf32>, vector<8x4xf32>, vector<8x8xf32> -> vector<8x8xf32>
    "tpu.trace_stop"() : () -> ()
    %cst_124 = arith.constant 5.000000e-01 : f32
    %363 = vector.broadcast %cst_124 : f32 to vector<8x8xf32>
    %364 = arith.mulf %362, %363 : vector<8x8xf32>
    %cst_125 = arith.constant dense<0xFF800000> : vector<8xf32>
    %365 = vector.multi_reduction <maximumf>, %364, %cst_125 [1] : vector<8x8xf32> to vector<8xf32>
    %366 = vector.shape_cast %365 : vector<8xf32> to vector<8x1xf32>
    %367 = vector.broadcast %366 : vector<8x1xf32> to vector<8x8xf32>
    %368 = arith.subf %364, %367 : vector<8x8xf32>
    %369 = math.exp %368 : vector<8x8xf32>
    %cst_126 = arith.constant dense<0.000000e+00> : vector<8xf32>
    %370 = vector.multi_reduction <add>, %369, %cst_126 [1] : vector<8x8xf32> to vector<8xf32>
    %371 = vector.shape_cast %370 : vector<8xf32> to vector<8x1xf32>
    %372 = tpu.reciprocal %371 {approx = true} : vector<8x1xf32> -> vector<8x1xf32>
    %373 = vector.broadcast %372 : vector<8x1xf32> to vector<8x8xf32>
    %374 = arith.mulf %369, %373 : vector<8x8xf32>
    %cst_127 = arith.constant dense<0.000000e+00> : vector<8x4xf32>
    %375 = tpu.matmul %374, %361, %cst_127 {dimension_numbers = #tpu.dot_dimension_numbers<[1], [0], [0], [1], [0, 0, 1, 1], [], []>} : vector<8x8xf32>, vector<8x4xf32>, vector<8x4xf32> -> vector<8x4xf32>
    %376 = vector.extract_strided_slice %317 {offsets = [0, 12], sizes = [8, 4], strides = [1, 1]} : vector<8x32xf32> to vector<8x4xf32>
    %377 = vector.extract_strided_slice %323 {offsets = [0, 12], sizes = [8, 4], strides = [1, 1]} : vector<8x32xf32> to vector<8x4xf32>
    %378 = vector.extract_strided_slice %324 {offsets = [0, 12], sizes = [8, 4], strides = [1, 1]} : vector<8x32xf32> to vector<8x4xf32>
    "tpu.trace_start"() <{level = 10 : i32, message = "qd,kd->qk"}> : () -> ()
    %cst_128 = arith.constant dense<0.000000e+00> : vector<8x8xf32>
    %379 = tpu.matmul %376, %377, %cst_128 {dimension_numbers = #tpu.dot_dimension_numbers<[1], [1], [0], [0], [0, 0, 1, 0], [], []>} : vector<8x4xf32>, vector<8x4xf32>, vector<8x8xf32> -> vector<8x8xf32>
    "tpu.trace_stop"() : () -> ()
    %cst_129 = arith.constant 5.000000e-01 : f32
    %380 = vector.broadcast %cst_129 : f32 to vector<8x8xf32>
    %381 = arith.mulf %379, %380 : vector<8x8xf32>
    %cst_130 = arith.constant dense<0xFF800000> : vector<8xf32>
    %382 = vector.multi_reduction <maximumf>, %381, %cst_130 [1] : vector<8x8xf32> to vector<8xf32>
    %383 = vector.shape_cast %382 : vector<8xf32> to vector<8x1xf32>
    %384 = vector.broadcast %383 : vector<8x1xf32> to vector<8x8xf32>
    %385 = arith.subf %381, %384 : vector<8x8xf32>
    %386 = math.exp %385 : vector<8x8xf32>
    %cst_131 = arith.constant dense<0.000000e+00> : vector<8xf32>
    %387 = vector.multi_reduction <add>, %386, %cst_131 [1] : vector<8x8xf32> to vector<8xf32>
    %388 = vector.shape_cast %387 : vector<8xf32> to vector<8x1xf32>
    %389 = tpu.reciprocal %388 {approx = true} : vector<8x1xf32> -> vector<8x1xf32>
    %390 = vector.broadcast %389 : vector<8x1xf32> to vector<8x8xf32>
    %391 = arith.mulf %386, %390 : vector<8x8xf32>
    %cst_132 = arith.constant dense<0.000000e+00> : vector<8x4xf32>
    %392 = tpu.matmul %391, %378, %cst_132 {dimension_numbers = #tpu.dot_dimension_numbers<[1], [0], [0], [1], [0, 0, 1, 1], [], []>} : vector<8x8xf32>, vector<8x4xf32>, vector<8x4xf32> -> vector<8x4xf32>
    %393 = vector.extract_strided_slice %317 {offsets = [0, 16], sizes = [8, 4], strides = [1, 1]} : vector<8x32xf32> to vector<8x4xf32>
    %394 = vector.extract_strided_slice %323 {offsets = [0, 16], sizes = [8, 4], strides = [1, 1]} : vector<8x32xf32> to vector<8x4xf32>
    %395 = vector.extract_strided_slice %324 {offsets = [0, 16], sizes = [8, 4], strides = [1, 1]} : vector<8x32xf32> to vector<8x4xf32>
    "tpu.trace_start"() <{level = 10 : i32, message = "qd,kd->qk"}> : () -> ()
    %cst_133 = arith.constant dense<0.000000e+00> : vector<8x8xf32>
    %396 = tpu.matmul %393, %394, %cst_133 {dimension_numbers = #tpu.dot_dimension_numbers<[1], [1], [0], [0], [0, 0, 1, 0], [], []>} : vector<8x4xf32>, vector<8x4xf32>, vector<8x8xf32> -> vector<8x8xf32>
    "tpu.trace_stop"() : () -> ()
    %cst_134 = arith.constant 5.000000e-01 : f32
    %397 = vector.broadcast %cst_134 : f32 to vector<8x8xf32>
    %398 = arith.mulf %396, %397 : vector<8x8xf32>
    %cst_135 = arith.constant dense<0xFF800000> : vector<8xf32>
    %399 = vector.multi_reduction <maximumf>, %398, %cst_135 [1] : vector<8x8xf32> to vector<8xf32>
    %400 = vector.shape_cast %399 : vector<8xf32> to vector<8x1xf32>
    %401 = vector.broadcast %400 : vector<8x1xf32> to vector<8x8xf32>
    %402 = arith.subf %398, %401 : vector<8x8xf32>
    %403 = math.exp %402 : vector<8x8xf32>
    %cst_136 = arith.constant dense<0.000000e+00> : vector<8xf32>
    %404 = vector.multi_reduction <add>, %403, %cst_136 [1] : vector<8x8xf32> to vector<8xf32>
    %405 = vector.shape_cast %404 : vector<8xf32> to vector<8x1xf32>
    %406 = tpu.reciprocal %405 {approx = true} : vector<8x1xf32> -> vector<8x1xf32>
    %407 = vector.broadcast %406 : vector<8x1xf32> to vector<8x8xf32>
    %408 = arith.mulf %403, %407 : vector<8x8xf32>
    %cst_137 = arith.constant dense<0.000000e+00> : vector<8x4xf32>
    %409 = tpu.matmul %408, %395, %cst_137 {dimension_numbers = #tpu.dot_dimension_numbers<[1], [0], [0], [1], [0, 0, 1, 1], [], []>} : vector<8x8xf32>, vector<8x4xf32>, vector<8x4xf32> -> vector<8x4xf32>
    %410 = vector.extract_strided_slice %317 {offsets = [0, 20], sizes = [8, 4], strides = [1, 1]} : vector<8x32xf32> to vector<8x4xf32>
    %411 = vector.extract_strided_slice %323 {offsets = [0, 20], sizes = [8, 4], strides = [1, 1]} : vector<8x32xf32> to vector<8x4xf32>
    %412 = vector.extract_strided_slice %324 {offsets = [0, 20], sizes = [8, 4], strides = [1, 1]} : vector<8x32xf32> to vector<8x4xf32>
    "tpu.trace_start"() <{level = 10 : i32, message = "qd,kd->qk"}> : () -> ()
    %cst_138 = arith.constant dense<0.000000e+00> : vector<8x8xf32>
    %413 = tpu.matmul %410, %411, %cst_138 {dimension_numbers = #tpu.dot_dimension_numbers<[1], [1], [0], [0], [0, 0, 1, 0], [], []>} : vector<8x4xf32>, vector<8x4xf32>, vector<8x8xf32> -> vector<8x8xf32>
    "tpu.trace_stop"() : () -> ()
    %cst_139 = arith.constant 5.000000e-01 : f32
    %414 = vector.broadcast %cst_139 : f32 to vector<8x8xf32>
    %415 = arith.mulf %413, %414 : vector<8x8xf32>
    %cst_140 = arith.constant dense<0xFF800000> : vector<8xf32>
    %416 = vector.multi_reduction <maximumf>, %415, %cst_140 [1] : vector<8x8xf32> to vector<8xf32>
    %417 = vector.shape_cast %416 : vector<8xf32> to vector<8x1xf32>
    %418 = vector.broadcast %417 : vector<8x1xf32> to vector<8x8xf32>
    %419 = arith.subf %415, %418 : vector<8x8xf32>
    %420 = math.exp %419 : vector<8x8xf32>
    %cst_141 = arith.constant dense<0.000000e+00> : vector<8xf32>
    %421 = vector.multi_reduction <add>, %420, %cst_141 [1] : vector<8x8xf32> to vector<8xf32>
    %422 = vector.shape_cast %421 : vector<8xf32> to vector<8x1xf32>
    %423 = tpu.reciprocal %422 {approx = true} : vector<8x1xf32> -> vector<8x1xf32>
    %424 = vector.broadcast %423 : vector<8x1xf32> to vector<8x8xf32>
    %425 = arith.mulf %420, %424 : vector<8x8xf32>
    %cst_142 = arith.constant dense<0.000000e+00> : vector<8x4xf32>
    %426 = tpu.matmul %425, %412, %cst_142 {dimension_numbers = #tpu.dot_dimension_numbers<[1], [0], [0], [1], [0, 0, 1, 1], [], []>} : vector<8x8xf32>, vector<8x4xf32>, vector<8x4xf32> -> vector<8x4xf32>
    %427 = vector.extract_strided_slice %317 {offsets = [0, 24], sizes = [8, 4], strides = [1, 1]} : vector<8x32xf32> to vector<8x4xf32>
    %428 = vector.extract_strided_slice %323 {offsets = [0, 24], sizes = [8, 4], strides = [1, 1]} : vector<8x32xf32> to vector<8x4xf32>
    %429 = vector.extract_strided_slice %324 {offsets = [0, 24], sizes = [8, 4], strides = [1, 1]} : vector<8x32xf32> to vector<8x4xf32>
    "tpu.trace_start"() <{level = 10 : i32, message = "qd,kd->qk"}> : () -> ()
    %cst_143 = arith.constant dense<0.000000e+00> : vector<8x8xf32>
    %430 = tpu.matmul %427, %428, %cst_143 {dimension_numbers = #tpu.dot_dimension_numbers<[1], [1], [0], [0], [0, 0, 1, 0], [], []>} : vector<8x4xf32>, vector<8x4xf32>, vector<8x8xf32> -> vector<8x8xf32>
    "tpu.trace_stop"() : () -> ()
    %cst_144 = arith.constant 5.000000e-01 : f32
    %431 = vector.broadcast %cst_144 : f32 to vector<8x8xf32>
    %432 = arith.mulf %430, %431 : vector<8x8xf32>
    %cst_145 = arith.constant dense<0xFF800000> : vector<8xf32>
    %433 = vector.multi_reduction <maximumf>, %432, %cst_145 [1] : vector<8x8xf32> to vector<8xf32>
    %434 = vector.shape_cast %433 : vector<8xf32> to vector<8x1xf32>
    %435 = vector.broadcast %434 : vector<8x1xf32> to vector<8x8xf32>
    %436 = arith.subf %432, %435 : vector<8x8xf32>
    %437 = math.exp %436 : vector<8x8xf32>
    %cst_146 = arith.constant dense<0.000000e+00> : vector<8xf32>
    %438 = vector.multi_reduction <add>, %437, %cst_146 [1] : vector<8x8xf32> to vector<8xf32>
    %439 = vector.shape_cast %438 : vector<8xf32> to vector<8x1xf32>
    %440 = tpu.reciprocal %439 {approx = true} : vector<8x1xf32> -> vector<8x1xf32>
    %441 = vector.broadcast %440 : vector<8x1xf32> to vector<8x8xf32>
    %442 = arith.mulf %437, %441 : vector<8x8xf32>
    %cst_147 = arith.constant dense<0.000000e+00> : vector<8x4xf32>
    %443 = tpu.matmul %442, %429, %cst_147 {dimension_numbers = #tpu.dot_dimension_numbers<[1], [0], [0], [1], [0, 0, 1, 1], [], []>} : vector<8x8xf32>, vector<8x4xf32>, vector<8x4xf32> -> vector<8x4xf32>
    %444 = vector.extract_strided_slice %317 {offsets = [0, 28], sizes = [8, 4], strides = [1, 1]} : vector<8x32xf32> to vector<8x4xf32>
    %445 = vector.extract_strided_slice %323 {offsets = [0, 28], sizes = [8, 4], strides = [1, 1]} : vector<8x32xf32> to vector<8x4xf32>
    %446 = vector.extract_strided_slice %324 {offsets = [0, 28], sizes = [8, 4], strides = [1, 1]} : vector<8x32xf32> to vector<8x4xf32>
    "tpu.trace_start"() <{level = 10 : i32, message = "qd,kd->qk"}> : () -> ()
    %cst_148 = arith.constant dense<0.000000e+00> : vector<8x8xf32>
    %447 = tpu.matmul %444, %445, %cst_148 {dimension_numbers = #tpu.dot_dimension_numbers<[1], [1], [0], [0], [0, 0, 1, 0], [], []>} : vector<8x4xf32>, vector<8x4xf32>, vector<8x8xf32> -> vector<8x8xf32>
    "tpu.trace_stop"() : () -> ()
    %cst_149 = arith.constant 5.000000e-01 : f32
    %448 = vector.broadcast %cst_149 : f32 to vector<8x8xf32>
    %449 = arith.mulf %447, %448 : vector<8x8xf32>
    %cst_150 = arith.constant dense<0xFF800000> : vector<8xf32>
    %450 = vector.multi_reduction <maximumf>, %449, %cst_150 [1] : vector<8x8xf32> to vector<8xf32>
    %451 = vector.shape_cast %450 : vector<8xf32> to vector<8x1xf32>
    %452 = vector.broadcast %451 : vector<8x1xf32> to vector<8x8xf32>
    %453 = arith.subf %449, %452 : vector<8x8xf32>
    %454 = math.exp %453 : vector<8x8xf32>
    %cst_151 = arith.constant dense<0.000000e+00> : vector<8xf32>
    %455 = vector.multi_reduction <add>, %454, %cst_151 [1] : vector<8x8xf32> to vector<8xf32>
    %456 = vector.shape_cast %455 : vector<8xf32> to vector<8x1xf32>
    %457 = tpu.reciprocal %456 {approx = true} : vector<8x1xf32> -> vector<8x1xf32>
    %458 = vector.broadcast %457 : vector<8x1xf32> to vector<8x8xf32>
    %459 = arith.mulf %454, %458 : vector<8x8xf32>
    %cst_152 = arith.constant dense<0.000000e+00> : vector<8x4xf32>
    %460 = tpu.matmul %459, %446, %cst_152 {dimension_numbers = #tpu.dot_dimension_numbers<[1], [0], [0], [1], [0, 0, 1, 1], [], []>} : vector<8x8xf32>, vector<8x4xf32>, vector<8x4xf32> -> vector<8x4xf32>
    %461 = tpu.concatenate %341, %358, %375, %392, %409, %426, %443, %460 in 1 : vector<8x4xf32>, vector<8x4xf32>, vector<8x4xf32>, vector<8x4xf32>, vector<8x4xf32>, vector<8x4xf32>, vector<8x4xf32>, vector<8x4xf32> -> vector<8x32xf32>
    %462 = arith.truncf %461 : vector<8x32xf32> to vector<8x32xbf16>
    %463 = arith.truncf %311 : vector<32x32xf32> to vector<32x32xbf16>
    %cst_153 = arith.constant dense<0.000000e+00> : vector<8x32xf32>
    %464 = tpu.matmul %462, %463, %cst_153 {dimension_numbers = #tpu.dot_dimension_numbers<[1], [0], [0], [1], [0, 0, 1, 1], [], []>} : vector<8x32xbf16>, vector<32x32xbf16>, vector<8x32xf32> -> vector<8x32xf32>
    %465 = vector.broadcast %312 : vector<1x32xf32> to vector<8x32xf32>
    %466 = arith.addf %464, %465 : vector<8x32xf32>
    %467 = arith.addf %306, %466 : vector<8x32xf32>
    %468 = arith.addf %467, %1 : vector<8x32xf32>
    %c0_154 = arith.constant 0 : index
    %c0_155 = arith.constant 0 : index
    %c0_156 = arith.constant 0 : index
    %469 = vector.load %arg14[%c0_154, %c0_155, %c0_156] : memref<1x8x32xf32, #tpu.memory_space<vmem>>, vector<1x8x32xf32>
    %470 = vector.shape_cast %469 : vector<1x8x32xf32> to vector<8x32xf32>
    %471 = vector.shape_cast %468 : vector<8x32xf32> to vector<1x8x32xf32>
    tpu.vector_store %arg14[%c0_154, %c0_155, %c0_156], %471 {strides = array<i32>} : memref<1x8x32xf32, #tpu.memory_space<vmem>>, vector<1x8x32xf32>,
    return
  }
  func.func @transform_0(%arg0: i32) -> (i32, i32, i32) {
    %c0_i32 = arith.constant 0 : i32
    %c0_i32_0 = arith.constant 0 : i32
    %c0_i32_1 = arith.constant 0 : i32
    return %arg0, %c0_i32, %c0_i32_0 : i32, i32, i32
  }
  func.func @transform_1(%arg0: i32) -> (i32, i32, i32) {
    %c0_i32 = arith.constant 0 : i32
    %c0_i32_0 = arith.constant 0 : i32
    %c0_i32_1 = arith.constant 0 : i32
    return %arg0, %c0_i32, %c0_i32_0 : i32, i32, i32
  }
  func.func @transform_2(%arg0: i32) -> (i32, i32) {
    %c0_i32 = arith.constant 0 : i32
    %c0_i32_0 = arith.constant 0 : i32
    %c0_i32_1 = arith.constant 0 : i32
    return %c0_i32, %c0_i32_0 : i32, i32
  }
  func.func @transform_3(%arg0: i32) -> (i32, i32) {
    %c0_i32 = arith.constant 0 : i32
    %c0_i32_0 = arith.constant 0 : i32
    %c0_i32_1 = arith.constant 0 : i32
    return %c0_i32, %c0_i32_0 : i32, i32
  }
  func.func @transform_4(%arg0: i32) -> (i32, i32) {
    %c0_i32 = arith.constant 0 : i32
    %c0_i32_0 = arith.constant 0 : i32
    %c0_i32_1 = arith.constant 0 : i32
    return %c0_i32, %c0_i32_0 : i32, i32
  }
  func.func @transform_5(%arg0: i32) -> (i32, i32) {
    %c0_i32 = arith.constant 0 : i32
    %c0_i32_0 = arith.constant 0 : i32
    %c0_i32_1 = arith.constant 0 : i32
    return %c0_i32, %c0_i32_0 : i32, i32
  }
  func.func @transform_6(%arg0: i32) -> (i32, i32) {
    %c0_i32 = arith.constant 0 : i32
    %c0_i32_0 = arith.constant 0 : i32
    %c0_i32_1 = arith.constant 0 : i32
    return %c0_i32, %c0_i32_0 : i32, i32
  }
  func.func @transform_7(%arg0: i32) -> (i32, i32) {
    %c0_i32 = arith.constant 0 : i32
    %c0_i32_0 = arith.constant 0 : i32
    %c0_i32_1 = arith.constant 0 : i32
    return %c0_i32, %c0_i32_0 : i32, i32
  }
  func.func @transform_8(%arg0: i32) -> (i32, i32) {
    %c0_i32 = arith.constant 0 : i32
    %c0_i32_0 = arith.constant 0 : i32
    %c0_i32_1 = arith.constant 0 : i32
    return %c0_i32, %c0_i32_0 : i32, i32
  }
  func.func @transform_9(%arg0: i32) -> (i32, i32) {
    %c0_i32 = arith.constant 0 : i32
    %c0_i32_0 = arith.constant 0 : i32
    %c0_i32_1 = arith.constant 0 : i32
    return %c0_i32, %c0_i32_0 : i32, i32
  }
  func.func @transform_10(%arg0: i32) -> (i32, i32) {
    %c0_i32 = arith.constant 0 : i32
    %c0_i32_0 = arith.constant 0 : i32
    %c0_i32_1 = arith.constant 0 : i32
    return %c0_i32, %c0_i32_0 : i32, i32
  }
  func.func @transform_11(%arg0: i32) -> (i32, i32) {
    %c0_i32 = arith.constant 0 : i32
    %c0_i32_0 = arith.constant 0 : i32
    %c0_i32_1 = arith.constant 0 : i32
    return %c0_i32, %c0_i32_0 : i32, i32
  }
  func.func @transform_12(%arg0: i32) -> (i32, i32) {
    %c0_i32 = arith.constant 0 : i32
    %c0_i32_0 = arith.constant 0 : i32
    %c0_i32_1 = arith.constant 0 : i32
    return %c0_i32, %c0_i32_0 : i32, i32
  }
  func.func @transform_13(%arg0: i32) -> (i32, i32, i32) {
    %c0_i32 = arith.constant 0 : i32
    %c0_i32_0 = arith.constant 0 : i32
    %c0_i32_1 = arith.constant 0 : i32
    return %arg0, %c0_i32, %c0_i32_0 : i32, i32, i32
  }
}

module attributes {stable_mosaic.version = 11 : i64} {
  func.func @_cross_attn_block_kernel(%arg0: i32, %arg1: memref<1x8x32xf32, #tpu.memory_space<vmem>>, %arg2: memref<1x8x32xf32, #tpu.memory_space<vmem>>, %arg3: memref<1x32xf32, #tpu.memory_space<vmem>>, %arg4: memref<32x32xf32, #tpu.memory_space<vmem>>, %arg5: memref<1x32xf32, #tpu.memory_space<vmem>>, %arg6: memref<32x64xf32, #tpu.memory_space<vmem>>, %arg7: memref<1x64xf32, #tpu.memory_space<vmem>>, %arg8: memref<32x32xf32, #tpu.memory_space<vmem>>, %arg9: memref<1x32xf32, #tpu.memory_space<vmem>>, %arg10: memref<1x8x32xf32, #tpu.memory_space<vmem>>) attributes {dimension_semantics = [#tpu.dimension_semantics<parallel>], iteration_bounds = array<i64: 2>, scalar_prefetch = 0 : i64, scratch_operands = 0 : i64, tpu.core_type = #tpu.core_type<tc>, window_params = [{transform_indices = @transform_0, window_bounds = array<i64: 1, 8, 32>}, {transform_indices = @transform_1, window_bounds = array<i64: 1, 8, 32>}, {pipeline_mode = #tpu.pipeline_mode<synchronous>, transform_indices = @transform_2, window_bounds = array<i64: 1, 32>}, {pipeline_mode = #tpu.pipeline_mode<synchronous>, transform_indices = @transform_3, window_bounds = array<i64: 32, 32>}, {pipeline_mode = #tpu.pipeline_mode<synchronous>, transform_indices = @transform_4, window_bounds = array<i64: 1, 32>}, {pipeline_mode = #tpu.pipeline_mode<synchronous>, transform_indices = @transform_5, window_bounds = array<i64: 32, 64>}, {pipeline_mode = #tpu.pipeline_mode<synchronous>, transform_indices = @transform_6, window_bounds = array<i64: 1, 64>}, {pipeline_mode = #tpu.pipeline_mode<synchronous>, transform_indices = @transform_7, window_bounds = array<i64: 32, 32>}, {pipeline_mode = #tpu.pipeline_mode<synchronous>, transform_indices = @transform_8, window_bounds = array<i64: 1, 32>}, {transform_indices = @transform_9, window_bounds = array<i64: 1, 8, 32>}]} {
    %c0 = arith.constant 0 : index
    %c0_0 = arith.constant 0 : index
    %c0_1 = arith.constant 0 : index
    %0 = vector.load %arg1[%c0, %c0_0, %c0_1] : memref<1x8x32xf32, #tpu.memory_space<vmem>>, vector<1x8x32xf32>
    %1 = vector.shape_cast %0 : vector<1x8x32xf32> to vector<8x32xf32>
    %c0_2 = arith.constant 0 : index
    %c0_3 = arith.constant 0 : index
    %c0_4 = arith.constant 0 : index
    %2 = vector.load %arg2[%c0_2, %c0_3, %c0_4] : memref<1x8x32xf32, #tpu.memory_space<vmem>>, vector<1x8x32xf32>
    %3 = vector.shape_cast %2 : vector<1x8x32xf32> to vector<8x32xf32>
    %c0_5 = arith.constant 0 : index
    %c0_6 = arith.constant 0 : index
    %4 = vector.load %arg3[%c0_5, %c0_6] : memref<1x32xf32, #tpu.memory_space<vmem>>, vector<1x32xf32>
    %5 = arith.mulf %1, %1 : vector<8x32xf32>
    %cst = arith.constant dense<0.000000e+00> : vector<8xf32>
    %6 = vector.multi_reduction <add>, %5, %cst [1] : vector<8x32xf32> to vector<8xf32>
    %7 = vector.shape_cast %6 : vector<8xf32> to vector<8x1xf32>
    %cst_7 = arith.constant 3.200000e+01 : f32
    %8 = vector.broadcast %cst_7 : f32 to vector<8x1xf32>
    %9 = arith.divf %7, %8 : vector<8x1xf32>
    %10 = math.sqrt %9 : vector<8x1xf32>
    %cst_8 = arith.constant 9.99999993E-9 : f32
    %11 = vector.broadcast %cst_8 : f32 to vector<8x1xf32>
    %12 = arith.maximumf %10, %11 : vector<8x1xf32>
    %13 = vector.broadcast %12 : vector<8x1xf32> to vector<8x32xf32>
    %14 = arith.divf %1, %13 : vector<8x32xf32>
    %15 = vector.broadcast %4 : vector<1x32xf32> to vector<8x32xf32>
    %16 = arith.mulf %14, %15 : vector<8x32xf32>
    %c0_9 = arith.constant 0 : index
    %c0_10 = arith.constant 0 : index
    %17 = vector.load %arg4[%c0_9, %c0_10] : memref<32x32xf32, #tpu.memory_space<vmem>>, vector<32x32xf32>
    %c0_11 = arith.constant 0 : index
    %c0_12 = arith.constant 0 : index
    %18 = vector.load %arg5[%c0_11, %c0_12] : memref<1x32xf32, #tpu.memory_space<vmem>>, vector<1x32xf32>
    %c0_13 = arith.constant 0 : index
    %c0_14 = arith.constant 0 : index
    %19 = vector.load %arg6[%c0_13, %c0_14] : memref<32x64xf32, #tpu.memory_space<vmem>>, vector<32x64xf32>
    %c0_15 = arith.constant 0 : index
    %c0_16 = arith.constant 0 : index
    %20 = vector.load %arg7[%c0_15, %c0_16] : memref<1x64xf32, #tpu.memory_space<vmem>>, vector<1x64xf32>
    %c0_17 = arith.constant 0 : index
    %c0_18 = arith.constant 0 : index
    %21 = vector.load %arg8[%c0_17, %c0_18] : memref<32x32xf32, #tpu.memory_space<vmem>>, vector<32x32xf32>
    %c0_19 = arith.constant 0 : index
    %c0_20 = arith.constant 0 : index
    %22 = vector.load %arg9[%c0_19, %c0_20] : memref<1x32xf32, #tpu.memory_space<vmem>>, vector<1x32xf32>
    %23 = arith.truncf %16 : vector<8x32xf32> to vector<8x32xbf16>
    %24 = arith.truncf %17 : vector<32x32xf32> to vector<32x32xbf16>
    %cst_21 = arith.constant dense<0.000000e+00> : vector<8x32xf32>
    %25 = tpu.matmul %23, %24, %cst_21 {dimension_numbers = #tpu.dot_dimension_numbers<[1], [0], [0], [1], [0, 0, 1, 1], [], []>} : vector<8x32xbf16>, vector<32x32xbf16>, vector<8x32xf32> -> vector<8x32xf32>
    %26 = vector.broadcast %18 : vector<1x32xf32> to vector<8x32xf32>
    %27 = arith.addf %25, %26 : vector<8x32xf32>
    %28 = arith.truncf %3 : vector<8x32xf32> to vector<8x32xbf16>
    %29 = arith.truncf %19 : vector<32x64xf32> to vector<32x64xbf16>
    %cst_22 = arith.constant dense<0.000000e+00> : vector<8x64xf32>
    %30 = tpu.matmul %28, %29, %cst_22 {dimension_numbers = #tpu.dot_dimension_numbers<[1], [0], [0], [1], [0, 0, 1, 1], [], []>} : vector<8x32xbf16>, vector<32x64xbf16>, vector<8x64xf32> -> vector<8x64xf32>
    %31 = vector.broadcast %20 : vector<1x64xf32> to vector<8x64xf32>
    %32 = arith.addf %30, %31 : vector<8x64xf32>
    %33 = vector.extract_strided_slice %32 {offsets = [0, 0], sizes = [8, 32], strides = [1, 1]} : vector<8x64xf32> to vector<8x32xf32>
    %34 = vector.extract_strided_slice %32 {offsets = [0, 32], sizes = [8, 32], strides = [1, 1]} : vector<8x64xf32> to vector<8x32xf32>
    %35 = vector.extract_strided_slice %27 {offsets = [0, 0], sizes = [8, 4], strides = [1, 1]} : vector<8x32xf32> to vector<8x4xf32>
    %36 = vector.extract_strided_slice %33 {offsets = [0, 0], sizes = [8, 4], strides = [1, 1]} : vector<8x32xf32> to vector<8x4xf32>
    %37 = vector.extract_strided_slice %34 {offsets = [0, 0], sizes = [8, 4], strides = [1, 1]} : vector<8x32xf32> to vector<8x4xf32>
    "tpu.trace_start"() <{level = 10 : i32, message = "qd,kd->qk"}> : () -> ()
    %cst_23 = arith.constant dense<0.000000e+00> : vector<8x8xf32>
    %38 = tpu.matmul %35, %36, %cst_23 {dimension_numbers = #tpu.dot_dimension_numbers<[1], [1], [0], [0], [0, 0, 1, 0], [], []>} : vector<8x4xf32>, vector<8x4xf32>, vector<8x8xf32> -> vector<8x8xf32>
    "tpu.trace_stop"() : () -> ()
    %cst_24 = arith.constant 5.000000e-01 : f32
    %39 = vector.broadcast %cst_24 : f32 to vector<8x8xf32>
    %40 = arith.mulf %38, %39 : vector<8x8xf32>
    %cst_25 = arith.constant dense<0xFF800000> : vector<8xf32>
    %41 = vector.multi_reduction <maximumf>, %40, %cst_25 [1] : vector<8x8xf32> to vector<8xf32>
    %42 = vector.shape_cast %41 : vector<8xf32> to vector<8x1xf32>
    %43 = vector.broadcast %42 : vector<8x1xf32> to vector<8x8xf32>
    %44 = arith.subf %40, %43 : vector<8x8xf32>
    %45 = math.exp %44 : vector<8x8xf32>
    %cst_26 = arith.constant dense<0.000000e+00> : vector<8xf32>
    %46 = vector.multi_reduction <add>, %45, %cst_26 [1] : vector<8x8xf32> to vector<8xf32>
    %47 = vector.shape_cast %46 : vector<8xf32> to vector<8x1xf32>
    %48 = tpu.reciprocal %47 {approx = true} : vector<8x1xf32> -> vector<8x1xf32>
    %49 = vector.broadcast %48 : vector<8x1xf32> to vector<8x8xf32>
    %50 = arith.mulf %45, %49 : vector<8x8xf32>
    %cst_27 = arith.constant dense<0.000000e+00> : vector<8x4xf32>
    %51 = tpu.matmul %50, %37, %cst_27 {dimension_numbers = #tpu.dot_dimension_numbers<[1], [0], [0], [1], [0, 0, 1, 1], [], []>} : vector<8x8xf32>, vector<8x4xf32>, vector<8x4xf32> -> vector<8x4xf32>
    %52 = vector.extract_strided_slice %27 {offsets = [0, 4], sizes = [8, 4], strides = [1, 1]} : vector<8x32xf32> to vector<8x4xf32>
    %53 = vector.extract_strided_slice %33 {offsets = [0, 4], sizes = [8, 4], strides = [1, 1]} : vector<8x32xf32> to vector<8x4xf32>
    %54 = vector.extract_strided_slice %34 {offsets = [0, 4], sizes = [8, 4], strides = [1, 1]} : vector<8x32xf32> to vector<8x4xf32>
    "tpu.trace_start"() <{level = 10 : i32, message = "qd,kd->qk"}> : () -> ()
    %cst_28 = arith.constant dense<0.000000e+00> : vector<8x8xf32>
    %55 = tpu.matmul %52, %53, %cst_28 {dimension_numbers = #tpu.dot_dimension_numbers<[1], [1], [0], [0], [0, 0, 1, 0], [], []>} : vector<8x4xf32>, vector<8x4xf32>, vector<8x8xf32> -> vector<8x8xf32>
    "tpu.trace_stop"() : () -> ()
    %cst_29 = arith.constant 5.000000e-01 : f32
    %56 = vector.broadcast %cst_29 : f32 to vector<8x8xf32>
    %57 = arith.mulf %55, %56 : vector<8x8xf32>
    %cst_30 = arith.constant dense<0xFF800000> : vector<8xf32>
    %58 = vector.multi_reduction <maximumf>, %57, %cst_30 [1] : vector<8x8xf32> to vector<8xf32>
    %59 = vector.shape_cast %58 : vector<8xf32> to vector<8x1xf32>
    %60 = vector.broadcast %59 : vector<8x1xf32> to vector<8x8xf32>
    %61 = arith.subf %57, %60 : vector<8x8xf32>
    %62 = math.exp %61 : vector<8x8xf32>
    %cst_31 = arith.constant dense<0.000000e+00> : vector<8xf32>
    %63 = vector.multi_reduction <add>, %62, %cst_31 [1] : vector<8x8xf32> to vector<8xf32>
    %64 = vector.shape_cast %63 : vector<8xf32> to vector<8x1xf32>
    %65 = tpu.reciprocal %64 {approx = true} : vector<8x1xf32> -> vector<8x1xf32>
    %66 = vector.broadcast %65 : vector<8x1xf32> to vector<8x8xf32>
    %67 = arith.mulf %62, %66 : vector<8x8xf32>
    %cst_32 = arith.constant dense<0.000000e+00> : vector<8x4xf32>
    %68 = tpu.matmul %67, %54, %cst_32 {dimension_numbers = #tpu.dot_dimension_numbers<[1], [0], [0], [1], [0, 0, 1, 1], [], []>} : vector<8x8xf32>, vector<8x4xf32>, vector<8x4xf32> -> vector<8x4xf32>
    %69 = vector.extract_strided_slice %27 {offsets = [0, 8], sizes = [8, 4], strides = [1, 1]} : vector<8x32xf32> to vector<8x4xf32>
    %70 = vector.extract_strided_slice %33 {offsets = [0, 8], sizes = [8, 4], strides = [1, 1]} : vector<8x32xf32> to vector<8x4xf32>
    %71 = vector.extract_strided_slice %34 {offsets = [0, 8], sizes = [8, 4], strides = [1, 1]} : vector<8x32xf32> to vector<8x4xf32>
    "tpu.trace_start"() <{level = 10 : i32, message = "qd,kd->qk"}> : () -> ()
    %cst_33 = arith.constant dense<0.000000e+00> : vector<8x8xf32>
    %72 = tpu.matmul %69, %70, %cst_33 {dimension_numbers = #tpu.dot_dimension_numbers<[1], [1], [0], [0], [0, 0, 1, 0], [], []>} : vector<8x4xf32>, vector<8x4xf32>, vector<8x8xf32> -> vector<8x8xf32>
    "tpu.trace_stop"() : () -> ()
    %cst_34 = arith.constant 5.000000e-01 : f32
    %73 = vector.broadcast %cst_34 : f32 to vector<8x8xf32>
    %74 = arith.mulf %72, %73 : vector<8x8xf32>
    %cst_35 = arith.constant dense<0xFF800000> : vector<8xf32>
    %75 = vector.multi_reduction <maximumf>, %74, %cst_35 [1] : vector<8x8xf32> to vector<8xf32>
    %76 = vector.shape_cast %75 : vector<8xf32> to vector<8x1xf32>
    %77 = vector.broadcast %76 : vector<8x1xf32> to vector<8x8xf32>
    %78 = arith.subf %74, %77 : vector<8x8xf32>
    %79 = math.exp %78 : vector<8x8xf32>
    %cst_36 = arith.constant dense<0.000000e+00> : vector<8xf32>
    %80 = vector.multi_reduction <add>, %79, %cst_36 [1] : vector<8x8xf32> to vector<8xf32>
    %81 = vector.shape_cast %80 : vector<8xf32> to vector<8x1xf32>
    %82 = tpu.reciprocal %81 {approx = true} : vector<8x1xf32> -> vector<8x1xf32>
    %83 = vector.broadcast %82 : vector<8x1xf32> to vector<8x8xf32>
    %84 = arith.mulf %79, %83 : vector<8x8xf32>
    %cst_37 = arith.constant dense<0.000000e+00> : vector<8x4xf32>
    %85 = tpu.matmul %84, %71, %cst_37 {dimension_numbers = #tpu.dot_dimension_numbers<[1], [0], [0], [1], [0, 0, 1, 1], [], []>} : vector<8x8xf32>, vector<8x4xf32>, vector<8x4xf32> -> vector<8x4xf32>
    %86 = vector.extract_strided_slice %27 {offsets = [0, 12], sizes = [8, 4], strides = [1, 1]} : vector<8x32xf32> to vector<8x4xf32>
    %87 = vector.extract_strided_slice %33 {offsets = [0, 12], sizes = [8, 4], strides = [1, 1]} : vector<8x32xf32> to vector<8x4xf32>
    %88 = vector.extract_strided_slice %34 {offsets = [0, 12], sizes = [8, 4], strides = [1, 1]} : vector<8x32xf32> to vector<8x4xf32>
    "tpu.trace_start"() <{level = 10 : i32, message = "qd,kd->qk"}> : () -> ()
    %cst_38 = arith.constant dense<0.000000e+00> : vector<8x8xf32>
    %89 = tpu.matmul %86, %87, %cst_38 {dimension_numbers = #tpu.dot_dimension_numbers<[1], [1], [0], [0], [0, 0, 1, 0], [], []>} : vector<8x4xf32>, vector<8x4xf32>, vector<8x8xf32> -> vector<8x8xf32>
    "tpu.trace_stop"() : () -> ()
    %cst_39 = arith.constant 5.000000e-01 : f32
    %90 = vector.broadcast %cst_39 : f32 to vector<8x8xf32>
    %91 = arith.mulf %89, %90 : vector<8x8xf32>
    %cst_40 = arith.constant dense<0xFF800000> : vector<8xf32>
    %92 = vector.multi_reduction <maximumf>, %91, %cst_40 [1] : vector<8x8xf32> to vector<8xf32>
    %93 = vector.shape_cast %92 : vector<8xf32> to vector<8x1xf32>
    %94 = vector.broadcast %93 : vector<8x1xf32> to vector<8x8xf32>
    %95 = arith.subf %91, %94 : vector<8x8xf32>
    %96 = math.exp %95 : vector<8x8xf32>
    %cst_41 = arith.constant dense<0.000000e+00> : vector<8xf32>
    %97 = vector.multi_reduction <add>, %96, %cst_41 [1] : vector<8x8xf32> to vector<8xf32>
    %98 = vector.shape_cast %97 : vector<8xf32> to vector<8x1xf32>
    %99 = tpu.reciprocal %98 {approx = true} : vector<8x1xf32> -> vector<8x1xf32>
    %100 = vector.broadcast %99 : vector<8x1xf32> to vector<8x8xf32>
    %101 = arith.mulf %96, %100 : vector<8x8xf32>
    %cst_42 = arith.constant dense<0.000000e+00> : vector<8x4xf32>
    %102 = tpu.matmul %101, %88, %cst_42 {dimension_numbers = #tpu.dot_dimension_numbers<[1], [0], [0], [1], [0, 0, 1, 1], [], []>} : vector<8x8xf32>, vector<8x4xf32>, vector<8x4xf32> -> vector<8x4xf32>
    %103 = vector.extract_strided_slice %27 {offsets = [0, 16], sizes = [8, 4], strides = [1, 1]} : vector<8x32xf32> to vector<8x4xf32>
    %104 = vector.extract_strided_slice %33 {offsets = [0, 16], sizes = [8, 4], strides = [1, 1]} : vector<8x32xf32> to vector<8x4xf32>
    %105 = vector.extract_strided_slice %34 {offsets = [0, 16], sizes = [8, 4], strides = [1, 1]} : vector<8x32xf32> to vector<8x4xf32>
    "tpu.trace_start"() <{level = 10 : i32, message = "qd,kd->qk"}> : () -> ()
    %cst_43 = arith.constant dense<0.000000e+00> : vector<8x8xf32>
    %106 = tpu.matmul %103, %104, %cst_43 {dimension_numbers = #tpu.dot_dimension_numbers<[1], [1], [0], [0], [0, 0, 1, 0], [], []>} : vector<8x4xf32>, vector<8x4xf32>, vector<8x8xf32> -> vector<8x8xf32>
    "tpu.trace_stop"() : () -> ()
    %cst_44 = arith.constant 5.000000e-01 : f32
    %107 = vector.broadcast %cst_44 : f32 to vector<8x8xf32>
    %108 = arith.mulf %106, %107 : vector<8x8xf32>
    %cst_45 = arith.constant dense<0xFF800000> : vector<8xf32>
    %109 = vector.multi_reduction <maximumf>, %108, %cst_45 [1] : vector<8x8xf32> to vector<8xf32>
    %110 = vector.shape_cast %109 : vector<8xf32> to vector<8x1xf32>
    %111 = vector.broadcast %110 : vector<8x1xf32> to vector<8x8xf32>
    %112 = arith.subf %108, %111 : vector<8x8xf32>
    %113 = math.exp %112 : vector<8x8xf32>
    %cst_46 = arith.constant dense<0.000000e+00> : vector<8xf32>
    %114 = vector.multi_reduction <add>, %113, %cst_46 [1] : vector<8x8xf32> to vector<8xf32>
    %115 = vector.shape_cast %114 : vector<8xf32> to vector<8x1xf32>
    %116 = tpu.reciprocal %115 {approx = true} : vector<8x1xf32> -> vector<8x1xf32>
    %117 = vector.broadcast %116 : vector<8x1xf32> to vector<8x8xf32>
    %118 = arith.mulf %113, %117 : vector<8x8xf32>
    %cst_47 = arith.constant dense<0.000000e+00> : vector<8x4xf32>
    %119 = tpu.matmul %118, %105, %cst_47 {dimension_numbers = #tpu.dot_dimension_numbers<[1], [0], [0], [1], [0, 0, 1, 1], [], []>} : vector<8x8xf32>, vector<8x4xf32>, vector<8x4xf32> -> vector<8x4xf32>
    %120 = vector.extract_strided_slice %27 {offsets = [0, 20], sizes = [8, 4], strides = [1, 1]} : vector<8x32xf32> to vector<8x4xf32>
    %121 = vector.extract_strided_slice %33 {offsets = [0, 20], sizes = [8, 4], strides = [1, 1]} : vector<8x32xf32> to vector<8x4xf32>
    %122 = vector.extract_strided_slice %34 {offsets = [0, 20], sizes = [8, 4], strides = [1, 1]} : vector<8x32xf32> to vector<8x4xf32>
    "tpu.trace_start"() <{level = 10 : i32, message = "qd,kd->qk"}> : () -> ()
    %cst_48 = arith.constant dense<0.000000e+00> : vector<8x8xf32>
    %123 = tpu.matmul %120, %121, %cst_48 {dimension_numbers = #tpu.dot_dimension_numbers<[1], [1], [0], [0], [0, 0, 1, 0], [], []>} : vector<8x4xf32>, vector<8x4xf32>, vector<8x8xf32> -> vector<8x8xf32>
    "tpu.trace_stop"() : () -> ()
    %cst_49 = arith.constant 5.000000e-01 : f32
    %124 = vector.broadcast %cst_49 : f32 to vector<8x8xf32>
    %125 = arith.mulf %123, %124 : vector<8x8xf32>
    %cst_50 = arith.constant dense<0xFF800000> : vector<8xf32>
    %126 = vector.multi_reduction <maximumf>, %125, %cst_50 [1] : vector<8x8xf32> to vector<8xf32>
    %127 = vector.shape_cast %126 : vector<8xf32> to vector<8x1xf32>
    %128 = vector.broadcast %127 : vector<8x1xf32> to vector<8x8xf32>
    %129 = arith.subf %125, %128 : vector<8x8xf32>
    %130 = math.exp %129 : vector<8x8xf32>
    %cst_51 = arith.constant dense<0.000000e+00> : vector<8xf32>
    %131 = vector.multi_reduction <add>, %130, %cst_51 [1] : vector<8x8xf32> to vector<8xf32>
    %132 = vector.shape_cast %131 : vector<8xf32> to vector<8x1xf32>
    %133 = tpu.reciprocal %132 {approx = true} : vector<8x1xf32> -> vector<8x1xf32>
    %134 = vector.broadcast %133 : vector<8x1xf32> to vector<8x8xf32>
    %135 = arith.mulf %130, %134 : vector<8x8xf32>
    %cst_52 = arith.constant dense<0.000000e+00> : vector<8x4xf32>
    %136 = tpu.matmul %135, %122, %cst_52 {dimension_numbers = #tpu.dot_dimension_numbers<[1], [0], [0], [1], [0, 0, 1, 1], [], []>} : vector<8x8xf32>, vector<8x4xf32>, vector<8x4xf32> -> vector<8x4xf32>
    %137 = vector.extract_strided_slice %27 {offsets = [0, 24], sizes = [8, 4], strides = [1, 1]} : vector<8x32xf32> to vector<8x4xf32>
    %138 = vector.extract_strided_slice %33 {offsets = [0, 24], sizes = [8, 4], strides = [1, 1]} : vector<8x32xf32> to vector<8x4xf32>
    %139 = vector.extract_strided_slice %34 {offsets = [0, 24], sizes = [8, 4], strides = [1, 1]} : vector<8x32xf32> to vector<8x4xf32>
    "tpu.trace_start"() <{level = 10 : i32, message = "qd,kd->qk"}> : () -> ()
    %cst_53 = arith.constant dense<0.000000e+00> : vector<8x8xf32>
    %140 = tpu.matmul %137, %138, %cst_53 {dimension_numbers = #tpu.dot_dimension_numbers<[1], [1], [0], [0], [0, 0, 1, 0], [], []>} : vector<8x4xf32>, vector<8x4xf32>, vector<8x8xf32> -> vector<8x8xf32>
    "tpu.trace_stop"() : () -> ()
    %cst_54 = arith.constant 5.000000e-01 : f32
    %141 = vector.broadcast %cst_54 : f32 to vector<8x8xf32>
    %142 = arith.mulf %140, %141 : vector<8x8xf32>
    %cst_55 = arith.constant dense<0xFF800000> : vector<8xf32>
    %143 = vector.multi_reduction <maximumf>, %142, %cst_55 [1] : vector<8x8xf32> to vector<8xf32>
    %144 = vector.shape_cast %143 : vector<8xf32> to vector<8x1xf32>
    %145 = vector.broadcast %144 : vector<8x1xf32> to vector<8x8xf32>
    %146 = arith.subf %142, %145 : vector<8x8xf32>
    %147 = math.exp %146 : vector<8x8xf32>
    %cst_56 = arith.constant dense<0.000000e+00> : vector<8xf32>
    %148 = vector.multi_reduction <add>, %147, %cst_56 [1] : vector<8x8xf32> to vector<8xf32>
    %149 = vector.shape_cast %148 : vector<8xf32> to vector<8x1xf32>
    %150 = tpu.reciprocal %149 {approx = true} : vector<8x1xf32> -> vector<8x1xf32>
    %151 = vector.broadcast %150 : vector<8x1xf32> to vector<8x8xf32>
    %152 = arith.mulf %147, %151 : vector<8x8xf32>
    %cst_57 = arith.constant dense<0.000000e+00> : vector<8x4xf32>
    %153 = tpu.matmul %152, %139, %cst_57 {dimension_numbers = #tpu.dot_dimension_numbers<[1], [0], [0], [1], [0, 0, 1, 1], [], []>} : vector<8x8xf32>, vector<8x4xf32>, vector<8x4xf32> -> vector<8x4xf32>
    %154 = vector.extract_strided_slice %27 {offsets = [0, 28], sizes = [8, 4], strides = [1, 1]} : vector<8x32xf32> to vector<8x4xf32>
    %155 = vector.extract_strided_slice %33 {offsets = [0, 28], sizes = [8, 4], strides = [1, 1]} : vector<8x32xf32> to vector<8x4xf32>
    %156 = vector.extract_strided_slice %34 {offsets = [0, 28], sizes = [8, 4], strides = [1, 1]} : vector<8x32xf32> to vector<8x4xf32>
    "tpu.trace_start"() <{level = 10 : i32, message = "qd,kd->qk"}> : () -> ()
    %cst_58 = arith.constant dense<0.000000e+00> : vector<8x8xf32>
    %157 = tpu.matmul %154, %155, %cst_58 {dimension_numbers = #tpu.dot_dimension_numbers<[1], [1], [0], [0], [0, 0, 1, 0], [], []>} : vector<8x4xf32>, vector<8x4xf32>, vector<8x8xf32> -> vector<8x8xf32>
    "tpu.trace_stop"() : () -> ()
    %cst_59 = arith.constant 5.000000e-01 : f32
    %158 = vector.broadcast %cst_59 : f32 to vector<8x8xf32>
    %159 = arith.mulf %157, %158 : vector<8x8xf32>
    %cst_60 = arith.constant dense<0xFF800000> : vector<8xf32>
    %160 = vector.multi_reduction <maximumf>, %159, %cst_60 [1] : vector<8x8xf32> to vector<8xf32>
    %161 = vector.shape_cast %160 : vector<8xf32> to vector<8x1xf32>
    %162 = vector.broadcast %161 : vector<8x1xf32> to vector<8x8xf32>
    %163 = arith.subf %159, %162 : vector<8x8xf32>
    %164 = math.exp %163 : vector<8x8xf32>
    %cst_61 = arith.constant dense<0.000000e+00> : vector<8xf32>
    %165 = vector.multi_reduction <add>, %164, %cst_61 [1] : vector<8x8xf32> to vector<8xf32>
    %166 = vector.shape_cast %165 : vector<8xf32> to vector<8x1xf32>
    %167 = tpu.reciprocal %166 {approx = true} : vector<8x1xf32> -> vector<8x1xf32>
    %168 = vector.broadcast %167 : vector<8x1xf32> to vector<8x8xf32>
    %169 = arith.mulf %164, %168 : vector<8x8xf32>
    %cst_62 = arith.constant dense<0.000000e+00> : vector<8x4xf32>
    %170 = tpu.matmul %169, %156, %cst_62 {dimension_numbers = #tpu.dot_dimension_numbers<[1], [0], [0], [1], [0, 0, 1, 1], [], []>} : vector<8x8xf32>, vector<8x4xf32>, vector<8x4xf32> -> vector<8x4xf32>
    %171 = tpu.concatenate %51, %68, %85, %102, %119, %136, %153, %170 in 1 : vector<8x4xf32>, vector<8x4xf32>, vector<8x4xf32>, vector<8x4xf32>, vector<8x4xf32>, vector<8x4xf32>, vector<8x4xf32>, vector<8x4xf32> -> vector<8x32xf32>
    %172 = arith.truncf %171 : vector<8x32xf32> to vector<8x32xbf16>
    %173 = arith.truncf %21 : vector<32x32xf32> to vector<32x32xbf16>
    %cst_63 = arith.constant dense<0.000000e+00> : vector<8x32xf32>
    %174 = tpu.matmul %172, %173, %cst_63 {dimension_numbers = #tpu.dot_dimension_numbers<[1], [0], [0], [1], [0, 0, 1, 1], [], []>} : vector<8x32xbf16>, vector<32x32xbf16>, vector<8x32xf32> -> vector<8x32xf32>
    %175 = vector.broadcast %22 : vector<1x32xf32> to vector<8x32xf32>
    %176 = arith.addf %174, %175 : vector<8x32xf32>
    %177 = arith.addf %176, %1 : vector<8x32xf32>
    %c0_64 = arith.constant 0 : index
    %c0_65 = arith.constant 0 : index
    %c0_66 = arith.constant 0 : index
    %178 = vector.load %arg10[%c0_64, %c0_65, %c0_66] : memref<1x8x32xf32, #tpu.memory_space<vmem>>, vector<1x8x32xf32>
    %179 = vector.shape_cast %178 : vector<1x8x32xf32> to vector<8x32xf32>
    %180 = vector.shape_cast %177 : vector<8x32xf32> to vector<1x8x32xf32>
    tpu.vector_store %arg10[%c0_64, %c0_65, %c0_66], %180 {strides = array<i32>} : memref<1x8x32xf32, #tpu.memory_space<vmem>>, vector<1x8x32xf32>,
    return
  }
  func.func @transform_0(%arg0: i32) -> (i32, i32, i32) {
    %c0_i32 = arith.constant 0 : i32
    %c0_i32_0 = arith.constant 0 : i32
    %c0_i32_1 = arith.constant 0 : i32
    return %arg0, %c0_i32, %c0_i32_0 : i32, i32, i32
  }
  func.func @transform_1(%arg0: i32) -> (i32, i32, i32) {
    %c0_i32 = arith.constant 0 : i32
    %c0_i32_0 = arith.constant 0 : i32
    %c0_i32_1 = arith.constant 0 : i32
    return %arg0, %c0_i32, %c0_i32_0 : i32, i32, i32
  }
  func.func @transform_2(%arg0: i32) -> (i32, i32) {
    %c0_i32 = arith.constant 0 : i32
    %c0_i32_0 = arith.constant 0 : i32
    %c0_i32_1 = arith.constant 0 : i32
    return %c0_i32, %c0_i32_0 : i32, i32
  }
  func.func @transform_3(%arg0: i32) -> (i32, i32) {
    %c0_i32 = arith.constant 0 : i32
    %c0_i32_0 = arith.constant 0 : i32
    %c0_i32_1 = arith.constant 0 : i32
    return %c0_i32, %c0_i32_0 : i32, i32
  }
  func.func @transform_4(%arg0: i32) -> (i32, i32) {
    %c0_i32 = arith.constant 0 : i32
    %c0_i32_0 = arith.constant 0 : i32
    %c0_i32_1 = arith.constant 0 : i32
    return %c0_i32, %c0_i32_0 : i32, i32
  }
  func.func @transform_5(%arg0: i32) -> (i32, i32) {
    %c0_i32 = arith.constant 0 : i32
    %c0_i32_0 = arith.constant 0 : i32
    %c0_i32_1 = arith.constant 0 : i32
    return %c0_i32, %c0_i32_0 : i32, i32
  }
  func.func @transform_6(%arg0: i32) -> (i32, i32) {
    %c0_i32 = arith.constant 0 : i32
    %c0_i32_0 = arith.constant 0 : i32
    %c0_i32_1 = arith.constant 0 : i32
    return %c0_i32, %c0_i32_0 : i32, i32
  }
  func.func @transform_7(%arg0: i32) -> (i32, i32) {
    %c0_i32 = arith.constant 0 : i32
    %c0_i32_0 = arith.constant 0 : i32
    %c0_i32_1 = arith.constant 0 : i32
    return %c0_i32, %c0_i32_0 : i32, i32
  }
  func.func @transform_8(%arg0: i32) -> (i32, i32) {
    %c0_i32 = arith.constant 0 : i32
    %c0_i32_0 = arith.constant 0 : i32
    %c0_i32_1 = arith.constant 0 : i32
    return %c0_i32, %c0_i32_0 : i32, i32
  }
  func.func @transform_9(%arg0: i32) -> (i32, i32, i32) {
    %c0_i32 = arith.constant 0 : i32
    %c0_i32_0 = arith.constant 0 : i32
    %c0_i32_1 = arith.constant 0 : i32
    return %arg0, %c0_i32, %c0_i32_0 : i32, i32, i32
  }
}

module attributes {stable_mosaic.version = 11 : i64} {
  func.func @_self_attn_block_kernel(%arg0: i32, %arg1: memref<1x8x32xf32, #tpu.memory_space<vmem>>, %arg2: memref<1x32xf32, #tpu.memory_space<vmem>>, %arg3: memref<32x96xf32, #tpu.memory_space<vmem>>, %arg4: memref<1x96xf32, #tpu.memory_space<vmem>>, %arg5: memref<32x32xf32, #tpu.memory_space<vmem>>, %arg6: memref<1x32xf32, #tpu.memory_space<vmem>>, %arg7: memref<1x8x32xf32, #tpu.memory_space<vmem>>) attributes {dimension_semantics = [#tpu.dimension_semantics<parallel>], iteration_bounds = array<i64: 2>, scalar_prefetch = 0 : i64, scratch_operands = 0 : i64, tpu.core_type = #tpu.core_type<tc>, window_params = [{transform_indices = @transform_0, window_bounds = array<i64: 1, 8, 32>}, {pipeline_mode = #tpu.pipeline_mode<synchronous>, transform_indices = @transform_1, window_bounds = array<i64: 1, 32>}, {pipeline_mode = #tpu.pipeline_mode<synchronous>, transform_indices = @transform_2, window_bounds = array<i64: 32, 96>}, {pipeline_mode = #tpu.pipeline_mode<synchronous>, transform_indices = @transform_3, window_bounds = array<i64: 1, 96>}, {pipeline_mode = #tpu.pipeline_mode<synchronous>, transform_indices = @transform_4, window_bounds = array<i64: 32, 32>}, {pipeline_mode = #tpu.pipeline_mode<synchronous>, transform_indices = @transform_5, window_bounds = array<i64: 1, 32>}, {transform_indices = @transform_6, window_bounds = array<i64: 1, 8, 32>}]} {
    %c0 = arith.constant 0 : index
    %c0_0 = arith.constant 0 : index
    %c0_1 = arith.constant 0 : index
    %0 = vector.load %arg1[%c0, %c0_0, %c0_1] : memref<1x8x32xf32, #tpu.memory_space<vmem>>, vector<1x8x32xf32>
    %1 = vector.shape_cast %0 : vector<1x8x32xf32> to vector<8x32xf32>
    %c0_2 = arith.constant 0 : index
    %c0_3 = arith.constant 0 : index
    %2 = vector.load %arg2[%c0_2, %c0_3] : memref<1x32xf32, #tpu.memory_space<vmem>>, vector<1x32xf32>
    %3 = arith.mulf %1, %1 : vector<8x32xf32>
    %cst = arith.constant dense<0.000000e+00> : vector<8xf32>
    %4 = vector.multi_reduction <add>, %3, %cst [1] : vector<8x32xf32> to vector<8xf32>
    %5 = vector.shape_cast %4 : vector<8xf32> to vector<8x1xf32>
    %cst_4 = arith.constant 3.200000e+01 : f32
    %6 = vector.broadcast %cst_4 : f32 to vector<8x1xf32>
    %7 = arith.divf %5, %6 : vector<8x1xf32>
    %8 = math.sqrt %7 : vector<8x1xf32>
    %cst_5 = arith.constant 9.99999993E-9 : f32
    %9 = vector.broadcast %cst_5 : f32 to vector<8x1xf32>
    %10 = arith.maximumf %8, %9 : vector<8x1xf32>
    %11 = vector.broadcast %10 : vector<8x1xf32> to vector<8x32xf32>
    %12 = arith.divf %1, %11 : vector<8x32xf32>
    %13 = vector.broadcast %2 : vector<1x32xf32> to vector<8x32xf32>
    %14 = arith.mulf %12, %13 : vector<8x32xf32>
    %c0_6 = arith.constant 0 : index
    %c0_7 = arith.constant 0 : index
    %15 = vector.load %arg3[%c0_6, %c0_7] : memref<32x96xf32, #tpu.memory_space<vmem>>, vector<32x96xf32>
    %c0_8 = arith.constant 0 : index
    %c0_9 = arith.constant 0 : index
    %16 = vector.load %arg4[%c0_8, %c0_9] : memref<1x96xf32, #tpu.memory_space<vmem>>, vector<1x96xf32>
    %c0_10 = arith.constant 0 : index
    %c0_11 = arith.constant 0 : index
    %17 = vector.load %arg5[%c0_10, %c0_11] : memref<32x32xf32, #tpu.memory_space<vmem>>, vector<32x32xf32>
    %c0_12 = arith.constant 0 : index
    %c0_13 = arith.constant 0 : index
    %18 = vector.load %arg6[%c0_12, %c0_13] : memref<1x32xf32, #tpu.memory_space<vmem>>, vector<1x32xf32>
    %19 = arith.truncf %14 : vector<8x32xf32> to vector<8x32xbf16>
    %20 = arith.truncf %15 : vector<32x96xf32> to vector<32x96xbf16>
    %cst_14 = arith.constant dense<0.000000e+00> : vector<8x96xf32>
    %21 = tpu.matmul %19, %20, %cst_14 {dimension_numbers = #tpu.dot_dimension_numbers<[1], [0], [0], [1], [0, 0, 1, 1], [], []>} : vector<8x32xbf16>, vector<32x96xbf16>, vector<8x96xf32> -> vector<8x96xf32>
    %22 = vector.broadcast %16 : vector<1x96xf32> to vector<8x96xf32>
    %23 = arith.addf %21, %22 : vector<8x96xf32>
    %24 = vector.extract_strided_slice %23 {offsets = [0, 0], sizes = [8, 32], strides = [1, 1]} : vector<8x96xf32> to vector<8x32xf32>
    %25 = vector.extract_strided_slice %23 {offsets = [0, 32], sizes = [8, 32], strides = [1, 1]} : vector<8x96xf32> to vector<8x32xf32>
    %26 = vector.extract_strided_slice %23 {offsets = [0, 64], sizes = [8, 32], strides = [1, 1]} : vector<8x96xf32> to vector<8x32xf32>
    %27 = vector.extract_strided_slice %24 {offsets = [0, 0], sizes = [8, 4], strides = [1, 1]} : vector<8x32xf32> to vector<8x4xf32>
    %28 = vector.extract_strided_slice %25 {offsets = [0, 0], sizes = [8, 4], strides = [1, 1]} : vector<8x32xf32> to vector<8x4xf32>
    %29 = vector.extract_strided_slice %26 {offsets = [0, 0], sizes = [8, 4], strides = [1, 1]} : vector<8x32xf32> to vector<8x4xf32>
    "tpu.trace_start"() <{level = 10 : i32, message = "qd,kd->qk"}> : () -> ()
    %cst_15 = arith.constant dense<0.000000e+00> : vector<8x8xf32>
    %30 = tpu.matmul %27, %28, %cst_15 {dimension_numbers = #tpu.dot_dimension_numbers<[1], [1], [0], [0], [0, 0, 1, 0], [], []>} : vector<8x4xf32>, vector<8x4xf32>, vector<8x8xf32> -> vector<8x8xf32>
    "tpu.trace_stop"() : () -> ()
    %cst_16 = arith.constant 5.000000e-01 : f32
    %31 = vector.broadcast %cst_16 : f32 to vector<8x8xf32>
    %32 = arith.mulf %30, %31 : vector<8x8xf32>
    %cst_17 = arith.constant dense<0xFF800000> : vector<8xf32>
    %33 = vector.multi_reduction <maximumf>, %32, %cst_17 [1] : vector<8x8xf32> to vector<8xf32>
    %34 = vector.shape_cast %33 : vector<8xf32> to vector<8x1xf32>
    %35 = vector.broadcast %34 : vector<8x1xf32> to vector<8x8xf32>
    %36 = arith.subf %32, %35 : vector<8x8xf32>
    %37 = math.exp %36 : vector<8x8xf32>
    %cst_18 = arith.constant dense<0.000000e+00> : vector<8xf32>
    %38 = vector.multi_reduction <add>, %37, %cst_18 [1] : vector<8x8xf32> to vector<8xf32>
    %39 = vector.shape_cast %38 : vector<8xf32> to vector<8x1xf32>
    %40 = tpu.reciprocal %39 {approx = true} : vector<8x1xf32> -> vector<8x1xf32>
    %41 = vector.broadcast %40 : vector<8x1xf32> to vector<8x8xf32>
    %42 = arith.mulf %37, %41 : vector<8x8xf32>
    %cst_19 = arith.constant dense<0.000000e+00> : vector<8x4xf32>
    %43 = tpu.matmul %42, %29, %cst_19 {dimension_numbers = #tpu.dot_dimension_numbers<[1], [0], [0], [1], [0, 0, 1, 1], [], []>} : vector<8x8xf32>, vector<8x4xf32>, vector<8x4xf32> -> vector<8x4xf32>
    %44 = vector.extract_strided_slice %24 {offsets = [0, 4], sizes = [8, 4], strides = [1, 1]} : vector<8x32xf32> to vector<8x4xf32>
    %45 = vector.extract_strided_slice %25 {offsets = [0, 4], sizes = [8, 4], strides = [1, 1]} : vector<8x32xf32> to vector<8x4xf32>
    %46 = vector.extract_strided_slice %26 {offsets = [0, 4], sizes = [8, 4], strides = [1, 1]} : vector<8x32xf32> to vector<8x4xf32>
    "tpu.trace_start"() <{level = 10 : i32, message = "qd,kd->qk"}> : () -> ()
    %cst_20 = arith.constant dense<0.000000e+00> : vector<8x8xf32>
    %47 = tpu.matmul %44, %45, %cst_20 {dimension_numbers = #tpu.dot_dimension_numbers<[1], [1], [0], [0], [0, 0, 1, 0], [], []>} : vector<8x4xf32>, vector<8x4xf32>, vector<8x8xf32> -> vector<8x8xf32>
    "tpu.trace_stop"() : () -> ()
    %cst_21 = arith.constant 5.000000e-01 : f32
    %48 = vector.broadcast %cst_21 : f32 to vector<8x8xf32>
    %49 = arith.mulf %47, %48 : vector<8x8xf32>
    %cst_22 = arith.constant dense<0xFF800000> : vector<8xf32>
    %50 = vector.multi_reduction <maximumf>, %49, %cst_22 [1] : vector<8x8xf32> to vector<8xf32>
    %51 = vector.shape_cast %50 : vector<8xf32> to vector<8x1xf32>
    %52 = vector.broadcast %51 : vector<8x1xf32> to vector<8x8xf32>
    %53 = arith.subf %49, %52 : vector<8x8xf32>
    %54 = math.exp %53 : vector<8x8xf32>
    %cst_23 = arith.constant dense<0.000000e+00> : vector<8xf32>
    %55 = vector.multi_reduction <add>, %54, %cst_23 [1] : vector<8x8xf32> to vector<8xf32>
    %56 = vector.shape_cast %55 : vector<8xf32> to vector<8x1xf32>
    %57 = tpu.reciprocal %56 {approx = true} : vector<8x1xf32> -> vector<8x1xf32>
    %58 = vector.broadcast %57 : vector<8x1xf32> to vector<8x8xf32>
    %59 = arith.mulf %54, %58 : vector<8x8xf32>
    %cst_24 = arith.constant dense<0.000000e+00> : vector<8x4xf32>
    %60 = tpu.matmul %59, %46, %cst_24 {dimension_numbers = #tpu.dot_dimension_numbers<[1], [0], [0], [1], [0, 0, 1, 1], [], []>} : vector<8x8xf32>, vector<8x4xf32>, vector<8x4xf32> -> vector<8x4xf32>
    %61 = vector.extract_strided_slice %24 {offsets = [0, 8], sizes = [8, 4], strides = [1, 1]} : vector<8x32xf32> to vector<8x4xf32>
    %62 = vector.extract_strided_slice %25 {offsets = [0, 8], sizes = [8, 4], strides = [1, 1]} : vector<8x32xf32> to vector<8x4xf32>
    %63 = vector.extract_strided_slice %26 {offsets = [0, 8], sizes = [8, 4], strides = [1, 1]} : vector<8x32xf32> to vector<8x4xf32>
    "tpu.trace_start"() <{level = 10 : i32, message = "qd,kd->qk"}> : () -> ()
    %cst_25 = arith.constant dense<0.000000e+00> : vector<8x8xf32>
    %64 = tpu.matmul %61, %62, %cst_25 {dimension_numbers = #tpu.dot_dimension_numbers<[1], [1], [0], [0], [0, 0, 1, 0], [], []>} : vector<8x4xf32>, vector<8x4xf32>, vector<8x8xf32> -> vector<8x8xf32>
    "tpu.trace_stop"() : () -> ()
    %cst_26 = arith.constant 5.000000e-01 : f32
    %65 = vector.broadcast %cst_26 : f32 to vector<8x8xf32>
    %66 = arith.mulf %64, %65 : vector<8x8xf32>
    %cst_27 = arith.constant dense<0xFF800000> : vector<8xf32>
    %67 = vector.multi_reduction <maximumf>, %66, %cst_27 [1] : vector<8x8xf32> to vector<8xf32>
    %68 = vector.shape_cast %67 : vector<8xf32> to vector<8x1xf32>
    %69 = vector.broadcast %68 : vector<8x1xf32> to vector<8x8xf32>
    %70 = arith.subf %66, %69 : vector<8x8xf32>
    %71 = math.exp %70 : vector<8x8xf32>
    %cst_28 = arith.constant dense<0.000000e+00> : vector<8xf32>
    %72 = vector.multi_reduction <add>, %71, %cst_28 [1] : vector<8x8xf32> to vector<8xf32>
    %73 = vector.shape_cast %72 : vector<8xf32> to vector<8x1xf32>
    %74 = tpu.reciprocal %73 {approx = true} : vector<8x1xf32> -> vector<8x1xf32>
    %75 = vector.broadcast %74 : vector<8x1xf32> to vector<8x8xf32>
    %76 = arith.mulf %71, %75 : vector<8x8xf32>
    %cst_29 = arith.constant dense<0.000000e+00> : vector<8x4xf32>
    %77 = tpu.matmul %76, %63, %cst_29 {dimension_numbers = #tpu.dot_dimension_numbers<[1], [0], [0], [1], [0, 0, 1, 1], [], []>} : vector<8x8xf32>, vector<8x4xf32>, vector<8x4xf32> -> vector<8x4xf32>
    %78 = vector.extract_strided_slice %24 {offsets = [0, 12], sizes = [8, 4], strides = [1, 1]} : vector<8x32xf32> to vector<8x4xf32>
    %79 = vector.extract_strided_slice %25 {offsets = [0, 12], sizes = [8, 4], strides = [1, 1]} : vector<8x32xf32> to vector<8x4xf32>
    %80 = vector.extract_strided_slice %26 {offsets = [0, 12], sizes = [8, 4], strides = [1, 1]} : vector<8x32xf32> to vector<8x4xf32>
    "tpu.trace_start"() <{level = 10 : i32, message = "qd,kd->qk"}> : () -> ()
    %cst_30 = arith.constant dense<0.000000e+00> : vector<8x8xf32>
    %81 = tpu.matmul %78, %79, %cst_30 {dimension_numbers = #tpu.dot_dimension_numbers<[1], [1], [0], [0], [0, 0, 1, 0], [], []>} : vector<8x4xf32>, vector<8x4xf32>, vector<8x8xf32> -> vector<8x8xf32>
    "tpu.trace_stop"() : () -> ()
    %cst_31 = arith.constant 5.000000e-01 : f32
    %82 = vector.broadcast %cst_31 : f32 to vector<8x8xf32>
    %83 = arith.mulf %81, %82 : vector<8x8xf32>
    %cst_32 = arith.constant dense<0xFF800000> : vector<8xf32>
    %84 = vector.multi_reduction <maximumf>, %83, %cst_32 [1] : vector<8x8xf32> to vector<8xf32>
    %85 = vector.shape_cast %84 : vector<8xf32> to vector<8x1xf32>
    %86 = vector.broadcast %85 : vector<8x1xf32> to vector<8x8xf32>
    %87 = arith.subf %83, %86 : vector<8x8xf32>
    %88 = math.exp %87 : vector<8x8xf32>
    %cst_33 = arith.constant dense<0.000000e+00> : vector<8xf32>
    %89 = vector.multi_reduction <add>, %88, %cst_33 [1] : vector<8x8xf32> to vector<8xf32>
    %90 = vector.shape_cast %89 : vector<8xf32> to vector<8x1xf32>
    %91 = tpu.reciprocal %90 {approx = true} : vector<8x1xf32> -> vector<8x1xf32>
    %92 = vector.broadcast %91 : vector<8x1xf32> to vector<8x8xf32>
    %93 = arith.mulf %88, %92 : vector<8x8xf32>
    %cst_34 = arith.constant dense<0.000000e+00> : vector<8x4xf32>
    %94 = tpu.matmul %93, %80, %cst_34 {dimension_numbers = #tpu.dot_dimension_numbers<[1], [0], [0], [1], [0, 0, 1, 1], [], []>} : vector<8x8xf32>, vector<8x4xf32>, vector<8x4xf32> -> vector<8x4xf32>
    %95 = vector.extract_strided_slice %24 {offsets = [0, 16], sizes = [8, 4], strides = [1, 1]} : vector<8x32xf32> to vector<8x4xf32>
    %96 = vector.extract_strided_slice %25 {offsets = [0, 16], sizes = [8, 4], strides = [1, 1]} : vector<8x32xf32> to vector<8x4xf32>
    %97 = vector.extract_strided_slice %26 {offsets = [0, 16], sizes = [8, 4], strides = [1, 1]} : vector<8x32xf32> to vector<8x4xf32>
    "tpu.trace_start"() <{level = 10 : i32, message = "qd,kd->qk"}> : () -> ()
    %cst_35 = arith.constant dense<0.000000e+00> : vector<8x8xf32>
    %98 = tpu.matmul %95, %96, %cst_35 {dimension_numbers = #tpu.dot_dimension_numbers<[1], [1], [0], [0], [0, 0, 1, 0], [], []>} : vector<8x4xf32>, vector<8x4xf32>, vector<8x8xf32> -> vector<8x8xf32>
    "tpu.trace_stop"() : () -> ()
    %cst_36 = arith.constant 5.000000e-01 : f32
    %99 = vector.broadcast %cst_36 : f32 to vector<8x8xf32>
    %100 = arith.mulf %98, %99 : vector<8x8xf32>
    %cst_37 = arith.constant dense<0xFF800000> : vector<8xf32>
    %101 = vector.multi_reduction <maximumf>, %100, %cst_37 [1] : vector<8x8xf32> to vector<8xf32>
    %102 = vector.shape_cast %101 : vector<8xf32> to vector<8x1xf32>
    %103 = vector.broadcast %102 : vector<8x1xf32> to vector<8x8xf32>
    %104 = arith.subf %100, %103 : vector<8x8xf32>
    %105 = math.exp %104 : vector<8x8xf32>
    %cst_38 = arith.constant dense<0.000000e+00> : vector<8xf32>
    %106 = vector.multi_reduction <add>, %105, %cst_38 [1] : vector<8x8xf32> to vector<8xf32>
    %107 = vector.shape_cast %106 : vector<8xf32> to vector<8x1xf32>
    %108 = tpu.reciprocal %107 {approx = true} : vector<8x1xf32> -> vector<8x1xf32>
    %109 = vector.broadcast %108 : vector<8x1xf32> to vector<8x8xf32>
    %110 = arith.mulf %105, %109 : vector<8x8xf32>
    %cst_39 = arith.constant dense<0.000000e+00> : vector<8x4xf32>
    %111 = tpu.matmul %110, %97, %cst_39 {dimension_numbers = #tpu.dot_dimension_numbers<[1], [0], [0], [1], [0, 0, 1, 1], [], []>} : vector<8x8xf32>, vector<8x4xf32>, vector<8x4xf32> -> vector<8x4xf32>
    %112 = vector.extract_strided_slice %24 {offsets = [0, 20], sizes = [8, 4], strides = [1, 1]} : vector<8x32xf32> to vector<8x4xf32>
    %113 = vector.extract_strided_slice %25 {offsets = [0, 20], sizes = [8, 4], strides = [1, 1]} : vector<8x32xf32> to vector<8x4xf32>
    %114 = vector.extract_strided_slice %26 {offsets = [0, 20], sizes = [8, 4], strides = [1, 1]} : vector<8x32xf32> to vector<8x4xf32>
    "tpu.trace_start"() <{level = 10 : i32, message = "qd,kd->qk"}> : () -> ()
    %cst_40 = arith.constant dense<0.000000e+00> : vector<8x8xf32>
    %115 = tpu.matmul %112, %113, %cst_40 {dimension_numbers = #tpu.dot_dimension_numbers<[1], [1], [0], [0], [0, 0, 1, 0], [], []>} : vector<8x4xf32>, vector<8x4xf32>, vector<8x8xf32> -> vector<8x8xf32>
    "tpu.trace_stop"() : () -> ()
    %cst_41 = arith.constant 5.000000e-01 : f32
    %116 = vector.broadcast %cst_41 : f32 to vector<8x8xf32>
    %117 = arith.mulf %115, %116 : vector<8x8xf32>
    %cst_42 = arith.constant dense<0xFF800000> : vector<8xf32>
    %118 = vector.multi_reduction <maximumf>, %117, %cst_42 [1] : vector<8x8xf32> to vector<8xf32>
    %119 = vector.shape_cast %118 : vector<8xf32> to vector<8x1xf32>
    %120 = vector.broadcast %119 : vector<8x1xf32> to vector<8x8xf32>
    %121 = arith.subf %117, %120 : vector<8x8xf32>
    %122 = math.exp %121 : vector<8x8xf32>
    %cst_43 = arith.constant dense<0.000000e+00> : vector<8xf32>
    %123 = vector.multi_reduction <add>, %122, %cst_43 [1] : vector<8x8xf32> to vector<8xf32>
    %124 = vector.shape_cast %123 : vector<8xf32> to vector<8x1xf32>
    %125 = tpu.reciprocal %124 {approx = true} : vector<8x1xf32> -> vector<8x1xf32>
    %126 = vector.broadcast %125 : vector<8x1xf32> to vector<8x8xf32>
    %127 = arith.mulf %122, %126 : vector<8x8xf32>
    %cst_44 = arith.constant dense<0.000000e+00> : vector<8x4xf32>
    %128 = tpu.matmul %127, %114, %cst_44 {dimension_numbers = #tpu.dot_dimension_numbers<[1], [0], [0], [1], [0, 0, 1, 1], [], []>} : vector<8x8xf32>, vector<8x4xf32>, vector<8x4xf32> -> vector<8x4xf32>
    %129 = vector.extract_strided_slice %24 {offsets = [0, 24], sizes = [8, 4], strides = [1, 1]} : vector<8x32xf32> to vector<8x4xf32>
    %130 = vector.extract_strided_slice %25 {offsets = [0, 24], sizes = [8, 4], strides = [1, 1]} : vector<8x32xf32> to vector<8x4xf32>
    %131 = vector.extract_strided_slice %26 {offsets = [0, 24], sizes = [8, 4], strides = [1, 1]} : vector<8x32xf32> to vector<8x4xf32>
    "tpu.trace_start"() <{level = 10 : i32, message = "qd,kd->qk"}> : () -> ()
    %cst_45 = arith.constant dense<0.000000e+00> : vector<8x8xf32>
    %132 = tpu.matmul %129, %130, %cst_45 {dimension_numbers = #tpu.dot_dimension_numbers<[1], [1], [0], [0], [0, 0, 1, 0], [], []>} : vector<8x4xf32>, vector<8x4xf32>, vector<8x8xf32> -> vector<8x8xf32>
    "tpu.trace_stop"() : () -> ()
    %cst_46 = arith.constant 5.000000e-01 : f32
    %133 = vector.broadcast %cst_46 : f32 to vector<8x8xf32>
    %134 = arith.mulf %132, %133 : vector<8x8xf32>
    %cst_47 = arith.constant dense<0xFF800000> : vector<8xf32>
    %135 = vector.multi_reduction <maximumf>, %134, %cst_47 [1] : vector<8x8xf32> to vector<8xf32>
    %136 = vector.shape_cast %135 : vector<8xf32> to vector<8x1xf32>
    %137 = vector.broadcast %136 : vector<8x1xf32> to vector<8x8xf32>
    %138 = arith.subf %134, %137 : vector<8x8xf32>
    %139 = math.exp %138 : vector<8x8xf32>
    %cst_48 = arith.constant dense<0.000000e+00> : vector<8xf32>
    %140 = vector.multi_reduction <add>, %139, %cst_48 [1] : vector<8x8xf32> to vector<8xf32>
    %141 = vector.shape_cast %140 : vector<8xf32> to vector<8x1xf32>
    %142 = tpu.reciprocal %141 {approx = true} : vector<8x1xf32> -> vector<8x1xf32>
    %143 = vector.broadcast %142 : vector<8x1xf32> to vector<8x8xf32>
    %144 = arith.mulf %139, %143 : vector<8x8xf32>
    %cst_49 = arith.constant dense<0.000000e+00> : vector<8x4xf32>
    %145 = tpu.matmul %144, %131, %cst_49 {dimension_numbers = #tpu.dot_dimension_numbers<[1], [0], [0], [1], [0, 0, 1, 1], [], []>} : vector<8x8xf32>, vector<8x4xf32>, vector<8x4xf32> -> vector<8x4xf32>
    %146 = vector.extract_strided_slice %24 {offsets = [0, 28], sizes = [8, 4], strides = [1, 1]} : vector<8x32xf32> to vector<8x4xf32>
    %147 = vector.extract_strided_slice %25 {offsets = [0, 28], sizes = [8, 4], strides = [1, 1]} : vector<8x32xf32> to vector<8x4xf32>
    %148 = vector.extract_strided_slice %26 {offsets = [0, 28], sizes = [8, 4], strides = [1, 1]} : vector<8x32xf32> to vector<8x4xf32>
    "tpu.trace_start"() <{level = 10 : i32, message = "qd,kd->qk"}> : () -> ()
    %cst_50 = arith.constant dense<0.000000e+00> : vector<8x8xf32>
    %149 = tpu.matmul %146, %147, %cst_50 {dimension_numbers = #tpu.dot_dimension_numbers<[1], [1], [0], [0], [0, 0, 1, 0], [], []>} : vector<8x4xf32>, vector<8x4xf32>, vector<8x8xf32> -> vector<8x8xf32>
    "tpu.trace_stop"() : () -> ()
    %cst_51 = arith.constant 5.000000e-01 : f32
    %150 = vector.broadcast %cst_51 : f32 to vector<8x8xf32>
    %151 = arith.mulf %149, %150 : vector<8x8xf32>
    %cst_52 = arith.constant dense<0xFF800000> : vector<8xf32>
    %152 = vector.multi_reduction <maximumf>, %151, %cst_52 [1] : vector<8x8xf32> to vector<8xf32>
    %153 = vector.shape_cast %152 : vector<8xf32> to vector<8x1xf32>
    %154 = vector.broadcast %153 : vector<8x1xf32> to vector<8x8xf32>
    %155 = arith.subf %151, %154 : vector<8x8xf32>
    %156 = math.exp %155 : vector<8x8xf32>
    %cst_53 = arith.constant dense<0.000000e+00> : vector<8xf32>
    %157 = vector.multi_reduction <add>, %156, %cst_53 [1] : vector<8x8xf32> to vector<8xf32>
    %158 = vector.shape_cast %157 : vector<8xf32> to vector<8x1xf32>
    %159 = tpu.reciprocal %158 {approx = true} : vector<8x1xf32> -> vector<8x1xf32>
    %160 = vector.broadcast %159 : vector<8x1xf32> to vector<8x8xf32>
    %161 = arith.mulf %156, %160 : vector<8x8xf32>
    %cst_54 = arith.constant dense<0.000000e+00> : vector<8x4xf32>
    %162 = tpu.matmul %161, %148, %cst_54 {dimension_numbers = #tpu.dot_dimension_numbers<[1], [0], [0], [1], [0, 0, 1, 1], [], []>} : vector<8x8xf32>, vector<8x4xf32>, vector<8x4xf32> -> vector<8x4xf32>
    %163 = tpu.concatenate %43, %60, %77, %94, %111, %128, %145, %162 in 1 : vector<8x4xf32>, vector<8x4xf32>, vector<8x4xf32>, vector<8x4xf32>, vector<8x4xf32>, vector<8x4xf32>, vector<8x4xf32>, vector<8x4xf32> -> vector<8x32xf32>
    %164 = arith.truncf %163 : vector<8x32xf32> to vector<8x32xbf16>
    %165 = arith.truncf %17 : vector<32x32xf32> to vector<32x32xbf16>
    %cst_55 = arith.constant dense<0.000000e+00> : vector<8x32xf32>
    %166 = tpu.matmul %164, %165, %cst_55 {dimension_numbers = #tpu.dot_dimension_numbers<[1], [0], [0], [1], [0, 0, 1, 1], [], []>} : vector<8x32xbf16>, vector<32x32xbf16>, vector<8x32xf32> -> vector<8x32xf32>
    %167 = vector.broadcast %18 : vector<1x32xf32> to vector<8x32xf32>
    %168 = arith.addf %166, %167 : vector<8x32xf32>
    %169 = arith.addf %168, %1 : vector<8x32xf32>
    %c0_56 = arith.constant 0 : index
    %c0_57 = arith.constant 0 : index
    %c0_58 = arith.constant 0 : index
    %170 = vector.load %arg7[%c0_56, %c0_57, %c0_58] : memref<1x8x32xf32, #tpu.memory_space<vmem>>, vector<1x8x32xf32>
    %171 = vector.shape_cast %170 : vector<1x8x32xf32> to vector<8x32xf32>
    %172 = vector.shape_cast %169 : vector<8x32xf32> to vector<1x8x32xf32>
    tpu.vector_store %arg7[%c0_56, %c0_57, %c0_58], %172 {strides = array<i32>} : memref<1x8x32xf32, #tpu.memory_space<vmem>>, vector<1x8x32xf32>,
    return
  }
  func.func @transform_0(%arg0: i32) -> (i32, i32, i32) {
    %c0_i32 = arith.constant 0 : i32
    %c0_i32_0 = arith.constant 0 : i32
    %c0_i32_1 = arith.constant 0 : i32
    return %arg0, %c0_i32, %c0_i32_0 : i32, i32, i32
  }
  func.func @transform_1(%arg0: i32) -> (i32, i32) {
    %c0_i32 = arith.constant 0 : i32
    %c0_i32_0 = arith.constant 0 : i32
    %c0_i32_1 = arith.constant 0 : i32
    return %c0_i32, %c0_i32_0 : i32, i32
  }
  func.func @transform_2(%arg0: i32) -> (i32, i32) {
    %c0_i32 = arith.constant 0 : i32
    %c0_i32_0 = arith.constant 0 : i32
    %c0_i32_1 = arith.constant 0 : i32
    return %c0_i32, %c0_i32_0 : i32, i32
  }
  func.func @transform_3(%arg0: i32) -> (i32, i32) {
    %c0_i32 = arith.constant 0 : i32
    %c0_i32_0 = arith.constant 0 : i32
    %c0_i32_1 = arith.constant 0 : i32
    return %c0_i32, %c0_i32_0 : i32, i32
  }
  func.func @transform_4(%arg0: i32) -> (i32, i32) {
    %c0_i32 = arith.constant 0 : i32
    %c0_i32_0 = arith.constant 0 : i32
    %c0_i32_1 = arith.constant 0 : i32
    return %c0_i32, %c0_i32_0 : i32, i32
  }
  func.func @transform_5(%arg0: i32) -> (i32, i32) {
    %c0_i32 = arith.constant 0 : i32
    %c0_i32_0 = arith.constant 0 : i32
    %c0_i32_1 = arith.constant 0 : i32
    return %c0_i32, %c0_i32_0 : i32, i32
  }
  func.func @transform_6(%arg0: i32) -> (i32, i32, i32) {
    %c0_i32 = arith.constant 0 : i32
    %c0_i32_0 = arith.constant 0 : i32
    %c0_i32_1 = arith.constant 0 : i32
    return %arg0, %c0_i32, %c0_i32_0 : i32, i32, i32
  }
}

module attributes {stable_mosaic.version = 11 : i64} {
  func.func @_ffn_block_kernel(%arg0: i32, %arg1: memref<8x32xf32, #tpu.memory_space<vmem>>, %arg2: memref<1x32xf32, #tpu.memory_space<vmem>>, %arg3: memref<32x128xf32, #tpu.memory_space<vmem>>, %arg4: memref<1x128xf32, #tpu.memory_space<vmem>>, %arg5: memref<128x32xf32, #tpu.memory_space<vmem>>, %arg6: memref<1x32xf32, #tpu.memory_space<vmem>>, %arg7: memref<8x32xf32, #tpu.memory_space<vmem>>) attributes {dimension_semantics = [#tpu.dimension_semantics<parallel>], iteration_bounds = array<i64: 2>, scalar_prefetch = 0 : i64, scratch_operands = 0 : i64, tpu.core_type = #tpu.core_type<tc>, window_params = [{transform_indices = @transform_0, window_bounds = array<i64: 8, 32>}, {pipeline_mode = #tpu.pipeline_mode<synchronous>, transform_indices = @transform_1, window_bounds = array<i64: 1, 32>}, {pipeline_mode = #tpu.pipeline_mode<synchronous>, transform_indices = @transform_2, window_bounds = array<i64: 32, 128>}, {pipeline_mode = #tpu.pipeline_mode<synchronous>, transform_indices = @transform_3, window_bounds = array<i64: 1, 128>}, {pipeline_mode = #tpu.pipeline_mode<synchronous>, transform_indices = @transform_4, window_bounds = array<i64: 128, 32>}, {pipeline_mode = #tpu.pipeline_mode<synchronous>, transform_indices = @transform_5, window_bounds = array<i64: 1, 32>}, {transform_indices = @transform_6, window_bounds = array<i64: 8, 32>}]} {
    %c0 = arith.constant 0 : index
    %c0_0 = arith.constant 0 : index
    %0 = vector.load %arg1[%c0, %c0_0] : memref<8x32xf32, #tpu.memory_space<vmem>>, vector<8x32xf32>
    %c0_1 = arith.constant 0 : index
    %c0_2 = arith.constant 0 : index
    %1 = vector.load %arg2[%c0_1, %c0_2] : memref<1x32xf32, #tpu.memory_space<vmem>>, vector<1x32xf32>
    %2 = arith.mulf %0, %0 : vector<8x32xf32>
    %cst = arith.constant dense<0.000000e+00> : vector<8xf32>
    %3 = vector.multi_reduction <add>, %2, %cst [1] : vector<8x32xf32> to vector<8xf32>
    %4 = vector.shape_cast %3 : vector<8xf32> to vector<8x1xf32>
    %cst_3 = arith.constant 3.200000e+01 : f32
    %5 = vector.broadcast %cst_3 : f32 to vector<8x1xf32>
    %6 = arith.divf %4, %5 : vector<8x1xf32>
    %7 = math.sqrt %6 : vector<8x1xf32>
    %cst_4 = arith.constant 9.99999993E-9 : f32
    %8 = vector.broadcast %cst_4 : f32 to vector<8x1xf32>
    %9 = arith.maximumf %7, %8 : vector<8x1xf32>
    %10 = vector.broadcast %9 : vector<8x1xf32> to vector<8x32xf32>
    %11 = arith.divf %0, %10 : vector<8x32xf32>
    %12 = vector.broadcast %1 : vector<1x32xf32> to vector<8x32xf32>
    %13 = arith.mulf %11, %12 : vector<8x32xf32>
    %c0_5 = arith.constant 0 : index
    %c0_6 = arith.constant 0 : index
    %14 = vector.load %arg3[%c0_5, %c0_6] : memref<32x128xf32, #tpu.memory_space<vmem>>, vector<32x128xf32>
    %15 = arith.truncf %13 : vector<8x32xf32> to vector<8x32xbf16>
    %16 = arith.truncf %14 : vector<32x128xf32> to vector<32x128xbf16>
    %cst_7 = arith.constant dense<0.000000e+00> : vector<8x128xf32>
    %17 = tpu.matmul %15, %16, %cst_7 {dimension_numbers = #tpu.dot_dimension_numbers<[1], [0], [0], [1], [0, 0, 1, 1], [], []>} : vector<8x32xbf16>, vector<32x128xbf16>, vector<8x128xf32> -> vector<8x128xf32>
    %c0_8 = arith.constant 0 : index
    %c0_9 = arith.constant 0 : index
    %18 = vector.load %arg4[%c0_8, %c0_9] : memref<1x128xf32, #tpu.memory_space<vmem>>, vector<1x128xf32>
    %19 = vector.broadcast %18 : vector<1x128xf32> to vector<8x128xf32>
    %20 = arith.addf %17, %19 : vector<8x128xf32>
    %cst_10 = arith.constant 0.000000e+00 : f32
    %21 = vector.broadcast %cst_10 : f32 to vector<8x128xf32>
    %22 = arith.subf %21, %20 : vector<8x128xf32>
    %23 = math.exp %22 : vector<8x128xf32>
    %cst_11 = arith.constant 1.000000e+00 : f32
    %24 = vector.broadcast %cst_11 : f32 to vector<8x128xf32>
    %25 = arith.addf %24, %23 : vector<8x128xf32>
    %cst_12 = arith.constant 1.000000e+00 : f32
    %26 = vector.broadcast %cst_12 : f32 to vector<8x128xf32>
    %27 = arith.divf %26, %25 : vector<8x128xf32>
    %28 = arith.mulf %20, %27 : vector<8x128xf32>
    %c0_13 = arith.constant 0 : index
    %c0_14 = arith.constant 0 : index
    %29 = vector.load %arg5[%c0_13, %c0_14] : memref<128x32xf32, #tpu.memory_space<vmem>>, vector<128x32xf32>
    %30 = arith.truncf %28 : vector<8x128xf32> to vector<8x128xbf16>
    %31 = arith.truncf %29 : vector<128x32xf32> to vector<128x32xbf16>
    %cst_15 = arith.constant dense<0.000000e+00> : vector<8x32xf32>
    %32 = tpu.matmul %30, %31, %cst_15 {dimension_numbers = #tpu.dot_dimension_numbers<[1], [0], [0], [1], [0, 0, 1, 1], [], []>} : vector<8x128xbf16>, vector<128x32xbf16>, vector<8x32xf32> -> vector<8x32xf32>
    %c0_16 = arith.constant 0 : index
    %c0_17 = arith.constant 0 : index
    %33 = vector.load %arg6[%c0_16, %c0_17] : memref<1x32xf32, #tpu.memory_space<vmem>>, vector<1x32xf32>
    %34 = vector.broadcast %33 : vector<1x32xf32> to vector<8x32xf32>
    %35 = arith.addf %32, %34 : vector<8x32xf32>
    %36 = arith.addf %35, %0 : vector<8x32xf32>
    %c0_18 = arith.constant 0 : index
    %c0_19 = arith.constant 0 : index
    %37 = vector.load %arg7[%c0_18, %c0_19] : memref<8x32xf32, #tpu.memory_space<vmem>>, vector<8x32xf32>
    tpu.vector_store %arg7[%c0_18, %c0_19], %36 {strides = array<i32>} : memref<8x32xf32, #tpu.memory_space<vmem>>, vector<8x32xf32>,
    return
  }
  func.func @transform_0(%arg0: i32) -> (i32, i32) {
    %c0_i32 = arith.constant 0 : i32
    %c0_i32_0 = arith.constant 0 : i32
    return %arg0, %c0_i32 : i32, i32
  }
  func.func @transform_1(%arg0: i32) -> (i32, i32) {
    %c0_i32 = arith.constant 0 : i32
    %c0_i32_0 = arith.constant 0 : i32
    %c0_i32_1 = arith.constant 0 : i32
    return %c0_i32, %c0_i32_0 : i32, i32
  }
  func.func @transform_2(%arg0: i32) -> (i32, i32) {
    %c0_i32 = arith.constant 0 : i32
    %c0_i32_0 = arith.constant 0 : i32
    %c0_i32_1 = arith.constant 0 : i32
    return %c0_i32, %c0_i32_0 : i32, i32
  }
  func.func @transform_3(%arg0: i32) -> (i32, i32) {
    %c0_i32 = arith.constant 0 : i32
    %c0_i32_0 = arith.constant 0 : i32
    %c0_i32_1 = arith.constant 0 : i32
    return %c0_i32, %c0_i32_0 : i32, i32
  }
  func.func @transform_4(%arg0: i32) -> (i32, i32) {
    %c0_i32 = arith.constant 0 : i32
    %c0_i32_0 = arith.constant 0 : i32
    %c0_i32_1 = arith.constant 0 : i32
    return %c0_i32, %c0_i32_0 : i32, i32
  }
  func.func @transform_5(%arg0: i32) -> (i32, i32) {
    %c0_i32 = arith.constant 0 : i32
    %c0_i32_0 = arith.constant 0 : i32
    %c0_i32_1 = arith.constant 0 : i32
    return %c0_i32, %c0_i32_0 : i32, i32
  }
  func.func @transform_6(%arg0: i32) -> (i32, i32) {
    %c0_i32 = arith.constant 0 : i32
    %c0_i32_0 = arith.constant 0 : i32
    return %arg0, %c0_i32 : i32, i32
  }
}

</mosaic_0001>

<llo_original>
// kernel: et_decoder_block.7
$region0: #{et_decoder_block.7}
  #allocation0 [shape = 'u32[]', space=smem, size = 0x4, offset = 0x4, fixed_abs, tag = 'smem constant byte address 0x4 - core index']
  #allocation1 [shape = 'u32[72,128]{1,0:T(1,128)}', space=vmem, size = 0x9000, scoped, tag = 'internal scratch']
  %s0 = inlined_call_operand.vmem [shape: f32[2,8,32], index: 0, kind: input, shape index: {}]
  %s1 = inlined_call_operand.hbm [shape: f32[1,32], index: 1, kind: input, shape index: {}]
  %s2 = inlined_call_operand.hbm [shape: f32[32,96], index: 2, kind: input, shape index: {}]
  %s3 = inlined_call_operand.hbm [shape: f32[1,96], index: 3, kind: input, shape index: {}]
  %s4 = inlined_call_operand.hbm [shape: f32[32,32], index: 4, kind: input, shape index: {}]
  %s5 = inlined_call_operand.hbm [shape: f32[1,32], index: 5, kind: input, shape index: {}]
  %s6 = inlined_call_operand.vmem [shape: f32[2,8,32], index: 6, kind: output, shape index: {}]
  %s7 = sld [smem:[#allocation0]]
  $region77: #{et_decoder_block.7} parent=0
    _
  %s9 = ssub.s32 1, %s7
  %s10 = scalar_select 0, %s9, %s7
  $region1: #{et_decoder_block.7} parent=0
    #allocation2 [shape = 'u8[512]{0}', space=vmem, size = 0x400, scoped, tag = 'input window, operand 1, single buffered']
    #allocation3 [shape = 's32[2]{0}', space=sflag, size = 0x8, scoped, tag = 'scoped memory for et_decoder_block.7']
    #allocation4 [shape = 'u8[16384]{0}', space=vmem, size = 0x4000, scoped, tag = 'input window, operand 2, single buffered']
    #allocation5 [shape = 's32[1]{0}', space=sflag, size = 0x4, scoped, tag = 'scoped memory for et_decoder_block.7']
    #allocation6 [shape = 'u8[512]{0}', space=vmem, size = 0x400, scoped, tag = 'input window, operand 3, single buffered']
    #allocation7 [shape = 'u8[16384]{0}', space=vmem, size = 0x4000, scoped, tag = 'input window, operand 4, single buffered']
    #allocation8 [shape = 's32[1]{0}', space=sflag, size = 0x4, scoped, tag = 'scoped memory for et_decoder_block.7']
    #allocation9 [shape = 'u8[512]{0}', space=vmem, size = 0x400, scoped, tag = 'input window, operand 5, single buffered']
    %11 = vsyncpa [#allocation3], 0
    %12 = vsyncpa [#allocation5], 0
    %13 = vsyncpa [#allocation8], 0
    loop: start=0, step=1, limit=4
    $region2: #{et_decoder_block.7} parent=1 // loop_pre_header
      _
    $region3: #{et_decoder_block.7} parent=1 // loop_header
      %s15 = sphi 0, %s19
      %p16 = scmp.ge.s32.totalorder %s15, 4
      %s25 = sphi 0, %s27
      %s28 = sphi 0, %s25
      %s29 = sphi 0, %s28
      %s45 = sphi 0, %s29
      %s49 = sphi 0, %s49
      %s51 = sphi 0, %s49
      %s52 = sphi 0, %s51
      %s66 = sphi 0, %s52
      %s70 = sphi 0, %s70
      %s72 = sphi 0, %s70
      %s73 = sphi 0, %s72
      %s87 = sphi 0, %s73
      %s91 = sphi 0, %s91
      %s93 = sphi 0, %s91
      %s94 = sphi 0, %s93
      %s108 = sphi 0, %s94
      %s112 = sphi 0, %s112
      %s114 = sphi 0, %s112
      %s115 = sphi 0, %s114
      %s129 = sphi 0, %s115
      %s133 = sphi 0, %s133
      %s135 = sphi 0, %s133
      %s136 = sphi 0, %s135
      %s150 = sphi 0, %s136
      %s156 = sphi 0, %s158
      %s159 = sphi 0, %s156
      %s160 = sphi 0, %s159
      %s176 = sphi 0, %s160
    $region4: #{et_decoder_block.7} parent=1 // loop_header_branch
      %18 = sbr.rel (%p16) target = $region8
    $region5: #{et_decoder_block.7} parent=1 // loop_body
      %s20 = ssub.s32 %s15, 1
      %s21 = ssub.s32 %s15, 2
      %s22 = sadd.s32 %s15, 1
      %s23 = ssub.s32 %s15, %s22
      %p24 = scmp.eq.s32.totalorder %s23, 0
      %s26 = sadd.s32 %s25, 1
      %s27 = scalar_select %p24, %s25, %s26
      %p30 = pneg %p24
      %p31 = scmp.eq.s32.totalorder %s15, 1
      %p32 = por %p30, %p31
      %p33 = scmp.ne.s32.totalorder %s25, %s28
      %p34 = scmp.eq.s32.totalorder %s15, 0
      %p35 = por %p33, %p34
      %p36 = scmp.ne.s32.totalorder %s25, %s28
      %p37 = scmp.eq.s32.totalorder %s20, 1
      %p38 = por %p36, %p37
      %p39 = scmp.ne.s32.totalorder %s28, %s29
      %p40 = scmp.eq.s32.totalorder %s20, 0
      %p41 = por %p39, %p40
      %p42 = scmp.ne.s32.totalorder %s28, %s29
      %p43 = scmp.eq.s32.totalorder %s21, 1
      %p44 = por %p42, %p43
      %p46 = scmp.ne.s32.totalorder %s29, %s45
      %p47 = scmp.eq.s32.totalorder %s21, 0
      %p48 = por %p46, %p47
      %s50 = sadd.s32 %s49, 1
      %p53 = scmp.eq.s32.totalorder %s15, 1
      %p54 = scmp.ne.s32.totalorder %s49, %s51
      %p55 = scmp.eq.s32.totalorder %s15, 0
      %p56 = por %p54, %p55
      %p57 = scmp.ne.s32.totalorder %s49, %s51
      %p58 = scmp.eq.s32.totalorder %s20, 1
      %p59 = por %p57, %p58
      %p60 = scmp.ne.s32.totalorder %s51, %s52
      %p61 = scmp.eq.s32.totalorder %s20, 0
      %p62 = por %p60, %p61
      %p63 = scmp.ne.s32.totalorder %s51, %s52
      %p64 = scmp.eq.s32.totalorder %s21, 1
      %p65 = por %p63, %p64
      %p67 = scmp.ne.s32.totalorder %s52, %s66
      %p68 = scmp.eq.s32.totalorder %s21, 0
      %p69 = por %p67, %p68
      %s71 = sadd.s32 %s70, 1
      %p74 = scmp.eq.s32.totalorder %s15, 1
      %p75 = scmp.ne.s32.totalorder %s70, %s72
      %p76 = scmp.eq.s32.totalorder %s15, 0
      %p77 = por %p75, %p76
      %p78 = scmp.ne.s32.totalorder %s70, %s72
      %p79 = scmp.eq.s32.totalorder %s20, 1
      %p80 = por %p78, %p79
      %p81 = scmp.ne.s32.totalorder %s72, %s73
      %p82 = scmp.eq.s32.totalorder %s20, 0
      %p83 = por %p81, %p82
      %p84 = scmp.ne.s32.totalorder %s72, %s73
      %p85 = scmp.eq.s32.totalorder %s21, 1
      %p86 = por %p84, %p85
      %p88 = scmp.ne.s32.totalorder %s73, %s87
      %p89 = scmp.eq.s32.totalorder %s21, 0
      %p90 = por %p88, %p89
      %s92 = sadd.s32 %s91, 1
      %p95 = scmp.eq.s32.totalorder %s15, 1
      %p96 = scmp.ne.s32.totalorder %s91, %s93
      %p97 = scmp.eq.s32.totalorder %s15, 0
      %p98 = por %p96, %p97
      %p99 = scmp.ne.s32.totalorder %s91, %s93
      %p100 = scmp.eq.s32.totalorder %s20, 1
      %p101 = por %p99, %p100
      %p102 = scmp.ne.s32.totalorder %s93, %s94
      %p103 = scmp.eq.s32.totalorder %s20, 0
      %p104 = por %p102, %p103
      %p105 = scmp.ne.s32.totalorder %s93, %s94
      %p106 = scmp.eq.s32.totalorder %s21, 1
      %p107 = por %p105, %p106
      %p109 = scmp.ne.s32.totalorder %s94, %s108
      %p110 = scmp.eq.s32.totalorder %s21, 0
      %p111 = por %p109, %p110
      %s113 = sadd.s32 %s112, 1
      %p116 = scmp.eq.s32.totalorder %s15, 1
      %p117 = scmp.ne.s32.totalorder %s112, %s114
      %p118 = scmp.eq.s32.totalorder %s15, 0
      %p119 = por %p117, %p118
      %p120 = scmp.ne.s32.totalorder %s112, %s114
      %p121 = scmp.eq.s32.totalorder %s20, 1
      %p122 = por %p120, %p121
      %p123 = scmp.ne.s32.totalorder %s114, %s115
      %p124 = scmp.eq.s32.totalorder %s20, 0
      %p125 = por %p123, %p124
      %p126 = scmp.ne.s32.totalorder %s114, %s115
      %p127 = scmp.eq.s32.totalorder %s21, 1
      %p128 = por %p126, %p127
      %p130 = scmp.ne.s32.totalorder %s115, %s129
      %p131 = scmp.eq.s32.totalorder %s21, 0
      %p132 = por %p130, %p131
      %s134 = sadd.s32 %s133, 1
      %p137 = scmp.eq.s32.totalorder %s15, 1
      %p138 = scmp.ne.s32.totalorder %s133, %s135
      %p139 = scmp.eq.s32.totalorder %s15, 0
      %p140 = por %p138, %p139
      %p141 = scmp.ne.s32.totalorder %s133, %s135
      %p142 = scmp.eq.s32.totalorder %s20, 1
      %p143 = por %p141, %p142
      %p144 = scmp.ne.s32.totalorder %s135, %s136
      %p145 = scmp.eq.s32.totalorder %s20, 0
      %p146 = por %p144, %p145
      %p147 = scmp.ne.s32.totalorder %s135, %s136
      %p148 = scmp.eq.s32.totalorder %s21, 1
      %p149 = por %p147, %p148
      %p151 = scmp.ne.s32.totalorder %s136, %s150
      %p152 = scmp.eq.s32.totalorder %s21, 0
      %p153 = por %p151, %p152
      %s154 = ssub.s32 %s15, %s22
      %p155 = scmp.eq.s32.totalorder %s154, 0
      %s157 = sadd.s32 %s156, 1
      %s158 = scalar_select %p155, %s156, %s157
      %p161 = pneg %p155
      %p162 = scmp.eq.s32.totalorder %s15, 1
      %p163 = por %p161, %p162
      %p164 = scmp.ne.s32.totalorder %s156, %s159
      %p165 = scmp.eq.s32.totalorder %s15, 0
      %p166 = por %p164, %p165
      %p167 = scmp.ne.s32.totalorder %s156, %s159
      %p168 = scmp.eq.s32.totalorder %s20, 1
      %p169 = por %p167, %p168
      %p170 = scmp.ne.s32.totalorder %s159, %s160
      %p171 = scmp.eq.s32.totalorder %s20, 0
      %p172 = por %p170, %p171
      %p173 = scmp.ne.s32.totalorder %s159, %s160
      %p174 = scmp.eq.s32.totalorder %s21, 1
      %p175 = por %p173, %p174
      %p177 = scmp.ne.s32.totalorder %s160, %s176
      %p178 = scmp.eq.s32.totalorder %s21, 0
      %p179 = por %p177, %p178
      %p180 = scmp.le.s32.totalorder 1, %s15
      %p181 = scmp.lt.s32.totalorder %s15, 3
      %p182 = pnand %p180, %p181
      %p183 = pneg %p182
      // Predicated region
      $region9: #{et_decoder_block.7} parent=5 // pred_check
        _
      $region10: #{et_decoder_block.7} parent=5 // pred_check_branch
        %185 = sbr.rel (%p182) target = $region12
      $region11: #{et_decoder_block.7} parent=5 // pred_region
        %s186 = ssub.s32 %s15, 1
        // Predicated region
        $region13: #{et_decoder_block.7} parent=11 // pred_check
          %p187 = pneg %p62
        $region14: #{et_decoder_block.7} parent=11 // pred_check_branch
          %189 = sbr.rel (%p187) target = $region16
        $region15: #{et_decoder_block.7} parent=11 // pred_region
          %191 = vsyncadd [#allocation3], 0
          %s193 = sshll.u32 %s1, 4
          %s194 = int_to_ptr.hbm [resolvable:$true] %s193
          %s195 = sshll.u32 [#allocation2], 4
          %s196 = int_to_ptr.vmem [resolvable:$true] %s195
          %198 = dma.hbm_to_vmem [thread:$0]  %s194, 16, %s196, [#allocation3]
        $region16: #{et_decoder_block.7} parent=11 // pred_fallthru
          _
        // Predicated region
        $region17: #{et_decoder_block.7} parent=11 // pred_check
          %p199 = pneg %p83
        $region18: #{et_decoder_block.7} parent=11 // pred_check_branch
          %201 = sbr.rel (%p199) target = $region20
        $region19: #{et_decoder_block.7} parent=11 // pred_region
          %203 = vsyncadd [#allocation5], 0
          %s204 = sshll.u32 %s2, 4
          %s205 = int_to_ptr.hbm [resolvable:$true] %s204
          %s206 = sshll.u32 [#allocation4], 4
          %s207 = int_to_ptr.vmem [resolvable:$true] %s206
          %212 = dma.hbm_to_vmem [thread:$0]  %s205, 512, %s207, [#allocation5], 128, 128, 8
        $region20: #{et_decoder_block.7} parent=11 // pred_fallthru
          _
        // Predicated region
        $region21: #{et_decoder_block.7} parent=11 // pred_check
          %p213 = pneg %p104
        $region22: #{et_decoder_block.7} parent=11 // pred_check_branch
          %215 = sbr.rel (%p213) target = $region24
        $region23: #{et_decoder_block.7} parent=11 // pred_region
          %217 = vsyncadd [#allocation5], 0
          %s219 = sshll.u32 %s3, 4
          %s220 = int_to_ptr.hbm [resolvable:$true] %s219
          %s221 = sshll.u32 [#allocation6], 4
          %s222 = int_to_ptr.vmem [resolvable:$true] %s221
          %224 = dma.hbm_to_vmem [thread:$0]  %s220, 16, %s222, [#allocation5]
        $region24: #{et_decoder_block.7} parent=11 // pred_fallthru
          _
        // Predicated region
        $region25: #{et_decoder_block.7} parent=11 // pred_check
          %p225 = pneg %p125
        $region26: #{et_decoder_block.7} parent=11 // pred_check_branch
          %227 = sbr.rel (%p225) target = $region28
        $region27: #{et_decoder_block.7} parent=11 // pred_region
          %229 = vsyncadd [#allocation8], 0
          %s230 = sshll.u32 %s4, 4
          %s231 = int_to_ptr.hbm [resolvable:$true] %s230
          %s232 = sshll.u32 [#allocation7], 4
          %s233 = int_to_ptr.vmem [resolvable:$true] %s232
          %238 = dma.hbm_to_vmem [thread:$0]  %s231, 512, %s233, [#allocation8], 128, 128, 8
        $region28: #{et_decoder_block.7} parent=11 // pred_fallthru
          _
        // Predicated region
        $region29: #{et_decoder_block.7} parent=11 // pred_check
          %p239 = pneg %p146
        $region30: #{et_decoder_block.7} parent=11 // pred_check_branch
          %241 = sbr.rel (%p239) target = $region32
        $region31: #{et_decoder_block.7} parent=11 // pred_region
          %243 = vsyncadd [#allocation8], 0
          %s245 = sshll.u32 %s5, 4
          %s246 = int_to_ptr.hbm [resolvable:$true] %s245
          %s247 = sshll.u32 [#allocation9], 4
          %s248 = int_to_ptr.vmem [resolvable:$true] %s247
          %250 = dma.hbm_to_vmem [thread:$0]  %s246, 16, %s248, [#allocation8]
        $region32: #{et_decoder_block.7} parent=11 // pred_fallthru
          _
      $region12: #{et_decoder_block.7} parent=5 // pred_fallthru
        _
      %p251 = scmp.lt.s32.totalorder %s15, 2
      // Predicated region
      $region33: #{et_decoder_block.7} parent=5 // pred_check
        %p252 = pneg %p251
      $region34: #{et_decoder_block.7} parent=5 // pred_check_branch
        %254 = sbr.rel (%p252) target = $region36
      $region35: #{et_decoder_block.7} parent=5 // pred_region
        // Predicated region
        $region37: #{et_decoder_block.7} parent=35 // pred_check
          %p255 = pneg %p35
        $region38: #{et_decoder_block.7} parent=35 // pred_check_branch
          %257 = sbr.rel (%p255) target = $region40
        $region39: #{et_decoder_block.7} parent=35 // pred_region
          %p258 = scmp.lt.s32.totalorder %s15, 1
          %s259 = scalar_select %p258, %s15, 1
          %s260 = smul.addr %s259, 8
          %s261 = scalar_lea.vmem %s0, %s260
        $region40: #{et_decoder_block.7} parent=35 // pred_fallthru
          _
      $region36: #{et_decoder_block.7} parent=5 // pred_fallthru
        _
      %p262 = scmp.le.s32.totalorder 1, %s15
      %p263 = scmp.lt.s32.totalorder %s15, 3
      %p264 = pnand %p262, %p263
      %p265 = pneg %p264
      // Predicated region
      $region41: #{et_decoder_block.7} parent=5 // pred_check
        _
      $region42: #{et_decoder_block.7} parent=5 // pred_check_branch
        %267 = sbr.rel (%p264) target = $region44
      $region43: #{et_decoder_block.7} parent=5 // pred_region
        %s268 = ssub.s32 %s15, 1
        // Predicated region
        $region45: #{et_decoder_block.7} parent=43 // pred_check
          %p269 = pneg %p62
        $region46: #{et_decoder_block.7} parent=43 // pred_check_branch
          %271 = sbr.rel (%p269) target = $region48
        $region47: #{et_decoder_block.7} parent=43 // pred_region
          %273 = dma.done [#allocation3], 16
        $region48: #{et_decoder_block.7} parent=43 // pred_fallthru
          _
        // Predicated region
        $region49: #{et_decoder_block.7} parent=43 // pred_check
          %p274 = pneg %p83
        $region50: #{et_decoder_block.7} parent=43 // pred_check_branch
          %276 = sbr.rel (%p274) target = $region52
        $region51: #{et_decoder_block.7} parent=43 // pred_region
          %278 = dma.done [#allocation5], 512
        $region52: #{et_decoder_block.7} parent=43 // pred_fallthru
          _
        // Predicated region
        $region53: #{et_decoder_block.7} parent=43 // pred_check
          %p279 = pneg %p104
        $region54: #{et_decoder_block.7} parent=43 // pred_check_branch
          %281 = sbr.rel (%p279) target = $region56
        $region55: #{et_decoder_block.7} parent=43 // pred_region
          %283 = dma.done [#allocation5], 16
        $region56: #{et_decoder_block.7} parent=43 // pred_fallthru
          _
        // Predicated region
        $region57: #{et_decoder_block.7} parent=43 // pred_check
          %p284 = pneg %p125
        $region58: #{et_decoder_block.7} parent=43 // pred_check_branch
          %286 = sbr.rel (%p284) target = $region60
        $region59: #{et_decoder_block.7} parent=43 // pred_region
          %288 = dma.done [#allocation8], 512
        $region60: #{et_decoder_block.7} parent=43 // pred_fallthru
          _
        // Predicated region
        $region61: #{et_decoder_block.7} parent=43 // pred_check
          %p289 = pneg %p146
        $region62: #{et_decoder_block.7} parent=43 // pred_check_branch
          %291 = sbr.rel (%p289) target = $region64
        $region63: #{et_decoder_block.7} parent=43 // pred_region
          %293 = dma.done [#allocation8], 16
        $region64: #{et_decoder_block.7} parent=43 // pred_fallthru
          _
        %p294 = scmp.lt.s32.totalorder %s20, 1
        %s295 = scalar_select %p294, %s20, 1
        %s296 = smul.addr %s295, 8
        %s297 = scalar_lea.vmem %s0, %s296
        %p298 = pneg %p41
        %p299 = pneg %p38
        %p300 = pneg %p62
        %p301 = pneg %p59
        %p302 = pneg %p83
        %p303 = pneg %p80
        %p304 = pneg %p104
        %p305 = pneg %p101
        %p306 = pneg %p125
        %p307 = pneg %p122
        %p308 = pneg %p146
        %p309 = pneg %p143
        %p310 = pneg %p172
        %p311 = pneg %p169
        %p312 = scmp.lt.s32.totalorder %s20, 1
        %s313 = scalar_select %p312, %s20, 1
        %s314 = smul.addr %s313, 8
        %s315 = scalar_lea.vmem %s6, %s314
        %p316 = scmp.lt.s32.totalorder %s20, 1
        %s317 = scalar_select %p316, %s20, 1
        %s318 = smul.addr %s317, 8
        %s319 = scalar_lea.vmem %s0, %s318
        %p320 = scmp.lt.s32.totalorder %s20, 1
        %s321 = scalar_select %p320, %s20, 1
        %s322 = smul.addr %s321, 8
        %s323 = scalar_lea.vmem %s6, %s322
        %v325 = vld [vmem:[%s319] sm:$0xff]
        %v326 = vld [vmem:[#allocation2] sm:$0x1]
        %v327 = vmul.f32 %v325, %v325
        %vm328 = vcmask 261120
        %v329 = vsel %vm328, %v327, 0.0
        %330 = vadd.xlane.f32.xlu0 %v329
        %v331 = vpop.xlane.xlu0 %330
        %v332 = vrcp.pop 32.0
        %v333 = vmul.f32 32.0, %v332
        %v334 = vsub.f32 1.0, %v333
        %v335 = vmul.f32 %v332, %v334
        %v336 = vadd.f32 %v332, %v335
        %vm337 = vweird.f32 %v332
        %v338 = vsel %vm337, %v332, %v336
        %v339 = vmul.f32 %v331, %v338
        %v340 = vrsqrt.pop %v339
        %v341 = vmul.f32 %v340, %v339
        %v342 = vmul.f32 %v341, %v340
        %v343 = vmul.f32 0.5, %v342
        %v344 = vsub.f32 1.5, %v343
        %v345 = vmul.f32 %v340, %v344
        %v346 = vmul.f32 %v339, %v345
        %vm347 = vcmp.eq.f32.partialorder %v339, inf
        %v348 = vsel %vm347, %v339, %v346
        %vm349 = vcmp.eq.f32.partialorder %v339, 0.0
        %v350 = vand.u32 %v339, 2147483648
        %v351 = vsel %vm349, %v350, %v348
        %v352 = vmax.f32 %v351, 1e-08
        %v353 = vrcp.pop %v352
        %v354 = vmul.f32 %v352, %v353
        %v355 = vsub.f32 1.0, %v354
        %v356 = vmul.f32 %v353, %v355
        %v357 = vadd.f32 %v353, %v356
        %vm358 = vweird.f32 %v352
        %vm359 = vweird.f32 %v353
        %vm360 = vmor %vm358, %vm359
        %v361 = vsel %vm360, %v353, %v357
        %v362 = vand.u32 2147483647, %v352
        %vm363 = vcmp.eq.f32.partialorder %v362, 8.507059e+37
        %v364 = vand.u32 %v352, 2147483648
        %v365 = vor.u32 1.1754944e-38, %v364
        %v366 = vsel %vm363, %v365, %v361
        %v367 = vmul.f32 %v325, %v366
        %v369 = vperm.slane %v326, 0
        %v371 = vmul.f32 %v367, %v369
        %v372 = vld [vmem:[#allocation4] sm:$0xff]
        %v373 = vld [vmem:[#allocation4 + $0x8] sm:$0xff]
        %v374 = vld [vmem:[#allocation4 + $0x10] sm:$0xff]
        %v375 = vld [vmem:[#allocation4 + $0x18] sm:$0xff]
        %v376 = vld [vmem:[#allocation6] sm:$0x1]
        %v377 = vld [vmem:[#allocation7] sm:$0xff]
        %v378 = vld [vmem:[#allocation7 + $0x8] sm:$0xff]
        %v379 = vld [vmem:[#allocation7 + $0x10] sm:$0xff]
        %v380 = vld [vmem:[#allocation7 + $0x18] sm:$0xff]
        %v381 = vld [vmem:[#allocation9] sm:$0x1]
        %v382 = vpack.c.bf16 %v371, %v371
        %v383 = vpack.c.bf16 %v373, %v372
        %v384 = vpack.c.bf16 %v375, %v374
        %v386 = vperm.slane %v376, 0
        %v389 = vsel %vm328, %v382, 0
        %391 = vmatpush.bf16.msra.mxu0 0
        %392 = vmatpush.bf16.msra.mxu0 0
        %393 = vmatpush.bf16.msra.mxu0 0
        %394 = vmatpush.bf16.msra.mxu0 0
        %395 = vmatpush.bf16.msra.mxu0 0
        %396 = vmatpush.bf16.msra.mxu0 0
        %397 = vmatpush.bf16.msra.mxu0 %v384
        %398 = vmatpush.bf16.msra.mxu0 %v383
        %399 = vmatmul.bf16.gmra.mxu0 %v389
        %v400 = vpop.f32.mrf.mxu0
        %v401 = vadd.f32 %v386, %v400
        %v402 = vpop.f32.mrf.mxu0
        %403 = vdwg.mxu0
        %405 = vrot.lane.b32.xlu0 %v401, 96
        %v406 = vpop.permute.xlu0 %405
        %vm407 = vcmask 31744
        %v408 = vsel %vm407, %v401, 0
        %v410 = vsel %vm407, %v406, 0
        %412 = vmatpush.xpose.msra.mxu0 0.0
        %413 = vmatpush.xpose.msra.mxu0 0.0
        %414 = vmatpush.xpose.msra.mxu0 0.0
        %415 = vmatpush.xpose.msra.mxu0 0.0
        %416 = vmatpush.xpose.msra.mxu0 0.0
        %417 = vmatpush.xpose.msra.mxu0 0.0
        %418 = vmatpush.xpose.msra.mxu0 0.0
        %419 = vmatpush.xpose.msra.mxu0 0.0
        %420 = vmatpush.xpose.msra.mxu0 0.0
        %421 = vmatpush.xpose.msra.mxu0 0.0
        %422 = vmatpush.xpose.msra.mxu0 0.0
        %423 = vmatpush.xpose.msra.mxu0 0.0
        %424 = vmatpush.xpose.msra.mxu0 0.0
        %425 = vmatpush.xpose.msra.mxu0 0.0
        %426 = vmatpush.xpose.msra.mxu0 0.0
        %427 = vmatpush.xpose.msra.mxu0 %v410
        %428 = vmatmul.f32.gmra.mxu0 %v408
        %v429 = vpop.f32.mrf.mxu0
        %v430 = vadd.f32 0.0, %v429
        %431 = vdwg.mxu0
        %v432 = vmul.f32 %v430, 0.5
        %vm433 = vcmask 64512
        %v434 = vsel %vm433, %v432, -inf
        %435 = vmax.xlane.f32.xlu0 %v434
        %v436 = vpop.xlane.xlu0 %435
        %v437 = vsub.f32 %v432, %v436
        %v438 = vmul.f32 %v437, 1.442695
        %v439 = vpow.pop %v438
        %v440 = vsel %vm433, %v439, 0.0
        %441 = vadd.xlane.f32.xlu0 %v440
        %v442 = vpop.xlane.xlu0 %441
        %v443 = vrcp.pop %v442
        %v444 = vmul.f32 %v439, %v443
        %445 = vrot.lane.b32.xlu0 %v401, 64
        %v446 = vpop.permute.xlu0 %445
        %v449 = vsel %vm433, %v444, 0
        %451 = vmatpush.msra.mxu0 0.0
        %452 = vmatpush.msra.mxu0 0.0
        %453 = vmatpush.msra.mxu0 0.0
        %454 = vmatpush.msra.mxu0 0.0
        %455 = vmatpush.msra.mxu0 0.0
        %456 = vmatpush.msra.mxu0 0.0
        %457 = vmatpush.msra.mxu0 0.0
        %458 = vmatpush.msra.mxu0 0.0
        %459 = vmatpush.msra.mxu0 0.0
        %460 = vmatpush.msra.mxu0 0.0
        %461 = vmatpush.msra.mxu0 0.0
        %462 = vmatpush.msra.mxu0 0.0
        %463 = vmatpush.msra.mxu0 0.0
        %464 = vmatpush.msra.mxu0 0.0
        %465 = vmatpush.msra.mxu0 0.0
        %466 = vmatpush.msra.mxu0 %v446
        %467 = vmatmul.f32.gmra.mxu0 %v449
        %v468 = vpop.f32.mrf.mxu0
        %v469 = vadd.f32 0.0, %v468
        %470 = vdwg.mxu0
        %471 = vrot.lane.b32.xlu0 %v401, 124
        %v472 = vpop.permute.xlu0 %471
        %473 = vrot.lane.b32.xlu0 %v401, 92
        %v474 = vpop.permute.xlu0 %473
        %v475 = vsel %vm407, %v472, 0
        %v477 = vsel %vm407, %v474, 0
        %479 = vmatpush.xpose.msra.mxu0 0.0
        %480 = vmatpush.xpose.msra.mxu0 0.0
        %481 = vmatpush.xpose.msra.mxu0 0.0
        %482 = vmatpush.xpose.msra.mxu0 0.0
        %483 = vmatpush.xpose.msra.mxu0 0.0
        %484 = vmatpush.xpose.msra.mxu0 0.0
        %485 = vmatpush.xpose.msra.mxu0 0.0
        %486 = vmatpush.xpose.msra.mxu0 0.0
        %487 = vmatpush.xpose.msra.mxu0 0.0
        %488 = vmatpush.xpose.msra.mxu0 0.0
        %489 = vmatpush.xpose.msra.mxu0 0.0
        %490 = vmatpush.xpose.msra.mxu0 0.0
        %491 = vmatpush.xpose.msra.mxu0 0.0
        %492 = vmatpush.xpose.msra.mxu0 0.0
        %493 = vmatpush.xpose.msra.mxu0 0.0
        %494 = vmatpush.xpose.msra.mxu0 %v477
        %495 = vmatmul.f32.gmra.mxu0 %v475
        %v496 = vpop.f32.mrf.mxu0
        %v497 = vadd.f32 0.0, %v496
        %498 = vdwg.mxu0
        %v499 = vmul.f32 %v497, 0.5
        %v500 = vsel %vm433, %v499, -inf
        %501 = vmax.xlane.f32.xlu0 %v500
        %v502 = vpop.xlane.xlu0 %501
        %v503 = vsub.f32 %v499, %v502
        %v504 = vmul.f32 %v503, 1.442695
        %v505 = vpow.pop %v504
        %v506 = vsel %vm433, %v505, 0.0
        %507 = vadd.xlane.f32.xlu0 %v506
        %v508 = vpop.xlane.xlu0 %507
        %v509 = vrcp.pop %v508
        %v510 = vmul.f32 %v505, %v509
        %511 = vrot.lane.b32.xlu0 %v401, 60
        %v512 = vpop.permute.xlu0 %511
        %v515 = vsel %vm433, %v510, 0
        %517 = vmatpush.msra.mxu0 0.0
        %518 = vmatpush.msra.mxu0 0.0
        %519 = vmatpush.msra.mxu0 0.0
        %520 = vmatpush.msra.mxu0 0.0
        %521 = vmatpush.msra.mxu0 0.0
        %522 = vmatpush.msra.mxu0 0.0
        %523 = vmatpush.msra.mxu0 0.0
        %524 = vmatpush.msra.mxu0 0.0
        %525 = vmatpush.msra.mxu0 0.0
        %526 = vmatpush.msra.mxu0 0.0
        %527 = vmatpush.msra.mxu0 0.0
        %528 = vmatpush.msra.mxu0 0.0
        %529 = vmatpush.msra.mxu0 0.0
        %530 = vmatpush.msra.mxu0 0.0
        %531 = vmatpush.msra.mxu0 0.0
        %532 = vmatpush.msra.mxu0 %v512
        %533 = vmatmul.f32.gmra.mxu0 %v515
        %v534 = vpop.f32.mrf.mxu0
        %v535 = vadd.f32 0.0, %v534
        %536 = vdwg.mxu0
        %537 = vrot.lane.b32.xlu0 %v401, 120
        %v538 = vpop.permute.xlu0 %537
        %539 = vrot.lane.b32.xlu0 %v401, 88
        %v540 = vpop.permute.xlu0 %539
        %v541 = vsel %vm407, %v538, 0
        %v543 = vsel %vm407, %v540, 0
        %545 = vmatpush.xpose.msra.mxu0 0.0
        %546 = vmatpush.xpose.msra.mxu0 0.0
        %547 = vmatpush.xpose.msra.mxu0 0.0
        %548 = vmatpush.xpose.msra.mxu0 0.0
        %549 = vmatpush.xpose.msra.mxu0 0.0
        %550 = vmatpush.xpose.msra.mxu0 0.0
        %551 = vmatpush.xpose.msra.mxu0 0.0
        %552 = vmatpush.xpose.msra.mxu0 0.0
        %553 = vmatpush.xpose.msra.mxu0 0.0
        %554 = vmatpush.xpose.msra.mxu0 0.0
        %555 = vmatpush.xpose.msra.mxu0 0.0
        %556 = vmatpush.xpose.msra.mxu0 0.0
        %557 = vmatpush.xpose.msra.mxu0 0.0
        %558 = vmatpush.xpose.msra.mxu0 0.0
        %559 = vmatpush.xpose.msra.mxu0 0.0
        %560 = vmatpush.xpose.msra.mxu0 %v543
        %561 = vmatmul.f32.gmra.mxu0 %v541
        %v562 = vpop.f32.mrf.mxu0
        %v563 = vadd.f32 0.0, %v562
        %564 = vdwg.mxu0
        %v565 = vmul.f32 %v563, 0.5
        %v566 = vsel %vm433, %v565, -inf
        %567 = vmax.xlane.f32.xlu0 %v566
        %v568 = vpop.xlane.xlu0 %567
        %v569 = vsub.f32 %v565, %v568
        %v570 = vmul.f32 %v569, 1.442695
        %v571 = vpow.pop %v570
        %v572 = vsel %vm433, %v571, 0.0
        %573 = vadd.xlane.f32.xlu0 %v572
        %v574 = vpop.xlane.xlu0 %573
        %v575 = vrcp.pop %v574
        %v576 = vmul.f32 %v571, %v575
        %577 = vrot.lane.b32.xlu0 %v401, 56
        %v578 = vpop.permute.xlu0 %577
        %v581 = vsel %vm433, %v576, 0
        %583 = vmatpush.msra.mxu0 0.0
        %584 = vmatpush.msra.mxu0 0.0
        %585 = vmatpush.msra.mxu0 0.0
        %586 = vmatpush.msra.mxu0 0.0
        %587 = vmatpush.msra.mxu0 0.0
        %588 = vmatpush.msra.mxu0 0.0
        %589 = vmatpush.msra.mxu0 0.0
        %590 = vmatpush.msra.mxu0 0.0
        %591 = vmatpush.msra.mxu0 0.0
        %592 = vmatpush.msra.mxu0 0.0
        %593 = vmatpush.msra.mxu0 0.0
        %594 = vmatpush.msra.mxu0 0.0
        %595 = vmatpush.msra.mxu0 0.0
        %596 = vmatpush.msra.mxu0 0.0
        %597 = vmatpush.msra.mxu0 0.0
        %598 = vmatpush.msra.mxu0 %v578
        %599 = vmatmul.f32.gmra.mxu0 %v581
        %v600 = vpop.f32.mrf.mxu0
        %v601 = vadd.f32 0.0, %v600
        %602 = vdwg.mxu0
        %603 = vrot.lane.b32.xlu0 %v401, 116
        %v604 = vpop.permute.xlu0 %603
        %605 = vrot.lane.b32.xlu0 %v401, 84
        %v606 = vpop.permute.xlu0 %605
        %v607 = vsel %vm407, %v604, 0
        %v609 = vsel %vm407, %v606, 0
        %611 = vmatpush.xpose.msra.mxu0 0.0
        %612 = vmatpush.xpose.msra.mxu0 0.0
        %613 = vmatpush.xpose.msra.mxu0 0.0
        %614 = vmatpush.xpose.msra.mxu0 0.0
        %615 = vmatpush.xpose.msra.mxu0 0.0
        %616 = vmatpush.xpose.msra.mxu0 0.0
        %617 = vmatpush.xpose.msra.mxu0 0.0
        %618 = vmatpush.xpose.msra.mxu0 0.0
        %619 = vmatpush.xpose.msra.mxu0 0.0
        %620 = vmatpush.xpose.msra.mxu0 0.0
        %621 = vmatpush.xpose.msra.mxu0 0.0
        %622 = vmatpush.xpose.msra.mxu0 0.0
        %623 = vmatpush.xpose.msra.mxu0 0.0
        %624 = vmatpush.xpose.msra.mxu0 0.0
        %625 = vmatpush.xpose.msra.mxu0 0.0
        %626 = vmatpush.xpose.msra.mxu0 %v609
        %627 = vmatmul.f32.gmra.mxu0 %v607
        %v628 = vpop.f32.mrf.mxu0
        %v629 = vadd.f32 0.0, %v628
        %630 = vdwg.mxu0
        %v631 = vmul.f32 %v629, 0.5
        %v632 = vsel %vm433, %v631, -inf
        %633 = vmax.xlane.f32.xlu0 %v632
        %v634 = vpop.xlane.xlu0 %633
        %v635 = vsub.f32 %v631, %v634
        %v636 = vmul.f32 %v635, 1.442695
        %v637 = vpow.pop %v636
        %v638 = vsel %vm433, %v637, 0.0
        %639 = vadd.xlane.f32.xlu0 %v638
        %v640 = vpop.xlane.xlu0 %639
        %v641 = vrcp.pop %v640
        %v642 = vmul.f32 %v637, %v641
        %643 = vrot.lane.b32.xlu0 %v401, 52
        %v644 = vpop.permute.xlu0 %643
        %v647 = vsel %vm433, %v642, 0
        %649 = vmatpush.msra.mxu0 0.0
        %650 = vmatpush.msra.mxu0 0.0
        %651 = vmatpush.msra.mxu0 0.0
        %652 = vmatpush.msra.mxu0 0.0
        %653 = vmatpush.msra.mxu0 0.0
        %654 = vmatpush.msra.mxu0 0.0
        %655 = vmatpush.msra.mxu0 0.0
        %656 = vmatpush.msra.mxu0 0.0
        %657 = vmatpush.msra.mxu0 0.0
        %658 = vmatpush.msra.mxu0 0.0
        %659 = vmatpush.msra.mxu0 0.0
        %660 = vmatpush.msra.mxu0 0.0
        %661 = vmatpush.msra.mxu0 0.0
        %662 = vmatpush.msra.mxu0 0.0
        %663 = vmatpush.msra.mxu0 0.0
        %664 = vmatpush.msra.mxu0 %v644
        %665 = vmatmul.f32.gmra.mxu0 %v647
        %v666 = vpop.f32.mrf.mxu0
        %v667 = vadd.f32 0.0, %v666
        %668 = vdwg.mxu0
        %669 = vrot.lane.b32.xlu0 %v401, 112
        %v670 = vpop.permute.xlu0 %669
        %671 = vrot.lane.b32.xlu0 %v401, 80
        %v672 = vpop.permute.xlu0 %671
        %v673 = vsel %vm407, %v670, 0
        %v675 = vsel %vm407, %v672, 0
        %677 = vmatpush.xpose.msra.mxu0 0.0
        %678 = vmatpush.xpose.msra.mxu0 0.0
        %679 = vmatpush.xpose.msra.mxu0 0.0
        %680 = vmatpush.xpose.msra.mxu0 0.0
        %681 = vmatpush.xpose.msra.mxu0 0.0
        %682 = vmatpush.xpose.msra.mxu0 0.0
        %683 = vmatpush.xpose.msra.mxu0 0.0
        %684 = vmatpush.xpose.msra.mxu0 0.0
        %685 = vmatpush.xpose.msra.mxu0 0.0
        %686 = vmatpush.xpose.msra.mxu0 0.0
        %687 = vmatpush.xpose.msra.mxu0 0.0
        %688 = vmatpush.xpose.msra.mxu0 0.0
        %689 = vmatpush.xpose.msra.mxu0 0.0
        %690 = vmatpush.xpose.msra.mxu0 0.0
        %691 = vmatpush.xpose.msra.mxu0 0.0
        %692 = vmatpush.xpose.msra.mxu0 %v675
        %693 = vmatmul.f32.gmra.mxu0 %v673
        %v694 = vpop.f32.mrf.mxu0
        %v695 = vadd.f32 0.0, %v694
        %696 = vdwg.mxu0
        %v697 = vmul.f32 %v695, 0.5
        %v698 = vsel %vm433, %v697, -inf
        %699 = vmax.xlane.f32.xlu0 %v698
        %v700 = vpop.xlane.xlu0 %699
        %v701 = vsub.f32 %v697, %v700
        %v702 = vmul.f32 %v701, 1.442695
        %v703 = vpow.pop %v702
        %v704 = vsel %vm433, %v703, 0.0
        %705 = vadd.xlane.f32.xlu0 %v704
        %v706 = vpop.xlane.xlu0 %705
        %v707 = vrcp.pop %v706
        %v708 = vmul.f32 %v703, %v707
        %709 = vrot.lane.b32.xlu0 %v401, 48
        %v710 = vpop.permute.xlu0 %709
        %v713 = vsel %vm433, %v708, 0
        %715 = vmatpush.msra.mxu0 0.0
        %716 = vmatpush.msra.mxu0 0.0
        %717 = vmatpush.msra.mxu0 0.0
        %718 = vmatpush.msra.mxu0 0.0
        %719 = vmatpush.msra.mxu0 0.0
        %720 = vmatpush.msra.mxu0 0.0
        %721 = vmatpush.msra.mxu0 0.0
        %722 = vmatpush.msra.mxu0 0.0
        %723 = vmatpush.msra.mxu0 0.0
        %724 = vmatpush.msra.mxu0 0.0
        %725 = vmatpush.msra.mxu0 0.0
        %726 = vmatpush.msra.mxu0 0.0
        %727 = vmatpush.msra.mxu0 0.0
        %728 = vmatpush.msra.mxu0 0.0
        %729 = vmatpush.msra.mxu0 0.0
        %730 = vmatpush.msra.mxu0 %v710
        %731 = vmatmul.f32.gmra.mxu0 %v713
        %v732 = vpop.f32.mrf.mxu0
        %v733 = vadd.f32 0.0, %v732
        %734 = vdwg.mxu0
        %735 = vrot.lane.b32.xlu0 %v401, 108
        %v736 = vpop.permute.xlu0 %735
        %737 = vrot.lane.b32.xlu0 %v401, 76
        %v738 = vpop.permute.xlu0 %737
        %v739 = vsel %vm407, %v736, 0
        %v741 = vsel %vm407, %v738, 0
        %743 = vmatpush.xpose.msra.mxu0 0.0
        %744 = vmatpush.xpose.msra.mxu0 0.0
        %745 = vmatpush.xpose.msra.mxu0 0.0
        %746 = vmatpush.xpose.msra.mxu0 0.0
        %747 = vmatpush.xpose.msra.mxu0 0.0
        %748 = vmatpush.xpose.msra.mxu0 0.0
        %749 = vmatpush.xpose.msra.mxu0 0.0
        %750 = vmatpush.xpose.msra.mxu0 0.0
        %751 = vmatpush.xpose.msra.mxu0 0.0
        %752 = vmatpush.xpose.msra.mxu0 0.0
        %753 = vmatpush.xpose.msra.mxu0 0.0
        %754 = vmatpush.xpose.msra.mxu0 0.0
        %755 = vmatpush.xpose.msra.mxu0 0.0
        %756 = vmatpush.xpose.msra.mxu0 0.0
        %757 = vmatpush.xpose.msra.mxu0 0.0
        %758 = vmatpush.xpose.msra.mxu0 %v741
        %759 = vmatmul.f32.gmra.mxu0 %v739
        %v760 = vpop.f32.mrf.mxu0
        %v761 = vadd.f32 0.0, %v760
        %762 = vdwg.mxu0
        %v763 = vmul.f32 %v761, 0.5
        %v764 = vsel %vm433, %v763, -inf
        %765 = vmax.xlane.f32.xlu0 %v764
        %v766 = vpop.xlane.xlu0 %765
        %v767 = vsub.f32 %v763, %v766
        %v768 = vmul.f32 %v767, 1.442695
        %v769 = vpow.pop %v768
        %v770 = vsel %vm433, %v769, 0.0
        %771 = vadd.xlane.f32.xlu0 %v770
        %v772 = vpop.xlane.xlu0 %771
        %v773 = vrcp.pop %v772
        %v774 = vmul.f32 %v769, %v773
        %775 = vrot.lane.b32.xlu0 %v401, 44
        %v776 = vpop.permute.xlu0 %775
        %v779 = vsel %vm433, %v774, 0
        %781 = vmatpush.msra.mxu0 0.0
        %782 = vmatpush.msra.mxu0 0.0
        %783 = vmatpush.msra.mxu0 0.0
        %784 = vmatpush.msra.mxu0 0.0
        %785 = vmatpush.msra.mxu0 0.0
        %786 = vmatpush.msra.mxu0 0.0
        %787 = vmatpush.msra.mxu0 0.0
        %788 = vmatpush.msra.mxu0 0.0
        %789 = vmatpush.msra.mxu0 0.0
        %790 = vmatpush.msra.mxu0 0.0
        %791 = vmatpush.msra.mxu0 0.0
        %792 = vmatpush.msra.mxu0 0.0
        %793 = vmatpush.msra.mxu0 0.0
        %794 = vmatpush.msra.mxu0 0.0
        %795 = vmatpush.msra.mxu0 0.0
        %796 = vmatpush.msra.mxu0 %v776
        %797 = vmatmul.f32.gmra.mxu0 %v779
        %v798 = vpop.f32.mrf.mxu0
        %v799 = vadd.f32 0.0, %v798
        %800 = vdwg.mxu0
        %801 = vrot.lane.b32.xlu0 %v401, 104
        %v802 = vpop.permute.xlu0 %801
        %803 = vrot.lane.b32.xlu0 %v401, 72
        %v804 = vpop.permute.xlu0 %803
        %v805 = vsel %vm407, %v802, 0
        %v807 = vsel %vm407, %v804, 0
        %809 = vmatpush.xpose.msra.mxu0 0.0
        %810 = vmatpush.xpose.msra.mxu0 0.0
        %811 = vmatpush.xpose.msra.mxu0 0.0
        %812 = vmatpush.xpose.msra.mxu0 0.0
        %813 = vmatpush.xpose.msra.mxu0 0.0
        %814 = vmatpush.xpose.msra.mxu0 0.0
        %815 = vmatpush.xpose.msra.mxu0 0.0
        %816 = vmatpush.xpose.msra.mxu0 0.0
        %817 = vmatpush.xpose.msra.mxu0 0.0
        %818 = vmatpush.xpose.msra.mxu0 0.0
        %819 = vmatpush.xpose.msra.mxu0 0.0
        %820 = vmatpush.xpose.msra.mxu0 0.0
        %821 = vmatpush.xpose.msra.mxu0 0.0
        %822 = vmatpush.xpose.msra.mxu0 0.0
        %823 = vmatpush.xpose.msra.mxu0 0.0
        %824 = vmatpush.xpose.msra.mxu0 %v807
        %825 = vmatmul.f32.gmra.mxu0 %v805
        %v826 = vpop.f32.mrf.mxu0
        %v827 = vadd.f32 0.0, %v826
        %828 = vdwg.mxu0
        %v829 = vmul.f32 %v827, 0.5
        %v830 = vsel %vm433, %v829, -inf
        %831 = vmax.xlane.f32.xlu0 %v830
        %v832 = vpop.xlane.xlu0 %831
        %v833 = vsub.f32 %v829, %v832
        %v834 = vmul.f32 %v833, 1.442695
        %v835 = vpow.pop %v834
        %v836 = vsel %vm433, %v835, 0.0
        %837 = vadd.xlane.f32.xlu0 %v836
        %v838 = vpop.xlane.xlu0 %837
        %v839 = vrcp.pop %v838
        %v840 = vmul.f32 %v835, %v839
        %841 = vrot.lane.b32.xlu0 %v401, 40
        %v842 = vpop.permute.xlu0 %841
        %v845 = vsel %vm433, %v840, 0
        %847 = vmatpush.msra.mxu0 0.0
        %848 = vmatpush.msra.mxu0 0.0
        %849 = vmatpush.msra.mxu0 0.0
        %850 = vmatpush.msra.mxu0 0.0
        %851 = vmatpush.msra.mxu0 0.0
        %852 = vmatpush.msra.mxu0 0.0
        %853 = vmatpush.msra.mxu0 0.0
        %854 = vmatpush.msra.mxu0 0.0
        %855 = vmatpush.msra.mxu0 0.0
        %856 = vmatpush.msra.mxu0 0.0
        %857 = vmatpush.msra.mxu0 0.0
        %858 = vmatpush.msra.mxu0 0.0
        %859 = vmatpush.msra.mxu0 0.0
        %860 = vmatpush.msra.mxu0 0.0
        %861 = vmatpush.msra.mxu0 0.0
        %862 = vmatpush.msra.mxu0 %v842
        %863 = vmatmul.f32.gmra.mxu0 %v845
        %v864 = vpop.f32.mrf.mxu0
        %v865 = vadd.f32 0.0, %v864
        %866 = vdwg.mxu0
        %867 = vrot.lane.b32.xlu0 %v401, 100
        %v868 = vpop.permute.xlu0 %867
        %869 = vrot.lane.b32.xlu0 %v401, 68
        %v870 = vpop.permute.xlu0 %869
        %v871 = vsel %vm407, %v868, 0
        %v873 = vsel %vm407, %v870, 0
        %875 = vmatpush.xpose.msra.mxu0 0.0
        %876 = vmatpush.xpose.msra.mxu0 0.0
        %877 = vmatpush.xpose.msra.mxu0 0.0
        %878 = vmatpush.xpose.msra.mxu0 0.0
        %879 = vmatpush.xpose.msra.mxu0 0.0
        %880 = vmatpush.xpose.msra.mxu0 0.0
        %881 = vmatpush.xpose.msra.mxu0 0.0
        %882 = vmatpush.xpose.msra.mxu0 0.0
        %883 = vmatpush.xpose.msra.mxu0 0.0
        %884 = vmatpush.xpose.msra.mxu0 0.0
        %885 = vmatpush.xpose.msra.mxu0 0.0
        %886 = vmatpush.xpose.msra.mxu0 0.0
        %887 = vmatpush.xpose.msra.mxu0 0.0
        %888 = vmatpush.xpose.msra.mxu0 0.0
        %889 = vmatpush.xpose.msra.mxu0 0.0
        %890 = vmatpush.xpose.msra.mxu0 %v873
        %891 = vmatmul.f32.gmra.mxu0 %v871
        %v892 = vpop.f32.mrf.mxu0
        %v893 = vadd.f32 0.0, %v892
        %894 = vdwg.mxu0
        %v895 = vmul.f32 %v893, 0.5
        %v896 = vsel %vm433, %v895, -inf
        %897 = vmax.xlane.f32.xlu0 %v896
        %v898 = vpop.xlane.xlu0 %897
        %v899 = vsub.f32 %v895, %v898
        %v900 = vmul.f32 %v899, 1.442695
        %v901 = vpow.pop %v900
        %v902 = vsel %vm433, %v901, 0.0
        %903 = vadd.xlane.f32.xlu0 %v902
        %v904 = vpop.xlane.xlu0 %903
        %v905 = vrcp.pop %v904
        %v906 = vmul.f32 %v901, %v905
        %907 = vrot.lane.b32.xlu0 %v401, 36
        %v908 = vpop.permute.xlu0 %907
        %v911 = vsel %vm433, %v906, 0
        %913 = vmatpush.msra.mxu0 0.0
        %914 = vmatpush.msra.mxu0 0.0
        %915 = vmatpush.msra.mxu0 0.0
        %916 = vmatpush.msra.mxu0 0.0
        %917 = vmatpush.msra.mxu0 0.0
        %918 = vmatpush.msra.mxu0 0.0
        %919 = vmatpush.msra.mxu0 0.0
        %920 = vmatpush.msra.mxu0 0.0
        %921 = vmatpush.msra.mxu0 0.0
        %922 = vmatpush.msra.mxu0 0.0
        %923 = vmatpush.msra.mxu0 0.0
        %924 = vmatpush.msra.mxu0 0.0
        %925 = vmatpush.msra.mxu0 0.0
        %926 = vmatpush.msra.mxu0 0.0
        %927 = vmatpush.msra.mxu0 0.0
        %928 = vmatpush.msra.mxu0 %v908
        %929 = vmatmul.f32.gmra.mxu0 %v911
        %v930 = vpop.f32.mrf.mxu0
        %v931 = vadd.f32 0.0, %v930
        %932 = vdwg.mxu0
        %934 = vrot.lane.b32.xlu0 %v535, 4
        %v935 = vpop.permute.xlu0 %934
        %938 = vrot.lane.b32.xlu0 %v601, 8
        %v939 = vpop.permute.xlu0 %938
        %942 = vrot.lane.b32.xlu0 %v667, 12
        %v943 = vpop.permute.xlu0 %942
        %946 = vrot.lane.b32.xlu0 %v733, 16
        %v947 = vpop.permute.xlu0 %946
        %950 = vrot.lane.b32.xlu0 %v799, 20
        %v951 = vpop.permute.xlu0 %950
        %954 = vrot.lane.b32.xlu0 %v865, 24
        %v955 = vpop.permute.xlu0 %954
        %958 = vrot.lane.b32.xlu0 %v931, 28
        %v959 = vpop.permute.xlu0 %958
        %v961 = vsel %vm407, %v469, %v935
        %v962 = vsel %vm433, %v961, %v939
        %vm963 = vcmask 97280
        %v964 = vsel %vm963, %v962, %v943
        %vm965 = vcmask 130048
        %v966 = vsel %vm965, %v964, %v947
        %vm967 = vcmask 162816
        %v968 = vsel %vm967, %v966, %v951
        %vm969 = vcmask 195584
        %v970 = vsel %vm969, %v968, %v955
        %vm971 = vcmask 228352
        %v972 = vsel %vm971, %v970, %v959
        %v973 = vpack.c.bf16 %v972, %v972
        %v974 = vpack.c.bf16 %v378, %v377
        %v975 = vpack.c.bf16 %v380, %v379
        %v977 = vperm.slane %v381, 0
        %v980 = vsel %vm328, %v973, 0
        %982 = vmatpush.bf16.msra.mxu0 0
        %983 = vmatpush.bf16.msra.mxu0 0
        %984 = vmatpush.bf16.msra.mxu0 0
        %985 = vmatpush.bf16.msra.mxu0 0
        %986 = vmatpush.bf16.msra.mxu0 0
        %987 = vmatpush.bf16.msra.mxu0 0
        %988 = vmatpush.bf16.msra.mxu0 %v975
        %989 = vmatpush.bf16.msra.mxu0 %v974
        %990 = vmatmul.bf16.gmra.mxu0 %v980
        %v991 = vpop.f32.mrf.mxu0
        %v992 = vadd.f32 %v977, %v991
        %v993 = vpop.f32.mrf.mxu0
        %994 = vdwg.mxu0
        %v995 = vadd.f32 %v992, %v325
        %996 = vst.msk [vmem:[%s323] sm:$0xff] %vm328, %v995
        %p997 = scmp.lt.s32.totalorder %s20, 1
        %s998 = scalar_select %p997, %s20, 1
        %s999 = smul.addr %s998, 8
        %s1000 = scalar_lea.vmem %s6, %s999
        // Predicated region
        $region65: #{et_decoder_block.7} parent=43 // pred_check
          %p1001 = pneg %p169
        $region66: #{et_decoder_block.7} parent=43 // pred_check_branch
          %1003 = sbr.rel (%p1001) target = $region68
        $region67: #{et_decoder_block.7} parent=43 // pred_region
          _
        $region68: #{et_decoder_block.7} parent=43 // pred_fallthru
          _
      $region44: #{et_decoder_block.7} parent=5 // pred_fallthru
        _
      %p1004 = scmp.le.s32.totalorder 2, %s15
      // Predicated region
      $region69: #{et_decoder_block.7} parent=5 // pred_check
        %p1005 = pneg %p1004
      $region70: #{et_decoder_block.7} parent=5 // pred_check_branch
        %1007 = sbr.rel (%p1005) target = $region72
      $region71: #{et_decoder_block.7} parent=5 // pred_region
        %s1008 = ssub.s32 %s15, 2
        // Predicated region
        $region73: #{et_decoder_block.7} parent=71 // pred_check
          %p1009 = pneg %p175
        $region74: #{et_decoder_block.7} parent=71 // pred_check_branch
          %1011 = sbr.rel (%p1009) target = $region76
        $region75: #{et_decoder_block.7} parent=71 // pred_region
          %p1012 = scmp.lt.s32.totalorder %s21, 1
          %s1013 = scalar_select %p1012, %s21, 1
          %s1014 = smul.addr %s1013, 8
          %s1015 = scalar_lea.vmem %s6, %s1014
        $region76: #{et_decoder_block.7} parent=71 // pred_fallthru
          _
      $region72: #{et_decoder_block.7} parent=5 // pred_fallthru
        _
    $region6: #{et_decoder_block.7} parent=1 // loop_footer
      %s19 = sadd.s32 1, %s15
    $region7: #{et_decoder_block.7} parent=1 // loop_footer_branch
      %14 = sbr.rel target = $region3
    $region8: #{et_decoder_block.7} parent=1 // loop_exit
      _
    %1016 = vsyncpa [#allocation3], 1
    %s1017 = scalar_lea.sflag [#allocation3], 1
    %1018 = vsyncpa %s1017, 1
    %1019 = vsyncpa [#allocation5], 1
    %1020 = vsyncpa [#allocation8], 1

// kernel: et_decoder_block.8
$region0: #{et_decoder_block.8}
  #allocation0 [shape = 'u32[]', space=smem, size = 0x4, offset = 0x4, fixed_abs, tag = 'smem constant byte address 0x4 - core index']
  #allocation1 [shape = 'u32[72,128]{1,0:T(1,128)}', space=vmem, size = 0x9000, scoped, tag = 'internal scratch']
  %s0 = inlined_call_operand.vmem [shape: f32[2,8,32], index: 0, kind: input, shape index: {}]
  %s1 = inlined_call_operand.hbm [shape: f32[2,8,32], index: 1, kind: input, shape index: {}]
  %s2 = inlined_call_operand.vmem [shape: f32[1,32], index: 2, kind: input, shape index: {}]
  %s3 = inlined_call_operand.hbm [shape: f32[32,32], index: 3, kind: input, shape index: {}]
  %s4 = inlined_call_operand.hbm [shape: f32[1,32], index: 4, kind: input, shape index: {}]
  %s5 = inlined_call_operand.hbm [shape: f32[32,64], index: 5, kind: input, shape index: {}]
  %s6 = inlined_call_operand.hbm [shape: f32[1,64], index: 6, kind: input, shape index: {}]
  %s7 = inlined_call_operand.hbm [shape: f32[32,32], index: 7, kind: input, shape index: {}]
  %s8 = inlined_call_operand.hbm [shape: f32[1,32], index: 8, kind: input, shape index: {}]
  %s9 = inlined_call_operand.vmem [shape: f32[2,8,32], index: 9, kind: output, shape index: {}]
  %s10 = sld [smem:[#allocation0]]
  $region97: #{et_decoder_block.8} parent=0
    _
  %s12 = ssub.s32 1, %s10
  %s13 = scalar_select 0, %s12, %s10
  $region1: #{et_decoder_block.8} parent=0
    #allocation2 [shape = 'u8[8192]{0}', space=vmem, size = 0x2000, scoped, tag = 'input window, operand 1']
    #allocation3 [shape = 's32[2]{0}', space=sflag, size = 0x8, scoped, tag = 'scoped memory for et_decoder_block.8']
    #allocation4 [shape = 'u8[16384]{0}', space=vmem, size = 0x4000, scoped, tag = 'input window, operand 3, single buffered']
    #allocation5 [shape = 's32[1]{0}', space=sflag, size = 0x4, scoped, tag = 'scoped memory for et_decoder_block.8']
    #allocation6 [shape = 'u8[512]{0}', space=vmem, size = 0x400, scoped, tag = 'input window, operand 4, single buffered']
    #allocation7 [shape = 'u8[16384]{0}', space=vmem, size = 0x4000, scoped, tag = 'input window, operand 5, single buffered']
    #allocation8 [shape = 's32[1]{0}', space=sflag, size = 0x4, scoped, tag = 'scoped memory for et_decoder_block.8']
    #allocation9 [shape = 'u8[512]{0}', space=vmem, size = 0x400, scoped, tag = 'input window, operand 6, single buffered']
    #allocation10 [shape = 'u8[16384]{0}', space=vmem, size = 0x4000, scoped, tag = 'input window, operand 7, single buffered']
    #allocation11 [shape = 's32[1]{0}', space=sflag, size = 0x4, scoped, tag = 'scoped memory for et_decoder_block.8']
    #allocation12 [shape = 'u8[512]{0}', space=vmem, size = 0x400, scoped, tag = 'input window, operand 8, single buffered']
    %14 = vsyncpa [#allocation3], 0
    %s15 = scalar_lea.sflag [#allocation3], 1
    %16 = vsyncpa %s15, 0
    %17 = vsyncpa [#allocation5], 0
    %18 = vsyncpa [#allocation8], 0
    %19 = vsyncpa [#allocation11], 0
    loop: start=0, step=1, limit=4
    $region2: #{et_decoder_block.8} parent=1 // loop_pre_header
      _
    $region3: #{et_decoder_block.8} parent=1 // loop_header
      %s21 = sphi 0, %s25
      %p22 = scmp.ge.s32.totalorder %s21, 4
      %s31 = sphi 0, %s33
      %s34 = sphi 0, %s31
      %s35 = sphi 0, %s34
      %s51 = sphi 0, %s35
      %s57 = sphi 0, %s59
      %s60 = sphi 0, %s57
      %s61 = sphi 0, %s60
      %s77 = sphi 0, %s61
      %s81 = sphi 0, %s81
      %s83 = sphi 0, %s81
      %s84 = sphi 0, %s83
      %s98 = sphi 0, %s84
      %s102 = sphi 0, %s102
      %s104 = sphi 0, %s102
      %s105 = sphi 0, %s104
      %s119 = sphi 0, %s105
      %s123 = sphi 0, %s123
      %s125 = sphi 0, %s123
      %s126 = sphi 0, %s125
      %s140 = sphi 0, %s126
      %s144 = sphi 0, %s144
      %s146 = sphi 0, %s144
      %s147 = sphi 0, %s146
      %s161 = sphi 0, %s147
      %s165 = sphi 0, %s165
      %s167 = sphi 0, %s165
      %s168 = sphi 0, %s167
      %s182 = sphi 0, %s168
      %s186 = sphi 0, %s186
      %s188 = sphi 0, %s186
      %s189 = sphi 0, %s188
      %s203 = sphi 0, %s189
      %s207 = sphi 0, %s207
      %s209 = sphi 0, %s207
      %s210 = sphi 0, %s209
      %s224 = sphi 0, %s210
      %s230 = sphi 0, %s232
      %s233 = sphi 0, %s230
      %s234 = sphi 0, %s233
      %s250 = sphi 0, %s234
    $region4: #{et_decoder_block.8} parent=1 // loop_header_branch
      %24 = sbr.rel (%p22) target = $region8
    $region5: #{et_decoder_block.8} parent=1 // loop_body
      %s26 = ssub.s32 %s21, 1
      %s27 = ssub.s32 %s21, 2
      %s28 = sadd.s32 %s21, 1
      %s29 = ssub.s32 %s21, %s28
      %p30 = scmp.eq.s32.totalorder %s29, 0
      %s32 = sadd.s32 %s31, 1
      %s33 = scalar_select %p30, %s31, %s32
      %p36 = pneg %p30
      %p37 = scmp.eq.s32.totalorder %s21, 1
      %p38 = por %p36, %p37
      %p39 = scmp.ne.s32.totalorder %s31, %s34
      %p40 = scmp.eq.s32.totalorder %s21, 0
      %p41 = por %p39, %p40
      %p42 = scmp.ne.s32.totalorder %s31, %s34
      %p43 = scmp.eq.s32.totalorder %s26, 1
      %p44 = por %p42, %p43
      %p45 = scmp.ne.s32.totalorder %s34, %s35
      %p46 = scmp.eq.s32.totalorder %s26, 0
      %p47 = por %p45, %p46
      %p48 = scmp.ne.s32.totalorder %s34, %s35
      %p49 = scmp.eq.s32.totalorder %s27, 1
      %p50 = por %p48, %p49
      %p52 = scmp.ne.s32.totalorder %s35, %s51
      %p53 = scmp.eq.s32.totalorder %s27, 0
      %p54 = por %p52, %p53
      %s55 = ssub.s32 %s21, %s28
      %p56 = scmp.eq.s32.totalorder %s55, 0
      %s58 = sadd.s32 %s57, 1
      %s59 = scalar_select %p56, %s57, %s58
      %p62 = pneg %p56
      %p63 = scmp.eq.s32.totalorder %s21, 1
      %p64 = por %p62, %p63
      %p65 = scmp.ne.s32.totalorder %s57, %s60
      %p66 = scmp.eq.s32.totalorder %s21, 0
      %p67 = por %p65, %p66
      %p68 = scmp.ne.s32.totalorder %s57, %s60
      %p69 = scmp.eq.s32.totalorder %s26, 1
      %p70 = por %p68, %p69
      %p71 = scmp.ne.s32.totalorder %s60, %s61
      %p72 = scmp.eq.s32.totalorder %s26, 0
      %p73 = por %p71, %p72
      %p74 = scmp.ne.s32.totalorder %s60, %s61
      %p75 = scmp.eq.s32.totalorder %s27, 1
      %p76 = por %p74, %p75
      %p78 = scmp.ne.s32.totalorder %s61, %s77
      %p79 = scmp.eq.s32.totalorder %s27, 0
      %p80 = por %p78, %p79
      %s82 = sadd.s32 %s81, 1
      %p85 = scmp.eq.s32.totalorder %s21, 1
      %p86 = scmp.ne.s32.totalorder %s81, %s83
      %p87 = scmp.eq.s32.totalorder %s21, 0
      %p88 = por %p86, %p87
      %p89 = scmp.ne.s32.totalorder %s81, %s83
      %p90 = scmp.eq.s32.totalorder %s26, 1
      %p91 = por %p89, %p90
      %p92 = scmp.ne.s32.totalorder %s83, %s84
      %p93 = scmp.eq.s32.totalorder %s26, 0
      %p94 = por %p92, %p93
      %p95 = scmp.ne.s32.totalorder %s83, %s84
      %p96 = scmp.eq.s32.totalorder %s27, 1
      %p97 = por %p95, %p96
      %p99 = scmp.ne.s32.totalorder %s84, %s98
      %p100 = scmp.eq.s32.totalorder %s27, 0
      %p101 = por %p99, %p100
      %s103 = sadd.s32 %s102, 1
      %p106 = scmp.eq.s32.totalorder %s21, 1
      %p107 = scmp.ne.s32.totalorder %s102, %s104
      %p108 = scmp.eq.s32.totalorder %s21, 0
      %p109 = por %p107, %p108
      %p110 = scmp.ne.s32.totalorder %s102, %s104
      %p111 = scmp.eq.s32.totalorder %s26, 1
      %p112 = por %p110, %p111
      %p113 = scmp.ne.s32.totalorder %s104, %s105
      %p114 = scmp.eq.s32.totalorder %s26, 0
      %p115 = por %p113, %p114
      %p116 = scmp.ne.s32.totalorder %s104, %s105
      %p117 = scmp.eq.s32.totalorder %s27, 1
      %p118 = por %p116, %p117
      %p120 = scmp.ne.s32.totalorder %s105, %s119
      %p121 = scmp.eq.s32.totalorder %s27, 0
      %p122 = por %p120, %p121
      %s124 = sadd.s32 %s123, 1
      %p127 = scmp.eq.s32.totalorder %s21, 1
      %p128 = scmp.ne.s32.totalorder %s123, %s125
      %p129 = scmp.eq.s32.totalorder %s21, 0
      %p130 = por %p128, %p129
      %p131 = scmp.ne.s32.totalorder %s123, %s125
      %p132 = scmp.eq.s32.totalorder %s26, 1
      %p133 = por %p131, %p132
      %p134 = scmp.ne.s32.totalorder %s125, %s126
      %p135 = scmp.eq.s32.totalorder %s26, 0
      %p136 = por %p134, %p135
      %p137 = scmp.ne.s32.totalorder %s125, %s126
      %p138 = scmp.eq.s32.totalorder %s27, 1
      %p139 = por %p137, %p138
      %p141 = scmp.ne.s32.totalorder %s126, %s140
      %p142 = scmp.eq.s32.totalorder %s27, 0
      %p143 = por %p141, %p142
      %s145 = sadd.s32 %s144, 1
      %p148 = scmp.eq.s32.totalorder %s21, 1
      %p149 = scmp.ne.s32.totalorder %s144, %s146
      %p150 = scmp.eq.s32.totalorder %s21, 0
      %p151 = por %p149, %p150
      %p152 = scmp.ne.s32.totalorder %s144, %s146
      %p153 = scmp.eq.s32.totalorder %s26, 1
      %p154 = por %p152, %p153
      %p155 = scmp.ne.s32.totalorder %s146, %s147
      %p156 = scmp.eq.s32.totalorder %s26, 0
      %p157 = por %p155, %p156
      %p158 = scmp.ne.s32.totalorder %s146, %s147
      %p159 = scmp.eq.s32.totalorder %s27, 1
      %p160 = por %p158, %p159
      %p162 = scmp.ne.s32.totalorder %s147, %s161
      %p163 = scmp.eq.s32.totalorder %s27, 0
      %p164 = por %p162, %p163
      %s166 = sadd.s32 %s165, 1
      %p169 = scmp.eq.s32.totalorder %s21, 1
      %p170 = scmp.ne.s32.totalorder %s165, %s167
      %p171 = scmp.eq.s32.totalorder %s21, 0
      %p172 = por %p170, %p171
      %p173 = scmp.ne.s32.totalorder %s165, %s167
      %p174 = scmp.eq.s32.totalorder %s26, 1
      %p175 = por %p173, %p174
      %p176 = scmp.ne.s32.totalorder %s167, %s168
      %p177 = scmp.eq.s32.totalorder %s26, 0
      %p178 = por %p176, %p177
      %p179 = scmp.ne.s32.totalorder %s167, %s168
      %p180 = scmp.eq.s32.totalorder %s27, 1
      %p181 = por %p179, %p180
      %p183 = scmp.ne.s32.totalorder %s168, %s182
      %p184 = scmp.eq.s32.totalorder %s27, 0
      %p185 = por %p183, %p184
      %s187 = sadd.s32 %s186, 1
      %p190 = scmp.eq.s32.totalorder %s21, 1
      %p191 = scmp.ne.s32.totalorder %s186, %s188
      %p192 = scmp.eq.s32.totalorder %s21, 0
      %p193 = por %p191, %p192
      %p194 = scmp.ne.s32.totalorder %s186, %s188
      %p195 = scmp.eq.s32.totalorder %s26, 1
      %p196 = por %p194, %p195
      %p197 = scmp.ne.s32.totalorder %s188, %s189
      %p198 = scmp.eq.s32.totalorder %s26, 0
      %p199 = por %p197, %p198
      %p200 = scmp.ne.s32.totalorder %s188, %s189
      %p201 = scmp.eq.s32.totalorder %s27, 1
      %p202 = por %p200, %p201
      %p204 = scmp.ne.s32.totalorder %s189, %s203
      %p205 = scmp.eq.s32.totalorder %s27, 0
      %p206 = por %p204, %p205
      %s208 = sadd.s32 %s207, 1
      %p211 = scmp.eq.s32.totalorder %s21, 1
      %p212 = scmp.ne.s32.totalorder %s207, %s209
      %p213 = scmp.eq.s32.totalorder %s21, 0
      %p214 = por %p212, %p213
      %p215 = scmp.ne.s32.totalorder %s207, %s209
      %p216 = scmp.eq.s32.totalorder %s26, 1
      %p217 = por %p215, %p216
      %p218 = scmp.ne.s32.totalorder %s209, %s210
      %p219 = scmp.eq.s32.totalorder %s26, 0
      %p220 = por %p218, %p219
      %p221 = scmp.ne.s32.totalorder %s209, %s210
      %p222 = scmp.eq.s32.totalorder %s27, 1
      %p223 = por %p221, %p222
      %p225 = scmp.ne.s32.totalorder %s210, %s224
      %p226 = scmp.eq.s32.totalorder %s27, 0
      %p227 = por %p225, %p226
      %s228 = ssub.s32 %s21, %s28
      %p229 = scmp.eq.s32.totalorder %s228, 0
      %s231 = sadd.s32 %s230, 1
      %s232 = scalar_select %p229, %s230, %s231
      %p235 = pneg %p229
      %p236 = scmp.eq.s32.totalorder %s21, 1
      %p237 = por %p235, %p236
      %p238 = scmp.ne.s32.totalorder %s230, %s233
      %p239 = scmp.eq.s32.totalorder %s21, 0
      %p240 = por %p238, %p239
      %p241 = scmp.ne.s32.totalorder %s230, %s233
      %p242 = scmp.eq.s32.totalorder %s26, 1
      %p243 = por %p241, %p242
      %p244 = scmp.ne.s32.totalorder %s233, %s234
      %p245 = scmp.eq.s32.totalorder %s26, 0
      %p246 = por %p244, %p245
      %p247 = scmp.ne.s32.totalorder %s233, %s234
      %p248 = scmp.eq.s32.totalorder %s27, 1
      %p249 = por %p247, %p248
      %p251 = scmp.ne.s32.totalorder %s234, %s250
      %p252 = scmp.eq.s32.totalorder %s27, 0
      %p253 = por %p251, %p252
      %p254 = scmp.le.s32.totalorder 1, %s21
      %p255 = scmp.lt.s32.totalorder %s21, 3
      %p256 = pnand %p254, %p255
      %p257 = pneg %p256
      // Predicated region
      $region9: #{et_decoder_block.8} parent=5 // pred_check
        _
      $region10: #{et_decoder_block.8} parent=5 // pred_check_branch
        %259 = sbr.rel (%p256) target = $region12
      $region11: #{et_decoder_block.8} parent=5 // pred_region
        %s260 = ssub.s32 %s21, 1
        // Predicated region
        $region13: #{et_decoder_block.8} parent=11 // pred_check
          %p261 = pneg %p94
        $region14: #{et_decoder_block.8} parent=11 // pred_check_branch
          %263 = sbr.rel (%p261) target = $region16
        $region15: #{et_decoder_block.8} parent=11 // pred_region
          _
        $region16: #{et_decoder_block.8} parent=11 // pred_fallthru
          _
        // Predicated region
        $region17: #{et_decoder_block.8} parent=11 // pred_check
          %p264 = pneg %p115
        $region18: #{et_decoder_block.8} parent=11 // pred_check_branch
          %266 = sbr.rel (%p264) target = $region20
        $region19: #{et_decoder_block.8} parent=11 // pred_region
          %268 = vsyncadd [#allocation5], 0
          %s269 = sshll.u32 %s3, 4
          %s270 = int_to_ptr.hbm [resolvable:$true] %s269
          %s271 = sshll.u32 [#allocation4], 4
          %s272 = int_to_ptr.vmem [resolvable:$true] %s271
          %277 = dma.hbm_to_vmem [thread:$0]  %s270, 512, %s272, [#allocation5], 128, 128, 8
        $region20: #{et_decoder_block.8} parent=11 // pred_fallthru
          _
        // Predicated region
        $region21: #{et_decoder_block.8} parent=11 // pred_check
          %p278 = pneg %p136
        $region22: #{et_decoder_block.8} parent=11 // pred_check_branch
          %280 = sbr.rel (%p278) target = $region24
        $region23: #{et_decoder_block.8} parent=11 // pred_region
          %282 = vsyncadd [#allocation5], 0
          %s284 = sshll.u32 %s4, 4
          %s285 = int_to_ptr.hbm [resolvable:$true] %s284
          %s286 = sshll.u32 [#allocation6], 4
          %s287 = int_to_ptr.vmem [resolvable:$true] %s286
          %289 = dma.hbm_to_vmem [thread:$0]  %s285, 16, %s287, [#allocation5]
        $region24: #{et_decoder_block.8} parent=11 // pred_fallthru
          _
        // Predicated region
        $region25: #{et_decoder_block.8} parent=11 // pred_check
          %p290 = pneg %p157
        $region26: #{et_decoder_block.8} parent=11 // pred_check_branch
          %292 = sbr.rel (%p290) target = $region28
        $region27: #{et_decoder_block.8} parent=11 // pred_region
          %294 = vsyncadd [#allocation8], 0
          %s295 = sshll.u32 %s5, 4
          %s296 = int_to_ptr.hbm [resolvable:$true] %s295
          %s297 = sshll.u32 [#allocation7], 4
          %s298 = int_to_ptr.vmem [resolvable:$true] %s297
          %303 = dma.hbm_to_vmem [thread:$0]  %s296, 512, %s298, [#allocation8], 128, 128, 8
        $region28: #{et_decoder_block.8} parent=11 // pred_fallthru
          _
        // Predicated region
        $region29: #{et_decoder_block.8} parent=11 // pred_check
          %p304 = pneg %p178
        $region30: #{et_decoder_block.8} parent=11 // pred_check_branch
          %306 = sbr.rel (%p304) target = $region32
        $region31: #{et_decoder_block.8} parent=11 // pred_region
          %308 = vsyncadd [#allocation8], 0
          %s310 = sshll.u32 %s6, 4
          %s311 = int_to_ptr.hbm [resolvable:$true] %s310
          %s312 = sshll.u32 [#allocation9], 4
          %s313 = int_to_ptr.vmem [resolvable:$true] %s312
          %315 = dma.hbm_to_vmem [thread:$0]  %s311, 16, %s313, [#allocation8]
        $region32: #{et_decoder_block.8} parent=11 // pred_fallthru
          _
        // Predicated region
        $region33: #{et_decoder_block.8} parent=11 // pred_check
          %p316 = pneg %p199
        $region34: #{et_decoder_block.8} parent=11 // pred_check_branch
          %318 = sbr.rel (%p316) target = $region36
        $region35: #{et_decoder_block.8} parent=11 // pred_region
          %320 = vsyncadd [#allocation11], 0
          %s321 = sshll.u32 %s7, 4
          %s322 = int_to_ptr.hbm [resolvable:$true] %s321
          %s323 = sshll.u32 [#allocation10], 4
          %s324 = int_to_ptr.vmem [resolvable:$true] %s323
          %329 = dma.hbm_to_vmem [thread:$0]  %s322, 512, %s324, [#allocation11], 128, 128, 8
        $region36: #{et_decoder_block.8} parent=11 // pred_fallthru
          _
        // Predicated region
        $region37: #{et_decoder_block.8} parent=11 // pred_check
          %p330 = pneg %p220
        $region38: #{et_decoder_block.8} parent=11 // pred_check_branch
          %332 = sbr.rel (%p330) target = $region40
        $region39: #{et_decoder_block.8} parent=11 // pred_region
          %334 = vsyncadd [#allocation11], 0
          %s336 = sshll.u32 %s8, 4
          %s337 = int_to_ptr.hbm [resolvable:$true] %s336
          %s338 = sshll.u32 [#allocation12], 4
          %s339 = int_to_ptr.vmem [resolvable:$true] %s338
          %341 = dma.hbm_to_vmem [thread:$0]  %s337, 16, %s339, [#allocation11]
        $region40: #{et_decoder_block.8} parent=11 // pred_fallthru
          _
      $region12: #{et_decoder_block.8} parent=5 // pred_fallthru
        _
      %p342 = scmp.lt.s32.totalorder %s21, 2
      // Predicated region
      $region41: #{et_decoder_block.8} parent=5 // pred_check
        %p343 = pneg %p342
      $region42: #{et_decoder_block.8} parent=5 // pred_check_branch
        %345 = sbr.rel (%p343) target = $region44
      $region43: #{et_decoder_block.8} parent=5 // pred_region
        // Predicated region
        $region45: #{et_decoder_block.8} parent=43 // pred_check
          %p346 = pneg %p41
        $region46: #{et_decoder_block.8} parent=43 // pred_check_branch
          %348 = sbr.rel (%p346) target = $region48
        $region47: #{et_decoder_block.8} parent=43 // pred_region
          %p349 = scmp.lt.s32.totalorder %s21, 1
          %s350 = scalar_select %p349, %s21, 1
          %s351 = smul.addr %s350, 8
          %s352 = scalar_lea.vmem %s0, %s351
        $region48: #{et_decoder_block.8} parent=43 // pred_fallthru
          _
        // Predicated region
        $region49: #{et_decoder_block.8} parent=43 // pred_check
          %p353 = pneg %p67
        $region50: #{et_decoder_block.8} parent=43 // pred_check_branch
          %355 = sbr.rel (%p353) target = $region52
        $region51: #{et_decoder_block.8} parent=43 // pred_region
          %s356 = sand.u32 %s57, 1
          %s357 = scalar_lea.sflag [#allocation3], %s356
          %s358 = sand.u32 %s57, 1
          %s359 = smul.addr %s358, 8
          %s360 = scalar_lea.vmem [#allocation2], %s359
          %362 = vsyncadd %s357, 0
          %s363 = smul.addr %s21, 8
          %s364 = scalar_lea.hbm %s1, %s363
          %s366 = sshll.u32 %s364, 4
          %s367 = int_to_ptr.hbm [resolvable:$true] %s366
          %s368 = sshll.u32 %s360, 4
          %s369 = int_to_ptr.vmem [resolvable:$true] %s368
          %371 = dma.hbm_to_vmem [thread:$0]  %s367, 128, %s369, %s357
        $region52: #{et_decoder_block.8} parent=43 // pred_fallthru
          _
      $region44: #{et_decoder_block.8} parent=5 // pred_fallthru
        _
      %p372 = scmp.le.s32.totalorder 1, %s21
      %p373 = scmp.lt.s32.totalorder %s21, 3
      %p374 = pnand %p372, %p373
      %p375 = pneg %p374
      // Predicated region
      $region53: #{et_decoder_block.8} parent=5 // pred_check
        _
      $region54: #{et_decoder_block.8} parent=5 // pred_check_branch
        %377 = sbr.rel (%p374) target = $region56
      $region55: #{et_decoder_block.8} parent=5 // pred_region
        %s378 = ssub.s32 %s21, 1
        %s379 = sand.u32 %s60, 1
        %s380 = scalar_lea.sflag [#allocation3], %s379
        %s381 = sand.u32 %s60, 1
        %s382 = smul.addr %s381, 8
        %s383 = scalar_lea.vmem [#allocation2], %s382
        // Predicated region
        $region57: #{et_decoder_block.8} parent=55 // pred_check
          %p384 = pneg %p73
        $region58: #{et_decoder_block.8} parent=55 // pred_check_branch
          %386 = sbr.rel (%p384) target = $region60
        $region59: #{et_decoder_block.8} parent=55 // pred_region
          %388 = dma.done %s380, 128
        $region60: #{et_decoder_block.8} parent=55 // pred_fallthru
          _
        // Predicated region
        $region61: #{et_decoder_block.8} parent=55 // pred_check
          %p389 = pneg %p115
        $region62: #{et_decoder_block.8} parent=55 // pred_check_branch
          %391 = sbr.rel (%p389) target = $region64
        $region63: #{et_decoder_block.8} parent=55 // pred_region
          %393 = dma.done [#allocation5], 512
        $region64: #{et_decoder_block.8} parent=55 // pred_fallthru
          _
        // Predicated region
        $region65: #{et_decoder_block.8} parent=55 // pred_check
          %p394 = pneg %p136
        $region66: #{et_decoder_block.8} parent=55 // pred_check_branch
          %396 = sbr.rel (%p394) target = $region68
        $region67: #{et_decoder_block.8} parent=55 // pred_region
          %398 = dma.done [#allocation5], 16
        $region68: #{et_decoder_block.8} parent=55 // pred_fallthru
          _
        // Predicated region
        $region69: #{et_decoder_block.8} parent=55 // pred_check
          %p399 = pneg %p157
        $region70: #{et_decoder_block.8} parent=55 // pred_check_branch
          %401 = sbr.rel (%p399) target = $region72
        $region71: #{et_decoder_block.8} parent=55 // pred_region
          %403 = dma.done [#allocation8], 512
        $region72: #{et_decoder_block.8} parent=55 // pred_fallthru
          _
        // Predicated region
        $region73: #{et_decoder_block.8} parent=55 // pred_check
          %p404 = pneg %p178
        $region74: #{et_decoder_block.8} parent=55 // pred_check_branch
          %406 = sbr.rel (%p404) target = $region76
        $region75: #{et_decoder_block.8} parent=55 // pred_region
          %408 = dma.done [#allocation8], 16
        $region76: #{et_decoder_block.8} parent=55 // pred_fallthru
          _
        // Predicated region
        $region77: #{et_decoder_block.8} parent=55 // pred_check
          %p409 = pneg %p199
        $region78: #{et_decoder_block.8} parent=55 // pred_check_branch
          %411 = sbr.rel (%p409) target = $region80
        $region79: #{et_decoder_block.8} parent=55 // pred_region
          %413 = dma.done [#allocation11], 512
        $region80: #{et_decoder_block.8} parent=55 // pred_fallthru
          _
        // Predicated region
        $region81: #{et_decoder_block.8} parent=55 // pred_check
          %p414 = pneg %p220
        $region82: #{et_decoder_block.8} parent=55 // pred_check_branch
          %416 = sbr.rel (%p414) target = $region84
        $region83: #{et_decoder_block.8} parent=55 // pred_region
          %418 = dma.done [#allocation11], 16
        $region84: #{et_decoder_block.8} parent=55 // pred_fallthru
          _
        %p419 = scmp.lt.s32.totalorder %s26, 1
        %s420 = scalar_select %p419, %s26, 1
        %s421 = smul.addr %s420, 8
        %s422 = scalar_lea.vmem %s0, %s421
        %p423 = pneg %p47
        %p424 = pneg %p44
        %s425 = sand.u32 %s60, 1
        %s426 = scalar_lea.sflag [#allocation3], %s425
        %s427 = sand.u32 %s60, 1
        %s428 = smul.addr %s427, 8
        %s429 = scalar_lea.vmem [#allocation2], %s428
        %p430 = pneg %p73
        %p431 = pneg %p70
        %p432 = pneg %p94
        %p433 = pneg %p91
        %p434 = pneg %p115
        %p435 = pneg %p112
        %p436 = pneg %p136
        %p437 = pneg %p133
        %p438 = pneg %p157
        %p439 = pneg %p154
        %p440 = pneg %p178
        %p441 = pneg %p175
        %p442 = pneg %p199
        %p443 = pneg %p196
        %p444 = pneg %p220
        %p445 = pneg %p217
        %p446 = pneg %p246
        %p447 = pneg %p243
        %p448 = scmp.lt.s32.totalorder %s26, 1
        %s449 = scalar_select %p448, %s26, 1
        %s450 = smul.addr %s449, 8
        %s451 = scalar_lea.vmem %s9, %s450
        %p452 = scmp.lt.s32.totalorder %s26, 1
        %s453 = scalar_select %p452, %s26, 1
        %s454 = smul.addr %s453, 8
        %s455 = scalar_lea.vmem %s0, %s454
        %p456 = scmp.lt.s32.totalorder %s26, 1
        %s457 = scalar_select %p456, %s26, 1
        %s458 = smul.addr %s457, 8
        %s459 = scalar_lea.vmem %s9, %s458
        %v461 = vld [vmem:[%s455] sm:$0xff]
        %v462 = vld [vmem:[%s383] sm:$0xff]
        %v463 = vld [vmem:[%s2] sm:$0x1]
        %v464 = vmul.f32 %v461, %v461
        %vm465 = vcmask 261120
        %v466 = vsel %vm465, %v464, 0.0
        %467 = vadd.xlane.f32.xlu0 %v466
        %v468 = vpop.xlane.xlu0 %467
        %v469 = vrcp.pop 32.0
        %v470 = vmul.f32 32.0, %v469
        %v471 = vsub.f32 1.0, %v470
        %v472 = vmul.f32 %v469, %v471
        %v473 = vadd.f32 %v469, %v472
        %vm474 = vweird.f32 %v469
        %v475 = vsel %vm474, %v469, %v473
        %v476 = vmul.f32 %v468, %v475
        %v477 = vrsqrt.pop %v476
        %v478 = vmul.f32 %v477, %v476
        %v479 = vmul.f32 %v478, %v477
        %v480 = vmul.f32 0.5, %v479
        %v481 = vsub.f32 1.5, %v480
        %v482 = vmul.f32 %v477, %v481
        %v483 = vmul.f32 %v476, %v482
        %vm484 = vcmp.eq.f32.partialorder %v476, inf
        %v485 = vsel %vm484, %v476, %v483
        %vm486 = vcmp.eq.f32.partialorder %v476, 0.0
        %v487 = vand.u32 %v476, 2147483648
        %v488 = vsel %vm486, %v487, %v485
        %v489 = vmax.f32 %v488, 1e-08
        %v490 = vrcp.pop %v489
        %v491 = vmul.f32 %v489, %v490
        %v492 = vsub.f32 1.0, %v491
        %v493 = vmul.f32 %v490, %v492
        %v494 = vadd.f32 %v490, %v493
        %vm495 = vweird.f32 %v489
        %vm496 = vweird.f32 %v490
        %vm497 = vmor %vm495, %vm496
        %v498 = vsel %vm497, %v490, %v494
        %v499 = vand.u32 2147483647, %v489
        %vm500 = vcmp.eq.f32.partialorder %v499, 8.507059e+37
        %v501 = vand.u32 %v489, 2147483648
        %v502 = vor.u32 1.1754944e-38, %v501
        %v503 = vsel %vm500, %v502, %v498
        %v504 = vmul.f32 %v461, %v503
        %v506 = vperm.slane %v463, 0
        %v508 = vmul.f32 %v504, %v506
        %v509 = vld [vmem:[#allocation4] sm:$0xff]
        %v510 = vld [vmem:[#allocation4 + $0x8] sm:$0xff]
        %v511 = vld [vmem:[#allocation4 + $0x10] sm:$0xff]
        %v512 = vld [vmem:[#allocation4 + $0x18] sm:$0xff]
        %v513 = vld [vmem:[#allocation6] sm:$0x1]
        %v514 = vld [vmem:[#allocation7] sm:$0xff]
        %v515 = vld [vmem:[#allocation7 + $0x8] sm:$0xff]
        %v516 = vld [vmem:[#allocation7 + $0x10] sm:$0xff]
        %v517 = vld [vmem:[#allocation7 + $0x18] sm:$0xff]
        %v518 = vld [vmem:[#allocation9] sm:$0x1]
        %v519 = vld [vmem:[#allocation10] sm:$0xff]
        %v520 = vld [vmem:[#allocation10 + $0x8] sm:$0xff]
        %v521 = vld [vmem:[#allocation10 + $0x10] sm:$0xff]
        %v522 = vld [vmem:[#allocation10 + $0x18] sm:$0xff]
        %v523 = vld [vmem:[#allocation12] sm:$0x1]
        %v524 = vpack.c.bf16 %v508, %v508
        %v525 = vpack.c.bf16 %v510, %v509
        %v526 = vpack.c.bf16 %v512, %v511
        %v528 = vperm.slane %v513, 0
        %v531 = vsel %vm465, %v524, 0
        %533 = vmatpush.bf16.msra.mxu0 0
        %534 = vmatpush.bf16.msra.mxu0 0
        %535 = vmatpush.bf16.msra.mxu0 0
        %536 = vmatpush.bf16.msra.mxu0 0
        %537 = vmatpush.bf16.msra.mxu0 0
        %538 = vmatpush.bf16.msra.mxu0 0
        %539 = vmatpush.bf16.msra.mxu0 %v526
        %540 = vmatpush.bf16.msra.mxu0 %v525
        %541 = vmatmul.bf16.gmra.mxu0 %v531
        %v542 = vpop.f32.mrf.mxu0
        %v543 = vadd.f32 %v528, %v542
        %v544 = vpop.f32.mrf.mxu0
        %545 = vdwg.mxu0
        %v546 = vpack.c.bf16 %v462, %v462
        %v547 = vpack.c.bf16 %v515, %v514
        %v548 = vpack.c.bf16 %v517, %v516
        %v550 = vperm.slane %v518, 0
        %v553 = vsel %vm465, %v546, 0
        %555 = vmatpush.bf16.msra.mxu0 0
        %556 = vmatpush.bf16.msra.mxu0 0
        %557 = vmatpush.bf16.msra.mxu0 0
        %558 = vmatpush.bf16.msra.mxu0 0
        %559 = vmatpush.bf16.msra.mxu0 0
        %560 = vmatpush.bf16.msra.mxu0 0
        %561 = vmatpush.bf16.msra.mxu0 %v548
        %562 = vmatpush.bf16.msra.mxu0 %v547
        %563 = vmatmul.bf16.gmra.mxu0 %v553
        %v564 = vpop.f32.mrf.mxu0
        %v565 = vadd.f32 %v550, %v564
        %v566 = vpop.f32.mrf.mxu0
        %567 = vdwg.mxu0
        %vm568 = vcmask 31744
        %v570 = vsel %vm568, %v543, 0
        %v573 = vsel %vm568, %v565, 0
        %575 = vmatpush.xpose.msra.mxu0 0.0
        %576 = vmatpush.xpose.msra.mxu0 0.0
        %577 = vmatpush.xpose.msra.mxu0 0.0
        %578 = vmatpush.xpose.msra.mxu0 0.0
        %579 = vmatpush.xpose.msra.mxu0 0.0
        %580 = vmatpush.xpose.msra.mxu0 0.0
        %581 = vmatpush.xpose.msra.mxu0 0.0
        %582 = vmatpush.xpose.msra.mxu0 0.0
        %583 = vmatpush.xpose.msra.mxu0 0.0
        %584 = vmatpush.xpose.msra.mxu0 0.0
        %585 = vmatpush.xpose.msra.mxu0 0.0
        %586 = vmatpush.xpose.msra.mxu0 0.0
        %587 = vmatpush.xpose.msra.mxu0 0.0
        %588 = vmatpush.xpose.msra.mxu0 0.0
        %589 = vmatpush.xpose.msra.mxu0 0.0
        %590 = vmatpush.xpose.msra.mxu0 %v573
        %591 = vmatmul.f32.gmra.mxu0 %v570
        %v592 = vpop.f32.mrf.mxu0
        %v593 = vadd.f32 0.0, %v592
        %594 = vdwg.mxu0
        %v595 = vmul.f32 %v593, 0.5
        %vm596 = vcmask 64512
        %v597 = vsel %vm596, %v595, -inf
        %598 = vmax.xlane.f32.xlu0 %v597
        %v599 = vpop.xlane.xlu0 %598
        %v600 = vsub.f32 %v595, %v599
        %v601 = vmul.f32 %v600, 1.442695
        %v602 = vpow.pop %v601
        %v603 = vsel %vm596, %v602, 0.0
        %604 = vadd.xlane.f32.xlu0 %v603
        %v605 = vpop.xlane.xlu0 %604
        %v606 = vrcp.pop %v605
        %v607 = vmul.f32 %v602, %v606
        %608 = vrot.lane.b32.xlu0 %v565, 96
        %v609 = vpop.permute.xlu0 %608
        %v612 = vsel %vm596, %v607, 0
        %614 = vmatpush.msra.mxu0 0.0
        %615 = vmatpush.msra.mxu0 0.0
        %616 = vmatpush.msra.mxu0 0.0
        %617 = vmatpush.msra.mxu0 0.0
        %618 = vmatpush.msra.mxu0 0.0
        %619 = vmatpush.msra.mxu0 0.0
        %620 = vmatpush.msra.mxu0 0.0
        %621 = vmatpush.msra.mxu0 0.0
        %622 = vmatpush.msra.mxu0 0.0
        %623 = vmatpush.msra.mxu0 0.0
        %624 = vmatpush.msra.mxu0 0.0
        %625 = vmatpush.msra.mxu0 0.0
        %626 = vmatpush.msra.mxu0 0.0
        %627 = vmatpush.msra.mxu0 0.0
        %628 = vmatpush.msra.mxu0 0.0
        %629 = vmatpush.msra.mxu0 %v609
        %630 = vmatmul.f32.gmra.mxu0 %v612
        %v631 = vpop.f32.mrf.mxu0
        %v632 = vadd.f32 0.0, %v631
        %633 = vdwg.mxu0
        %634 = vrot.lane.b32.xlu0 %v543, 124
        %v635 = vpop.permute.xlu0 %634
        %636 = vrot.lane.b32.xlu0 %v565, 124
        %v637 = vpop.permute.xlu0 %636
        %v638 = vsel %vm568, %v635, 0
        %v640 = vsel %vm568, %v637, 0
        %642 = vmatpush.xpose.msra.mxu0 0.0
        %643 = vmatpush.xpose.msra.mxu0 0.0
        %644 = vmatpush.xpose.msra.mxu0 0.0
        %645 = vmatpush.xpose.msra.mxu0 0.0
        %646 = vmatpush.xpose.msra.mxu0 0.0
        %647 = vmatpush.xpose.msra.mxu0 0.0
        %648 = vmatpush.xpose.msra.mxu0 0.0
        %649 = vmatpush.xpose.msra.mxu0 0.0
        %650 = vmatpush.xpose.msra.mxu0 0.0
        %651 = vmatpush.xpose.msra.mxu0 0.0
        %652 = vmatpush.xpose.msra.mxu0 0.0
        %653 = vmatpush.xpose.msra.mxu0 0.0
        %654 = vmatpush.xpose.msra.mxu0 0.0
        %655 = vmatpush.xpose.msra.mxu0 0.0
        %656 = vmatpush.xpose.msra.mxu0 0.0
        %657 = vmatpush.xpose.msra.mxu0 %v640
        %658 = vmatmul.f32.gmra.mxu0 %v638
        %v659 = vpop.f32.mrf.mxu0
        %v660 = vadd.f32 0.0, %v659
        %661 = vdwg.mxu0
        %v662 = vmul.f32 %v660, 0.5
        %v663 = vsel %vm596, %v662, -inf
        %664 = vmax.xlane.f32.xlu0 %v663
        %v665 = vpop.xlane.xlu0 %664
        %v666 = vsub.f32 %v662, %v665
        %v667 = vmul.f32 %v666, 1.442695
        %v668 = vpow.pop %v667
        %v669 = vsel %vm596, %v668, 0.0
        %670 = vadd.xlane.f32.xlu0 %v669
        %v671 = vpop.xlane.xlu0 %670
        %v672 = vrcp.pop %v671
        %v673 = vmul.f32 %v668, %v672
        %674 = vrot.lane.b32.xlu0 %v565, 92
        %v675 = vpop.permute.xlu0 %674
        %v678 = vsel %vm596, %v673, 0
        %680 = vmatpush.msra.mxu0 0.0
        %681 = vmatpush.msra.mxu0 0.0
        %682 = vmatpush.msra.mxu0 0.0
        %683 = vmatpush.msra.mxu0 0.0
        %684 = vmatpush.msra.mxu0 0.0
        %685 = vmatpush.msra.mxu0 0.0
        %686 = vmatpush.msra.mxu0 0.0
        %687 = vmatpush.msra.mxu0 0.0
        %688 = vmatpush.msra.mxu0 0.0
        %689 = vmatpush.msra.mxu0 0.0
        %690 = vmatpush.msra.mxu0 0.0
        %691 = vmatpush.msra.mxu0 0.0
        %692 = vmatpush.msra.mxu0 0.0
        %693 = vmatpush.msra.mxu0 0.0
        %694 = vmatpush.msra.mxu0 0.0
        %695 = vmatpush.msra.mxu0 %v675
        %696 = vmatmul.f32.gmra.mxu0 %v678
        %v697 = vpop.f32.mrf.mxu0
        %v698 = vadd.f32 0.0, %v697
        %699 = vdwg.mxu0
        %700 = vrot.lane.b32.xlu0 %v543, 120
        %v701 = vpop.permute.xlu0 %700
        %702 = vrot.lane.b32.xlu0 %v565, 120
        %v703 = vpop.permute.xlu0 %702
        %v704 = vsel %vm568, %v701, 0
        %v706 = vsel %vm568, %v703, 0
        %708 = vmatpush.xpose.msra.mxu0 0.0
        %709 = vmatpush.xpose.msra.mxu0 0.0
        %710 = vmatpush.xpose.msra.mxu0 0.0
        %711 = vmatpush.xpose.msra.mxu0 0.0
        %712 = vmatpush.xpose.msra.mxu0 0.0
        %713 = vmatpush.xpose.msra.mxu0 0.0
        %714 = vmatpush.xpose.msra.mxu0 0.0
        %715 = vmatpush.xpose.msra.mxu0 0.0
        %716 = vmatpush.xpose.msra.mxu0 0.0
        %717 = vmatpush.xpose.msra.mxu0 0.0
        %718 = vmatpush.xpose.msra.mxu0 0.0
        %719 = vmatpush.xpose.msra.mxu0 0.0
        %720 = vmatpush.xpose.msra.mxu0 0.0
        %721 = vmatpush.xpose.msra.mxu0 0.0
        %722 = vmatpush.xpose.msra.mxu0 0.0
        %723 = vmatpush.xpose.msra.mxu0 %v706
        %724 = vmatmul.f32.gmra.mxu0 %v704
        %v725 = vpop.f32.mrf.mxu0
        %v726 = vadd.f32 0.0, %v725
        %727 = vdwg.mxu0
        %v728 = vmul.f32 %v726, 0.5
        %v729 = vsel %vm596, %v728, -inf
        %730 = vmax.xlane.f32.xlu0 %v729
        %v731 = vpop.xlane.xlu0 %730
        %v732 = vsub.f32 %v728, %v731
        %v733 = vmul.f32 %v732, 1.442695
        %v734 = vpow.pop %v733
        %v735 = vsel %vm596, %v734, 0.0
        %736 = vadd.xlane.f32.xlu0 %v735
        %v737 = vpop.xlane.xlu0 %736
        %v738 = vrcp.pop %v737
        %v739 = vmul.f32 %v734, %v738
        %740 = vrot.lane.b32.xlu0 %v565, 88
        %v741 = vpop.permute.xlu0 %740
        %v744 = vsel %vm596, %v739, 0
        %746 = vmatpush.msra.mxu0 0.0
        %747 = vmatpush.msra.mxu0 0.0
        %748 = vmatpush.msra.mxu0 0.0
        %749 = vmatpush.msra.mxu0 0.0
        %750 = vmatpush.msra.mxu0 0.0
        %751 = vmatpush.msra.mxu0 0.0
        %752 = vmatpush.msra.mxu0 0.0
        %753 = vmatpush.msra.mxu0 0.0
        %754 = vmatpush.msra.mxu0 0.0
        %755 = vmatpush.msra.mxu0 0.0
        %756 = vmatpush.msra.mxu0 0.0
        %757 = vmatpush.msra.mxu0 0.0
        %758 = vmatpush.msra.mxu0 0.0
        %759 = vmatpush.msra.mxu0 0.0
        %760 = vmatpush.msra.mxu0 0.0
        %761 = vmatpush.msra.mxu0 %v741
        %762 = vmatmul.f32.gmra.mxu0 %v744
        %v763 = vpop.f32.mrf.mxu0
        %v764 = vadd.f32 0.0, %v763
        %765 = vdwg.mxu0
        %766 = vrot.lane.b32.xlu0 %v543, 116
        %v767 = vpop.permute.xlu0 %766
        %768 = vrot.lane.b32.xlu0 %v565, 116
        %v769 = vpop.permute.xlu0 %768
        %v770 = vsel %vm568, %v767, 0
        %v772 = vsel %vm568, %v769, 0
        %774 = vmatpush.xpose.msra.mxu0 0.0
        %775 = vmatpush.xpose.msra.mxu0 0.0
        %776 = vmatpush.xpose.msra.mxu0 0.0
        %777 = vmatpush.xpose.msra.mxu0 0.0
        %778 = vmatpush.xpose.msra.mxu0 0.0
        %779 = vmatpush.xpose.msra.mxu0 0.0
        %780 = vmatpush.xpose.msra.mxu0 0.0
        %781 = vmatpush.xpose.msra.mxu0 0.0
        %782 = vmatpush.xpose.msra.mxu0 0.0
        %783 = vmatpush.xpose.msra.mxu0 0.0
        %784 = vmatpush.xpose.msra.mxu0 0.0
        %785 = vmatpush.xpose.msra.mxu0 0.0
        %786 = vmatpush.xpose.msra.mxu0 0.0
        %787 = vmatpush.xpose.msra.mxu0 0.0
        %788 = vmatpush.xpose.msra.mxu0 0.0
        %789 = vmatpush.xpose.msra.mxu0 %v772
        %790 = vmatmul.f32.gmra.mxu0 %v770
        %v791 = vpop.f32.mrf.mxu0
        %v792 = vadd.f32 0.0, %v791
        %793 = vdwg.mxu0
        %v794 = vmul.f32 %v792, 0.5
        %v795 = vsel %vm596, %v794, -inf
        %796 = vmax.xlane.f32.xlu0 %v795
        %v797 = vpop.xlane.xlu0 %796
        %v798 = vsub.f32 %v794, %v797
        %v799 = vmul.f32 %v798, 1.442695
        %v800 = vpow.pop %v799
        %v801 = vsel %vm596, %v800, 0.0
        %802 = vadd.xlane.f32.xlu0 %v801
        %v803 = vpop.xlane.xlu0 %802
        %v804 = vrcp.pop %v803
        %v805 = vmul.f32 %v800, %v804
        %806 = vrot.lane.b32.xlu0 %v565, 84
        %v807 = vpop.permute.xlu0 %806
        %v810 = vsel %vm596, %v805, 0
        %812 = vmatpush.msra.mxu0 0.0
        %813 = vmatpush.msra.mxu0 0.0
        %814 = vmatpush.msra.mxu0 0.0
        %815 = vmatpush.msra.mxu0 0.0
        %816 = vmatpush.msra.mxu0 0.0
        %817 = vmatpush.msra.mxu0 0.0
        %818 = vmatpush.msra.mxu0 0.0
        %819 = vmatpush.msra.mxu0 0.0
        %820 = vmatpush.msra.mxu0 0.0
        %821 = vmatpush.msra.mxu0 0.0
        %822 = vmatpush.msra.mxu0 0.0
        %823 = vmatpush.msra.mxu0 0.0
        %824 = vmatpush.msra.mxu0 0.0
        %825 = vmatpush.msra.mxu0 0.0
        %826 = vmatpush.msra.mxu0 0.0
        %827 = vmatpush.msra.mxu0 %v807
        %828 = vmatmul.f32.gmra.mxu0 %v810
        %v829 = vpop.f32.mrf.mxu0
        %v830 = vadd.f32 0.0, %v829
        %831 = vdwg.mxu0
        %832 = vrot.lane.b32.xlu0 %v543, 112
        %v833 = vpop.permute.xlu0 %832
        %834 = vrot.lane.b32.xlu0 %v565, 112
        %v835 = vpop.permute.xlu0 %834
        %v836 = vsel %vm568, %v833, 0
        %v838 = vsel %vm568, %v835, 0
        %840 = vmatpush.xpose.msra.mxu0 0.0
        %841 = vmatpush.xpose.msra.mxu0 0.0
        %842 = vmatpush.xpose.msra.mxu0 0.0
        %843 = vmatpush.xpose.msra.mxu0 0.0
        %844 = vmatpush.xpose.msra.mxu0 0.0
        %845 = vmatpush.xpose.msra.mxu0 0.0
        %846 = vmatpush.xpose.msra.mxu0 0.0
        %847 = vmatpush.xpose.msra.mxu0 0.0
        %848 = vmatpush.xpose.msra.mxu0 0.0
        %849 = vmatpush.xpose.msra.mxu0 0.0
        %850 = vmatpush.xpose.msra.mxu0 0.0
        %851 = vmatpush.xpose.msra.mxu0 0.0
        %852 = vmatpush.xpose.msra.mxu0 0.0
        %853 = vmatpush.xpose.msra.mxu0 0.0
        %854 = vmatpush.xpose.msra.mxu0 0.0
        %855 = vmatpush.xpose.msra.mxu0 %v838
        %856 = vmatmul.f32.gmra.mxu0 %v836
        %v857 = vpop.f32.mrf.mxu0
        %v858 = vadd.f32 0.0, %v857
        %859 = vdwg.mxu0
        %v860 = vmul.f32 %v858, 0.5
        %v861 = vsel %vm596, %v860, -inf
        %862 = vmax.xlane.f32.xlu0 %v861
        %v863 = vpop.xlane.xlu0 %862
        %v864 = vsub.f32 %v860, %v863
        %v865 = vmul.f32 %v864, 1.442695
        %v866 = vpow.pop %v865
        %v867 = vsel %vm596, %v866, 0.0
        %868 = vadd.xlane.f32.xlu0 %v867
        %v869 = vpop.xlane.xlu0 %868
        %v870 = vrcp.pop %v869
        %v871 = vmul.f32 %v866, %v870
        %872 = vrot.lane.b32.xlu0 %v565, 80
        %v873 = vpop.permute.xlu0 %872
        %v876 = vsel %vm596, %v871, 0
        %878 = vmatpush.msra.mxu0 0.0
        %879 = vmatpush.msra.mxu0 0.0
        %880 = vmatpush.msra.mxu0 0.0
        %881 = vmatpush.msra.mxu0 0.0
        %882 = vmatpush.msra.mxu0 0.0
        %883 = vmatpush.msra.mxu0 0.0
        %884 = vmatpush.msra.mxu0 0.0
        %885 = vmatpush.msra.mxu0 0.0
        %886 = vmatpush.msra.mxu0 0.0
        %887 = vmatpush.msra.mxu0 0.0
        %888 = vmatpush.msra.mxu0 0.0
        %889 = vmatpush.msra.mxu0 0.0
        %890 = vmatpush.msra.mxu0 0.0
        %891 = vmatpush.msra.mxu0 0.0
        %892 = vmatpush.msra.mxu0 0.0
        %893 = vmatpush.msra.mxu0 %v873
        %894 = vmatmul.f32.gmra.mxu0 %v876
        %v895 = vpop.f32.mrf.mxu0
        %v896 = vadd.f32 0.0, %v895
        %897 = vdwg.mxu0
        %898 = vrot.lane.b32.xlu0 %v543, 108
        %v899 = vpop.permute.xlu0 %898
        %900 = vrot.lane.b32.xlu0 %v565, 108
        %v901 = vpop.permute.xlu0 %900
        %v902 = vsel %vm568, %v899, 0
        %v904 = vsel %vm568, %v901, 0
        %906 = vmatpush.xpose.msra.mxu0 0.0
        %907 = vmatpush.xpose.msra.mxu0 0.0
        %908 = vmatpush.xpose.msra.mxu0 0.0
        %909 = vmatpush.xpose.msra.mxu0 0.0
        %910 = vmatpush.xpose.msra.mxu0 0.0
        %911 = vmatpush.xpose.msra.mxu0 0.0
        %912 = vmatpush.xpose.msra.mxu0 0.0
        %913 = vmatpush.xpose.msra.mxu0 0.0
        %914 = vmatpush.xpose.msra.mxu0 0.0
        %915 = vmatpush.xpose.msra.mxu0 0.0
        %916 = vmatpush.xpose.msra.mxu0 0.0
        %917 = vmatpush.xpose.msra.mxu0 0.0
        %918 = vmatpush.xpose.msra.mxu0 0.0
        %919 = vmatpush.xpose.msra.mxu0 0.0
        %920 = vmatpush.xpose.msra.mxu0 0.0
        %921 = vmatpush.xpose.msra.mxu0 %v904
        %922 = vmatmul.f32.gmra.mxu0 %v902
        %v923 = vpop.f32.mrf.mxu0
        %v924 = vadd.f32 0.0, %v923
        %925 = vdwg.mxu0
        %v926 = vmul.f32 %v924, 0.5
        %v927 = vsel %vm596, %v926, -inf
        %928 = vmax.xlane.f32.xlu0 %v927
        %v929 = vpop.xlane.xlu0 %928
        %v930 = vsub.f32 %v926, %v929
        %v931 = vmul.f32 %v930, 1.442695
        %v932 = vpow.pop %v931
        %v933 = vsel %vm596, %v932, 0.0
        %934 = vadd.xlane.f32.xlu0 %v933
        %v935 = vpop.xlane.xlu0 %934
        %v936 = vrcp.pop %v935
        %v937 = vmul.f32 %v932, %v936
        %938 = vrot.lane.b32.xlu0 %v565, 76
        %v939 = vpop.permute.xlu0 %938
        %v942 = vsel %vm596, %v937, 0
        %944 = vmatpush.msra.mxu0 0.0
        %945 = vmatpush.msra.mxu0 0.0
        %946 = vmatpush.msra.mxu0 0.0
        %947 = vmatpush.msra.mxu0 0.0
        %948 = vmatpush.msra.mxu0 0.0
        %949 = vmatpush.msra.mxu0 0.0
        %950 = vmatpush.msra.mxu0 0.0
        %951 = vmatpush.msra.mxu0 0.0
        %952 = vmatpush.msra.mxu0 0.0
        %953 = vmatpush.msra.mxu0 0.0
        %954 = vmatpush.msra.mxu0 0.0
        %955 = vmatpush.msra.mxu0 0.0
        %956 = vmatpush.msra.mxu0 0.0
        %957 = vmatpush.msra.mxu0 0.0
        %958 = vmatpush.msra.mxu0 0.0
        %959 = vmatpush.msra.mxu0 %v939
        %960 = vmatmul.f32.gmra.mxu0 %v942
        %v961 = vpop.f32.mrf.mxu0
        %v962 = vadd.f32 0.0, %v961
        %963 = vdwg.mxu0
        %964 = vrot.lane.b32.xlu0 %v543, 104
        %v965 = vpop.permute.xlu0 %964
        %966 = vrot.lane.b32.xlu0 %v565, 104
        %v967 = vpop.permute.xlu0 %966
        %v968 = vsel %vm568, %v965, 0
        %v970 = vsel %vm568, %v967, 0
        %972 = vmatpush.xpose.msra.mxu0 0.0
        %973 = vmatpush.xpose.msra.mxu0 0.0
        %974 = vmatpush.xpose.msra.mxu0 0.0
        %975 = vmatpush.xpose.msra.mxu0 0.0
        %976 = vmatpush.xpose.msra.mxu0 0.0
        %977 = vmatpush.xpose.msra.mxu0 0.0
        %978 = vmatpush.xpose.msra.mxu0 0.0
        %979 = vmatpush.xpose.msra.mxu0 0.0
        %980 = vmatpush.xpose.msra.mxu0 0.0
        %981 = vmatpush.xpose.msra.mxu0 0.0
        %982 = vmatpush.xpose.msra.mxu0 0.0
        %983 = vmatpush.xpose.msra.mxu0 0.0
        %984 = vmatpush.xpose.msra.mxu0 0.0
        %985 = vmatpush.xpose.msra.mxu0 0.0
        %986 = vmatpush.xpose.msra.mxu0 0.0
        %987 = vmatpush.xpose.msra.mxu0 %v970
        %988 = vmatmul.f32.gmra.mxu0 %v968
        %v989 = vpop.f32.mrf.mxu0
        %v990 = vadd.f32 0.0, %v989
        %991 = vdwg.mxu0
        %v992 = vmul.f32 %v990, 0.5
        %v993 = vsel %vm596, %v992, -inf
        %994 = vmax.xlane.f32.xlu0 %v993
        %v995 = vpop.xlane.xlu0 %994
        %v996 = vsub.f32 %v992, %v995
        %v997 = vmul.f32 %v996, 1.442695
        %v998 = vpow.pop %v997
        %v999 = vsel %vm596, %v998, 0.0
        %1000 = vadd.xlane.f32.xlu0 %v999
        %v1001 = vpop.xlane.xlu0 %1000
        %v1002 = vrcp.pop %v1001
        %v1003 = vmul.f32 %v998, %v1002
        %1004 = vrot.lane.b32.xlu0 %v565, 72
        %v1005 = vpop.permute.xlu0 %1004
        %v1008 = vsel %vm596, %v1003, 0
        %1010 = vmatpush.msra.mxu0 0.0
        %1011 = vmatpush.msra.mxu0 0.0
        %1012 = vmatpush.msra.mxu0 0.0
        %1013 = vmatpush.msra.mxu0 0.0
        %1014 = vmatpush.msra.mxu0 0.0
        %1015 = vmatpush.msra.mxu0 0.0
        %1016 = vmatpush.msra.mxu0 0.0
        %1017 = vmatpush.msra.mxu0 0.0
        %1018 = vmatpush.msra.mxu0 0.0
        %1019 = vmatpush.msra.mxu0 0.0
        %1020 = vmatpush.msra.mxu0 0.0
        %1021 = vmatpush.msra.mxu0 0.0
        %1022 = vmatpush.msra.mxu0 0.0
        %1023 = vmatpush.msra.mxu0 0.0
        %1024 = vmatpush.msra.mxu0 0.0
        %1025 = vmatpush.msra.mxu0 %v1005
        %1026 = vmatmul.f32.gmra.mxu0 %v1008
        %v1027 = vpop.f32.mrf.mxu0
        %v1028 = vadd.f32 0.0, %v1027
        %1029 = vdwg.mxu0
        %1030 = vrot.lane.b32.xlu0 %v543, 100
        %v1031 = vpop.permute.xlu0 %1030
        %1032 = vrot.lane.b32.xlu0 %v565, 100
        %v1033 = vpop.permute.xlu0 %1032
        %v1034 = vsel %vm568, %v1031, 0
        %v1036 = vsel %vm568, %v1033, 0
        %1038 = vmatpush.xpose.msra.mxu0 0.0
        %1039 = vmatpush.xpose.msra.mxu0 0.0
        %1040 = vmatpush.xpose.msra.mxu0 0.0
        %1041 = vmatpush.xpose.msra.mxu0 0.0
        %1042 = vmatpush.xpose.msra.mxu0 0.0
        %1043 = vmatpush.xpose.msra.mxu0 0.0
        %1044 = vmatpush.xpose.msra.mxu0 0.0
        %1045 = vmatpush.xpose.msra.mxu0 0.0
        %1046 = vmatpush.xpose.msra.mxu0 0.0
        %1047 = vmatpush.xpose.msra.mxu0 0.0
        %1048 = vmatpush.xpose.msra.mxu0 0.0
        %1049 = vmatpush.xpose.msra.mxu0 0.0
        %1050 = vmatpush.xpose.msra.mxu0 0.0
        %1051 = vmatpush.xpose.msra.mxu0 0.0
        %1052 = vmatpush.xpose.msra.mxu0 0.0
        %1053 = vmatpush.xpose.msra.mxu0 %v1036
        %1054 = vmatmul.f32.gmra.mxu0 %v1034
        %v1055 = vpop.f32.mrf.mxu0
        %v1056 = vadd.f32 0.0, %v1055
        %1057 = vdwg.mxu0
        %v1058 = vmul.f32 %v1056, 0.5
        %v1059 = vsel %vm596, %v1058, -inf
        %1060 = vmax.xlane.f32.xlu0 %v1059
        %v1061 = vpop.xlane.xlu0 %1060
        %v1062 = vsub.f32 %v1058, %v1061
        %v1063 = vmul.f32 %v1062, 1.442695
        %v1064 = vpow.pop %v1063
        %v1065 = vsel %vm596, %v1064, 0.0
        %1066 = vadd.xlane.f32.xlu0 %v1065
        %v1067 = vpop.xlane.xlu0 %1066
        %v1068 = vrcp.pop %v1067
        %v1069 = vmul.f32 %v1064, %v1068
        %1070 = vrot.lane.b32.xlu0 %v565, 68
        %v1071 = vpop.permute.xlu0 %1070
        %v1074 = vsel %vm596, %v1069, 0
        %1076 = vmatpush.msra.mxu0 0.0
        %1077 = vmatpush.msra.mxu0 0.0
        %1078 = vmatpush.msra.mxu0 0.0
        %1079 = vmatpush.msra.mxu0 0.0
        %1080 = vmatpush.msra.mxu0 0.0
        %1081 = vmatpush.msra.mxu0 0.0
        %1082 = vmatpush.msra.mxu0 0.0
        %1083 = vmatpush.msra.mxu0 0.0
        %1084 = vmatpush.msra.mxu0 0.0
        %1085 = vmatpush.msra.mxu0 0.0
        %1086 = vmatpush.msra.mxu0 0.0
        %1087 = vmatpush.msra.mxu0 0.0
        %1088 = vmatpush.msra.mxu0 0.0
        %1089 = vmatpush.msra.mxu0 0.0
        %1090 = vmatpush.msra.mxu0 0.0
        %1091 = vmatpush.msra.mxu0 %v1071
        %1092 = vmatmul.f32.gmra.mxu0 %v1074
        %v1093 = vpop.f32.mrf.mxu0
        %v1094 = vadd.f32 0.0, %v1093
        %1095 = vdwg.mxu0
        %1097 = vrot.lane.b32.xlu0 %v698, 4
        %v1098 = vpop.permute.xlu0 %1097
        %1101 = vrot.lane.b32.xlu0 %v764, 8
        %v1102 = vpop.permute.xlu0 %1101
        %1105 = vrot.lane.b32.xlu0 %v830, 12
        %v1106 = vpop.permute.xlu0 %1105
        %1109 = vrot.lane.b32.xlu0 %v896, 16
        %v1110 = vpop.permute.xlu0 %1109
        %1113 = vrot.lane.b32.xlu0 %v962, 20
        %v1114 = vpop.permute.xlu0 %1113
        %1117 = vrot.lane.b32.xlu0 %v1028, 24
        %v1118 = vpop.permute.xlu0 %1117
        %1121 = vrot.lane.b32.xlu0 %v1094, 28
        %v1122 = vpop.permute.xlu0 %1121
        %v1124 = vsel %vm568, %v632, %v1098
        %v1125 = vsel %vm596, %v1124, %v1102
        %vm1126 = vcmask 97280
        %v1127 = vsel %vm1126, %v1125, %v1106
        %vm1128 = vcmask 130048
        %v1129 = vsel %vm1128, %v1127, %v1110
        %vm1130 = vcmask 162816
        %v1131 = vsel %vm1130, %v1129, %v1114
        %vm1132 = vcmask 195584
        %v1133 = vsel %vm1132, %v1131, %v1118
        %vm1134 = vcmask 228352
        %v1135 = vsel %vm1134, %v1133, %v1122
        %v1136 = vpack.c.bf16 %v1135, %v1135
        %v1137 = vpack.c.bf16 %v520, %v519
        %v1138 = vpack.c.bf16 %v522, %v521
        %v1140 = vperm.slane %v523, 0
        %v1143 = vsel %vm465, %v1136, 0
        %1145 = vmatpush.bf16.msra.mxu0 0
        %1146 = vmatpush.bf16.msra.mxu0 0
        %1147 = vmatpush.bf16.msra.mxu0 0
        %1148 = vmatpush.bf16.msra.mxu0 0
        %1149 = vmatpush.bf16.msra.mxu0 0
        %1150 = vmatpush.bf16.msra.mxu0 0
        %1151 = vmatpush.bf16.msra.mxu0 %v1138
        %1152 = vmatpush.bf16.msra.mxu0 %v1137
        %1153 = vmatmul.bf16.gmra.mxu0 %v1143
        %v1154 = vpop.f32.mrf.mxu0
        %v1155 = vadd.f32 %v1140, %v1154
        %v1156 = vpop.f32.mrf.mxu0
        %1157 = vdwg.mxu0
        %v1158 = vadd.f32 %v1155, %v461
        %1159 = vst.msk [vmem:[%s459] sm:$0xff] %vm465, %v1158
        %p1160 = scmp.lt.s32.totalorder %s26, 1
        %s1161 = scalar_select %p1160, %s26, 1
        %s1162 = smul.addr %s1161, 8
        %s1163 = scalar_lea.vmem %s9, %s1162
        // Predicated region
        $region85: #{et_decoder_block.8} parent=55 // pred_check
          %p1164 = pneg %p243
        $region86: #{et_decoder_block.8} parent=55 // pred_check_branch
          %1166 = sbr.rel (%p1164) target = $region88
        $region87: #{et_decoder_block.8} parent=55 // pred_region
          _
        $region88: #{et_decoder_block.8} parent=55 // pred_fallthru
          _
      $region56: #{et_decoder_block.8} parent=5 // pred_fallthru
        _
      %p1167 = scmp.le.s32.totalorder 2, %s21
      // Predicated region
      $region89: #{et_decoder_block.8} parent=5 // pred_check
        %p1168 = pneg %p1167
      $region90: #{et_decoder_block.8} parent=5 // pred_check_branch
        %1170 = sbr.rel (%p1168) target = $region92
      $region91: #{et_decoder_block.8} parent=5 // pred_region
        %s1171 = ssub.s32 %s21, 2
        // Predicated region
        $region93: #{et_decoder_block.8} parent=91 // pred_check
          %p1172 = pneg %p249
        $region94: #{et_decoder_block.8} parent=91 // pred_check_branch
          %1174 = sbr.rel (%p1172) target = $region96
        $region95: #{et_decoder_block.8} parent=91 // pred_region
          %p1175 = scmp.lt.s32.totalorder %s27, 1
          %s1176 = scalar_select %p1175, %s27, 1
          %s1177 = smul.addr %s1176, 8
          %s1178 = scalar_lea.vmem %s9, %s1177
        $region96: #{et_decoder_block.8} parent=91 // pred_fallthru
          _
      $region92: #{et_decoder_block.8} parent=5 // pred_fallthru
        _
    $region6: #{et_decoder_block.8} parent=1 // loop_footer
      %s25 = sadd.s32 1, %s21
    $region7: #{et_decoder_block.8} parent=1 // loop_footer_branch
      %20 = sbr.rel target = $region3
    $region8: #{et_decoder_block.8} parent=1 // loop_exit
      _
    %1179 = vsyncpa [#allocation3], 1
    %s1180 = scalar_lea.sflag [#allocation3], 1
    %1181 = vsyncpa %s1180, 1
    %1182 = vsyncpa [#allocation5], 1
    %1183 = vsyncpa [#allocation8], 1
    %1184 = vsyncpa [#allocation11], 1

// kernel: et_decoder_block.6
$region0: #{et_decoder_block.6}
  #allocation0 [shape = 'u32[]', space=smem, size = 0x4, offset = 0x4, fixed_abs, tag = 'smem constant byte address 0x4 - core index']
  #allocation1 [shape = 'u32[72,128]{1,0:T(1,128)}', space=vmem, size = 0x9000, scoped, tag = 'internal scratch']
  %s0 = inlined_call_operand.vmem [shape: f32[2,8,32], index: 0, kind: input, shape index: {}]
  %s1 = inlined_call_operand.hbm [shape: f32[1,32], index: 1, kind: input, shape index: {}]
  %s2 = inlined_call_operand.hbm [shape: f32[1,32], index: 2, kind: input, shape index: {}]
  %s3 = inlined_call_operand.vmem [shape: f32[32,64], index: 3, kind: input, shape index: {}]
  %s4 = inlined_call_operand.hbm [shape: f32[1,64], index: 4, kind: input, shape index: {}]
  %s5 = inlined_call_operand.vmem [shape: f32[11,64], index: 5, kind: input, shape index: {}]
  %s6 = inlined_call_operand.hbm [shape: f32[1,64], index: 6, kind: input, shape index: {}]
  %s7 = inlined_call_operand.vmem [shape: f32[64,32], index: 7, kind: input, shape index: {}]
  %s8 = inlined_call_operand.hbm [shape: f32[1,32], index: 8, kind: input, shape index: {}]
  %s9 = inlined_call_operand.vmem [shape: f32[32,16], index: 9, kind: input, shape index: {}]
  %s10 = inlined_call_operand.hbm [shape: f32[1,16], index: 10, kind: input, shape index: {}]
  %s11 = inlined_call_operand.vmem [shape: f32[7,16], index: 11, kind: input, shape index: {}]
  %s12 = inlined_call_operand.hbm [shape: f32[1,16], index: 12, kind: input, shape index: {}]
  %s13 = inlined_call_operand.vmem [shape: f32[16,32], index: 13, kind: input, shape index: {}]
  %s14 = inlined_call_operand.hbm [shape: f32[1,32], index: 14, kind: input, shape index: {}]
  %s15 = inlined_call_operand.vmem [shape: f32[32,32], index: 15, kind: input, shape index: {}]
  %s16 = inlined_call_operand.hbm [shape: f32[1,32], index: 16, kind: input, shape index: {}]
  %s17 = inlined_call_operand.hbm [shape: f32[7,32], index: 17, kind: input, shape index: {}]
  %s18 = inlined_call_operand.hbm [shape: f32[1,32], index: 18, kind: input, shape index: {}]
  %s19 = inlined_call_operand.hbm [shape: f32[32,32], index: 19, kind: input, shape index: {}]
  %s20 = inlined_call_operand.hbm [shape: f32[1,32], index: 20, kind: input, shape index: {}]
  %s21 = inlined_call_operand.vmem [shape: f32[2,8,32], index: 21, kind: output, shape index: {}]
  %s22 = sld [smem:[#allocation0]]
  $region169: #{et_decoder_block.6} parent=0
    _
  %s24 = ssub.s32 1, %s22
  %s25 = scalar_select 0, %s24, %s22
  $region1: #{et_decoder_block.6} parent=0
    #allocation2 [shape = 'u8[512]{0}', space=vmem, size = 0x400, scoped, tag = 'input window, operand 1, single buffered']
    #allocation3 [shape = 's32[2]{0}', space=sflag, size = 0x8, scoped, tag = 'scoped memory for et_decoder_block.6']
    #allocation4 [shape = 'u8[512]{0}', space=vmem, size = 0x400, scoped, tag = 'input window, operand 2, single buffered']
    #allocation5 [shape = 's32[1]{0}', space=sflag, size = 0x4, scoped, tag = 'scoped memory for et_decoder_block.6']
    #allocation6 [shape = 'u8[512]{0}', space=vmem, size = 0x400, scoped, tag = 'input window, operand 4, single buffered']
    #allocation7 [shape = 'u8[512]{0}', space=vmem, size = 0x400, scoped, tag = 'input window, operand 6, single buffered']
    #allocation8 [shape = 's32[1]{0}', space=sflag, size = 0x4, scoped, tag = 'scoped memory for et_decoder_block.6']
    #allocation9 [shape = 'u8[512]{0}', space=vmem, size = 0x400, scoped, tag = 'input window, operand 8, single buffered']
    #allocation10 [shape = 'u8[512]{0}', space=vmem, size = 0x400, scoped, tag = 'input window, operand 10, single buffered']
    #allocation11 [shape = 's32[1]{0}', space=sflag, size = 0x4, scoped, tag = 'scoped memory for et_decoder_block.6']
    #allocation12 [shape = 'u8[512]{0}', space=vmem, size = 0x400, scoped, tag = 'input window, operand 12, single buffered']
    #allocation13 [shape = 'u8[512]{0}', space=vmem, size = 0x400, scoped, tag = 'input window, operand 14, single buffered']
    #allocation14 [shape = 's32[1]{0}', space=sflag, size = 0x4, scoped, tag = 'scoped memory for et_decoder_block.6']
    #allocation15 [shape = 'u8[512]{0}', space=vmem, size = 0x400, scoped, tag = 'input window, operand 16, single buffered']
    #allocation16 [shape = 'u8[4096]{0}', space=vmem, size = 0x1000, scoped, tag = 'input window, operand 17, single buffered']
    #allocation17 [shape = 's32[1]{0}', space=sflag, size = 0x4, scoped, tag = 'scoped memory for et_decoder_block.6']
    #allocation18 [shape = 'u8[512]{0}', space=vmem, size = 0x400, scoped, tag = 'input window, operand 18, single buffered']
    #allocation19 [shape = 'u8[16384]{0}', space=vmem, size = 0x4000, scoped, tag = 'input window, operand 19, single buffered']
    #allocation20 [shape = 's32[1]{0}', space=sflag, size = 0x4, scoped, tag = 'scoped memory for et_decoder_block.6']
    #allocation21 [shape = 'u8[512]{0}', space=vmem, size = 0x400, scoped, tag = 'input window, operand 20, single buffered']
    %26 = vsyncpa [#allocation3], 0
    %27 = vsyncpa [#allocation5], 0
    %28 = vsyncpa [#allocation8], 0
    %29 = vsyncpa [#allocation11], 0
    %30 = vsyncpa [#allocation14], 0
    %31 = vsyncpa [#allocation17], 0
    %32 = vsyncpa [#allocation20], 0
    loop: start=0, step=1, limit=4
    $region2: #{et_decoder_block.6} parent=1 // loop_pre_header
      _
    $region3: #{et_decoder_block.6} parent=1 // loop_header
      %s34 = sphi 0, %s38
      %p35 = scmp.ge.s32.totalorder %s34, 4
      %s44 = sphi 0, %s46
      %s47 = sphi 0, %s44
      %s48 = sphi 0, %s47
      %s64 = sphi 0, %s48
      %s68 = sphi 0, %s68
      %s70 = sphi 0, %s68
      %s71 = sphi 0, %s70
      %s85 = sphi 0, %s71
      %s89 = sphi 0, %s89
      %s91 = sphi 0, %s89
      %s92 = sphi 0, %s91
      %s106 = sphi 0, %s92
      %s110 = sphi 0, %s110
      %s112 = sphi 0, %s110
      %s113 = sphi 0, %s112
      %s127 = sphi 0, %s113
      %s131 = sphi 0, %s131
      %s133 = sphi 0, %s131
      %s134 = sphi 0, %s133
      %s148 = sphi 0, %s134
      %s152 = sphi 0, %s152
      %s154 = sphi 0, %s152
      %s155 = sphi 0, %s154
      %s169 = sphi 0, %s155
      %s173 = sphi 0, %s173
      %s175 = sphi 0, %s173
      %s176 = sphi 0, %s175
      %s190 = sphi 0, %s176
      %s194 = sphi 0, %s194
      %s196 = sphi 0, %s194
      %s197 = sphi 0, %s196
      %s211 = sphi 0, %s197
      %s215 = sphi 0, %s215
      %s217 = sphi 0, %s215
      %s218 = sphi 0, %s217
      %s232 = sphi 0, %s218
      %s236 = sphi 0, %s236
      %s238 = sphi 0, %s236
      %s239 = sphi 0, %s238
      %s253 = sphi 0, %s239
      %s257 = sphi 0, %s257
      %s259 = sphi 0, %s257
      %s260 = sphi 0, %s259
      %s274 = sphi 0, %s260
      %s278 = sphi 0, %s278
      %s280 = sphi 0, %s278
      %s281 = sphi 0, %s280
      %s295 = sphi 0, %s281
      %s299 = sphi 0, %s299
      %s301 = sphi 0, %s299
      %s302 = sphi 0, %s301
      %s316 = sphi 0, %s302
      %s320 = sphi 0, %s320
      %s322 = sphi 0, %s320
      %s323 = sphi 0, %s322
      %s337 = sphi 0, %s323
      %s341 = sphi 0, %s341
      %s343 = sphi 0, %s341
      %s344 = sphi 0, %s343
      %s358 = sphi 0, %s344
      %s362 = sphi 0, %s362
      %s364 = sphi 0, %s362
      %s365 = sphi 0, %s364
      %s379 = sphi 0, %s365
      %s383 = sphi 0, %s383
      %s385 = sphi 0, %s383
      %s386 = sphi 0, %s385
      %s400 = sphi 0, %s386
      %s404 = sphi 0, %s404
      %s406 = sphi 0, %s404
      %s407 = sphi 0, %s406
      %s421 = sphi 0, %s407
      %s425 = sphi 0, %s425
      %s427 = sphi 0, %s425
      %s428 = sphi 0, %s427
      %s442 = sphi 0, %s428
      %s446 = sphi 0, %s446
      %s448 = sphi 0, %s446
      %s449 = sphi 0, %s448
      %s463 = sphi 0, %s449
      %s467 = sphi 0, %s467
      %s469 = sphi 0, %s467
      %s470 = sphi 0, %s469
      %s484 = sphi 0, %s470
      %s490 = sphi 0, %s492
      %s493 = sphi 0, %s490
      %s494 = sphi 0, %s493
      %s510 = sphi 0, %s494
    $region4: #{et_decoder_block.6} parent=1 // loop_header_branch
      %37 = sbr.rel (%p35) target = $region8
    $region5: #{et_decoder_block.6} parent=1 // loop_body
      %s39 = ssub.s32 %s34, 1
      %s40 = ssub.s32 %s34, 2
      %s41 = sadd.s32 %s34, 1
      %s42 = ssub.s32 %s34, %s41
      %p43 = scmp.eq.s32.totalorder %s42, 0
      %s45 = sadd.s32 %s44, 1
      %s46 = scalar_select %p43, %s44, %s45
      %p49 = pneg %p43
      %p50 = scmp.eq.s32.totalorder %s34, 1
      %p51 = por %p49, %p50
      %p52 = scmp.ne.s32.totalorder %s44, %s47
      %p53 = scmp.eq.s32.totalorder %s34, 0
      %p54 = por %p52, %p53
      %p55 = scmp.ne.s32.totalorder %s44, %s47
      %p56 = scmp.eq.s32.totalorder %s39, 1
      %p57 = por %p55, %p56
      %p58 = scmp.ne.s32.totalorder %s47, %s48
      %p59 = scmp.eq.s32.totalorder %s39, 0
      %p60 = por %p58, %p59
      %p61 = scmp.ne.s32.totalorder %s47, %s48
      %p62 = scmp.eq.s32.totalorder %s40, 1
      %p63 = por %p61, %p62
      %p65 = scmp.ne.s32.totalorder %s48, %s64
      %p66 = scmp.eq.s32.totalorder %s40, 0
      %p67 = por %p65, %p66
      %s69 = sadd.s32 %s68, 1
      %p72 = scmp.eq.s32.totalorder %s34, 1
      %p73 = scmp.ne.s32.totalorder %s68, %s70
      %p74 = scmp.eq.s32.totalorder %s34, 0
      %p75 = por %p73, %p74
      %p76 = scmp.ne.s32.totalorder %s68, %s70
      %p77 = scmp.eq.s32.totalorder %s39, 1
      %p78 = por %p76, %p77
      %p79 = scmp.ne.s32.totalorder %s70, %s71
      %p80 = scmp.eq.s32.totalorder %s39, 0
      %p81 = por %p79, %p80
      %p82 = scmp.ne.s32.totalorder %s70, %s71
      %p83 = scmp.eq.s32.totalorder %s40, 1
      %p84 = por %p82, %p83
      %p86 = scmp.ne.s32.totalorder %s71, %s85
      %p87 = scmp.eq.s32.totalorder %s40, 0
      %p88 = por %p86, %p87
      %s90 = sadd.s32 %s89, 1
      %p93 = scmp.eq.s32.totalorder %s34, 1
      %p94 = scmp.ne.s32.totalorder %s89, %s91
      %p95 = scmp.eq.s32.totalorder %s34, 0
      %p96 = por %p94, %p95
      %p97 = scmp.ne.s32.totalorder %s89, %s91
      %p98 = scmp.eq.s32.totalorder %s39, 1
      %p99 = por %p97, %p98
      %p100 = scmp.ne.s32.totalorder %s91, %s92
      %p101 = scmp.eq.s32.totalorder %s39, 0
      %p102 = por %p100, %p101
      %p103 = scmp.ne.s32.totalorder %s91, %s92
      %p104 = scmp.eq.s32.totalorder %s40, 1
      %p105 = por %p103, %p104
      %p107 = scmp.ne.s32.totalorder %s92, %s106
      %p108 = scmp.eq.s32.totalorder %s40, 0
      %p109 = por %p107, %p108
      %s111 = sadd.s32 %s110, 1
      %p114 = scmp.eq.s32.totalorder %s34, 1
      %p115 = scmp.ne.s32.totalorder %s110, %s112
      %p116 = scmp.eq.s32.totalorder %s34, 0
      %p117 = por %p115, %p116
      %p118 = scmp.ne.s32.totalorder %s110, %s112
      %p119 = scmp.eq.s32.totalorder %s39, 1
      %p120 = por %p118, %p119
      %p121 = scmp.ne.s32.totalorder %s112, %s113
      %p122 = scmp.eq.s32.totalorder %s39, 0
      %p123 = por %p121, %p122
      %p124 = scmp.ne.s32.totalorder %s112, %s113
      %p125 = scmp.eq.s32.totalorder %s40, 1
      %p126 = por %p124, %p125
      %p128 = scmp.ne.s32.totalorder %s113, %s127
      %p129 = scmp.eq.s32.totalorder %s40, 0
      %p130 = por %p128, %p129
      %s132 = sadd.s32 %s131, 1
      %p135 = scmp.eq.s32.totalorder %s34, 1
      %p136 = scmp.ne.s32.totalorder %s131, %s133
      %p137 = scmp.eq.s32.totalorder %s34, 0
      %p138 = por %p136, %p137
      %p139 = scmp.ne.s32.totalorder %s131, %s133
      %p140 = scmp.eq.s32.totalorder %s39, 1
      %p141 = por %p139, %p140
      %p142 = scmp.ne.s32.totalorder %s133, %s134
      %p143 = scmp.eq.s32.totalorder %s39, 0
      %p144 = por %p142, %p143
      %p145 = scmp.ne.s32.totalorder %s133, %s134
      %p146 = scmp.eq.s32.totalorder %s40, 1
      %p147 = por %p145, %p146
      %p149 = scmp.ne.s32.totalorder %s134, %s148
      %p150 = scmp.eq.s32.totalorder %s40, 0
      %p151 = por %p149, %p150
      %s153 = sadd.s32 %s152, 1
      %p156 = scmp.eq.s32.totalorder %s34, 1
      %p157 = scmp.ne.s32.totalorder %s152, %s154
      %p158 = scmp.eq.s32.totalorder %s34, 0
      %p159 = por %p157, %p158
      %p160 = scmp.ne.s32.totalorder %s152, %s154
      %p161 = scmp.eq.s32.totalorder %s39, 1
      %p162 = por %p160, %p161
      %p163 = scmp.ne.s32.totalorder %s154, %s155
      %p164 = scmp.eq.s32.totalorder %s39, 0
      %p165 = por %p163, %p164
      %p166 = scmp.ne.s32.totalorder %s154, %s155
      %p167 = scmp.eq.s32.totalorder %s40, 1
      %p168 = por %p166, %p167
      %p170 = scmp.ne.s32.totalorder %s155, %s169
      %p171 = scmp.eq.s32.totalorder %s40, 0
      %p172 = por %p170, %p171
      %s174 = sadd.s32 %s173, 1
      %p177 = scmp.eq.s32.totalorder %s34, 1
      %p178 = scmp.ne.s32.totalorder %s173, %s175
      %p179 = scmp.eq.s32.totalorder %s34, 0
      %p180 = por %p178, %p179
      %p181 = scmp.ne.s32.totalorder %s173, %s175
      %p182 = scmp.eq.s32.totalorder %s39, 1
      %p183 = por %p181, %p182
      %p184 = scmp.ne.s32.totalorder %s175, %s176
      %p185 = scmp.eq.s32.totalorder %s39, 0
      %p186 = por %p184, %p185
      %p187 = scmp.ne.s32.totalorder %s175, %s176
      %p188 = scmp.eq.s32.totalorder %s40, 1
      %p189 = por %p187, %p188
      %p191 = scmp.ne.s32.totalorder %s176, %s190
      %p192 = scmp.eq.s32.totalorder %s40, 0
      %p193 = por %p191, %p192
      %s195 = sadd.s32 %s194, 1
      %p198 = scmp.eq.s32.totalorder %s34, 1
      %p199 = scmp.ne.s32.totalorder %s194, %s196
      %p200 = scmp.eq.s32.totalorder %s34, 0
      %p201 = por %p199, %p200
      %p202 = scmp.ne.s32.totalorder %s194, %s196
      %p203 = scmp.eq.s32.totalorder %s39, 1
      %p204 = por %p202, %p203
      %p205 = scmp.ne.s32.totalorder %s196, %s197
      %p206 = scmp.eq.s32.totalorder %s39, 0
      %p207 = por %p205, %p206
      %p208 = scmp.ne.s32.totalorder %s196, %s197
      %p209 = scmp.eq.s32.totalorder %s40, 1
      %p210 = por %p208, %p209
      %p212 = scmp.ne.s32.totalorder %s197, %s211
      %p213 = scmp.eq.s32.totalorder %s40, 0
      %p214 = por %p212, %p213
      %s216 = sadd.s32 %s215, 1
      %p219 = scmp.eq.s32.totalorder %s34, 1
      %p220 = scmp.ne.s32.totalorder %s215, %s217
      %p221 = scmp.eq.s32.totalorder %s34, 0
      %p222 = por %p220, %p221
      %p223 = scmp.ne.s32.totalorder %s215, %s217
      %p224 = scmp.eq.s32.totalorder %s39, 1
      %p225 = por %p223, %p224
      %p226 = scmp.ne.s32.totalorder %s217, %s218
      %p227 = scmp.eq.s32.totalorder %s39, 0
      %p228 = por %p226, %p227
      %p229 = scmp.ne.s32.totalorder %s217, %s218
      %p230 = scmp.eq.s32.totalorder %s40, 1
      %p231 = por %p229, %p230
      %p233 = scmp.ne.s32.totalorder %s218, %s232
      %p234 = scmp.eq.s32.totalorder %s40, 0
      %p235 = por %p233, %p234
      %s237 = sadd.s32 %s236, 1
      %p240 = scmp.eq.s32.totalorder %s34, 1
      %p241 = scmp.ne.s32.totalorder %s236, %s238
      %p242 = scmp.eq.s32.totalorder %s34, 0
      %p243 = por %p241, %p242
      %p244 = scmp.ne.s32.totalorder %s236, %s238
      %p245 = scmp.eq.s32.totalorder %s39, 1
      %p246 = por %p244, %p245
      %p247 = scmp.ne.s32.totalorder %s238, %s239
      %p248 = scmp.eq.s32.totalorder %s39, 0
      %p249 = por %p247, %p248
      %p250 = scmp.ne.s32.totalorder %s238, %s239
      %p251 = scmp.eq.s32.totalorder %s40, 1
      %p252 = por %p250, %p251
      %p254 = scmp.ne.s32.totalorder %s239, %s253
      %p255 = scmp.eq.s32.totalorder %s40, 0
      %p256 = por %p254, %p255
      %s258 = sadd.s32 %s257, 1
      %p261 = scmp.eq.s32.totalorder %s34, 1
      %p262 = scmp.ne.s32.totalorder %s257, %s259
      %p263 = scmp.eq.s32.totalorder %s34, 0
      %p264 = por %p262, %p263
      %p265 = scmp.ne.s32.totalorder %s257, %s259
      %p266 = scmp.eq.s32.totalorder %s39, 1
      %p267 = por %p265, %p266
      %p268 = scmp.ne.s32.totalorder %s259, %s260
      %p269 = scmp.eq.s32.totalorder %s39, 0
      %p270 = por %p268, %p269
      %p271 = scmp.ne.s32.totalorder %s259, %s260
      %p272 = scmp.eq.s32.totalorder %s40, 1
      %p273 = por %p271, %p272
      %p275 = scmp.ne.s32.totalorder %s260, %s274
      %p276 = scmp.eq.s32.totalorder %s40, 0
      %p277 = por %p275, %p276
      %s279 = sadd.s32 %s278, 1
      %p282 = scmp.eq.s32.totalorder %s34, 1
      %p283 = scmp.ne.s32.totalorder %s278, %s280
      %p284 = scmp.eq.s32.totalorder %s34, 0
      %p285 = por %p283, %p284
      %p286 = scmp.ne.s32.totalorder %s278, %s280
      %p287 = scmp.eq.s32.totalorder %s39, 1
      %p288 = por %p286, %p287
      %p289 = scmp.ne.s32.totalorder %s280, %s281
      %p290 = scmp.eq.s32.totalorder %s39, 0
      %p291 = por %p289, %p290
      %p292 = scmp.ne.s32.totalorder %s280, %s281
      %p293 = scmp.eq.s32.totalorder %s40, 1
      %p294 = por %p292, %p293
      %p296 = scmp.ne.s32.totalorder %s281, %s295
      %p297 = scmp.eq.s32.totalorder %s40, 0
      %p298 = por %p296, %p297
      %s300 = sadd.s32 %s299, 1
      %p303 = scmp.eq.s32.totalorder %s34, 1
      %p304 = scmp.ne.s32.totalorder %s299, %s301
      %p305 = scmp.eq.s32.totalorder %s34, 0
      %p306 = por %p304, %p305
      %p307 = scmp.ne.s32.totalorder %s299, %s301
      %p308 = scmp.eq.s32.totalorder %s39, 1
      %p309 = por %p307, %p308
      %p310 = scmp.ne.s32.totalorder %s301, %s302
      %p311 = scmp.eq.s32.totalorder %s39, 0
      %p312 = por %p310, %p311
      %p313 = scmp.ne.s32.totalorder %s301, %s302
      %p314 = scmp.eq.s32.totalorder %s40, 1
      %p315 = por %p313, %p314
      %p317 = scmp.ne.s32.totalorder %s302, %s316
      %p318 = scmp.eq.s32.totalorder %s40, 0
      %p319 = por %p317, %p318
      %s321 = sadd.s32 %s320, 1
      %p324 = scmp.eq.s32.totalorder %s34, 1
      %p325 = scmp.ne.s32.totalorder %s320, %s322
      %p326 = scmp.eq.s32.totalorder %s34, 0
      %p327 = por %p325, %p326
      %p328 = scmp.ne.s32.totalorder %s320, %s322
      %p329 = scmp.eq.s32.totalorder %s39, 1
      %p330 = por %p328, %p329
      %p331 = scmp.ne.s32.totalorder %s322, %s323
      %p332 = scmp.eq.s32.totalorder %s39, 0
      %p333 = por %p331, %p332
      %p334 = scmp.ne.s32.totalorder %s322, %s323
      %p335 = scmp.eq.s32.totalorder %s40, 1
      %p336 = por %p334, %p335
      %p338 = scmp.ne.s32.totalorder %s323, %s337
      %p339 = scmp.eq.s32.totalorder %s40, 0
      %p340 = por %p338, %p339
      %s342 = sadd.s32 %s341, 1
      %p345 = scmp.eq.s32.totalorder %s34, 1
      %p346 = scmp.ne.s32.totalorder %s341, %s343
      %p347 = scmp.eq.s32.totalorder %s34, 0
      %p348 = por %p346, %p347
      %p349 = scmp.ne.s32.totalorder %s341, %s343
      %p350 = scmp.eq.s32.totalorder %s39, 1
      %p351 = por %p349, %p350
      %p352 = scmp.ne.s32.totalorder %s343, %s344
      %p353 = scmp.eq.s32.totalorder %s39, 0
      %p354 = por %p352, %p353
      %p355 = scmp.ne.s32.totalorder %s343, %s344
      %p356 = scmp.eq.s32.totalorder %s40, 1
      %p357 = por %p355, %p356
      %p359 = scmp.ne.s32.totalorder %s344, %s358
      %p360 = scmp.eq.s32.totalorder %s40, 0
      %p361 = por %p359, %p360
      %s363 = sadd.s32 %s362, 1
      %p366 = scmp.eq.s32.totalorder %s34, 1
      %p367 = scmp.ne.s32.totalorder %s362, %s364
      %p368 = scmp.eq.s32.totalorder %s34, 0
      %p369 = por %p367, %p368
      %p370 = scmp.ne.s32.totalorder %s362, %s364
      %p371 = scmp.eq.s32.totalorder %s39, 1
      %p372 = por %p370, %p371
      %p373 = scmp.ne.s32.totalorder %s364, %s365
      %p374 = scmp.eq.s32.totalorder %s39, 0
      %p375 = por %p373, %p374
      %p376 = scmp.ne.s32.totalorder %s364, %s365
      %p377 = scmp.eq.s32.totalorder %s40, 1
      %p378 = por %p376, %p377
      %p380 = scmp.ne.s32.totalorder %s365, %s379
      %p381 = scmp.eq.s32.totalorder %s40, 0
      %p382 = por %p380, %p381
      %s384 = sadd.s32 %s383, 1
      %p387 = scmp.eq.s32.totalorder %s34, 1
      %p388 = scmp.ne.s32.totalorder %s383, %s385
      %p389 = scmp.eq.s32.totalorder %s34, 0
      %p390 = por %p388, %p389
      %p391 = scmp.ne.s32.totalorder %s383, %s385
      %p392 = scmp.eq.s32.totalorder %s39, 1
      %p393 = por %p391, %p392
      %p394 = scmp.ne.s32.totalorder %s385, %s386
      %p395 = scmp.eq.s32.totalorder %s39, 0
      %p396 = por %p394, %p395
      %p397 = scmp.ne.s32.totalorder %s385, %s386
      %p398 = scmp.eq.s32.totalorder %s40, 1
      %p399 = por %p397, %p398
      %p401 = scmp.ne.s32.totalorder %s386, %s400
      %p402 = scmp.eq.s32.totalorder %s40, 0
      %p403 = por %p401, %p402
      %s405 = sadd.s32 %s404, 1
      %p408 = scmp.eq.s32.totalorder %s34, 1
      %p409 = scmp.ne.s32.totalorder %s404, %s406
      %p410 = scmp.eq.s32.totalorder %s34, 0
      %p411 = por %p409, %p410
      %p412 = scmp.ne.s32.totalorder %s404, %s406
      %p413 = scmp.eq.s32.totalorder %s39, 1
      %p414 = por %p412, %p413
      %p415 = scmp.ne.s32.totalorder %s406, %s407
      %p416 = scmp.eq.s32.totalorder %s39, 0
      %p417 = por %p415, %p416
      %p418 = scmp.ne.s32.totalorder %s406, %s407
      %p419 = scmp.eq.s32.totalorder %s40, 1
      %p420 = por %p418, %p419
      %p422 = scmp.ne.s32.totalorder %s407, %s421
      %p423 = scmp.eq.s32.totalorder %s40, 0
      %p424 = por %p422, %p423
      %s426 = sadd.s32 %s425, 1
      %p429 = scmp.eq.s32.totalorder %s34, 1
      %p430 = scmp.ne.s32.totalorder %s425, %s427
      %p431 = scmp.eq.s32.totalorder %s34, 0
      %p432 = por %p430, %p431
      %p433 = scmp.ne.s32.totalorder %s425, %s427
      %p434 = scmp.eq.s32.totalorder %s39, 1
      %p435 = por %p433, %p434
      %p436 = scmp.ne.s32.totalorder %s427, %s428
      %p437 = scmp.eq.s32.totalorder %s39, 0
      %p438 = por %p436, %p437
      %p439 = scmp.ne.s32.totalorder %s427, %s428
      %p440 = scmp.eq.s32.totalorder %s40, 1
      %p441 = por %p439, %p440
      %p443 = scmp.ne.s32.totalorder %s428, %s442
      %p444 = scmp.eq.s32.totalorder %s40, 0
      %p445 = por %p443, %p444
      %s447 = sadd.s32 %s446, 1
      %p450 = scmp.eq.s32.totalorder %s34, 1
      %p451 = scmp.ne.s32.totalorder %s446, %s448
      %p452 = scmp.eq.s32.totalorder %s34, 0
      %p453 = por %p451, %p452
      %p454 = scmp.ne.s32.totalorder %s446, %s448
      %p455 = scmp.eq.s32.totalorder %s39, 1
      %p456 = por %p454, %p455
      %p457 = scmp.ne.s32.totalorder %s448, %s449
      %p458 = scmp.eq.s32.totalorder %s39, 0
      %p459 = por %p457, %p458
      %p460 = scmp.ne.s32.totalorder %s448, %s449
      %p461 = scmp.eq.s32.totalorder %s40, 1
      %p462 = por %p460, %p461
      %p464 = scmp.ne.s32.totalorder %s449, %s463
      %p465 = scmp.eq.s32.totalorder %s40, 0
      %p466 = por %p464, %p465
      %s468 = sadd.s32 %s467, 1
      %p471 = scmp.eq.s32.totalorder %s34, 1
      %p472 = scmp.ne.s32.totalorder %s467, %s469
      %p473 = scmp.eq.s32.totalorder %s34, 0
      %p474 = por %p472, %p473
      %p475 = scmp.ne.s32.totalorder %s467, %s469
      %p476 = scmp.eq.s32.totalorder %s39, 1
      %p477 = por %p475, %p476
      %p478 = scmp.ne.s32.totalorder %s469, %s470
      %p479 = scmp.eq.s32.totalorder %s39, 0
      %p480 = por %p478, %p479
      %p481 = scmp.ne.s32.totalorder %s469, %s470
      %p482 = scmp.eq.s32.totalorder %s40, 1
      %p483 = por %p481, %p482
      %p485 = scmp.ne.s32.totalorder %s470, %s484
      %p486 = scmp.eq.s32.totalorder %s40, 0
      %p487 = por %p485, %p486
      %s488 = ssub.s32 %s34, %s41
      %p489 = scmp.eq.s32.totalorder %s488, 0
      %s491 = sadd.s32 %s490, 1
      %s492 = scalar_select %p489, %s490, %s491
      %p495 = pneg %p489
      %p496 = scmp.eq.s32.totalorder %s34, 1
      %p497 = por %p495, %p496
      %p498 = scmp.ne.s32.totalorder %s490, %s493
      %p499 = scmp.eq.s32.totalorder %s34, 0
      %p500 = por %p498, %p499
      %p501 = scmp.ne.s32.totalorder %s490, %s493
      %p502 = scmp.eq.s32.totalorder %s39, 1
      %p503 = por %p501, %p502
      %p504 = scmp.ne.s32.totalorder %s493, %s494
      %p505 = scmp.eq.s32.totalorder %s39, 0
      %p506 = por %p504, %p505
      %p507 = scmp.ne.s32.totalorder %s493, %s494
      %p508 = scmp.eq.s32.totalorder %s40, 1
      %p509 = por %p507, %p508
      %p511 = scmp.ne.s32.totalorder %s494, %s510
      %p512 = scmp.eq.s32.totalorder %s40, 0
      %p513 = por %p511, %p512
      %p514 = scmp.le.s32.totalorder 1, %s34
      %p515 = scmp.lt.s32.totalorder %s34, 3
      %p516 = pnand %p514, %p515
      %p517 = pneg %p516
      // Predicated region
      $region9: #{et_decoder_block.6} parent=5 // pred_check
        _
      $region10: #{et_decoder_block.6} parent=5 // pred_check_branch
        %519 = sbr.rel (%p516) target = $region12
      $region11: #{et_decoder_block.6} parent=5 // pred_region
        %s520 = ssub.s32 %s34, 1
        // Predicated region
        $region13: #{et_decoder_block.6} parent=11 // pred_check
          %p521 = pneg %p81
        $region14: #{et_decoder_block.6} parent=11 // pred_check_branch
          %523 = sbr.rel (%p521) target = $region16
        $region15: #{et_decoder_block.6} parent=11 // pred_region
          %525 = vsyncadd [#allocation3], 0
          %s527 = sshll.u32 %s1, 4
          %s528 = int_to_ptr.hbm [resolvable:$true] %s527
          %s529 = sshll.u32 [#allocation2], 4
          %s530 = int_to_ptr.vmem [resolvable:$true] %s529
          %532 = dma.hbm_to_vmem [thread:$0]  %s528, 16, %s530, [#allocation3]
        $region16: #{et_decoder_block.6} parent=11 // pred_fallthru
          _
        // Predicated region
        $region17: #{et_decoder_block.6} parent=11 // pred_check
          %p533 = pneg %p102
        $region18: #{et_decoder_block.6} parent=11 // pred_check_branch
          %535 = sbr.rel (%p533) target = $region20
        $region19: #{et_decoder_block.6} parent=11 // pred_region
          %537 = vsyncadd [#allocation5], 0
          %s539 = sshll.u32 %s2, 4
          %s540 = int_to_ptr.hbm [resolvable:$true] %s539
          %s541 = sshll.u32 [#allocation4], 4
          %s542 = int_to_ptr.vmem [resolvable:$true] %s541
          %544 = dma.hbm_to_vmem [thread:$0]  %s540, 16, %s542, [#allocation5]
        $region20: #{et_decoder_block.6} parent=11 // pred_fallthru
          _
        // Predicated region
        $region21: #{et_decoder_block.6} parent=11 // pred_check
          %p545 = pneg %p123
        $region22: #{et_decoder_block.6} parent=11 // pred_check_branch
          %547 = sbr.rel (%p545) target = $region24
        $region23: #{et_decoder_block.6} parent=11 // pred_region
          _
        $region24: #{et_decoder_block.6} parent=11 // pred_fallthru
          _
        // Predicated region
        $region25: #{et_decoder_block.6} parent=11 // pred_check
          %p548 = pneg %p144
        $region26: #{et_decoder_block.6} parent=11 // pred_check_branch
          %550 = sbr.rel (%p548) target = $region28
        $region27: #{et_decoder_block.6} parent=11 // pred_region
          %552 = vsyncadd [#allocation5], 0
          %s554 = sshll.u32 %s4, 4
          %s555 = int_to_ptr.hbm [resolvable:$true] %s554
          %s556 = sshll.u32 [#allocation6], 4
          %s557 = int_to_ptr.vmem [resolvable:$true] %s556
          %559 = dma.hbm_to_vmem [thread:$0]  %s555, 16, %s557, [#allocation5]
        $region28: #{et_decoder_block.6} parent=11 // pred_fallthru
          _
        // Predicated region
        $region29: #{et_decoder_block.6} parent=11 // pred_check
          %p560 = pneg %p165
        $region30: #{et_decoder_block.6} parent=11 // pred_check_branch
          %562 = sbr.rel (%p560) target = $region32
        $region31: #{et_decoder_block.6} parent=11 // pred_region
          _
        $region32: #{et_decoder_block.6} parent=11 // pred_fallthru
          _
        // Predicated region
        $region33: #{et_decoder_block.6} parent=11 // pred_check
          %p563 = pneg %p186
        $region34: #{et_decoder_block.6} parent=11 // pred_check_branch
          %565 = sbr.rel (%p563) target = $region36
        $region35: #{et_decoder_block.6} parent=11 // pred_region
          %567 = vsyncadd [#allocation8], 0
          %s569 = sshll.u32 %s6, 4
          %s570 = int_to_ptr.hbm [resolvable:$true] %s569
          %s571 = sshll.u32 [#allocation7], 4
          %s572 = int_to_ptr.vmem [resolvable:$true] %s571
          %574 = dma.hbm_to_vmem [thread:$0]  %s570, 16, %s572, [#allocation8]
        $region36: #{et_decoder_block.6} parent=11 // pred_fallthru
          _
        // Predicated region
        $region37: #{et_decoder_block.6} parent=11 // pred_check
          %p575 = pneg %p207
        $region38: #{et_decoder_block.6} parent=11 // pred_check_branch
          %577 = sbr.rel (%p575) target = $region40
        $region39: #{et_decoder_block.6} parent=11 // pred_region
          _
        $region40: #{et_decoder_block.6} parent=11 // pred_fallthru
          _
        // Predicated region
        $region41: #{et_decoder_block.6} parent=11 // pred_check
          %p578 = pneg %p228
        $region42: #{et_decoder_block.6} parent=11 // pred_check_branch
          %580 = sbr.rel (%p578) target = $region44
        $region43: #{et_decoder_block.6} parent=11 // pred_region
          %582 = vsyncadd [#allocation8], 0
          %s584 = sshll.u32 %s8, 4
          %s585 = int_to_ptr.hbm [resolvable:$true] %s584
          %s586 = sshll.u32 [#allocation9], 4
          %s587 = int_to_ptr.vmem [resolvable:$true] %s586
          %589 = dma.hbm_to_vmem [thread:$0]  %s585, 16, %s587, [#allocation8]
        $region44: #{et_decoder_block.6} parent=11 // pred_fallthru
          _
        // Predicated region
        $region45: #{et_decoder_block.6} parent=11 // pred_check
          %p590 = pneg %p249
        $region46: #{et_decoder_block.6} parent=11 // pred_check_branch
          %592 = sbr.rel (%p590) target = $region48
        $region47: #{et_decoder_block.6} parent=11 // pred_region
          _
        $region48: #{et_decoder_block.6} parent=11 // pred_fallthru
          _
        // Predicated region
        $region49: #{et_decoder_block.6} parent=11 // pred_check
          %p593 = pneg %p270
        $region50: #{et_decoder_block.6} parent=11 // pred_check_branch
          %595 = sbr.rel (%p593) target = $region52
        $region51: #{et_decoder_block.6} parent=11 // pred_region
          %597 = vsyncadd [#allocation11], 0
          %s599 = sshll.u32 %s10, 4
          %s600 = int_to_ptr.hbm [resolvable:$true] %s599
          %s601 = sshll.u32 [#allocation10], 4
          %s602 = int_to_ptr.vmem [resolvable:$true] %s601
          %604 = dma.hbm_to_vmem [thread:$0]  %s600, 16, %s602, [#allocation11]
        $region52: #{et_decoder_block.6} parent=11 // pred_fallthru
          _
        // Predicated region
        $region53: #{et_decoder_block.6} parent=11 // pred_check
          %p605 = pneg %p291
        $region54: #{et_decoder_block.6} parent=11 // pred_check_branch
          %607 = sbr.rel (%p605) target = $region56
        $region55: #{et_decoder_block.6} parent=11 // pred_region
          _
        $region56: #{et_decoder_block.6} parent=11 // pred_fallthru
          _
        // Predicated region
        $region57: #{et_decoder_block.6} parent=11 // pred_check
          %p608 = pneg %p312
        $region58: #{et_decoder_block.6} parent=11 // pred_check_branch
          %610 = sbr.rel (%p608) target = $region60
        $region59: #{et_decoder_block.6} parent=11 // pred_region
          %612 = vsyncadd [#allocation11], 0
          %s614 = sshll.u32 %s12, 4
          %s615 = int_to_ptr.hbm [resolvable:$true] %s614
          %s616 = sshll.u32 [#allocation12], 4
          %s617 = int_to_ptr.vmem [resolvable:$true] %s616
          %619 = dma.hbm_to_vmem [thread:$0]  %s615, 16, %s617, [#allocation11]
        $region60: #{et_decoder_block.6} parent=11 // pred_fallthru
          _
        // Predicated region
        $region61: #{et_decoder_block.6} parent=11 // pred_check
          %p620 = pneg %p333
        $region62: #{et_decoder_block.6} parent=11 // pred_check_branch
          %622 = sbr.rel (%p620) target = $region64
        $region63: #{et_decoder_block.6} parent=11 // pred_region
          _
        $region64: #{et_decoder_block.6} parent=11 // pred_fallthru
          _
        // Predicated region
        $region65: #{et_decoder_block.6} parent=11 // pred_check
          %p623 = pneg %p354
        $region66: #{et_decoder_block.6} parent=11 // pred_check_branch
          %625 = sbr.rel (%p623) target = $region68
        $region67: #{et_decoder_block.6} parent=11 // pred_region
          %627 = vsyncadd [#allocation14], 0
          %s629 = sshll.u32 %s14, 4
          %s630 = int_to_ptr.hbm [resolvable:$true] %s629
          %s631 = sshll.u32 [#allocation13], 4
          %s632 = int_to_ptr.vmem [resolvable:$true] %s631
          %634 = dma.hbm_to_vmem [thread:$0]  %s630, 16, %s632, [#allocation14]
        $region68: #{et_decoder_block.6} parent=11 // pred_fallthru
          _
        // Predicated region
        $region69: #{et_decoder_block.6} parent=11 // pred_check
          %p635 = pneg %p375
        $region70: #{et_decoder_block.6} parent=11 // pred_check_branch
          %637 = sbr.rel (%p635) target = $region72
        $region71: #{et_decoder_block.6} parent=11 // pred_region
          _
        $region72: #{et_decoder_block.6} parent=11 // pred_fallthru
          _
        // Predicated region
        $region73: #{et_decoder_block.6} parent=11 // pred_check
          %p638 = pneg %p396
        $region74: #{et_decoder_block.6} parent=11 // pred_check_branch
          %640 = sbr.rel (%p638) target = $region76
        $region75: #{et_decoder_block.6} parent=11 // pred_region
          %642 = vsyncadd [#allocation14], 0
          %s644 = sshll.u32 %s16, 4
          %s645 = int_to_ptr.hbm [resolvable:$true] %s644
          %s646 = sshll.u32 [#allocation15], 4
          %s647 = int_to_ptr.vmem [resolvable:$true] %s646
          %649 = dma.hbm_to_vmem [thread:$0]  %s645, 16, %s647, [#allocation14]
        $region76: #{et_decoder_block.6} parent=11 // pred_fallthru
          _
        // Predicated region
        $region77: #{et_decoder_block.6} parent=11 // pred_check
          %p650 = pneg %p417
        $region78: #{et_decoder_block.6} parent=11 // pred_check_branch
          %652 = sbr.rel (%p650) target = $region80
        $region79: #{et_decoder_block.6} parent=11 // pred_region
          %654 = vsyncadd [#allocation17], 0
          %s656 = sshll.u32 %s17, 4
          %s657 = int_to_ptr.hbm [resolvable:$true] %s656
          %s658 = sshll.u32 [#allocation16], 4
          %s659 = int_to_ptr.vmem [resolvable:$true] %s658
          %661 = dma.hbm_to_vmem [thread:$0]  %s657, 128, %s659, [#allocation17]
        $region80: #{et_decoder_block.6} parent=11 // pred_fallthru
          _
        // Predicated region
        $region81: #{et_decoder_block.6} parent=11 // pred_check
          %p662 = pneg %p438
        $region82: #{et_decoder_block.6} parent=11 // pred_check_branch
          %664 = sbr.rel (%p662) target = $region84
        $region83: #{et_decoder_block.6} parent=11 // pred_region
          %666 = vsyncadd [#allocation17], 0
          %s668 = sshll.u32 %s18, 4
          %s669 = int_to_ptr.hbm [resolvable:$true] %s668
          %s670 = sshll.u32 [#allocation18], 4
          %s671 = int_to_ptr.vmem [resolvable:$true] %s670
          %673 = dma.hbm_to_vmem [thread:$0]  %s669, 16, %s671, [#allocation17]
        $region84: #{et_decoder_block.6} parent=11 // pred_fallthru
          _
        // Predicated region
        $region85: #{et_decoder_block.6} parent=11 // pred_check
          %p674 = pneg %p459
        $region86: #{et_decoder_block.6} parent=11 // pred_check_branch
          %676 = sbr.rel (%p674) target = $region88
        $region87: #{et_decoder_block.6} parent=11 // pred_region
          %678 = vsyncadd [#allocation20], 0
          %s679 = sshll.u32 %s19, 4
          %s680 = int_to_ptr.hbm [resolvable:$true] %s679
          %s681 = sshll.u32 [#allocation19], 4
          %s682 = int_to_ptr.vmem [resolvable:$true] %s681
          %687 = dma.hbm_to_vmem [thread:$0]  %s680, 512, %s682, [#allocation20], 128, 128, 8
        $region88: #{et_decoder_block.6} parent=11 // pred_fallthru
          _
        // Predicated region
        $region89: #{et_decoder_block.6} parent=11 // pred_check
          %p688 = pneg %p480
        $region90: #{et_decoder_block.6} parent=11 // pred_check_branch
          %690 = sbr.rel (%p688) target = $region92
        $region91: #{et_decoder_block.6} parent=11 // pred_region
          %692 = vsyncadd [#allocation20], 0
          %s694 = sshll.u32 %s20, 4
          %s695 = int_to_ptr.hbm [resolvable:$true] %s694
          %s696 = sshll.u32 [#allocation21], 4
          %s697 = int_to_ptr.vmem [resolvable:$true] %s696
          %699 = dma.hbm_to_vmem [thread:$0]  %s695, 16, %s697, [#allocation20]
        $region92: #{et_decoder_block.6} parent=11 // pred_fallthru
          _
      $region12: #{et_decoder_block.6} parent=5 // pred_fallthru
        _
      %p700 = scmp.lt.s32.totalorder %s34, 2
      // Predicated region
      $region93: #{et_decoder_block.6} parent=5 // pred_check
        %p701 = pneg %p700
      $region94: #{et_decoder_block.6} parent=5 // pred_check_branch
        %703 = sbr.rel (%p701) target = $region96
      $region95: #{et_decoder_block.6} parent=5 // pred_region
        // Predicated region
        $region97: #{et_decoder_block.6} parent=95 // pred_check
          %p704 = pneg %p54
        $region98: #{et_decoder_block.6} parent=95 // pred_check_branch
          %706 = sbr.rel (%p704) target = $region100
        $region99: #{et_decoder_block.6} parent=95 // pred_region
          %p707 = scmp.lt.s32.totalorder %s34, 1
          %s708 = scalar_select %p707, %s34, 1
          %s709 = smul.addr %s708, 8
          %s710 = scalar_lea.vmem %s0, %s709
        $region100: #{et_decoder_block.6} parent=95 // pred_fallthru
          _
      $region96: #{et_decoder_block.6} parent=5 // pred_fallthru
        _
      %p711 = scmp.le.s32.totalorder 1, %s34
      %p712 = scmp.lt.s32.totalorder %s34, 3
      %p713 = pnand %p711, %p712
      %p714 = pneg %p713
      // Predicated region
      $region101: #{et_decoder_block.6} parent=5 // pred_check
        _
      $region102: #{et_decoder_block.6} parent=5 // pred_check_branch
        %716 = sbr.rel (%p713) target = $region104
      $region103: #{et_decoder_block.6} parent=5 // pred_region
        %s717 = ssub.s32 %s34, 1
        // Predicated region
        $region105: #{et_decoder_block.6} parent=103 // pred_check
          %p718 = pneg %p81
        $region106: #{et_decoder_block.6} parent=103 // pred_check_branch
          %720 = sbr.rel (%p718) target = $region108
        $region107: #{et_decoder_block.6} parent=103 // pred_region
          %722 = dma.done [#allocation3], 16
        $region108: #{et_decoder_block.6} parent=103 // pred_fallthru
          _
        // Predicated region
        $region109: #{et_decoder_block.6} parent=103 // pred_check
          %p723 = pneg %p102
        $region110: #{et_decoder_block.6} parent=103 // pred_check_branch
          %725 = sbr.rel (%p723) target = $region112
        $region111: #{et_decoder_block.6} parent=103 // pred_region
          %727 = dma.done [#allocation5], 16
        $region112: #{et_decoder_block.6} parent=103 // pred_fallthru
          _
        // Predicated region
        $region113: #{et_decoder_block.6} parent=103 // pred_check
          %p728 = pneg %p144
        $region114: #{et_decoder_block.6} parent=103 // pred_check_branch
          %730 = sbr.rel (%p728) target = $region116
        $region115: #{et_decoder_block.6} parent=103 // pred_region
          %732 = dma.done [#allocation5], 16
        $region116: #{et_decoder_block.6} parent=103 // pred_fallthru
          _
        // Predicated region
        $region117: #{et_decoder_block.6} parent=103 // pred_check
          %p733 = pneg %p186
        $region118: #{et_decoder_block.6} parent=103 // pred_check_branch
          %735 = sbr.rel (%p733) target = $region120
        $region119: #{et_decoder_block.6} parent=103 // pred_region
          %737 = dma.done [#allocation8], 16
        $region120: #{et_decoder_block.6} parent=103 // pred_fallthru
          _
        // Predicated region
        $region121: #{et_decoder_block.6} parent=103 // pred_check
          %p738 = pneg %p228
        $region122: #{et_decoder_block.6} parent=103 // pred_check_branch
          %740 = sbr.rel (%p738) target = $region124
        $region123: #{et_decoder_block.6} parent=103 // pred_region
          %742 = dma.done [#allocation8], 16
        $region124: #{et_decoder_block.6} parent=103 // pred_fallthru
          _
        // Predicated region
        $region125: #{et_decoder_block.6} parent=103 // pred_check
          %p743 = pneg %p270
        $region126: #{et_decoder_block.6} parent=103 // pred_check_branch
          %745 = sbr.rel (%p743) target = $region128
        $region127: #{et_decoder_block.6} parent=103 // pred_region
          %747 = dma.done [#allocation11], 16
        $region128: #{et_decoder_block.6} parent=103 // pred_fallthru
          _
        // Predicated region
        $region129: #{et_decoder_block.6} parent=103 // pred_check
          %p748 = pneg %p312
        $region130: #{et_decoder_block.6} parent=103 // pred_check_branch
          %750 = sbr.rel (%p748) target = $region132
        $region131: #{et_decoder_block.6} parent=103 // pred_region
          %752 = dma.done [#allocation11], 16
        $region132: #{et_decoder_block.6} parent=103 // pred_fallthru
          _
        // Predicated region
        $region133: #{et_decoder_block.6} parent=103 // pred_check
          %p753 = pneg %p354
        $region134: #{et_decoder_block.6} parent=103 // pred_check_branch
          %755 = sbr.rel (%p753) target = $region136
        $region135: #{et_decoder_block.6} parent=103 // pred_region
          %757 = dma.done [#allocation14], 16
        $region136: #{et_decoder_block.6} parent=103 // pred_fallthru
          _
        // Predicated region
        $region137: #{et_decoder_block.6} parent=103 // pred_check
          %p758 = pneg %p396
        $region138: #{et_decoder_block.6} parent=103 // pred_check_branch
          %760 = sbr.rel (%p758) target = $region140
        $region139: #{et_decoder_block.6} parent=103 // pred_region
          %762 = dma.done [#allocation14], 16
        $region140: #{et_decoder_block.6} parent=103 // pred_fallthru
          _
        // Predicated region
        $region141: #{et_decoder_block.6} parent=103 // pred_check
          %p763 = pneg %p417
        $region142: #{et_decoder_block.6} parent=103 // pred_check_branch
          %765 = sbr.rel (%p763) target = $region144
        $region143: #{et_decoder_block.6} parent=103 // pred_region
          %767 = dma.done [#allocation17], 128
        $region144: #{et_decoder_block.6} parent=103 // pred_fallthru
          _
        // Predicated region
        $region145: #{et_decoder_block.6} parent=103 // pred_check
          %p768 = pneg %p438
        $region146: #{et_decoder_block.6} parent=103 // pred_check_branch
          %770 = sbr.rel (%p768) target = $region148
        $region147: #{et_decoder_block.6} parent=103 // pred_region
          %772 = dma.done [#allocation17], 16
        $region148: #{et_decoder_block.6} parent=103 // pred_fallthru
          _
        // Predicated region
        $region149: #{et_decoder_block.6} parent=103 // pred_check
          %p773 = pneg %p459
        $region150: #{et_decoder_block.6} parent=103 // pred_check_branch
          %775 = sbr.rel (%p773) target = $region152
        $region151: #{et_decoder_block.6} parent=103 // pred_region
          %777 = dma.done [#allocation20], 512
        $region152: #{et_decoder_block.6} parent=103 // pred_fallthru
          _
        // Predicated region
        $region153: #{et_decoder_block.6} parent=103 // pred_check
          %p778 = pneg %p480
        $region154: #{et_decoder_block.6} parent=103 // pred_check_branch
          %780 = sbr.rel (%p778) target = $region156
        $region155: #{et_decoder_block.6} parent=103 // pred_region
          %782 = dma.done [#allocation20], 16
        $region156: #{et_decoder_block.6} parent=103 // pred_fallthru
          _
        %p783 = scmp.lt.s32.totalorder %s39, 1
        %s784 = scalar_select %p783, %s39, 1
        %s785 = smul.addr %s784, 8
        %s786 = scalar_lea.vmem %s0, %s785
        %p787 = pneg %p60
        %p788 = pneg %p57
        %p789 = pneg %p81
        %p790 = pneg %p78
        %p791 = pneg %p102
        %p792 = pneg %p99
        %p793 = pneg %p123
        %p794 = pneg %p120
        %p795 = pneg %p144
        %p796 = pneg %p141
        %p797 = pneg %p165
        %p798 = pneg %p162
        %p799 = pneg %p186
        %p800 = pneg %p183
        %p801 = pneg %p207
        %p802 = pneg %p204
        %p803 = pneg %p228
        %p804 = pneg %p225
        %p805 = pneg %p249
        %p806 = pneg %p246
        %p807 = pneg %p270
        %p808 = pneg %p267
        %p809 = pneg %p291
        %p810 = pneg %p288
        %p811 = pneg %p312
        %p812 = pneg %p309
        %p813 = pneg %p333
        %p814 = pneg %p330
        %p815 = pneg %p354
        %p816 = pneg %p351
        %p817 = pneg %p375
        %p818 = pneg %p372
        %p819 = pneg %p396
        %p820 = pneg %p393
        %p821 = pneg %p417
        %p822 = pneg %p414
        %p823 = pneg %p438
        %p824 = pneg %p435
        %p825 = pneg %p459
        %p826 = pneg %p456
        %p827 = pneg %p480
        %p828 = pneg %p477
        %p829 = pneg %p506
        %p830 = pneg %p503
        %p831 = scmp.lt.s32.totalorder %s39, 1
        %s832 = scalar_select %p831, %s39, 1
        %s833 = smul.addr %s832, 8
        %s834 = scalar_lea.vmem %s21, %s833
        %p835 = scmp.lt.s32.totalorder %s39, 1
        %s836 = scalar_select %p835, %s39, 1
        %s837 = smul.addr %s836, 8
        %s838 = scalar_lea.vmem %s0, %s837
        %p839 = scmp.lt.s32.totalorder %s39, 1
        %s840 = scalar_select %p839, %s39, 1
        %s841 = smul.addr %s840, 8
        %s842 = scalar_lea.vmem %s21, %s841
        %v844 = vld [vmem:[%s838] sm:$0xff]
        %v845 = vld [vmem:[#allocation2] sm:$0x1]
        %v846 = vmul.f32 %v844, %v844
        %vm847 = vcmask 261120
        %v848 = vsel %vm847, %v846, 0.0
        %849 = vadd.xlane.f32.xlu0 %v848
        %v850 = vpop.xlane.xlu0 %849
        %v851 = vrcp.pop 32.0
        %v852 = vmul.f32 32.0, %v851
        %v853 = vsub.f32 1.0, %v852
        %v854 = vmul.f32 %v851, %v853
        %v855 = vadd.f32 %v851, %v854
        %vm856 = vweird.f32 %v851
        %v857 = vsel %vm856, %v851, %v855
        %v858 = vmul.f32 %v850, %v857
        %v859 = vrsqrt.pop %v858
        %v860 = vmul.f32 %v859, %v858
        %v861 = vmul.f32 %v860, %v859
        %v862 = vmul.f32 0.5, %v861
        %v863 = vsub.f32 1.5, %v862
        %v864 = vmul.f32 %v859, %v863
        %v865 = vmul.f32 %v858, %v864
        %vm866 = vcmp.eq.f32.partialorder %v858, inf
        %v867 = vsel %vm866, %v858, %v865
        %vm868 = vcmp.eq.f32.partialorder %v858, 0.0
        %v869 = vand.u32 %v858, 2147483648
        %v870 = vsel %vm868, %v869, %v867
        %v871 = vmax.f32 %v870, 1e-08
        %v872 = vrcp.pop %v871
        %v873 = vmul.f32 %v871, %v872
        %v874 = vsub.f32 1.0, %v873
        %v875 = vmul.f32 %v872, %v874
        %v876 = vadd.f32 %v872, %v875
        %vm877 = vweird.f32 %v871
        %vm878 = vweird.f32 %v872
        %vm879 = vmor %vm877, %vm878
        %v880 = vsel %vm879, %v872, %v876
        %v881 = vand.u32 2147483647, %v871
        %vm882 = vcmp.eq.f32.partialorder %v881, 8.507059e+37
        %v883 = vand.u32 %v871, 2147483648
        %v884 = vor.u32 1.1754944e-38, %v883
        %v885 = vsel %vm882, %v884, %v880
        %v886 = vmul.f32 %v844, %v885
        %v888 = vperm.slane %v845, 0
        %v890 = vmul.f32 %v886, %v888
        %v891 = vld [vmem:[%s3] sm:$0xff]
        %v892 = vld [vmem:[%s3 + $0x8] sm:$0xff]
        %v893 = vld [vmem:[%s3 + $0x10] sm:$0xff]
        %v894 = vld [vmem:[%s3 + $0x18] sm:$0xff]
        %v895 = vld [vmem:[#allocation6] sm:$0x1]
        %v896 = vld [vmem:[%s5] sm:$0xff]
        %v897 = vld [vmem:[%s5 + $0x8] sm:$0x7]
        %v898 = vld [vmem:[#allocation7] sm:$0x1]
        %v899 = vld [vmem:[%s7] sm:$0xff]
        %v900 = vld [vmem:[%s7 + $0x8] sm:$0xff]
        %v901 = vld [vmem:[%s7 + $0x10] sm:$0xff]
        %v902 = vld [vmem:[%s7 + $0x18] sm:$0xff]
        %v903 = vld [vmem:[%s7 + $0x20] sm:$0xff]
        %v904 = vld [vmem:[%s7 + $0x28] sm:$0xff]
        %v905 = vld [vmem:[%s7 + $0x30] sm:$0xff]
        %v906 = vld [vmem:[%s7 + $0x38] sm:$0xff]
        %v907 = vld [vmem:[#allocation9] sm:$0x1]
        %v908 = vpack.c.bf16 %v890, %v890
        %v909 = vpack.c.bf16 %v892, %v891
        %v910 = vpack.c.bf16 %v894, %v893
        %v912 = vperm.slane %v895, 0
        %v915 = vsel %vm847, %v908, 0
        %917 = vmatpush.bf16.msra.mxu0 0
        %918 = vmatpush.bf16.msra.mxu0 0
        %919 = vmatpush.bf16.msra.mxu0 0
        %920 = vmatpush.bf16.msra.mxu0 0
        %921 = vmatpush.bf16.msra.mxu0 0
        %922 = vmatpush.bf16.msra.mxu0 0
        %923 = vmatpush.bf16.msra.mxu0 %v910
        %924 = vmatpush.bf16.msra.mxu0 %v909
        %925 = vmatmul.bf16.gmra.mxu0 %v915
        %v926 = vpop.f32.mrf.mxu0
        %v927 = vadd.f32 %v912, %v926
        %v928 = vpop.f32.mrf.mxu0
        %929 = vdwg.mxu0
        %v930 = vlaneseq
        %v931 = vshrl.u32 %v930, 7
        %v933 = vperm.slane %v898, 0
        %v935 = vadd.f32 %v933, 0.0
        %v936 = vperm.slane %v897, 2
        %v937 = vmul.f32 %v927, %v936
        %v938 = vadd.f32 %v935, %v937
        %vm939 = vcmp.ge.s32.totalorder %v931, 1
        %v940 = vrot.slane %v927, 7
        %v941 = vsel %vm939, %v940, 0.0
        %v942 = vperm.slane %v897, 1
        %v943 = vmul.f32 %v941, %v942
        %v944 = vadd.f32 %v938, %v943
        %vm945 = vcmp.ge.s32.totalorder %v931, 2
        %v946 = vrot.slane %v927, 6
        %v947 = vsel %vm945, %v946, 0.0
        %v948 = vperm.slane %v897, 0
        %v949 = vmul.f32 %v947, %v948
        %v950 = vadd.f32 %v944, %v949
        %vm951 = vcmp.ge.s32.totalorder %v931, 3
        %v952 = vrot.slane %v927, 5
        %v953 = vsel %vm951, %v952, 0.0
        %v954 = vperm.slane %v896, 7
        %v955 = vmul.f32 %v953, %v954
        %v956 = vadd.f32 %v950, %v955
        %vm957 = vcmp.ge.s32.totalorder %v931, 4
        %v958 = vrot.slane %v927, 4
        %v959 = vsel %vm957, %v958, 0.0
        %v960 = vperm.slane %v896, 6
        %v961 = vmul.f32 %v959, %v960
        %v962 = vadd.f32 %v956, %v961
        %vm963 = vcmp.ge.s32.totalorder %v931, 5
        %v964 = vrot.slane %v927, 3
        %v965 = vsel %vm963, %v964, 0.0
        %v966 = vperm.slane %v896, 5
        %v967 = vmul.f32 %v965, %v966
        %v968 = vadd.f32 %v962, %v967
        %vm969 = vcmp.ge.s32.totalorder %v931, 6
        %v970 = vrot.slane %v927, 2
        %v971 = vsel %vm969, %v970, 0.0
        %v972 = vperm.slane %v896, 4
        %v973 = vmul.f32 %v971, %v972
        %v974 = vadd.f32 %v968, %v973
        %vm975 = vcmp.ge.s32.totalorder %v931, 7
        %v976 = vrot.slane %v927, 1
        %v977 = vsel %vm975, %v976, 0.0
        %v978 = vperm.slane %v896, 3
        %v979 = vmul.f32 %v977, %v978
        %v980 = vadd.f32 %v974, %v979
        %v981 = vpack.c.bf16 %v980, %v980
        %v982 = vpack.c.bf16 %v900, %v899
        %v983 = vpack.c.bf16 %v902, %v901
        %v984 = vpack.c.bf16 %v904, %v903
        %v985 = vpack.c.bf16 %v906, %v905
        %v987 = vperm.slane %v907, 0
        %vm989 = vcmask 523264
        %v991 = vsel %vm989, %v981, 0
        %993 = vmatpush.bf16.msra.mxu0 0
        %994 = vmatpush.bf16.msra.mxu0 0
        %995 = vmatpush.bf16.msra.mxu0 0
        %996 = vmatpush.bf16.msra.mxu0 0
        %997 = vmatpush.bf16.msra.mxu0 %v985
        %998 = vmatpush.bf16.msra.mxu0 %v984
        %999 = vmatpush.bf16.msra.mxu0 %v983
        %1000 = vmatpush.bf16.msra.mxu0 %v982
        %1001 = vmatmul.bf16.gmra.mxu0 %v991
        %v1002 = vpop.f32.mrf.mxu0
        %v1003 = vadd.f32 %v987, %v1002
        %v1004 = vpop.f32.mrf.mxu0
        %1005 = vdwg.mxu0
        %v1006 = vmax.f32 %v1003, 0.0
        %v1007 = vld [vmem:[%s9] sm:$0xff]
        %v1008 = vld [vmem:[%s9 + $0x8] sm:$0xff]
        %v1009 = vld [vmem:[%s9 + $0x10] sm:$0xff]
        %v1010 = vld [vmem:[%s9 + $0x18] sm:$0xff]
        %v1011 = vld [vmem:[#allocation10] sm:$0x1]
        %v1012 = vld [vmem:[%s11] sm:$0x7f]
        %v1013 = vld [vmem:[#allocation12] sm:$0x1]
        %v1014 = vld [vmem:[%s13] sm:$0xff]
        %v1015 = vld [vmem:[%s13 + $0x8] sm:$0xff]
        %v1016 = vld [vmem:[#allocation13] sm:$0x1]
        %v1017 = vpack.c.bf16 %v1008, %v1007
        %v1018 = vpack.c.bf16 %v1010, %v1009
        %v1020 = vperm.slane %v1011, 0
        %1022 = vmatpush.bf16.msra.mxu0 0
        %1023 = vmatpush.bf16.msra.mxu0 0
        %1024 = vmatpush.bf16.msra.mxu0 0
        %1025 = vmatpush.bf16.msra.mxu0 0
        %1026 = vmatpush.bf16.msra.mxu0 0
        %1027 = vmatpush.bf16.msra.mxu0 0
        %1028 = vmatpush.bf16.msra.mxu0 %v1018
        %1029 = vmatpush.bf16.msra.mxu0 %v1017
        %1030 = vmatmul.bf16.gmra.mxu0 %v915
        %v1031 = vpop.f32.mrf.mxu0
        %v1032 = vadd.f32 %v1020, %v1031
        %v1033 = vpop.f32.mrf.mxu0
        %1034 = vdwg.mxu0
        %v1036 = vperm.slane %v1013, 0
        %v1038 = vadd.f32 %v1036, 0.0
        %v1039 = vperm.slane %v1012, 6
        %v1040 = vmul.f32 %v1032, %v1039
        %v1041 = vadd.f32 %v1038, %v1040
        %v1042 = vrot.slane %v1032, 7
        %v1043 = vsel %vm939, %v1042, 0.0
        %v1044 = vperm.slane %v1012, 5
        %v1045 = vmul.f32 %v1043, %v1044
        %v1046 = vadd.f32 %v1041, %v1045
        %v1047 = vrot.slane %v1032, 6
        %v1048 = vsel %vm945, %v1047, 0.0
        %v1049 = vperm.slane %v1012, 4
        %v1050 = vmul.f32 %v1048, %v1049
        %v1051 = vadd.f32 %v1046, %v1050
        %v1052 = vrot.slane %v1032, 5
        %v1053 = vsel %vm951, %v1052, 0.0
        %v1054 = vperm.slane %v1012, 3
        %v1055 = vmul.f32 %v1053, %v1054
        %v1056 = vadd.f32 %v1051, %v1055
        %v1057 = vrot.slane %v1032, 4
        %v1058 = vsel %vm957, %v1057, 0.0
        %v1059 = vperm.slane %v1012, 2
        %v1060 = vmul.f32 %v1058, %v1059
        %v1061 = vadd.f32 %v1056, %v1060
        %v1062 = vrot.slane %v1032, 3
        %v1063 = vsel %vm963, %v1062, 0.0
        %v1064 = vperm.slane %v1012, 1
        %v1065 = vmul.f32 %v1063, %v1064
        %v1066 = vadd.f32 %v1061, %v1065
        %v1067 = vrot.slane %v1032, 2
        %v1068 = vsel %vm969, %v1067, 0.0
        %v1069 = vperm.slane %v1012, 0
        %v1070 = vmul.f32 %v1068, %v1069
        %v1071 = vadd.f32 %v1066, %v1070
        %v1072 = vpack.c.bf16 %v1071, %v1071
        %v1073 = vpack.c.bf16 %v1015, %v1014
        %v1075 = vperm.slane %v1016, 0
        %vm1077 = vcmask 130048
        %v1079 = vsel %vm1077, %v1072, 0
        %1081 = vmatpush.bf16.msra.mxu0 0
        %1082 = vmatpush.bf16.msra.mxu0 0
        %1083 = vmatpush.bf16.msra.mxu0 0
        %1084 = vmatpush.bf16.msra.mxu0 0
        %1085 = vmatpush.bf16.msra.mxu0 0
        %1086 = vmatpush.bf16.msra.mxu0 0
        %1087 = vmatpush.bf16.msra.mxu0 0
        %1088 = vmatpush.bf16.msra.mxu0 %v1073
        %1089 = vmatmul.bf16.gmra.mxu0 %v1079
        %v1090 = vpop.f32.mrf.mxu0
        %v1091 = vadd.f32 %v1075, %v1090
        %v1092 = vpop.f32.mrf.mxu0
        %1093 = vdwg.mxu0
        %v1094 = vadd.f32 %v1006, %v1091
        %v1095 = vld [vmem:[#allocation4] sm:$0x1]
        %v1096 = vmul.f32 %v1094, %v1094
        %v1097 = vsel %vm847, %v1096, 0.0
        %1098 = vadd.xlane.f32.xlu0 %v1097
        %v1099 = vpop.xlane.xlu0 %1098
        %v1100 = vmul.f32 %v1099, %v857
        %v1101 = vrsqrt.pop %v1100
        %v1102 = vmul.f32 %v1101, %v1100
        %v1103 = vmul.f32 %v1102, %v1101
        %v1104 = vmul.f32 0.5, %v1103
        %v1105 = vsub.f32 1.5, %v1104
        %v1106 = vmul.f32 %v1101, %v1105
        %v1107 = vmul.f32 %v1100, %v1106
        %vm1108 = vcmp.eq.f32.partialorder %v1100, inf
        %v1109 = vsel %vm1108, %v1100, %v1107
        %vm1110 = vcmp.eq.f32.partialorder %v1100, 0.0
        %v1111 = vand.u32 %v1100, 2147483648
        %v1112 = vsel %vm1110, %v1111, %v1109
        %v1113 = vmax.f32 %v1112, 1e-08
        %v1114 = vrcp.pop %v1113
        %v1115 = vmul.f32 %v1113, %v1114
        %v1116 = vsub.f32 1.0, %v1115
        %v1117 = vmul.f32 %v1114, %v1116
        %v1118 = vadd.f32 %v1114, %v1117
        %vm1119 = vweird.f32 %v1113
        %vm1120 = vweird.f32 %v1114
        %vm1121 = vmor %vm1119, %vm1120
        %v1122 = vsel %vm1121, %v1114, %v1118
        %v1123 = vand.u32 2147483647, %v1113
        %vm1124 = vcmp.eq.f32.partialorder %v1123, 8.507059e+37
        %v1125 = vand.u32 %v1113, 2147483648
        %v1126 = vor.u32 1.1754944e-38, %v1125
        %v1127 = vsel %vm1124, %v1126, %v1122
        %v1128 = vmul.f32 %v1094, %v1127
        %v1130 = vperm.slane %v1095, 0
        %v1132 = vmul.f32 %v1128, %v1130
        %v1133 = vld [vmem:[%s15] sm:$0xff]
        %v1134 = vld [vmem:[%s15 + $0x8] sm:$0xff]
        %v1135 = vld [vmem:[%s15 + $0x10] sm:$0xff]
        %v1136 = vld [vmem:[%s15 + $0x18] sm:$0xff]
        %v1137 = vld [vmem:[#allocation15] sm:$0x1]
        %v1138 = vld [vmem:[#allocation16] sm:$0x7f]
        %v1139 = vld [vmem:[#allocation18] sm:$0x1]
        %v1140 = vld [vmem:[#allocation19] sm:$0xff]
        %v1141 = vld [vmem:[#allocation19 + $0x8] sm:$0xff]
        %v1142 = vld [vmem:[#allocation19 + $0x10] sm:$0xff]
        %v1143 = vld [vmem:[#allocation19 + $0x18] sm:$0xff]
        %v1144 = vld [vmem:[#allocation21] sm:$0x1]
        %v1145 = vpack.c.bf16 %v1132, %v1132
        %v1146 = vpack.c.bf16 %v1134, %v1133
        %v1147 = vpack.c.bf16 %v1136, %v1135
        %v1149 = vperm.slane %v1137, 0
        %v1152 = vsel %vm847, %v1145, 0
        %1154 = vmatpush.bf16.msra.mxu0 0
        %1155 = vmatpush.bf16.msra.mxu0 0
        %1156 = vmatpush.bf16.msra.mxu0 0
        %1157 = vmatpush.bf16.msra.mxu0 0
        %1158 = vmatpush.bf16.msra.mxu0 0
        %1159 = vmatpush.bf16.msra.mxu0 0
        %1160 = vmatpush.bf16.msra.mxu0 %v1147
        %1161 = vmatpush.bf16.msra.mxu0 %v1146
        %1162 = vmatmul.bf16.gmra.mxu0 %v1152
        %v1163 = vpop.f32.mrf.mxu0
        %v1164 = vadd.f32 %v1149, %v1163
        %v1165 = vpop.f32.mrf.mxu0
        %1166 = vdwg.mxu0
        %v1168 = vperm.slane %v1139, 0
        %v1170 = vadd.f32 %v1168, 0.0
        %v1171 = vperm.slane %v1138, 6
        %v1172 = vmul.f32 %v1164, %v1171
        %v1173 = vadd.f32 %v1170, %v1172
        %v1174 = vrot.slane %v1164, 7
        %v1175 = vsel %vm939, %v1174, 0.0
        %v1176 = vperm.slane %v1138, 5
        %v1177 = vmul.f32 %v1175, %v1176
        %v1178 = vadd.f32 %v1173, %v1177
        %v1179 = vrot.slane %v1164, 6
        %v1180 = vsel %vm945, %v1179, 0.0
        %v1181 = vperm.slane %v1138, 4
        %v1182 = vmul.f32 %v1180, %v1181
        %v1183 = vadd.f32 %v1178, %v1182
        %v1184 = vrot.slane %v1164, 5
        %v1185 = vsel %vm951, %v1184, 0.0
        %v1186 = vperm.slane %v1138, 3
        %v1187 = vmul.f32 %v1185, %v1186
        %v1188 = vadd.f32 %v1183, %v1187
        %v1189 = vrot.slane %v1164, 4
        %v1190 = vsel %vm957, %v1189, 0.0
        %v1191 = vperm.slane %v1138, 2
        %v1192 = vmul.f32 %v1190, %v1191
        %v1193 = vadd.f32 %v1188, %v1192
        %v1194 = vrot.slane %v1164, 3
        %v1195 = vsel %vm963, %v1194, 0.0
        %v1196 = vperm.slane %v1138, 1
        %v1197 = vmul.f32 %v1195, %v1196
        %v1198 = vadd.f32 %v1193, %v1197
        %v1199 = vrot.slane %v1164, 2
        %v1200 = vsel %vm969, %v1199, 0.0
        %v1201 = vperm.slane %v1138, 0
        %v1202 = vmul.f32 %v1200, %v1201
        %v1203 = vadd.f32 %v1198, %v1202
        %v1204 = vpack.c.bf16 %v1203, %v1203
        %v1205 = vpack.c.bf16 %v1141, %v1140
        %v1206 = vpack.c.bf16 %v1143, %v1142
        %v1208 = vperm.slane %v1144, 0
        %v1211 = vsel %vm847, %v1204, 0
        %1213 = vmatpush.bf16.msra.mxu0 0
        %1214 = vmatpush.bf16.msra.mxu0 0
        %1215 = vmatpush.bf16.msra.mxu0 0
        %1216 = vmatpush.bf16.msra.mxu0 0
        %1217 = vmatpush.bf16.msra.mxu0 0
        %1218 = vmatpush.bf16.msra.mxu0 0
        %1219 = vmatpush.bf16.msra.mxu0 %v1206
        %1220 = vmatpush.bf16.msra.mxu0 %v1205
        %1221 = vmatmul.bf16.gmra.mxu0 %v1211
        %v1222 = vpop.f32.mrf.mxu0
        %v1223 = vadd.f32 %v1208, %v1222
        %v1224 = vpop.f32.mrf.mxu0
        %1225 = vdwg.mxu0
        %v1226 = vadd.f32 %v1223, %v844
        %1227 = vst.msk [vmem:[%s842] sm:$0xff] %vm847, %v1226
        %p1228 = scmp.lt.s32.totalorder %s39, 1
        %s1229 = scalar_select %p1228, %s39, 1
        %s1230 = smul.addr %s1229, 8
        %s1231 = scalar_lea.vmem %s21, %s1230
        // Predicated region
        $region157: #{et_decoder_block.6} parent=103 // pred_check
          %p1232 = pneg %p503
        $region158: #{et_decoder_block.6} parent=103 // pred_check_branch
          %1234 = sbr.rel (%p1232) target = $region160
        $region159: #{et_decoder_block.6} parent=103 // pred_region
          _
        $region160: #{et_decoder_block.6} parent=103 // pred_fallthru
          _
      $region104: #{et_decoder_block.6} parent=5 // pred_fallthru
        _
      %p1235 = scmp.le.s32.totalorder 2, %s34
      // Predicated region
      $region161: #{et_decoder_block.6} parent=5 // pred_check
        %p1236 = pneg %p1235
      $region162: #{et_decoder_block.6} parent=5 // pred_check_branch
        %1238 = sbr.rel (%p1236) target = $region164
      $region163: #{et_decoder_block.6} parent=5 // pred_region
        %s1239 = ssub.s32 %s34, 2
        // Predicated region
        $region165: #{et_decoder_block.6} parent=163 // pred_check
          %p1240 = pneg %p509
        $region166: #{et_decoder_block.6} parent=163 // pred_check_branch
          %1242 = sbr.rel (%p1240) target = $region168
        $region167: #{et_decoder_block.6} parent=163 // pred_region
          %p1243 = scmp.lt.s32.totalorder %s40, 1
          %s1244 = scalar_select %p1243, %s40, 1
          %s1245 = smul.addr %s1244, 8
          %s1246 = scalar_lea.vmem %s21, %s1245
        $region168: #{et_decoder_block.6} parent=163 // pred_fallthru
          _
      $region164: #{et_decoder_block.6} parent=5 // pred_fallthru
        _
    $region6: #{et_decoder_block.6} parent=1 // loop_footer
      %s38 = sadd.s32 1, %s34
    $region7: #{et_decoder_block.6} parent=1 // loop_footer_branch
      %33 = sbr.rel target = $region3
    $region8: #{et_decoder_block.6} parent=1 // loop_exit
      _
    %1247 = vsyncpa [#allocation3], 1
    %s1248 = scalar_lea.sflag [#allocation3], 1
    %1249 = vsyncpa %s1248, 1
    %1250 = vsyncpa [#allocation5], 1
    %1251 = vsyncpa [#allocation8], 1
    %1252 = vsyncpa [#allocation11], 1
    %1253 = vsyncpa [#allocation14], 1
    %1254 = vsyncpa [#allocation17], 1
    %1255 = vsyncpa [#allocation20], 1

// kernel: et_decoder_block.5
$region0: #{et_decoder_block.5}
  #allocation0 [shape = 'u32[]', space=smem, size = 0x4, offset = 0x4, fixed_abs, tag = 'smem constant byte address 0x4 - core index']
  #allocation1 [shape = 'u32[72,128]{1,0:T(1,128)}', space=vmem, size = 0x9000, scoped, tag = 'internal scratch']
  %s0 = inlined_call_operand.hbm [shape: f32[2,8,32], index: 0, kind: input, shape index: {}]
  %s1 = inlined_call_operand.hbm [shape: f32[2,8,32], index: 1, kind: input, shape index: {}]
  %s2 = inlined_call_operand.hbm [shape: f32[1,32], index: 2, kind: input, shape index: {}]
  %s3 = inlined_call_operand.vmem [shape: f32[32,96], index: 3, kind: input, shape index: {}]
  %s4 = inlined_call_operand.hbm [shape: f32[1,96], index: 4, kind: input, shape index: {}]
  %s5 = inlined_call_operand.hbm [shape: f32[32,32], index: 5, kind: input, shape index: {}]
  %s6 = inlined_call_operand.hbm [shape: f32[1,32], index: 6, kind: input, shape index: {}]
  %s7 = inlined_call_operand.hbm [shape: f32[32,32], index: 7, kind: input, shape index: {}]
  %s8 = inlined_call_operand.hbm [shape: f32[1,32], index: 8, kind: input, shape index: {}]
  %s9 = inlined_call_operand.hbm [shape: f32[32,64], index: 9, kind: input, shape index: {}]
  %s10 = inlined_call_operand.hbm [shape: f32[1,64], index: 10, kind: input, shape index: {}]
  %s11 = inlined_call_operand.hbm [shape: f32[32,32], index: 11, kind: input, shape index: {}]
  %s12 = inlined_call_operand.hbm [shape: f32[1,32], index: 12, kind: input, shape index: {}]
  %s13 = inlined_call_operand.vmem [shape: f32[2,8,32], index: 13, kind: output, shape index: {}]
  %s14 = sld [smem:[#allocation0]]
  $region133: #{et_decoder_block.5} parent=0
    _
  %s16 = ssub.s32 1, %s14
  %s17 = scalar_select 0, %s16, %s14
  $region1: #{et_decoder_block.5} parent=0
    #allocation2 [shape = 'u8[8192]{0}', space=vmem, size = 0x2000, scoped, tag = 'input window, operand 0']
    #allocation3 [shape = 's32[2]{0}', space=sflag, size = 0x8, scoped, tag = 'scoped memory for et_decoder_block.5']
    #allocation4 [shape = 'u8[8192]{0}', space=vmem, size = 0x2000, scoped, tag = 'input window, operand 1']
    #allocation5 [shape = 's32[2]{0}', space=sflag, size = 0x8, scoped, tag = 'scoped memory for et_decoder_block.5']
    #allocation6 [shape = 'u8[512]{0}', space=vmem, size = 0x400, scoped, tag = 'input window, operand 2, single buffered']
    #allocation7 [shape = 'u8[512]{0}', space=vmem, size = 0x400, scoped, tag = 'input window, operand 4, single buffered']
    #allocation8 [shape = 's32[1]{0}', space=sflag, size = 0x4, scoped, tag = 'scoped memory for et_decoder_block.5']
    #allocation9 [shape = 'u8[16384]{0}', space=vmem, size = 0x4000, scoped, tag = 'input window, operand 5, single buffered']
    #allocation10 [shape = 'u8[512]{0}', space=vmem, size = 0x400, scoped, tag = 'input window, operand 6, single buffered']
    #allocation11 [shape = 's32[1]{0}', space=sflag, size = 0x4, scoped, tag = 'scoped memory for et_decoder_block.5']
    #allocation12 [shape = 'u8[16384]{0}', space=vmem, size = 0x4000, scoped, tag = 'input window, operand 7, single buffered']
    #allocation13 [shape = 'u8[512]{0}', space=vmem, size = 0x400, scoped, tag = 'input window, operand 8, single buffered']
    #allocation14 [shape = 's32[1]{0}', space=sflag, size = 0x4, scoped, tag = 'scoped memory for et_decoder_block.5']
    #allocation15 [shape = 'u8[16384]{0}', space=vmem, size = 0x4000, scoped, tag = 'input window, operand 9, single buffered']
    #allocation16 [shape = 'u8[512]{0}', space=vmem, size = 0x400, scoped, tag = 'input window, operand 10, single buffered']
    #allocation17 [shape = 's32[1]{0}', space=sflag, size = 0x4, scoped, tag = 'scoped memory for et_decoder_block.5']
    #allocation18 [shape = 'u8[16384]{0}', space=vmem, size = 0x4000, scoped, tag = 'input window, operand 11, single buffered']
    #allocation19 [shape = 'u8[512]{0}', space=vmem, size = 0x400, scoped, tag = 'input window, operand 12, single buffered']
    #allocation20 [shape = 's32[1]{0}', space=sflag, size = 0x4, scoped, tag = 'scoped memory for et_decoder_block.5']
    %18 = vsyncpa [#allocation3], 0
    %s19 = scalar_lea.sflag [#allocation3], 1
    %20 = vsyncpa %s19, 0
    %21 = vsyncpa [#allocation5], 0
    %s22 = scalar_lea.sflag [#allocation5], 1
    %23 = vsyncpa %s22, 0
    %24 = vsyncpa [#allocation8], 0
    %25 = vsyncpa [#allocation11], 0
    %26 = vsyncpa [#allocation14], 0
    %27 = vsyncpa [#allocation17], 0
    %28 = vsyncpa [#allocation20], 0
    loop: start=0, step=1, limit=4
    $region2: #{et_decoder_block.5} parent=1 // loop_pre_header
      _
    $region3: #{et_decoder_block.5} parent=1 // loop_header
      %s30 = sphi 0, %s34
      %p31 = scmp.ge.s32.totalorder %s30, 4
      %s40 = sphi 0, %s42
      %s43 = sphi 0, %s40
      %s44 = sphi 0, %s43
      %s60 = sphi 0, %s44
      %s66 = sphi 0, %s68
      %s69 = sphi 0, %s66
      %s70 = sphi 0, %s69
      %s86 = sphi 0, %s70
      %s90 = sphi 0, %s90
      %s92 = sphi 0, %s90
      %s93 = sphi 0, %s92
      %s107 = sphi 0, %s93
      %s111 = sphi 0, %s111
      %s113 = sphi 0, %s111
      %s114 = sphi 0, %s113
      %s128 = sphi 0, %s114
      %s132 = sphi 0, %s132
      %s134 = sphi 0, %s132
      %s135 = sphi 0, %s134
      %s149 = sphi 0, %s135
      %s153 = sphi 0, %s153
      %s155 = sphi 0, %s153
      %s156 = sphi 0, %s155
      %s170 = sphi 0, %s156
      %s174 = sphi 0, %s174
      %s176 = sphi 0, %s174
      %s177 = sphi 0, %s176
      %s191 = sphi 0, %s177
      %s195 = sphi 0, %s195
      %s197 = sphi 0, %s195
      %s198 = sphi 0, %s197
      %s212 = sphi 0, %s198
      %s216 = sphi 0, %s216
      %s218 = sphi 0, %s216
      %s219 = sphi 0, %s218
      %s233 = sphi 0, %s219
      %s237 = sphi 0, %s237
      %s239 = sphi 0, %s237
      %s240 = sphi 0, %s239
      %s254 = sphi 0, %s240
      %s258 = sphi 0, %s258
      %s260 = sphi 0, %s258
      %s261 = sphi 0, %s260
      %s275 = sphi 0, %s261
      %s279 = sphi 0, %s279
      %s281 = sphi 0, %s279
      %s282 = sphi 0, %s281
      %s296 = sphi 0, %s282
      %s300 = sphi 0, %s300
      %s302 = sphi 0, %s300
      %s303 = sphi 0, %s302
      %s317 = sphi 0, %s303
      %s323 = sphi 0, %s325
      %s326 = sphi 0, %s323
      %s327 = sphi 0, %s326
      %s343 = sphi 0, %s327
    $region4: #{et_decoder_block.5} parent=1 // loop_header_branch
      %33 = sbr.rel (%p31) target = $region8
    $region5: #{et_decoder_block.5} parent=1 // loop_body
      %s35 = ssub.s32 %s30, 1
      %s36 = ssub.s32 %s30, 2
      %s37 = sadd.s32 %s30, 1
      %s38 = ssub.s32 %s30, %s37
      %p39 = scmp.eq.s32.totalorder %s38, 0
      %s41 = sadd.s32 %s40, 1
      %s42 = scalar_select %p39, %s40, %s41
      %p45 = pneg %p39
      %p46 = scmp.eq.s32.totalorder %s30, 1
      %p47 = por %p45, %p46
      %p48 = scmp.ne.s32.totalorder %s40, %s43
      %p49 = scmp.eq.s32.totalorder %s30, 0
      %p50 = por %p48, %p49
      %p51 = scmp.ne.s32.totalorder %s40, %s43
      %p52 = scmp.eq.s32.totalorder %s35, 1
      %p53 = por %p51, %p52
      %p54 = scmp.ne.s32.totalorder %s43, %s44
      %p55 = scmp.eq.s32.totalorder %s35, 0
      %p56 = por %p54, %p55
      %p57 = scmp.ne.s32.totalorder %s43, %s44
      %p58 = scmp.eq.s32.totalorder %s36, 1
      %p59 = por %p57, %p58
      %p61 = scmp.ne.s32.totalorder %s44, %s60
      %p62 = scmp.eq.s32.totalorder %s36, 0
      %p63 = por %p61, %p62
      %s64 = ssub.s32 %s30, %s37
      %p65 = scmp.eq.s32.totalorder %s64, 0
      %s67 = sadd.s32 %s66, 1
      %s68 = scalar_select %p65, %s66, %s67
      %p71 = pneg %p65
      %p72 = scmp.eq.s32.totalorder %s30, 1
      %p73 = por %p71, %p72
      %p74 = scmp.ne.s32.totalorder %s66, %s69
      %p75 = scmp.eq.s32.totalorder %s30, 0
      %p76 = por %p74, %p75
      %p77 = scmp.ne.s32.totalorder %s66, %s69
      %p78 = scmp.eq.s32.totalorder %s35, 1
      %p79 = por %p77, %p78
      %p80 = scmp.ne.s32.totalorder %s69, %s70
      %p81 = scmp.eq.s32.totalorder %s35, 0
      %p82 = por %p80, %p81
      %p83 = scmp.ne.s32.totalorder %s69, %s70
      %p84 = scmp.eq.s32.totalorder %s36, 1
      %p85 = por %p83, %p84
      %p87 = scmp.ne.s32.totalorder %s70, %s86
      %p88 = scmp.eq.s32.totalorder %s36, 0
      %p89 = por %p87, %p88
      %s91 = sadd.s32 %s90, 1
      %p94 = scmp.eq.s32.totalorder %s30, 1
      %p95 = scmp.ne.s32.totalorder %s90, %s92
      %p96 = scmp.eq.s32.totalorder %s30, 0
      %p97 = por %p95, %p96
      %p98 = scmp.ne.s32.totalorder %s90, %s92
      %p99 = scmp.eq.s32.totalorder %s35, 1
      %p100 = por %p98, %p99
      %p101 = scmp.ne.s32.totalorder %s92, %s93
      %p102 = scmp.eq.s32.totalorder %s35, 0
      %p103 = por %p101, %p102
      %p104 = scmp.ne.s32.totalorder %s92, %s93
      %p105 = scmp.eq.s32.totalorder %s36, 1
      %p106 = por %p104, %p105
      %p108 = scmp.ne.s32.totalorder %s93, %s107
      %p109 = scmp.eq.s32.totalorder %s36, 0
      %p110 = por %p108, %p109
      %s112 = sadd.s32 %s111, 1
      %p115 = scmp.eq.s32.totalorder %s30, 1
      %p116 = scmp.ne.s32.totalorder %s111, %s113
      %p117 = scmp.eq.s32.totalorder %s30, 0
      %p118 = por %p116, %p117
      %p119 = scmp.ne.s32.totalorder %s111, %s113
      %p120 = scmp.eq.s32.totalorder %s35, 1
      %p121 = por %p119, %p120
      %p122 = scmp.ne.s32.totalorder %s113, %s114
      %p123 = scmp.eq.s32.totalorder %s35, 0
      %p124 = por %p122, %p123
      %p125 = scmp.ne.s32.totalorder %s113, %s114
      %p126 = scmp.eq.s32.totalorder %s36, 1
      %p127 = por %p125, %p126
      %p129 = scmp.ne.s32.totalorder %s114, %s128
      %p130 = scmp.eq.s32.totalorder %s36, 0
      %p131 = por %p129, %p130
      %s133 = sadd.s32 %s132, 1
      %p136 = scmp.eq.s32.totalorder %s30, 1
      %p137 = scmp.ne.s32.totalorder %s132, %s134
      %p138 = scmp.eq.s32.totalorder %s30, 0
      %p139 = por %p137, %p138
      %p140 = scmp.ne.s32.totalorder %s132, %s134
      %p141 = scmp.eq.s32.totalorder %s35, 1
      %p142 = por %p140, %p141
      %p143 = scmp.ne.s32.totalorder %s134, %s135
      %p144 = scmp.eq.s32.totalorder %s35, 0
      %p145 = por %p143, %p144
      %p146 = scmp.ne.s32.totalorder %s134, %s135
      %p147 = scmp.eq.s32.totalorder %s36, 1
      %p148 = por %p146, %p147
      %p150 = scmp.ne.s32.totalorder %s135, %s149
      %p151 = scmp.eq.s32.totalorder %s36, 0
      %p152 = por %p150, %p151
      %s154 = sadd.s32 %s153, 1
      %p157 = scmp.eq.s32.totalorder %s30, 1
      %p158 = scmp.ne.s32.totalorder %s153, %s155
      %p159 = scmp.eq.s32.totalorder %s30, 0
      %p160 = por %p158, %p159
      %p161 = scmp.ne.s32.totalorder %s153, %s155
      %p162 = scmp.eq.s32.totalorder %s35, 1
      %p163 = por %p161, %p162
      %p164 = scmp.ne.s32.totalorder %s155, %s156
      %p165 = scmp.eq.s32.totalorder %s35, 0
      %p166 = por %p164, %p165
      %p167 = scmp.ne.s32.totalorder %s155, %s156
      %p168 = scmp.eq.s32.totalorder %s36, 1
      %p169 = por %p167, %p168
      %p171 = scmp.ne.s32.totalorder %s156, %s170
      %p172 = scmp.eq.s32.totalorder %s36, 0
      %p173 = por %p171, %p172
      %s175 = sadd.s32 %s174, 1
      %p178 = scmp.eq.s32.totalorder %s30, 1
      %p179 = scmp.ne.s32.totalorder %s174, %s176
      %p180 = scmp.eq.s32.totalorder %s30, 0
      %p181 = por %p179, %p180
      %p182 = scmp.ne.s32.totalorder %s174, %s176
      %p183 = scmp.eq.s32.totalorder %s35, 1
      %p184 = por %p182, %p183
      %p185 = scmp.ne.s32.totalorder %s176, %s177
      %p186 = scmp.eq.s32.totalorder %s35, 0
      %p187 = por %p185, %p186
      %p188 = scmp.ne.s32.totalorder %s176, %s177
      %p189 = scmp.eq.s32.totalorder %s36, 1
      %p190 = por %p188, %p189
      %p192 = scmp.ne.s32.totalorder %s177, %s191
      %p193 = scmp.eq.s32.totalorder %s36, 0
      %p194 = por %p192, %p193
      %s196 = sadd.s32 %s195, 1
      %p199 = scmp.eq.s32.totalorder %s30, 1
      %p200 = scmp.ne.s32.totalorder %s195, %s197
      %p201 = scmp.eq.s32.totalorder %s30, 0
      %p202 = por %p200, %p201
      %p203 = scmp.ne.s32.totalorder %s195, %s197
      %p204 = scmp.eq.s32.totalorder %s35, 1
      %p205 = por %p203, %p204
      %p206 = scmp.ne.s32.totalorder %s197, %s198
      %p207 = scmp.eq.s32.totalorder %s35, 0
      %p208 = por %p206, %p207
      %p209 = scmp.ne.s32.totalorder %s197, %s198
      %p210 = scmp.eq.s32.totalorder %s36, 1
      %p211 = por %p209, %p210
      %p213 = scmp.ne.s32.totalorder %s198, %s212
      %p214 = scmp.eq.s32.totalorder %s36, 0
      %p215 = por %p213, %p214
      %s217 = sadd.s32 %s216, 1
      %p220 = scmp.eq.s32.totalorder %s30, 1
      %p221 = scmp.ne.s32.totalorder %s216, %s218
      %p222 = scmp.eq.s32.totalorder %s30, 0
      %p223 = por %p221, %p222
      %p224 = scmp.ne.s32.totalorder %s216, %s218
      %p225 = scmp.eq.s32.totalorder %s35, 1
      %p226 = por %p224, %p225
      %p227 = scmp.ne.s32.totalorder %s218, %s219
      %p228 = scmp.eq.s32.totalorder %s35, 0
      %p229 = por %p227, %p228
      %p230 = scmp.ne.s32.totalorder %s218, %s219
      %p231 = scmp.eq.s32.totalorder %s36, 1
      %p232 = por %p230, %p231
      %p234 = scmp.ne.s32.totalorder %s219, %s233
      %p235 = scmp.eq.s32.totalorder %s36, 0
      %p236 = por %p234, %p235
      %s238 = sadd.s32 %s237, 1
      %p241 = scmp.eq.s32.totalorder %s30, 1
      %p242 = scmp.ne.s32.totalorder %s237, %s239
      %p243 = scmp.eq.s32.totalorder %s30, 0
      %p244 = por %p242, %p243
      %p245 = scmp.ne.s32.totalorder %s237, %s239
      %p246 = scmp.eq.s32.totalorder %s35, 1
      %p247 = por %p245, %p246
      %p248 = scmp.ne.s32.totalorder %s239, %s240
      %p249 = scmp.eq.s32.totalorder %s35, 0
      %p250 = por %p248, %p249
      %p251 = scmp.ne.s32.totalorder %s239, %s240
      %p252 = scmp.eq.s32.totalorder %s36, 1
      %p253 = por %p251, %p252
      %p255 = scmp.ne.s32.totalorder %s240, %s254
      %p256 = scmp.eq.s32.totalorder %s36, 0
      %p257 = por %p255, %p256
      %s259 = sadd.s32 %s258, 1
      %p262 = scmp.eq.s32.totalorder %s30, 1
      %p263 = scmp.ne.s32.totalorder %s258, %s260
      %p264 = scmp.eq.s32.totalorder %s30, 0
      %p265 = por %p263, %p264
      %p266 = scmp.ne.s32.totalorder %s258, %s260
      %p267 = scmp.eq.s32.totalorder %s35, 1
      %p268 = por %p266, %p267
      %p269 = scmp.ne.s32.totalorder %s260, %s261
      %p270 = scmp.eq.s32.totalorder %s35, 0
      %p271 = por %p269, %p270
      %p272 = scmp.ne.s32.totalorder %s260, %s261
      %p273 = scmp.eq.s32.totalorder %s36, 1
      %p274 = por %p272, %p273
      %p276 = scmp.ne.s32.totalorder %s261, %s275
      %p277 = scmp.eq.s32.totalorder %s36, 0
      %p278 = por %p276, %p277
      %s280 = sadd.s32 %s279, 1
      %p283 = scmp.eq.s32.totalorder %s30, 1
      %p284 = scmp.ne.s32.totalorder %s279, %s281
      %p285 = scmp.eq.s32.totalorder %s30, 0
      %p286 = por %p284, %p285
      %p287 = scmp.ne.s32.totalorder %s279, %s281
      %p288 = scmp.eq.s32.totalorder %s35, 1
      %p289 = por %p287, %p288
      %p290 = scmp.ne.s32.totalorder %s281, %s282
      %p291 = scmp.eq.s32.totalorder %s35, 0
      %p292 = por %p290, %p291
      %p293 = scmp.ne.s32.totalorder %s281, %s282
      %p294 = scmp.eq.s32.totalorder %s36, 1
      %p295 = por %p293, %p294
      %p297 = scmp.ne.s32.totalorder %s282, %s296
      %p298 = scmp.eq.s32.totalorder %s36, 0
      %p299 = por %p297, %p298
      %s301 = sadd.s32 %s300, 1
      %p304 = scmp.eq.s32.totalorder %s30, 1
      %p305 = scmp.ne.s32.totalorder %s300, %s302
      %p306 = scmp.eq.s32.totalorder %s30, 0
      %p307 = por %p305, %p306
      %p308 = scmp.ne.s32.totalorder %s300, %s302
      %p309 = scmp.eq.s32.totalorder %s35, 1
      %p310 = por %p308, %p309
      %p311 = scmp.ne.s32.totalorder %s302, %s303
      %p312 = scmp.eq.s32.totalorder %s35, 0
      %p313 = por %p311, %p312
      %p314 = scmp.ne.s32.totalorder %s302, %s303
      %p315 = scmp.eq.s32.totalorder %s36, 1
      %p316 = por %p314, %p315
      %p318 = scmp.ne.s32.totalorder %s303, %s317
      %p319 = scmp.eq.s32.totalorder %s36, 0
      %p320 = por %p318, %p319
      %s321 = ssub.s32 %s30, %s37
      %p322 = scmp.eq.s32.totalorder %s321, 0
      %s324 = sadd.s32 %s323, 1
      %s325 = scalar_select %p322, %s323, %s324
      %p328 = pneg %p322
      %p329 = scmp.eq.s32.totalorder %s30, 1
      %p330 = por %p328, %p329
      %p331 = scmp.ne.s32.totalorder %s323, %s326
      %p332 = scmp.eq.s32.totalorder %s30, 0
      %p333 = por %p331, %p332
      %p334 = scmp.ne.s32.totalorder %s323, %s326
      %p335 = scmp.eq.s32.totalorder %s35, 1
      %p336 = por %p334, %p335
      %p337 = scmp.ne.s32.totalorder %s326, %s327
      %p338 = scmp.eq.s32.totalorder %s35, 0
      %p339 = por %p337, %p338
      %p340 = scmp.ne.s32.totalorder %s326, %s327
      %p341 = scmp.eq.s32.totalorder %s36, 1
      %p342 = por %p340, %p341
      %p344 = scmp.ne.s32.totalorder %s327, %s343
      %p345 = scmp.eq.s32.totalorder %s36, 0
      %p346 = por %p344, %p345
      %p347 = scmp.le.s32.totalorder 1, %s30
      %p348 = scmp.lt.s32.totalorder %s30, 3
      %p349 = pnand %p347, %p348
      %p350 = pneg %p349
      // Predicated region
      $region9: #{et_decoder_block.5} parent=5 // pred_check
        _
      $region10: #{et_decoder_block.5} parent=5 // pred_check_branch
        %352 = sbr.rel (%p349) target = $region12
      $region11: #{et_decoder_block.5} parent=5 // pred_region
        %s353 = ssub.s32 %s30, 1
        // Predicated region
        $region13: #{et_decoder_block.5} parent=11 // pred_check
          %p354 = pneg %p103
        $region14: #{et_decoder_block.5} parent=11 // pred_check_branch
          %356 = sbr.rel (%p354) target = $region16
        $region15: #{et_decoder_block.5} parent=11 // pred_region
          %358 = vsyncadd [#allocation5], 0
          %s360 = sshll.u32 %s2, 4
          %s361 = int_to_ptr.hbm [resolvable:$true] %s360
          %s362 = sshll.u32 [#allocation6], 4
          %s363 = int_to_ptr.vmem [resolvable:$true] %s362
          %365 = dma.hbm_to_vmem [thread:$0]  %s361, 16, %s363, [#allocation5]
        $region16: #{et_decoder_block.5} parent=11 // pred_fallthru
          _
        // Predicated region
        $region17: #{et_decoder_block.5} parent=11 // pred_check
          %p366 = pneg %p124
        $region18: #{et_decoder_block.5} parent=11 // pred_check_branch
          %368 = sbr.rel (%p366) target = $region20
        $region19: #{et_decoder_block.5} parent=11 // pred_region
          _
        $region20: #{et_decoder_block.5} parent=11 // pred_fallthru
          _
        // Predicated region
        $region21: #{et_decoder_block.5} parent=11 // pred_check
          %p369 = pneg %p145
        $region22: #{et_decoder_block.5} parent=11 // pred_check_branch
          %371 = sbr.rel (%p369) target = $region24
        $region23: #{et_decoder_block.5} parent=11 // pred_region
          %373 = vsyncadd [#allocation8], 0
          %s375 = sshll.u32 %s4, 4
          %s376 = int_to_ptr.hbm [resolvable:$true] %s375
          %s377 = sshll.u32 [#allocation7], 4
          %s378 = int_to_ptr.vmem [resolvable:$true] %s377
          %380 = dma.hbm_to_vmem [thread:$0]  %s376, 16, %s378, [#allocation8]
        $region24: #{et_decoder_block.5} parent=11 // pred_fallthru
          _
        // Predicated region
        $region25: #{et_decoder_block.5} parent=11 // pred_check
          %p381 = pneg %p166
        $region26: #{et_decoder_block.5} parent=11 // pred_check_branch
          %383 = sbr.rel (%p381) target = $region28
        $region27: #{et_decoder_block.5} parent=11 // pred_region
          %385 = vsyncadd [#allocation8], 0
          %s386 = sshll.u32 %s5, 4
          %s387 = int_to_ptr.hbm [resolvable:$true] %s386
          %s388 = sshll.u32 [#allocation9], 4
          %s389 = int_to_ptr.vmem [resolvable:$true] %s388
          %394 = dma.hbm_to_vmem [thread:$0]  %s387, 512, %s389, [#allocation8], 128, 128, 8
        $region28: #{et_decoder_block.5} parent=11 // pred_fallthru
          _
        // Predicated region
        $region29: #{et_decoder_block.5} parent=11 // pred_check
          %p395 = pneg %p187
        $region30: #{et_decoder_block.5} parent=11 // pred_check_branch
          %397 = sbr.rel (%p395) target = $region32
        $region31: #{et_decoder_block.5} parent=11 // pred_region
          %399 = vsyncadd [#allocation11], 0
          %s401 = sshll.u32 %s6, 4
          %s402 = int_to_ptr.hbm [resolvable:$true] %s401
          %s403 = sshll.u32 [#allocation10], 4
          %s404 = int_to_ptr.vmem [resolvable:$true] %s403
          %406 = dma.hbm_to_vmem [thread:$0]  %s402, 16, %s404, [#allocation11]
        $region32: #{et_decoder_block.5} parent=11 // pred_fallthru
          _
        // Predicated region
        $region33: #{et_decoder_block.5} parent=11 // pred_check
          %p407 = pneg %p208
        $region34: #{et_decoder_block.5} parent=11 // pred_check_branch
          %409 = sbr.rel (%p407) target = $region36
        $region35: #{et_decoder_block.5} parent=11 // pred_region
          %411 = vsyncadd [#allocation11], 0
          %s412 = sshll.u32 %s7, 4
          %s413 = int_to_ptr.hbm [resolvable:$true] %s412
          %s414 = sshll.u32 [#allocation12], 4
          %s415 = int_to_ptr.vmem [resolvable:$true] %s414
          %420 = dma.hbm_to_vmem [thread:$0]  %s413, 512, %s415, [#allocation11], 128, 128, 8
        $region36: #{et_decoder_block.5} parent=11 // pred_fallthru
          _
        // Predicated region
        $region37: #{et_decoder_block.5} parent=11 // pred_check
          %p421 = pneg %p229
        $region38: #{et_decoder_block.5} parent=11 // pred_check_branch
          %423 = sbr.rel (%p421) target = $region40
        $region39: #{et_decoder_block.5} parent=11 // pred_region
          %425 = vsyncadd [#allocation14], 0
          %s427 = sshll.u32 %s8, 4
          %s428 = int_to_ptr.hbm [resolvable:$true] %s427
          %s429 = sshll.u32 [#allocation13], 4
          %s430 = int_to_ptr.vmem [resolvable:$true] %s429
          %432 = dma.hbm_to_vmem [thread:$0]  %s428, 16, %s430, [#allocation14]
        $region40: #{et_decoder_block.5} parent=11 // pred_fallthru
          _
        // Predicated region
        $region41: #{et_decoder_block.5} parent=11 // pred_check
          %p433 = pneg %p250
        $region42: #{et_decoder_block.5} parent=11 // pred_check_branch
          %435 = sbr.rel (%p433) target = $region44
        $region43: #{et_decoder_block.5} parent=11 // pred_region
          %437 = vsyncadd [#allocation14], 0
          %s438 = sshll.u32 %s9, 4
          %s439 = int_to_ptr.hbm [resolvable:$true] %s438
          %s440 = sshll.u32 [#allocation15], 4
          %s441 = int_to_ptr.vmem [resolvable:$true] %s440
          %446 = dma.hbm_to_vmem [thread:$0]  %s439, 512, %s441, [#allocation14], 128, 128, 8
        $region44: #{et_decoder_block.5} parent=11 // pred_fallthru
          _
        // Predicated region
        $region45: #{et_decoder_block.5} parent=11 // pred_check
          %p447 = pneg %p271
        $region46: #{et_decoder_block.5} parent=11 // pred_check_branch
          %449 = sbr.rel (%p447) target = $region48
        $region47: #{et_decoder_block.5} parent=11 // pred_region
          %451 = vsyncadd [#allocation17], 0
          %s453 = sshll.u32 %s10, 4
          %s454 = int_to_ptr.hbm [resolvable:$true] %s453
          %s455 = sshll.u32 [#allocation16], 4
          %s456 = int_to_ptr.vmem [resolvable:$true] %s455
          %458 = dma.hbm_to_vmem [thread:$0]  %s454, 16, %s456, [#allocation17]
        $region48: #{et_decoder_block.5} parent=11 // pred_fallthru
          _
        // Predicated region
        $region49: #{et_decoder_block.5} parent=11 // pred_check
          %p459 = pneg %p292
        $region50: #{et_decoder_block.5} parent=11 // pred_check_branch
          %461 = sbr.rel (%p459) target = $region52
        $region51: #{et_decoder_block.5} parent=11 // pred_region
          %463 = vsyncadd [#allocation17], 0
          %s464 = sshll.u32 %s11, 4
          %s465 = int_to_ptr.hbm [resolvable:$true] %s464
          %s466 = sshll.u32 [#allocation18], 4
          %s467 = int_to_ptr.vmem [resolvable:$true] %s466
          %472 = dma.hbm_to_vmem [thread:$0]  %s465, 512, %s467, [#allocation17], 128, 128, 8
        $region52: #{et_decoder_block.5} parent=11 // pred_fallthru
          _
        // Predicated region
        $region53: #{et_decoder_block.5} parent=11 // pred_check
          %p473 = pneg %p313
        $region54: #{et_decoder_block.5} parent=11 // pred_check_branch
          %475 = sbr.rel (%p473) target = $region56
        $region55: #{et_decoder_block.5} parent=11 // pred_region
          %477 = vsyncadd [#allocation20], 0
          %s479 = sshll.u32 %s12, 4
          %s480 = int_to_ptr.hbm [resolvable:$true] %s479
          %s481 = sshll.u32 [#allocation19], 4
          %s482 = int_to_ptr.vmem [resolvable:$true] %s481
          %484 = dma.hbm_to_vmem [thread:$0]  %s480, 16, %s482, [#allocation20]
        $region56: #{et_decoder_block.5} parent=11 // pred_fallthru
          _
      $region12: #{et_decoder_block.5} parent=5 // pred_fallthru
        _
      %p485 = scmp.lt.s32.totalorder %s30, 2
      // Predicated region
      $region57: #{et_decoder_block.5} parent=5 // pred_check
        %p486 = pneg %p485
      $region58: #{et_decoder_block.5} parent=5 // pred_check_branch
        %488 = sbr.rel (%p486) target = $region60
      $region59: #{et_decoder_block.5} parent=5 // pred_region
        // Predicated region
        $region61: #{et_decoder_block.5} parent=59 // pred_check
          %p489 = pneg %p50
        $region62: #{et_decoder_block.5} parent=59 // pred_check_branch
          %491 = sbr.rel (%p489) target = $region64
        $region63: #{et_decoder_block.5} parent=59 // pred_region
          %s492 = sand.u32 %s40, 1
          %s493 = scalar_lea.sflag [#allocation3], %s492
          %s494 = sand.u32 %s40, 1
          %s495 = smul.addr %s494, 8
          %s496 = scalar_lea.vmem [#allocation2], %s495
          %498 = vsyncadd %s493, 0
          %s499 = smul.addr %s30, 8
          %s500 = scalar_lea.hbm %s0, %s499
          %s502 = sshll.u32 %s500, 4
          %s503 = int_to_ptr.hbm [resolvable:$true] %s502
          %s504 = sshll.u32 %s496, 4
          %s505 = int_to_ptr.vmem [resolvable:$true] %s504
          %507 = dma.hbm_to_vmem [thread:$0]  %s503, 128, %s505, %s493
        $region64: #{et_decoder_block.5} parent=59 // pred_fallthru
          _
        // Predicated region
        $region65: #{et_decoder_block.5} parent=59 // pred_check
          %p508 = pneg %p76
        $region66: #{et_decoder_block.5} parent=59 // pred_check_branch
          %510 = sbr.rel (%p508) target = $region68
        $region67: #{et_decoder_block.5} parent=59 // pred_region
          %s511 = sand.u32 %s30, 1
          %s512 = scalar_lea.sflag [#allocation5], %s511
          %s513 = sand.u32 %s66, 1
          %s514 = smul.addr %s513, 8
          %s515 = scalar_lea.vmem [#allocation4], %s514
          %517 = vsyncadd %s512, 0
          %s518 = smul.addr %s30, 8
          %s519 = scalar_lea.hbm %s1, %s518
          %s521 = sshll.u32 %s519, 4
          %s522 = int_to_ptr.hbm [resolvable:$true] %s521
          %s523 = sshll.u32 %s515, 4
          %s524 = int_to_ptr.vmem [resolvable:$true] %s523
          %526 = dma.hbm_to_vmem [thread:$0]  %s522, 128, %s524, %s512
        $region68: #{et_decoder_block.5} parent=59 // pred_fallthru
          _
      $region60: #{et_decoder_block.5} parent=5 // pred_fallthru
        _
      %p527 = scmp.le.s32.totalorder 1, %s30
      %p528 = scmp.lt.s32.totalorder %s30, 3
      %p529 = pnand %p527, %p528
      %p530 = pneg %p529
      // Predicated region
      $region69: #{et_decoder_block.5} parent=5 // pred_check
        _
      $region70: #{et_decoder_block.5} parent=5 // pred_check_branch
        %532 = sbr.rel (%p529) target = $region72
      $region71: #{et_decoder_block.5} parent=5 // pred_region
        %s533 = ssub.s32 %s30, 1
        %s534 = sand.u32 %s43, 1
        %s535 = scalar_lea.sflag [#allocation3], %s534
        %s536 = sand.u32 %s43, 1
        %s537 = smul.addr %s536, 8
        %s538 = scalar_lea.vmem [#allocation2], %s537
        // Predicated region
        $region73: #{et_decoder_block.5} parent=71 // pred_check
          %p539 = pneg %p56
        $region74: #{et_decoder_block.5} parent=71 // pred_check_branch
          %541 = sbr.rel (%p539) target = $region76
        $region75: #{et_decoder_block.5} parent=71 // pred_region
          %543 = dma.done %s535, 128
        $region76: #{et_decoder_block.5} parent=71 // pred_fallthru
          _
        %s544 = sand.u32 %s35, 1
        %s545 = scalar_lea.sflag [#allocation5], %s544
        %s546 = sand.u32 %s69, 1
        %s547 = smul.addr %s546, 8
        %s548 = scalar_lea.vmem [#allocation4], %s547
        // Predicated region
        $region77: #{et_decoder_block.5} parent=71 // pred_check
          %p549 = pneg %p82
        $region78: #{et_decoder_block.5} parent=71 // pred_check_branch
          %551 = sbr.rel (%p549) target = $region80
        $region79: #{et_decoder_block.5} parent=71 // pred_region
          %553 = dma.done %s545, 128
        $region80: #{et_decoder_block.5} parent=71 // pred_fallthru
          _
        // Predicated region
        $region81: #{et_decoder_block.5} parent=71 // pred_check
          %p554 = pneg %p103
        $region82: #{et_decoder_block.5} parent=71 // pred_check_branch
          %556 = sbr.rel (%p554) target = $region84
        $region83: #{et_decoder_block.5} parent=71 // pred_region
          %558 = dma.done [#allocation5], 16
        $region84: #{et_decoder_block.5} parent=71 // pred_fallthru
          _
        // Predicated region
        $region85: #{et_decoder_block.5} parent=71 // pred_check
          %p559 = pneg %p145
        $region86: #{et_decoder_block.5} parent=71 // pred_check_branch
          %561 = sbr.rel (%p559) target = $region88
        $region87: #{et_decoder_block.5} parent=71 // pred_region
          %563 = dma.done [#allocation8], 16
        $region88: #{et_decoder_block.5} parent=71 // pred_fallthru
          _
        // Predicated region
        $region89: #{et_decoder_block.5} parent=71 // pred_check
          %p564 = pneg %p166
        $region90: #{et_decoder_block.5} parent=71 // pred_check_branch
          %566 = sbr.rel (%p564) target = $region92
        $region91: #{et_decoder_block.5} parent=71 // pred_region
          %568 = dma.done [#allocation8], 512
        $region92: #{et_decoder_block.5} parent=71 // pred_fallthru
          _
        // Predicated region
        $region93: #{et_decoder_block.5} parent=71 // pred_check
          %p569 = pneg %p187
        $region94: #{et_decoder_block.5} parent=71 // pred_check_branch
          %571 = sbr.rel (%p569) target = $region96
        $region95: #{et_decoder_block.5} parent=71 // pred_region
          %573 = dma.done [#allocation11], 16
        $region96: #{et_decoder_block.5} parent=71 // pred_fallthru
          _
        // Predicated region
        $region97: #{et_decoder_block.5} parent=71 // pred_check
          %p574 = pneg %p208
        $region98: #{et_decoder_block.5} parent=71 // pred_check_branch
          %576 = sbr.rel (%p574) target = $region100
        $region99: #{et_decoder_block.5} parent=71 // pred_region
          %578 = dma.done [#allocation11], 512
        $region100: #{et_decoder_block.5} parent=71 // pred_fallthru
          _
        // Predicated region
        $region101: #{et_decoder_block.5} parent=71 // pred_check
          %p579 = pneg %p229
        $region102: #{et_decoder_block.5} parent=71 // pred_check_branch
          %581 = sbr.rel (%p579) target = $region104
        $region103: #{et_decoder_block.5} parent=71 // pred_region
          %583 = dma.done [#allocation14], 16
        $region104: #{et_decoder_block.5} parent=71 // pred_fallthru
          _
        // Predicated region
        $region105: #{et_decoder_block.5} parent=71 // pred_check
          %p584 = pneg %p250
        $region106: #{et_decoder_block.5} parent=71 // pred_check_branch
          %586 = sbr.rel (%p584) target = $region108
        $region107: #{et_decoder_block.5} parent=71 // pred_region
          %588 = dma.done [#allocation14], 512
        $region108: #{et_decoder_block.5} parent=71 // pred_fallthru
          _
        // Predicated region
        $region109: #{et_decoder_block.5} parent=71 // pred_check
          %p589 = pneg %p271
        $region110: #{et_decoder_block.5} parent=71 // pred_check_branch
          %591 = sbr.rel (%p589) target = $region112
        $region111: #{et_decoder_block.5} parent=71 // pred_region
          %593 = dma.done [#allocation17], 16
        $region112: #{et_decoder_block.5} parent=71 // pred_fallthru
          _
        // Predicated region
        $region113: #{et_decoder_block.5} parent=71 // pred_check
          %p594 = pneg %p292
        $region114: #{et_decoder_block.5} parent=71 // pred_check_branch
          %596 = sbr.rel (%p594) target = $region116
        $region115: #{et_decoder_block.5} parent=71 // pred_region
          %598 = dma.done [#allocation17], 512
        $region116: #{et_decoder_block.5} parent=71 // pred_fallthru
          _
        // Predicated region
        $region117: #{et_decoder_block.5} parent=71 // pred_check
          %p599 = pneg %p313
        $region118: #{et_decoder_block.5} parent=71 // pred_check_branch
          %601 = sbr.rel (%p599) target = $region120
        $region119: #{et_decoder_block.5} parent=71 // pred_region
          %603 = dma.done [#allocation20], 16
        $region120: #{et_decoder_block.5} parent=71 // pred_fallthru
          _
        %s604 = sand.u32 %s43, 1
        %s605 = scalar_lea.sflag [#allocation3], %s604
        %s606 = sand.u32 %s43, 1
        %s607 = smul.addr %s606, 8
        %s608 = scalar_lea.vmem [#allocation2], %s607
        %p609 = pneg %p56
        %p610 = pneg %p53
        %s611 = sand.u32 %s35, 1
        %s612 = scalar_lea.sflag [#allocation5], %s611
        %s613 = sand.u32 %s69, 1
        %s614 = smul.addr %s613, 8
        %s615 = scalar_lea.vmem [#allocation4], %s614
        %p616 = pneg %p82
        %p617 = pneg %p79
        %p618 = pneg %p103
        %p619 = pneg %p100
        %p620 = pneg %p124
        %p621 = pneg %p121
        %p622 = pneg %p145
        %p623 = pneg %p142
        %p624 = pneg %p166
        %p625 = pneg %p163
        %p626 = pneg %p187
        %p627 = pneg %p184
        %p628 = pneg %p208
        %p629 = pneg %p205
        %p630 = pneg %p229
        %p631 = pneg %p226
        %p632 = pneg %p250
        %p633 = pneg %p247
        %p634 = pneg %p271
        %p635 = pneg %p268
        %p636 = pneg %p292
        %p637 = pneg %p289
        %p638 = pneg %p313
        %p639 = pneg %p310
        %p640 = pneg %p339
        %p641 = pneg %p336
        %p642 = scmp.lt.s32.totalorder %s35, 1
        %s643 = scalar_select %p642, %s35, 1
        %s644 = smul.addr %s643, 8
        %s645 = scalar_lea.vmem %s13, %s644
        %p646 = scmp.lt.s32.totalorder %s35, 1
        %s647 = scalar_select %p646, %s35, 1
        %s648 = smul.addr %s647, 8
        %s649 = scalar_lea.vmem %s13, %s648
        %v651 = vld [vmem:[%s538] sm:$0xff]
        %v652 = vld [vmem:[%s548] sm:$0xff]
        %v653 = vld [vmem:[#allocation6] sm:$0x1]
        %v654 = vmul.f32 %v651, %v651
        %vm655 = vcmask 261120
        %v656 = vsel %vm655, %v654, 0.0
        %657 = vadd.xlane.f32.xlu0 %v656
        %v658 = vpop.xlane.xlu0 %657
        %v659 = vrcp.pop 32.0
        %v660 = vmul.f32 32.0, %v659
        %v661 = vsub.f32 1.0, %v660
        %v662 = vmul.f32 %v659, %v661
        %v663 = vadd.f32 %v659, %v662
        %vm664 = vweird.f32 %v659
        %v665 = vsel %vm664, %v659, %v663
        %v666 = vmul.f32 %v658, %v665
        %v667 = vrsqrt.pop %v666
        %v668 = vmul.f32 %v667, %v666
        %v669 = vmul.f32 %v668, %v667
        %v670 = vmul.f32 0.5, %v669
        %v671 = vsub.f32 1.5, %v670
        %v672 = vmul.f32 %v667, %v671
        %v673 = vmul.f32 %v666, %v672
        %vm674 = vcmp.eq.f32.partialorder %v666, inf
        %v675 = vsel %vm674, %v666, %v673
        %vm676 = vcmp.eq.f32.partialorder %v666, 0.0
        %v677 = vand.u32 %v666, 2147483648
        %v678 = vsel %vm676, %v677, %v675
        %v679 = vmax.f32 %v678, 1e-08
        %v680 = vrcp.pop %v679
        %v681 = vmul.f32 %v679, %v680
        %v682 = vsub.f32 1.0, %v681
        %v683 = vmul.f32 %v680, %v682
        %v684 = vadd.f32 %v680, %v683
        %vm685 = vweird.f32 %v679
        %vm686 = vweird.f32 %v680
        %vm687 = vmor %vm685, %vm686
        %v688 = vsel %vm687, %v680, %v684
        %v689 = vand.u32 2147483647, %v679
        %vm690 = vcmp.eq.f32.partialorder %v689, 8.507059e+37
        %v691 = vand.u32 %v679, 2147483648
        %v692 = vor.u32 1.1754944e-38, %v691
        %v693 = vsel %vm690, %v692, %v688
        %v694 = vmul.f32 %v651, %v693
        %v696 = vperm.slane %v653, 0
        %v698 = vmul.f32 %v694, %v696
        %v699 = vld [vmem:[%s3] sm:$0xff]
        %v700 = vld [vmem:[%s3 + $0x8] sm:$0xff]
        %v701 = vld [vmem:[%s3 + $0x10] sm:$0xff]
        %v702 = vld [vmem:[%s3 + $0x18] sm:$0xff]
        %v703 = vld [vmem:[#allocation7] sm:$0x1]
        %v704 = vld [vmem:[#allocation9] sm:$0xff]
        %v705 = vld [vmem:[#allocation9 + $0x8] sm:$0xff]
        %v706 = vld [vmem:[#allocation9 + $0x10] sm:$0xff]
        %v707 = vld [vmem:[#allocation9 + $0x18] sm:$0xff]
        %v708 = vld [vmem:[#allocation10] sm:$0x1]
        %v709 = vpack.c.bf16 %v698, %v698
        %v710 = vpack.c.bf16 %v700, %v699
        %v711 = vpack.c.bf16 %v702, %v701
        %v713 = vperm.slane %v703, 0
        %v716 = vsel %vm655, %v709, 0
        %718 = vmatpush.bf16.msra.mxu0 0
        %719 = vmatpush.bf16.msra.mxu0 0
        %720 = vmatpush.bf16.msra.mxu0 0
        %721 = vmatpush.bf16.msra.mxu0 0
        %722 = vmatpush.bf16.msra.mxu0 0
        %723 = vmatpush.bf16.msra.mxu0 0
        %724 = vmatpush.bf16.msra.mxu0 %v711
        %725 = vmatpush.bf16.msra.mxu0 %v710
        %726 = vmatmul.bf16.gmra.mxu0 %v716
        %v727 = vpop.f32.mrf.mxu0
        %v728 = vadd.f32 %v713, %v727
        %v729 = vpop.f32.mrf.mxu0
        %730 = vdwg.mxu0
        %732 = vrot.lane.b32.xlu0 %v728, 96
        %v733 = vpop.permute.xlu0 %732
        %vm734 = vcmask 15360
        %v735 = vsel %vm734, %v728, 0
        %v737 = vsel %vm734, %v733, 0
        %739 = vmatpush.xpose.msra.mxu0 0.0
        %740 = vmatpush.xpose.msra.mxu0 0.0
        %741 = vmatpush.xpose.msra.mxu0 0.0
        %742 = vmatpush.xpose.msra.mxu0 0.0
        %743 = vmatpush.xpose.msra.mxu0 0.0
        %744 = vmatpush.xpose.msra.mxu0 0.0
        %745 = vmatpush.xpose.msra.mxu0 0.0
        %746 = vmatpush.xpose.msra.mxu0 0.0
        %747 = vmatpush.xpose.msra.mxu0 0.0
        %748 = vmatpush.xpose.msra.mxu0 0.0
        %749 = vmatpush.xpose.msra.mxu0 0.0
        %750 = vmatpush.xpose.msra.mxu0 0.0
        %751 = vmatpush.xpose.msra.mxu0 0.0
        %752 = vmatpush.xpose.msra.mxu0 0.0
        %753 = vmatpush.xpose.msra.mxu0 0.0
        %754 = vmatpush.xpose.msra.mxu0 %v737
        %755 = vmatmul.f32.gmra.mxu0 %v735
        %v756 = vpop.f32.mrf.mxu0
        %v757 = vadd.f32 0.0, %v756
        %758 = vdwg.mxu0
        %v759 = vmul.f32 %v757, 0.70710677
        %vm760 = vcmask 64512
        %v761 = vsel %vm760, %v759, -inf
        %762 = vmax.xlane.f32.xlu0 %v761
        %v763 = vpop.xlane.xlu0 %762
        %v764 = vsub.f32 %v759, %v763
        %v765 = vmul.f32 %v764, 1.442695
        %v766 = vpow.pop %v765
        %v767 = vsel %vm760, %v766, 0.0
        %768 = vadd.xlane.f32.xlu0 %v767
        %v769 = vpop.xlane.xlu0 %768
        %v770 = vrcp.pop %v769
        %v771 = vmul.f32 %v766, %v770
        %772 = vrot.lane.b32.xlu0 %v728, 64
        %v773 = vpop.permute.xlu0 %772
        %v776 = vsel %vm760, %v771, 0
        %778 = vmatpush.msra.mxu0 0.0
        %779 = vmatpush.msra.mxu0 0.0
        %780 = vmatpush.msra.mxu0 0.0
        %781 = vmatpush.msra.mxu0 0.0
        %782 = vmatpush.msra.mxu0 0.0
        %783 = vmatpush.msra.mxu0 0.0
        %784 = vmatpush.msra.mxu0 0.0
        %785 = vmatpush.msra.mxu0 0.0
        %786 = vmatpush.msra.mxu0 0.0
        %787 = vmatpush.msra.mxu0 0.0
        %788 = vmatpush.msra.mxu0 0.0
        %789 = vmatpush.msra.mxu0 0.0
        %790 = vmatpush.msra.mxu0 0.0
        %791 = vmatpush.msra.mxu0 0.0
        %792 = vmatpush.msra.mxu0 0.0
        %793 = vmatpush.msra.mxu0 %v773
        %794 = vmatmul.f32.gmra.mxu0 %v776
        %v795 = vpop.f32.mrf.mxu0
        %v796 = vadd.f32 0.0, %v795
        %797 = vdwg.mxu0
        %798 = vrot.lane.b32.xlu0 %v728, 126
        %v799 = vpop.permute.xlu0 %798
        %800 = vrot.lane.b32.xlu0 %v728, 94
        %v801 = vpop.permute.xlu0 %800
        %v802 = vsel %vm734, %v799, 0
        %v804 = vsel %vm734, %v801, 0
        %806 = vmatpush.xpose.msra.mxu0 0.0
        %807 = vmatpush.xpose.msra.mxu0 0.0
        %808 = vmatpush.xpose.msra.mxu0 0.0
        %809 = vmatpush.xpose.msra.mxu0 0.0
        %810 = vmatpush.xpose.msra.mxu0 0.0
        %811 = vmatpush.xpose.msra.mxu0 0.0
        %812 = vmatpush.xpose.msra.mxu0 0.0
        %813 = vmatpush.xpose.msra.mxu0 0.0
        %814 = vmatpush.xpose.msra.mxu0 0.0
        %815 = vmatpush.xpose.msra.mxu0 0.0
        %816 = vmatpush.xpose.msra.mxu0 0.0
        %817 = vmatpush.xpose.msra.mxu0 0.0
        %818 = vmatpush.xpose.msra.mxu0 0.0
        %819 = vmatpush.xpose.msra.mxu0 0.0
        %820 = vmatpush.xpose.msra.mxu0 0.0
        %821 = vmatpush.xpose.msra.mxu0 %v804
        %822 = vmatmul.f32.gmra.mxu0 %v802
        %v823 = vpop.f32.mrf.mxu0
        %v824 = vadd.f32 0.0, %v823
        %825 = vdwg.mxu0
        %v826 = vmul.f32 %v824, 0.70710677
        %v827 = vsel %vm760, %v826, -inf
        %828 = vmax.xlane.f32.xlu0 %v827
        %v829 = vpop.xlane.xlu0 %828
        %v830 = vsub.f32 %v826, %v829
        %v831 = vmul.f32 %v830, 1.442695
        %v832 = vpow.pop %v831
        %v833 = vsel %vm760, %v832, 0.0
        %834 = vadd.xlane.f32.xlu0 %v833
        %v835 = vpop.xlane.xlu0 %834
        %v836 = vrcp.pop %v835
        %v837 = vmul.f32 %v832, %v836
        %838 = vrot.lane.b32.xlu0 %v728, 62
        %v839 = vpop.permute.xlu0 %838
        %v842 = vsel %vm760, %v837, 0
        %844 = vmatpush.msra.mxu0 0.0
        %845 = vmatpush.msra.mxu0 0.0
        %846 = vmatpush.msra.mxu0 0.0
        %847 = vmatpush.msra.mxu0 0.0
        %848 = vmatpush.msra.mxu0 0.0
        %849 = vmatpush.msra.mxu0 0.0
        %850 = vmatpush.msra.mxu0 0.0
        %851 = vmatpush.msra.mxu0 0.0
        %852 = vmatpush.msra.mxu0 0.0
        %853 = vmatpush.msra.mxu0 0.0
        %854 = vmatpush.msra.mxu0 0.0
        %855 = vmatpush.msra.mxu0 0.0
        %856 = vmatpush.msra.mxu0 0.0
        %857 = vmatpush.msra.mxu0 0.0
        %858 = vmatpush.msra.mxu0 0.0
        %859 = vmatpush.msra.mxu0 %v839
        %860 = vmatmul.f32.gmra.mxu0 %v842
        %v861 = vpop.f32.mrf.mxu0
        %v862 = vadd.f32 0.0, %v861
        %863 = vdwg.mxu0
        %864 = vrot.lane.b32.xlu0 %v728, 124
        %v865 = vpop.permute.xlu0 %864
        %866 = vrot.lane.b32.xlu0 %v728, 92
        %v867 = vpop.permute.xlu0 %866
        %v868 = vsel %vm734, %v865, 0
        %v870 = vsel %vm734, %v867, 0
        %872 = vmatpush.xpose.msra.mxu0 0.0
        %873 = vmatpush.xpose.msra.mxu0 0.0
        %874 = vmatpush.xpose.msra.mxu0 0.0
        %875 = vmatpush.xpose.msra.mxu0 0.0
        %876 = vmatpush.xpose.msra.mxu0 0.0
        %877 = vmatpush.xpose.msra.mxu0 0.0
        %878 = vmatpush.xpose.msra.mxu0 0.0
        %879 = vmatpush.xpose.msra.mxu0 0.0
        %880 = vmatpush.xpose.msra.mxu0 0.0
        %881 = vmatpush.xpose.msra.mxu0 0.0
        %882 = vmatpush.xpose.msra.mxu0 0.0
        %883 = vmatpush.xpose.msra.mxu0 0.0
        %884 = vmatpush.xpose.msra.mxu0 0.0
        %885 = vmatpush.xpose.msra.mxu0 0.0
        %886 = vmatpush.xpose.msra.mxu0 0.0
        %887 = vmatpush.xpose.msra.mxu0 %v870
        %888 = vmatmul.f32.gmra.mxu0 %v868
        %v889 = vpop.f32.mrf.mxu0
        %v890 = vadd.f32 0.0, %v889
        %891 = vdwg.mxu0
        %v892 = vmul.f32 %v890, 0.70710677
        %v893 = vsel %vm760, %v892, -inf
        %894 = vmax.xlane.f32.xlu0 %v893
        %v895 = vpop.xlane.xlu0 %894
        %v896 = vsub.f32 %v892, %v895
        %v897 = vmul.f32 %v896, 1.442695
        %v898 = vpow.pop %v897
        %v899 = vsel %vm760, %v898, 0.0
        %900 = vadd.xlane.f32.xlu0 %v899
        %v901 = vpop.xlane.xlu0 %900
        %v902 = vrcp.pop %v901
        %v903 = vmul.f32 %v898, %v902
        %904 = vrot.lane.b32.xlu0 %v728, 60
        %v905 = vpop.permute.xlu0 %904
        %v908 = vsel %vm760, %v903, 0
        %910 = vmatpush.msra.mxu0 0.0
        %911 = vmatpush.msra.mxu0 0.0
        %912 = vmatpush.msra.mxu0 0.0
        %913 = vmatpush.msra.mxu0 0.0
        %914 = vmatpush.msra.mxu0 0.0
        %915 = vmatpush.msra.mxu0 0.0
        %916 = vmatpush.msra.mxu0 0.0
        %917 = vmatpush.msra.mxu0 0.0
        %918 = vmatpush.msra.mxu0 0.0
        %919 = vmatpush.msra.mxu0 0.0
        %920 = vmatpush.msra.mxu0 0.0
        %921 = vmatpush.msra.mxu0 0.0
        %922 = vmatpush.msra.mxu0 0.0
        %923 = vmatpush.msra.mxu0 0.0
        %924 = vmatpush.msra.mxu0 0.0
        %925 = vmatpush.msra.mxu0 %v905
        %926 = vmatmul.f32.gmra.mxu0 %v908
        %v927 = vpop.f32.mrf.mxu0
        %v928 = vadd.f32 0.0, %v927
        %929 = vdwg.mxu0
        %930 = vrot.lane.b32.xlu0 %v728, 122
        %v931 = vpop.permute.xlu0 %930
        %932 = vrot.lane.b32.xlu0 %v728, 90
        %v933 = vpop.permute.xlu0 %932
        %v934 = vsel %vm734, %v931, 0
        %v936 = vsel %vm734, %v933, 0
        %938 = vmatpush.xpose.msra.mxu0 0.0
        %939 = vmatpush.xpose.msra.mxu0 0.0
        %940 = vmatpush.xpose.msra.mxu0 0.0
        %941 = vmatpush.xpose.msra.mxu0 0.0
        %942 = vmatpush.xpose.msra.mxu0 0.0
        %943 = vmatpush.xpose.msra.mxu0 0.0
        %944 = vmatpush.xpose.msra.mxu0 0.0
        %945 = vmatpush.xpose.msra.mxu0 0.0
        %946 = vmatpush.xpose.msra.mxu0 0.0
        %947 = vmatpush.xpose.msra.mxu0 0.0
        %948 = vmatpush.xpose.msra.mxu0 0.0
        %949 = vmatpush.xpose.msra.mxu0 0.0
        %950 = vmatpush.xpose.msra.mxu0 0.0
        %951 = vmatpush.xpose.msra.mxu0 0.0
        %952 = vmatpush.xpose.msra.mxu0 0.0
        %953 = vmatpush.xpose.msra.mxu0 %v936
        %954 = vmatmul.f32.gmra.mxu0 %v934
        %v955 = vpop.f32.mrf.mxu0
        %v956 = vadd.f32 0.0, %v955
        %957 = vdwg.mxu0
        %v958 = vmul.f32 %v956, 0.70710677
        %v959 = vsel %vm760, %v958, -inf
        %960 = vmax.xlane.f32.xlu0 %v959
        %v961 = vpop.xlane.xlu0 %960
        %v962 = vsub.f32 %v958, %v961
        %v963 = vmul.f32 %v962, 1.442695
        %v964 = vpow.pop %v963
        %v965 = vsel %vm760, %v964, 0.0
        %966 = vadd.xlane.f32.xlu0 %v965
        %v967 = vpop.xlane.xlu0 %966
        %v968 = vrcp.pop %v967
        %v969 = vmul.f32 %v964, %v968
        %970 = vrot.lane.b32.xlu0 %v728, 58
        %v971 = vpop.permute.xlu0 %970
        %v974 = vsel %vm760, %v969, 0
        %976 = vmatpush.msra.mxu0 0.0
        %977 = vmatpush.msra.mxu0 0.0
        %978 = vmatpush.msra.mxu0 0.0
        %979 = vmatpush.msra.mxu0 0.0
        %980 = vmatpush.msra.mxu0 0.0
        %981 = vmatpush.msra.mxu0 0.0
        %982 = vmatpush.msra.mxu0 0.0
        %983 = vmatpush.msra.mxu0 0.0
        %984 = vmatpush.msra.mxu0 0.0
        %985 = vmatpush.msra.mxu0 0.0
        %986 = vmatpush.msra.mxu0 0.0
        %987 = vmatpush.msra.mxu0 0.0
        %988 = vmatpush.msra.mxu0 0.0
        %989 = vmatpush.msra.mxu0 0.0
        %990 = vmatpush.msra.mxu0 0.0
        %991 = vmatpush.msra.mxu0 %v971
        %992 = vmatmul.f32.gmra.mxu0 %v974
        %v993 = vpop.f32.mrf.mxu0
        %v994 = vadd.f32 0.0, %v993
        %995 = vdwg.mxu0
        %996 = vrot.lane.b32.xlu0 %v728, 120
        %v997 = vpop.permute.xlu0 %996
        %998 = vrot.lane.b32.xlu0 %v728, 88
        %v999 = vpop.permute.xlu0 %998
        %v1000 = vsel %vm734, %v997, 0
        %v1002 = vsel %vm734, %v999, 0
        %1004 = vmatpush.xpose.msra.mxu0 0.0
        %1005 = vmatpush.xpose.msra.mxu0 0.0
        %1006 = vmatpush.xpose.msra.mxu0 0.0
        %1007 = vmatpush.xpose.msra.mxu0 0.0
        %1008 = vmatpush.xpose.msra.mxu0 0.0
        %1009 = vmatpush.xpose.msra.mxu0 0.0
        %1010 = vmatpush.xpose.msra.mxu0 0.0
        %1011 = vmatpush.xpose.msra.mxu0 0.0
        %1012 = vmatpush.xpose.msra.mxu0 0.0
        %1013 = vmatpush.xpose.msra.mxu0 0.0
        %1014 = vmatpush.xpose.msra.mxu0 0.0
        %1015 = vmatpush.xpose.msra.mxu0 0.0
        %1016 = vmatpush.xpose.msra.mxu0 0.0
        %1017 = vmatpush.xpose.msra.mxu0 0.0
        %1018 = vmatpush.xpose.msra.mxu0 0.0
        %1019 = vmatpush.xpose.msra.mxu0 %v1002
        %1020 = vmatmul.f32.gmra.mxu0 %v1000
        %v1021 = vpop.f32.mrf.mxu0
        %v1022 = vadd.f32 0.0, %v1021
        %1023 = vdwg.mxu0
        %v1024 = vmul.f32 %v1022, 0.70710677
        %v1025 = vsel %vm760, %v1024, -inf
        %1026 = vmax.xlane.f32.xlu0 %v1025
        %v1027 = vpop.xlane.xlu0 %1026
        %v1028 = vsub.f32 %v1024, %v1027
        %v1029 = vmul.f32 %v1028, 1.442695
        %v1030 = vpow.pop %v1029
        %v1031 = vsel %vm760, %v1030, 0.0
        %1032 = vadd.xlane.f32.xlu0 %v1031
        %v1033 = vpop.xlane.xlu0 %1032
        %v1034 = vrcp.pop %v1033
        %v1035 = vmul.f32 %v1030, %v1034
        %1036 = vrot.lane.b32.xlu0 %v728, 56
        %v1037 = vpop.permute.xlu0 %1036
        %v1040 = vsel %vm760, %v1035, 0
        %1042 = vmatpush.msra.mxu0 0.0
        %1043 = vmatpush.msra.mxu0 0.0
        %1044 = vmatpush.msra.mxu0 0.0
        %1045 = vmatpush.msra.mxu0 0.0
        %1046 = vmatpush.msra.mxu0 0.0
        %1047 = vmatpush.msra.mxu0 0.0
        %1048 = vmatpush.msra.mxu0 0.0
        %1049 = vmatpush.msra.mxu0 0.0
        %1050 = vmatpush.msra.mxu0 0.0
        %1051 = vmatpush.msra.mxu0 0.0
        %1052 = vmatpush.msra.mxu0 0.0
        %1053 = vmatpush.msra.mxu0 0.0
        %1054 = vmatpush.msra.mxu0 0.0
        %1055 = vmatpush.msra.mxu0 0.0
        %1056 = vmatpush.msra.mxu0 0.0
        %1057 = vmatpush.msra.mxu0 %v1037
        %1058 = vmatmul.f32.gmra.mxu0 %v1040
        %v1059 = vpop.f32.mrf.mxu0
        %v1060 = vadd.f32 0.0, %v1059
        %1061 = vdwg.mxu0
        %1062 = vrot.lane.b32.xlu0 %v728, 118
        %v1063 = vpop.permute.xlu0 %1062
        %1064 = vrot.lane.b32.xlu0 %v728, 86
        %v1065 = vpop.permute.xlu0 %1064
        %v1066 = vsel %vm734, %v1063, 0
        %v1068 = vsel %vm734, %v1065, 0
        %1070 = vmatpush.xpose.msra.mxu0 0.0
        %1071 = vmatpush.xpose.msra.mxu0 0.0
        %1072 = vmatpush.xpose.msra.mxu0 0.0
        %1073 = vmatpush.xpose.msra.mxu0 0.0
        %1074 = vmatpush.xpose.msra.mxu0 0.0
        %1075 = vmatpush.xpose.msra.mxu0 0.0
        %1076 = vmatpush.xpose.msra.mxu0 0.0
        %1077 = vmatpush.xpose.msra.mxu0 0.0
        %1078 = vmatpush.xpose.msra.mxu0 0.0
        %1079 = vmatpush.xpose.msra.mxu0 0.0
        %1080 = vmatpush.xpose.msra.mxu0 0.0
        %1081 = vmatpush.xpose.msra.mxu0 0.0
        %1082 = vmatpush.xpose.msra.mxu0 0.0
        %1083 = vmatpush.xpose.msra.mxu0 0.0
        %1084 = vmatpush.xpose.msra.mxu0 0.0
        %1085 = vmatpush.xpose.msra.mxu0 %v1068
        %1086 = vmatmul.f32.gmra.mxu0 %v1066
        %v1087 = vpop.f32.mrf.mxu0
        %v1088 = vadd.f32 0.0, %v1087
        %1089 = vdwg.mxu0
        %v1090 = vmul.f32 %v1088, 0.70710677
        %v1091 = vsel %vm760, %v1090, -inf
        %1092 = vmax.xlane.f32.xlu0 %v1091
        %v1093 = vpop.xlane.xlu0 %1092
        %v1094 = vsub.f32 %v1090, %v1093
        %v1095 = vmul.f32 %v1094, 1.442695
        %v1096 = vpow.pop %v1095
        %v1097 = vsel %vm760, %v1096, 0.0
        %1098 = vadd.xlane.f32.xlu0 %v1097
        %v1099 = vpop.xlane.xlu0 %1098
        %v1100 = vrcp.pop %v1099
        %v1101 = vmul.f32 %v1096, %v1100
        %1102 = vrot.lane.b32.xlu0 %v728, 54
        %v1103 = vpop.permute.xlu0 %1102
        %v1106 = vsel %vm760, %v1101, 0
        %1108 = vmatpush.msra.mxu0 0.0
        %1109 = vmatpush.msra.mxu0 0.0
        %1110 = vmatpush.msra.mxu0 0.0
        %1111 = vmatpush.msra.mxu0 0.0
        %1112 = vmatpush.msra.mxu0 0.0
        %1113 = vmatpush.msra.mxu0 0.0
        %1114 = vmatpush.msra.mxu0 0.0
        %1115 = vmatpush.msra.mxu0 0.0
        %1116 = vmatpush.msra.mxu0 0.0
        %1117 = vmatpush.msra.mxu0 0.0
        %1118 = vmatpush.msra.mxu0 0.0
        %1119 = vmatpush.msra.mxu0 0.0
        %1120 = vmatpush.msra.mxu0 0.0
        %1121 = vmatpush.msra.mxu0 0.0
        %1122 = vmatpush.msra.mxu0 0.0
        %1123 = vmatpush.msra.mxu0 %v1103
        %1124 = vmatmul.f32.gmra.mxu0 %v1106
        %v1125 = vpop.f32.mrf.mxu0
        %v1126 = vadd.f32 0.0, %v1125
        %1127 = vdwg.mxu0
        %1128 = vrot.lane.b32.xlu0 %v728, 116
        %v1129 = vpop.permute.xlu0 %1128
        %1130 = vrot.lane.b32.xlu0 %v728, 84
        %v1131 = vpop.permute.xlu0 %1130
        %v1132 = vsel %vm734, %v1129, 0
        %v1134 = vsel %vm734, %v1131, 0
        %1136 = vmatpush.xpose.msra.mxu0 0.0
        %1137 = vmatpush.xpose.msra.mxu0 0.0
        %1138 = vmatpush.xpose.msra.mxu0 0.0
        %1139 = vmatpush.xpose.msra.mxu0 0.0
        %1140 = vmatpush.xpose.msra.mxu0 0.0
        %1141 = vmatpush.xpose.msra.mxu0 0.0
        %1142 = vmatpush.xpose.msra.mxu0 0.0
        %1143 = vmatpush.xpose.msra.mxu0 0.0
        %1144 = vmatpush.xpose.msra.mxu0 0.0
        %1145 = vmatpush.xpose.msra.mxu0 0.0
        %1146 = vmatpush.xpose.msra.mxu0 0.0
        %1147 = vmatpush.xpose.msra.mxu0 0.0
        %1148 = vmatpush.xpose.msra.mxu0 0.0
        %1149 = vmatpush.xpose.msra.mxu0 0.0
        %1150 = vmatpush.xpose.msra.mxu0 0.0
        %1151 = vmatpush.xpose.msra.mxu0 %v1134
        %1152 = vmatmul.f32.gmra.mxu0 %v1132
        %v1153 = vpop.f32.mrf.mxu0
        %v1154 = vadd.f32 0.0, %v1153
        %1155 = vdwg.mxu0
        %v1156 = vmul.f32 %v1154, 0.70710677
        %v1157 = vsel %vm760, %v1156, -inf
        %1158 = vmax.xlane.f32.xlu0 %v1157
        %v1159 = vpop.xlane.xlu0 %1158
        %v1160 = vsub.f32 %v1156, %v1159
        %v1161 = vmul.f32 %v1160, 1.442695
        %v1162 = vpow.pop %v1161
        %v1163 = vsel %vm760, %v1162, 0.0
        %1164 = vadd.xlane.f32.xlu0 %v1163
        %v1165 = vpop.xlane.xlu0 %1164
        %v1166 = vrcp.pop %v1165
        %v1167 = vmul.f32 %v1162, %v1166
        %1168 = vrot.lane.b32.xlu0 %v728, 52
        %v1169 = vpop.permute.xlu0 %1168
        %v1172 = vsel %vm760, %v1167, 0
        %1174 = vmatpush.msra.mxu0 0.0
        %1175 = vmatpush.msra.mxu0 0.0
        %1176 = vmatpush.msra.mxu0 0.0
        %1177 = vmatpush.msra.mxu0 0.0
        %1178 = vmatpush.msra.mxu0 0.0
        %1179 = vmatpush.msra.mxu0 0.0
        %1180 = vmatpush.msra.mxu0 0.0
        %1181 = vmatpush.msra.mxu0 0.0
        %1182 = vmatpush.msra.mxu0 0.0
        %1183 = vmatpush.msra.mxu0 0.0
        %1184 = vmatpush.msra.mxu0 0.0
        %1185 = vmatpush.msra.mxu0 0.0
        %1186 = vmatpush.msra.mxu0 0.0
        %1187 = vmatpush.msra.mxu0 0.0
        %1188 = vmatpush.msra.mxu0 0.0
        %1189 = vmatpush.msra.mxu0 %v1169
        %1190 = vmatmul.f32.gmra.mxu0 %v1172
        %v1191 = vpop.f32.mrf.mxu0
        %v1192 = vadd.f32 0.0, %v1191
        %1193 = vdwg.mxu0
        %1194 = vrot.lane.b32.xlu0 %v728, 114
        %v1195 = vpop.permute.xlu0 %1194
        %1196 = vrot.lane.b32.xlu0 %v728, 82
        %v1197 = vpop.permute.xlu0 %1196
        %v1198 = vsel %vm734, %v1195, 0
        %v1200 = vsel %vm734, %v1197, 0
        %1202 = vmatpush.xpose.msra.mxu0 0.0
        %1203 = vmatpush.xpose.msra.mxu0 0.0
        %1204 = vmatpush.xpose.msra.mxu0 0.0
        %1205 = vmatpush.xpose.msra.mxu0 0.0
        %1206 = vmatpush.xpose.msra.mxu0 0.0
        %1207 = vmatpush.xpose.msra.mxu0 0.0
        %1208 = vmatpush.xpose.msra.mxu0 0.0
        %1209 = vmatpush.xpose.msra.mxu0 0.0
        %1210 = vmatpush.xpose.msra.mxu0 0.0
        %1211 = vmatpush.xpose.msra.mxu0 0.0
        %1212 = vmatpush.xpose.msra.mxu0 0.0
        %1213 = vmatpush.xpose.msra.mxu0 0.0
        %1214 = vmatpush.xpose.msra.mxu0 0.0
        %1215 = vmatpush.xpose.msra.mxu0 0.0
        %1216 = vmatpush.xpose.msra.mxu0 0.0
        %1217 = vmatpush.xpose.msra.mxu0 %v1200
        %1218 = vmatmul.f32.gmra.mxu0 %v1198
        %v1219 = vpop.f32.mrf.mxu0
        %v1220 = vadd.f32 0.0, %v1219
        %1221 = vdwg.mxu0
        %v1222 = vmul.f32 %v1220, 0.70710677
        %v1223 = vsel %vm760, %v1222, -inf
        %1224 = vmax.xlane.f32.xlu0 %v1223
        %v1225 = vpop.xlane.xlu0 %1224
        %v1226 = vsub.f32 %v1222, %v1225
        %v1227 = vmul.f32 %v1226, 1.442695
        %v1228 = vpow.pop %v1227
        %v1229 = vsel %vm760, %v1228, 0.0
        %1230 = vadd.xlane.f32.xlu0 %v1229
        %v1231 = vpop.xlane.xlu0 %1230
        %v1232 = vrcp.pop %v1231
        %v1233 = vmul.f32 %v1228, %v1232
        %1234 = vrot.lane.b32.xlu0 %v728, 50
        %v1235 = vpop.permute.xlu0 %1234
        %v1238 = vsel %vm760, %v1233, 0
        %1240 = vmatpush.msra.mxu0 0.0
        %1241 = vmatpush.msra.mxu0 0.0
        %1242 = vmatpush.msra.mxu0 0.0
        %1243 = vmatpush.msra.mxu0 0.0
        %1244 = vmatpush.msra.mxu0 0.0
        %1245 = vmatpush.msra.mxu0 0.0
        %1246 = vmatpush.msra.mxu0 0.0
        %1247 = vmatpush.msra.mxu0 0.0
        %1248 = vmatpush.msra.mxu0 0.0
        %1249 = vmatpush.msra.mxu0 0.0
        %1250 = vmatpush.msra.mxu0 0.0
        %1251 = vmatpush.msra.mxu0 0.0
        %1252 = vmatpush.msra.mxu0 0.0
        %1253 = vmatpush.msra.mxu0 0.0
        %1254 = vmatpush.msra.mxu0 0.0
        %1255 = vmatpush.msra.mxu0 %v1235
        %1256 = vmatmul.f32.gmra.mxu0 %v1238
        %v1257 = vpop.f32.mrf.mxu0
        %v1258 = vadd.f32 0.0, %v1257
        %1259 = vdwg.mxu0
        %1260 = vrot.lane.b32.xlu0 %v728, 112
        %v1261 = vpop.permute.xlu0 %1260
        %1262 = vrot.lane.b32.xlu0 %v728, 80
        %v1263 = vpop.permute.xlu0 %1262
        %v1264 = vsel %vm734, %v1261, 0
        %v1266 = vsel %vm734, %v1263, 0
        %1268 = vmatpush.xpose.msra.mxu0 0.0
        %1269 = vmatpush.xpose.msra.mxu0 0.0
        %1270 = vmatpush.xpose.msra.mxu0 0.0
        %1271 = vmatpush.xpose.msra.mxu0 0.0
        %1272 = vmatpush.xpose.msra.mxu0 0.0
        %1273 = vmatpush.xpose.msra.mxu0 0.0
        %1274 = vmatpush.xpose.msra.mxu0 0.0
        %1275 = vmatpush.xpose.msra.mxu0 0.0
        %1276 = vmatpush.xpose.msra.mxu0 0.0
        %1277 = vmatpush.xpose.msra.mxu0 0.0
        %1278 = vmatpush.xpose.msra.mxu0 0.0
        %1279 = vmatpush.xpose.msra.mxu0 0.0
        %1280 = vmatpush.xpose.msra.mxu0 0.0
        %1281 = vmatpush.xpose.msra.mxu0 0.0
        %1282 = vmatpush.xpose.msra.mxu0 0.0
        %1283 = vmatpush.xpose.msra.mxu0 %v1266
        %1284 = vmatmul.f32.gmra.mxu0 %v1264
        %v1285 = vpop.f32.mrf.mxu0
        %v1286 = vadd.f32 0.0, %v1285
        %1287 = vdwg.mxu0
        %v1288 = vmul.f32 %v1286, 0.70710677
        %v1289 = vsel %vm760, %v1288, -inf
        %1290 = vmax.xlane.f32.xlu0 %v1289
        %v1291 = vpop.xlane.xlu0 %1290
        %v1292 = vsub.f32 %v1288, %v1291
        %v1293 = vmul.f32 %v1292, 1.442695
        %v1294 = vpow.pop %v1293
        %v1295 = vsel %vm760, %v1294, 0.0
        %1296 = vadd.xlane.f32.xlu0 %v1295
        %v1297 = vpop.xlane.xlu0 %1296
        %v1298 = vrcp.pop %v1297
        %v1299 = vmul.f32 %v1294, %v1298
        %1300 = vrot.lane.b32.xlu0 %v728, 48
        %v1301 = vpop.permute.xlu0 %1300
        %v1304 = vsel %vm760, %v1299, 0
        %1306 = vmatpush.msra.mxu0 0.0
        %1307 = vmatpush.msra.mxu0 0.0
        %1308 = vmatpush.msra.mxu0 0.0
        %1309 = vmatpush.msra.mxu0 0.0
        %1310 = vmatpush.msra.mxu0 0.0
        %1311 = vmatpush.msra.mxu0 0.0
        %1312 = vmatpush.msra.mxu0 0.0
        %1313 = vmatpush.msra.mxu0 0.0
        %1314 = vmatpush.msra.mxu0 0.0
        %1315 = vmatpush.msra.mxu0 0.0
        %1316 = vmatpush.msra.mxu0 0.0
        %1317 = vmatpush.msra.mxu0 0.0
        %1318 = vmatpush.msra.mxu0 0.0
        %1319 = vmatpush.msra.mxu0 0.0
        %1320 = vmatpush.msra.mxu0 0.0
        %1321 = vmatpush.msra.mxu0 %v1301
        %1322 = vmatmul.f32.gmra.mxu0 %v1304
        %v1323 = vpop.f32.mrf.mxu0
        %v1324 = vadd.f32 0.0, %v1323
        %1325 = vdwg.mxu0
        %1326 = vrot.lane.b32.xlu0 %v728, 110
        %v1327 = vpop.permute.xlu0 %1326
        %1328 = vrot.lane.b32.xlu0 %v728, 78
        %v1329 = vpop.permute.xlu0 %1328
        %v1330 = vsel %vm734, %v1327, 0
        %v1332 = vsel %vm734, %v1329, 0
        %1334 = vmatpush.xpose.msra.mxu0 0.0
        %1335 = vmatpush.xpose.msra.mxu0 0.0
        %1336 = vmatpush.xpose.msra.mxu0 0.0
        %1337 = vmatpush.xpose.msra.mxu0 0.0
        %1338 = vmatpush.xpose.msra.mxu0 0.0
        %1339 = vmatpush.xpose.msra.mxu0 0.0
        %1340 = vmatpush.xpose.msra.mxu0 0.0
        %1341 = vmatpush.xpose.msra.mxu0 0.0
        %1342 = vmatpush.xpose.msra.mxu0 0.0
        %1343 = vmatpush.xpose.msra.mxu0 0.0
        %1344 = vmatpush.xpose.msra.mxu0 0.0
        %1345 = vmatpush.xpose.msra.mxu0 0.0
        %1346 = vmatpush.xpose.msra.mxu0 0.0
        %1347 = vmatpush.xpose.msra.mxu0 0.0
        %1348 = vmatpush.xpose.msra.mxu0 0.0
        %1349 = vmatpush.xpose.msra.mxu0 %v1332
        %1350 = vmatmul.f32.gmra.mxu0 %v1330
        %v1351 = vpop.f32.mrf.mxu0
        %v1352 = vadd.f32 0.0, %v1351
        %1353 = vdwg.mxu0
        %v1354 = vmul.f32 %v1352, 0.70710677
        %v1355 = vsel %vm760, %v1354, -inf
        %1356 = vmax.xlane.f32.xlu0 %v1355
        %v1357 = vpop.xlane.xlu0 %1356
        %v1358 = vsub.f32 %v1354, %v1357
        %v1359 = vmul.f32 %v1358, 1.442695
        %v1360 = vpow.pop %v1359
        %v1361 = vsel %vm760, %v1360, 0.0
        %1362 = vadd.xlane.f32.xlu0 %v1361
        %v1363 = vpop.xlane.xlu0 %1362
        %v1364 = vrcp.pop %v1363
        %v1365 = vmul.f32 %v1360, %v1364
        %1366 = vrot.lane.b32.xlu0 %v728, 46
        %v1367 = vpop.permute.xlu0 %1366
        %v1370 = vsel %vm760, %v1365, 0
        %1372 = vmatpush.msra.mxu0 0.0
        %1373 = vmatpush.msra.mxu0 0.0
        %1374 = vmatpush.msra.mxu0 0.0
        %1375 = vmatpush.msra.mxu0 0.0
        %1376 = vmatpush.msra.mxu0 0.0
        %1377 = vmatpush.msra.mxu0 0.0
        %1378 = vmatpush.msra.mxu0 0.0
        %1379 = vmatpush.msra.mxu0 0.0
        %1380 = vmatpush.msra.mxu0 0.0
        %1381 = vmatpush.msra.mxu0 0.0
        %1382 = vmatpush.msra.mxu0 0.0
        %1383 = vmatpush.msra.mxu0 0.0
        %1384 = vmatpush.msra.mxu0 0.0
        %1385 = vmatpush.msra.mxu0 0.0
        %1386 = vmatpush.msra.mxu0 0.0
        %1387 = vmatpush.msra.mxu0 %v1367
        %1388 = vmatmul.f32.gmra.mxu0 %v1370
        %v1389 = vpop.f32.mrf.mxu0
        %v1390 = vadd.f32 0.0, %v1389
        %1391 = vdwg.mxu0
        %1392 = vrot.lane.b32.xlu0 %v728, 108
        %v1393 = vpop.permute.xlu0 %1392
        %1394 = vrot.lane.b32.xlu0 %v728, 76
        %v1395 = vpop.permute.xlu0 %1394
        %v1396 = vsel %vm734, %v1393, 0
        %v1398 = vsel %vm734, %v1395, 0
        %1400 = vmatpush.xpose.msra.mxu0 0.0
        %1401 = vmatpush.xpose.msra.mxu0 0.0
        %1402 = vmatpush.xpose.msra.mxu0 0.0
        %1403 = vmatpush.xpose.msra.mxu0 0.0
        %1404 = vmatpush.xpose.msra.mxu0 0.0
        %1405 = vmatpush.xpose.msra.mxu0 0.0
        %1406 = vmatpush.xpose.msra.mxu0 0.0
        %1407 = vmatpush.xpose.msra.mxu0 0.0
        %1408 = vmatpush.xpose.msra.mxu0 0.0
        %1409 = vmatpush.xpose.msra.mxu0 0.0
        %1410 = vmatpush.xpose.msra.mxu0 0.0
        %1411 = vmatpush.xpose.msra.mxu0 0.0
        %1412 = vmatpush.xpose.msra.mxu0 0.0
        %1413 = vmatpush.xpose.msra.mxu0 0.0
        %1414 = vmatpush.xpose.msra.mxu0 0.0
        %1415 = vmatpush.xpose.msra.mxu0 %v1398
        %1416 = vmatmul.f32.gmra.mxu0 %v1396
        %v1417 = vpop.f32.mrf.mxu0
        %v1418 = vadd.f32 0.0, %v1417
        %1419 = vdwg.mxu0
        %v1420 = vmul.f32 %v1418, 0.70710677
        %v1421 = vsel %vm760, %v1420, -inf
        %1422 = vmax.xlane.f32.xlu0 %v1421
        %v1423 = vpop.xlane.xlu0 %1422
        %v1424 = vsub.f32 %v1420, %v1423
        %v1425 = vmul.f32 %v1424, 1.442695
        %v1426 = vpow.pop %v1425
        %v1427 = vsel %vm760, %v1426, 0.0
        %1428 = vadd.xlane.f32.xlu0 %v1427
        %v1429 = vpop.xlane.xlu0 %1428
        %v1430 = vrcp.pop %v1429
        %v1431 = vmul.f32 %v1426, %v1430
        %1432 = vrot.lane.b32.xlu0 %v728, 44
        %v1433 = vpop.permute.xlu0 %1432
        %v1436 = vsel %vm760, %v1431, 0
        %1438 = vmatpush.msra.mxu0 0.0
        %1439 = vmatpush.msra.mxu0 0.0
        %1440 = vmatpush.msra.mxu0 0.0
        %1441 = vmatpush.msra.mxu0 0.0
        %1442 = vmatpush.msra.mxu0 0.0
        %1443 = vmatpush.msra.mxu0 0.0
        %1444 = vmatpush.msra.mxu0 0.0
        %1445 = vmatpush.msra.mxu0 0.0
        %1446 = vmatpush.msra.mxu0 0.0
        %1447 = vmatpush.msra.mxu0 0.0
        %1448 = vmatpush.msra.mxu0 0.0
        %1449 = vmatpush.msra.mxu0 0.0
        %1450 = vmatpush.msra.mxu0 0.0
        %1451 = vmatpush.msra.mxu0 0.0
        %1452 = vmatpush.msra.mxu0 0.0
        %1453 = vmatpush.msra.mxu0 %v1433
        %1454 = vmatmul.f32.gmra.mxu0 %v1436
        %v1455 = vpop.f32.mrf.mxu0
        %v1456 = vadd.f32 0.0, %v1455
        %1457 = vdwg.mxu0
        %1458 = vrot.lane.b32.xlu0 %v728, 106
        %v1459 = vpop.permute.xlu0 %1458
        %1460 = vrot.lane.b32.xlu0 %v728, 74
        %v1461 = vpop.permute.xlu0 %1460
        %v1462 = vsel %vm734, %v1459, 0
        %v1464 = vsel %vm734, %v1461, 0
        %1466 = vmatpush.xpose.msra.mxu0 0.0
        %1467 = vmatpush.xpose.msra.mxu0 0.0
        %1468 = vmatpush.xpose.msra.mxu0 0.0
        %1469 = vmatpush.xpose.msra.mxu0 0.0
        %1470 = vmatpush.xpose.msra.mxu0 0.0
        %1471 = vmatpush.xpose.msra.mxu0 0.0
        %1472 = vmatpush.xpose.msra.mxu0 0.0
        %1473 = vmatpush.xpose.msra.mxu0 0.0
        %1474 = vmatpush.xpose.msra.mxu0 0.0
        %1475 = vmatpush.xpose.msra.mxu0 0.0
        %1476 = vmatpush.xpose.msra.mxu0 0.0
        %1477 = vmatpush.xpose.msra.mxu0 0.0
        %1478 = vmatpush.xpose.msra.mxu0 0.0
        %1479 = vmatpush.xpose.msra.mxu0 0.0
        %1480 = vmatpush.xpose.msra.mxu0 0.0
        %1481 = vmatpush.xpose.msra.mxu0 %v1464
        %1482 = vmatmul.f32.gmra.mxu0 %v1462
        %v1483 = vpop.f32.mrf.mxu0
        %v1484 = vadd.f32 0.0, %v1483
        %1485 = vdwg.mxu0
        %v1486 = vmul.f32 %v1484, 0.70710677
        %v1487 = vsel %vm760, %v1486, -inf
        %1488 = vmax.xlane.f32.xlu0 %v1487
        %v1489 = vpop.xlane.xlu0 %1488
        %v1490 = vsub.f32 %v1486, %v1489
        %v1491 = vmul.f32 %v1490, 1.442695
        %v1492 = vpow.pop %v1491
        %v1493 = vsel %vm760, %v1492, 0.0
        %1494 = vadd.xlane.f32.xlu0 %v1493
        %v1495 = vpop.xlane.xlu0 %1494
        %v1496 = vrcp.pop %v1495
        %v1497 = vmul.f32 %v1492, %v1496
        %1498 = vrot.lane.b32.xlu0 %v728, 42
        %v1499 = vpop.permute.xlu0 %1498
        %v1502 = vsel %vm760, %v1497, 0
        %1504 = vmatpush.msra.mxu0 0.0
        %1505 = vmatpush.msra.mxu0 0.0
        %1506 = vmatpush.msra.mxu0 0.0
        %1507 = vmatpush.msra.mxu0 0.0
        %1508 = vmatpush.msra.mxu0 0.0
        %1509 = vmatpush.msra.mxu0 0.0
        %1510 = vmatpush.msra.mxu0 0.0
        %1511 = vmatpush.msra.mxu0 0.0
        %1512 = vmatpush.msra.mxu0 0.0
        %1513 = vmatpush.msra.mxu0 0.0
        %1514 = vmatpush.msra.mxu0 0.0
        %1515 = vmatpush.msra.mxu0 0.0
        %1516 = vmatpush.msra.mxu0 0.0
        %1517 = vmatpush.msra.mxu0 0.0
        %1518 = vmatpush.msra.mxu0 0.0
        %1519 = vmatpush.msra.mxu0 %v1499
        %1520 = vmatmul.f32.gmra.mxu0 %v1502
        %v1521 = vpop.f32.mrf.mxu0
        %v1522 = vadd.f32 0.0, %v1521
        %1523 = vdwg.mxu0
        %1524 = vrot.lane.b32.xlu0 %v728, 104
        %v1525 = vpop.permute.xlu0 %1524
        %1526 = vrot.lane.b32.xlu0 %v728, 72
        %v1527 = vpop.permute.xlu0 %1526
        %v1528 = vsel %vm734, %v1525, 0
        %v1530 = vsel %vm734, %v1527, 0
        %1532 = vmatpush.xpose.msra.mxu0 0.0
        %1533 = vmatpush.xpose.msra.mxu0 0.0
        %1534 = vmatpush.xpose.msra.mxu0 0.0
        %1535 = vmatpush.xpose.msra.mxu0 0.0
        %1536 = vmatpush.xpose.msra.mxu0 0.0
        %1537 = vmatpush.xpose.msra.mxu0 0.0
        %1538 = vmatpush.xpose.msra.mxu0 0.0
        %1539 = vmatpush.xpose.msra.mxu0 0.0
        %1540 = vmatpush.xpose.msra.mxu0 0.0
        %1541 = vmatpush.xpose.msra.mxu0 0.0
        %1542 = vmatpush.xpose.msra.mxu0 0.0
        %1543 = vmatpush.xpose.msra.mxu0 0.0
        %1544 = vmatpush.xpose.msra.mxu0 0.0
        %1545 = vmatpush.xpose.msra.mxu0 0.0
        %1546 = vmatpush.xpose.msra.mxu0 0.0
        %1547 = vmatpush.xpose.msra.mxu0 %v1530
        %1548 = vmatmul.f32.gmra.mxu0 %v1528
        %v1549 = vpop.f32.mrf.mxu0
        %v1550 = vadd.f32 0.0, %v1549
        %1551 = vdwg.mxu0
        %v1552 = vmul.f32 %v1550, 0.70710677
        %v1553 = vsel %vm760, %v1552, -inf
        %1554 = vmax.xlane.f32.xlu0 %v1553
        %v1555 = vpop.xlane.xlu0 %1554
        %v1556 = vsub.f32 %v1552, %v1555
        %v1557 = vmul.f32 %v1556, 1.442695
        %v1558 = vpow.pop %v1557
        %v1559 = vsel %vm760, %v1558, 0.0
        %1560 = vadd.xlane.f32.xlu0 %v1559
        %v1561 = vpop.xlane.xlu0 %1560
        %v1562 = vrcp.pop %v1561
        %v1563 = vmul.f32 %v1558, %v1562
        %1564 = vrot.lane.b32.xlu0 %v728, 40
        %v1565 = vpop.permute.xlu0 %1564
        %v1568 = vsel %vm760, %v1563, 0
        %1570 = vmatpush.msra.mxu0 0.0
        %1571 = vmatpush.msra.mxu0 0.0
        %1572 = vmatpush.msra.mxu0 0.0
        %1573 = vmatpush.msra.mxu0 0.0
        %1574 = vmatpush.msra.mxu0 0.0
        %1575 = vmatpush.msra.mxu0 0.0
        %1576 = vmatpush.msra.mxu0 0.0
        %1577 = vmatpush.msra.mxu0 0.0
        %1578 = vmatpush.msra.mxu0 0.0
        %1579 = vmatpush.msra.mxu0 0.0
        %1580 = vmatpush.msra.mxu0 0.0
        %1581 = vmatpush.msra.mxu0 0.0
        %1582 = vmatpush.msra.mxu0 0.0
        %1583 = vmatpush.msra.mxu0 0.0
        %1584 = vmatpush.msra.mxu0 0.0
        %1585 = vmatpush.msra.mxu0 %v1565
        %1586 = vmatmul.f32.gmra.mxu0 %v1568
        %v1587 = vpop.f32.mrf.mxu0
        %v1588 = vadd.f32 0.0, %v1587
        %1589 = vdwg.mxu0
        %1590 = vrot.lane.b32.xlu0 %v728, 102
        %v1591 = vpop.permute.xlu0 %1590
        %1592 = vrot.lane.b32.xlu0 %v728, 70
        %v1593 = vpop.permute.xlu0 %1592
        %v1594 = vsel %vm734, %v1591, 0
        %v1596 = vsel %vm734, %v1593, 0
        %1598 = vmatpush.xpose.msra.mxu0 0.0
        %1599 = vmatpush.xpose.msra.mxu0 0.0
        %1600 = vmatpush.xpose.msra.mxu0 0.0
        %1601 = vmatpush.xpose.msra.mxu0 0.0
        %1602 = vmatpush.xpose.msra.mxu0 0.0
        %1603 = vmatpush.xpose.msra.mxu0 0.0
        %1604 = vmatpush.xpose.msra.mxu0 0.0
        %1605 = vmatpush.xpose.msra.mxu0 0.0
        %1606 = vmatpush.xpose.msra.mxu0 0.0
        %1607 = vmatpush.xpose.msra.mxu0 0.0
        %1608 = vmatpush.xpose.msra.mxu0 0.0
        %1609 = vmatpush.xpose.msra.mxu0 0.0
        %1610 = vmatpush.xpose.msra.mxu0 0.0
        %1611 = vmatpush.xpose.msra.mxu0 0.0
        %1612 = vmatpush.xpose.msra.mxu0 0.0
        %1613 = vmatpush.xpose.msra.mxu0 %v1596
        %1614 = vmatmul.f32.gmra.mxu0 %v1594
        %v1615 = vpop.f32.mrf.mxu0
        %v1616 = vadd.f32 0.0, %v1615
        %1617 = vdwg.mxu0
        %v1618 = vmul.f32 %v1616, 0.70710677
        %v1619 = vsel %vm760, %v1618, -inf
        %1620 = vmax.xlane.f32.xlu0 %v1619
        %v1621 = vpop.xlane.xlu0 %1620
        %v1622 = vsub.f32 %v1618, %v1621
        %v1623 = vmul.f32 %v1622, 1.442695
        %v1624 = vpow.pop %v1623
        %v1625 = vsel %vm760, %v1624, 0.0
        %1626 = vadd.xlane.f32.xlu0 %v1625
        %v1627 = vpop.xlane.xlu0 %1626
        %v1628 = vrcp.pop %v1627
        %v1629 = vmul.f32 %v1624, %v1628
        %1630 = vrot.lane.b32.xlu0 %v728, 38
        %v1631 = vpop.permute.xlu0 %1630
        %v1634 = vsel %vm760, %v1629, 0
        %1636 = vmatpush.msra.mxu0 0.0
        %1637 = vmatpush.msra.mxu0 0.0
        %1638 = vmatpush.msra.mxu0 0.0
        %1639 = vmatpush.msra.mxu0 0.0
        %1640 = vmatpush.msra.mxu0 0.0
        %1641 = vmatpush.msra.mxu0 0.0
        %1642 = vmatpush.msra.mxu0 0.0
        %1643 = vmatpush.msra.mxu0 0.0
        %1644 = vmatpush.msra.mxu0 0.0
        %1645 = vmatpush.msra.mxu0 0.0
        %1646 = vmatpush.msra.mxu0 0.0
        %1647 = vmatpush.msra.mxu0 0.0
        %1648 = vmatpush.msra.mxu0 0.0
        %1649 = vmatpush.msra.mxu0 0.0
        %1650 = vmatpush.msra.mxu0 0.0
        %1651 = vmatpush.msra.mxu0 %v1631
        %1652 = vmatmul.f32.gmra.mxu0 %v1634
        %v1653 = vpop.f32.mrf.mxu0
        %v1654 = vadd.f32 0.0, %v1653
        %1655 = vdwg.mxu0
        %1656 = vrot.lane.b32.xlu0 %v728, 100
        %v1657 = vpop.permute.xlu0 %1656
        %1658 = vrot.lane.b32.xlu0 %v728, 68
        %v1659 = vpop.permute.xlu0 %1658
        %v1660 = vsel %vm734, %v1657, 0
        %v1662 = vsel %vm734, %v1659, 0
        %1664 = vmatpush.xpose.msra.mxu0 0.0
        %1665 = vmatpush.xpose.msra.mxu0 0.0
        %1666 = vmatpush.xpose.msra.mxu0 0.0
        %1667 = vmatpush.xpose.msra.mxu0 0.0
        %1668 = vmatpush.xpose.msra.mxu0 0.0
        %1669 = vmatpush.xpose.msra.mxu0 0.0
        %1670 = vmatpush.xpose.msra.mxu0 0.0
        %1671 = vmatpush.xpose.msra.mxu0 0.0
        %1672 = vmatpush.xpose.msra.mxu0 0.0
        %1673 = vmatpush.xpose.msra.mxu0 0.0
        %1674 = vmatpush.xpose.msra.mxu0 0.0
        %1675 = vmatpush.xpose.msra.mxu0 0.0
        %1676 = vmatpush.xpose.msra.mxu0 0.0
        %1677 = vmatpush.xpose.msra.mxu0 0.0
        %1678 = vmatpush.xpose.msra.mxu0 0.0
        %1679 = vmatpush.xpose.msra.mxu0 %v1662
        %1680 = vmatmul.f32.gmra.mxu0 %v1660
        %v1681 = vpop.f32.mrf.mxu0
        %v1682 = vadd.f32 0.0, %v1681
        %1683 = vdwg.mxu0
        %v1684 = vmul.f32 %v1682, 0.70710677
        %v1685 = vsel %vm760, %v1684, -inf
        %1686 = vmax.xlane.f32.xlu0 %v1685
        %v1687 = vpop.xlane.xlu0 %1686
        %v1688 = vsub.f32 %v1684, %v1687
        %v1689 = vmul.f32 %v1688, 1.442695
        %v1690 = vpow.pop %v1689
        %v1691 = vsel %vm760, %v1690, 0.0
        %1692 = vadd.xlane.f32.xlu0 %v1691
        %v1693 = vpop.xlane.xlu0 %1692
        %v1694 = vrcp.pop %v1693
        %v1695 = vmul.f32 %v1690, %v1694
        %1696 = vrot.lane.b32.xlu0 %v728, 36
        %v1697 = vpop.permute.xlu0 %1696
        %v1700 = vsel %vm760, %v1695, 0
        %1702 = vmatpush.msra.mxu0 0.0
        %1703 = vmatpush.msra.mxu0 0.0
        %1704 = vmatpush.msra.mxu0 0.0
        %1705 = vmatpush.msra.mxu0 0.0
        %1706 = vmatpush.msra.mxu0 0.0
        %1707 = vmatpush.msra.mxu0 0.0
        %1708 = vmatpush.msra.mxu0 0.0
        %1709 = vmatpush.msra.mxu0 0.0
        %1710 = vmatpush.msra.mxu0 0.0
        %1711 = vmatpush.msra.mxu0 0.0
        %1712 = vmatpush.msra.mxu0 0.0
        %1713 = vmatpush.msra.mxu0 0.0
        %1714 = vmatpush.msra.mxu0 0.0
        %1715 = vmatpush.msra.mxu0 0.0
        %1716 = vmatpush.msra.mxu0 0.0
        %1717 = vmatpush.msra.mxu0 %v1697
        %1718 = vmatmul.f32.gmra.mxu0 %v1700
        %v1719 = vpop.f32.mrf.mxu0
        %v1720 = vadd.f32 0.0, %v1719
        %1721 = vdwg.mxu0
        %1722 = vrot.lane.b32.xlu0 %v728, 98
        %v1723 = vpop.permute.xlu0 %1722
        %1724 = vrot.lane.b32.xlu0 %v728, 66
        %v1725 = vpop.permute.xlu0 %1724
        %v1726 = vsel %vm734, %v1723, 0
        %v1728 = vsel %vm734, %v1725, 0
        %1730 = vmatpush.xpose.msra.mxu0 0.0
        %1731 = vmatpush.xpose.msra.mxu0 0.0
        %1732 = vmatpush.xpose.msra.mxu0 0.0
        %1733 = vmatpush.xpose.msra.mxu0 0.0
        %1734 = vmatpush.xpose.msra.mxu0 0.0
        %1735 = vmatpush.xpose.msra.mxu0 0.0
        %1736 = vmatpush.xpose.msra.mxu0 0.0
        %1737 = vmatpush.xpose.msra.mxu0 0.0
        %1738 = vmatpush.xpose.msra.mxu0 0.0
        %1739 = vmatpush.xpose.msra.mxu0 0.0
        %1740 = vmatpush.xpose.msra.mxu0 0.0
        %1741 = vmatpush.xpose.msra.mxu0 0.0
        %1742 = vmatpush.xpose.msra.mxu0 0.0
        %1743 = vmatpush.xpose.msra.mxu0 0.0
        %1744 = vmatpush.xpose.msra.mxu0 0.0
        %1745 = vmatpush.xpose.msra.mxu0 %v1728
        %1746 = vmatmul.f32.gmra.mxu0 %v1726
        %v1747 = vpop.f32.mrf.mxu0
        %v1748 = vadd.f32 0.0, %v1747
        %1749 = vdwg.mxu0
        %v1750 = vmul.f32 %v1748, 0.70710677
        %v1751 = vsel %vm760, %v1750, -inf
        %1752 = vmax.xlane.f32.xlu0 %v1751
        %v1753 = vpop.xlane.xlu0 %1752
        %v1754 = vsub.f32 %v1750, %v1753
        %v1755 = vmul.f32 %v1754, 1.442695
        %v1756 = vpow.pop %v1755
        %v1757 = vsel %vm760, %v1756, 0.0
        %1758 = vadd.xlane.f32.xlu0 %v1757
        %v1759 = vpop.xlane.xlu0 %1758
        %v1760 = vrcp.pop %v1759
        %v1761 = vmul.f32 %v1756, %v1760
        %1762 = vrot.lane.b32.xlu0 %v728, 34
        %v1763 = vpop.permute.xlu0 %1762
        %v1766 = vsel %vm760, %v1761, 0
        %1768 = vmatpush.msra.mxu0 0.0
        %1769 = vmatpush.msra.mxu0 0.0
        %1770 = vmatpush.msra.mxu0 0.0
        %1771 = vmatpush.msra.mxu0 0.0
        %1772 = vmatpush.msra.mxu0 0.0
        %1773 = vmatpush.msra.mxu0 0.0
        %1774 = vmatpush.msra.mxu0 0.0
        %1775 = vmatpush.msra.mxu0 0.0
        %1776 = vmatpush.msra.mxu0 0.0
        %1777 = vmatpush.msra.mxu0 0.0
        %1778 = vmatpush.msra.mxu0 0.0
        %1779 = vmatpush.msra.mxu0 0.0
        %1780 = vmatpush.msra.mxu0 0.0
        %1781 = vmatpush.msra.mxu0 0.0
        %1782 = vmatpush.msra.mxu0 0.0
        %1783 = vmatpush.msra.mxu0 %v1763
        %1784 = vmatmul.f32.gmra.mxu0 %v1766
        %v1785 = vpop.f32.mrf.mxu0
        %v1786 = vadd.f32 0.0, %v1785
        %1787 = vdwg.mxu0
        %1789 = vrot.lane.b32.xlu0 %v862, 2
        %v1790 = vpop.permute.xlu0 %1789
        %1793 = vrot.lane.b32.xlu0 %v928, 4
        %v1794 = vpop.permute.xlu0 %1793
        %1797 = vrot.lane.b32.xlu0 %v994, 6
        %v1798 = vpop.permute.xlu0 %1797
        %1801 = vrot.lane.b32.xlu0 %v1060, 8
        %v1802 = vpop.permute.xlu0 %1801
        %1805 = vrot.lane.b32.xlu0 %v1126, 10
        %v1806 = vpop.permute.xlu0 %1805
        %1809 = vrot.lane.b32.xlu0 %v1192, 12
        %v1810 = vpop.permute.xlu0 %1809
        %1813 = vrot.lane.b32.xlu0 %v1258, 14
        %v1814 = vpop.permute.xlu0 %1813
        %1817 = vrot.lane.b32.xlu0 %v1324, 16
        %v1818 = vpop.permute.xlu0 %1817
        %1821 = vrot.lane.b32.xlu0 %v1390, 18
        %v1822 = vpop.permute.xlu0 %1821
        %1825 = vrot.lane.b32.xlu0 %v1456, 20
        %v1826 = vpop.permute.xlu0 %1825
        %1829 = vrot.lane.b32.xlu0 %v1522, 22
        %v1830 = vpop.permute.xlu0 %1829
        %1833 = vrot.lane.b32.xlu0 %v1588, 24
        %v1834 = vpop.permute.xlu0 %1833
        %1837 = vrot.lane.b32.xlu0 %v1654, 26
        %v1838 = vpop.permute.xlu0 %1837
        %1841 = vrot.lane.b32.xlu0 %v1720, 28
        %v1842 = vpop.permute.xlu0 %1841
        %1845 = vrot.lane.b32.xlu0 %v1786, 30
        %v1846 = vpop.permute.xlu0 %1845
        %v1848 = vsel %vm734, %v796, %v1790
        %vm1849 = vcmask 31744
        %v1850 = vsel %vm1849, %v1848, %v1794
        %vm1851 = vcmask 48128
        %v1852 = vsel %vm1851, %v1850, %v1798
        %v1853 = vsel %vm760, %v1852, %v1802
        %vm1854 = vcmask 80896
        %v1855 = vsel %vm1854, %v1853, %v1806
        %vm1856 = vcmask 97280
        %v1857 = vsel %vm1856, %v1855, %v1810
        %vm1858 = vcmask 113664
        %v1859 = vsel %vm1858, %v1857, %v1814
        %vm1860 = vcmask 130048
        %v1861 = vsel %vm1860, %v1859, %v1818
        %vm1862 = vcmask 146432
        %v1863 = vsel %vm1862, %v1861, %v1822
        %vm1864 = vcmask 162816
        %v1865 = vsel %vm1864, %v1863, %v1826
        %vm1866 = vcmask 179200
        %v1867 = vsel %vm1866, %v1865, %v1830
        %vm1868 = vcmask 195584
        %v1869 = vsel %vm1868, %v1867, %v1834
        %vm1870 = vcmask 211968
        %v1871 = vsel %vm1870, %v1869, %v1838
        %vm1872 = vcmask 228352
        %v1873 = vsel %vm1872, %v1871, %v1842
        %vm1874 = vcmask 244736
        %v1875 = vsel %vm1874, %v1873, %v1846
        %v1876 = vpack.c.bf16 %v1875, %v1875
        %v1877 = vpack.c.bf16 %v705, %v704
        %v1878 = vpack.c.bf16 %v707, %v706
        %v1880 = vperm.slane %v708, 0
        %v1883 = vsel %vm655, %v1876, 0
        %1885 = vmatpush.bf16.msra.mxu0 0
        %1886 = vmatpush.bf16.msra.mxu0 0
        %1887 = vmatpush.bf16.msra.mxu0 0
        %1888 = vmatpush.bf16.msra.mxu0 0
        %1889 = vmatpush.bf16.msra.mxu0 0
        %1890 = vmatpush.bf16.msra.mxu0 0
        %1891 = vmatpush.bf16.msra.mxu0 %v1878
        %1892 = vmatpush.bf16.msra.mxu0 %v1877
        %1893 = vmatmul.bf16.gmra.mxu0 %v1883
        %v1894 = vpop.f32.mrf.mxu0
        %v1895 = vadd.f32 %v1880, %v1894
        %v1896 = vpop.f32.mrf.mxu0
        %1897 = vdwg.mxu0
        %v1898 = vld [vmem:[#allocation12] sm:$0xff]
        %v1899 = vld [vmem:[#allocation12 + $0x8] sm:$0xff]
        %v1900 = vld [vmem:[#allocation12 + $0x10] sm:$0xff]
        %v1901 = vld [vmem:[#allocation12 + $0x18] sm:$0xff]
        %v1902 = vld [vmem:[#allocation13] sm:$0x1]
        %v1903 = vld [vmem:[#allocation15] sm:$0xff]
        %v1904 = vld [vmem:[#allocation15 + $0x8] sm:$0xff]
        %v1905 = vld [vmem:[#allocation15 + $0x10] sm:$0xff]
        %v1906 = vld [vmem:[#allocation15 + $0x18] sm:$0xff]
        %v1907 = vld [vmem:[#allocation16] sm:$0x1]
        %v1908 = vld [vmem:[#allocation18] sm:$0xff]
        %v1909 = vld [vmem:[#allocation18 + $0x8] sm:$0xff]
        %v1910 = vld [vmem:[#allocation18 + $0x10] sm:$0xff]
        %v1911 = vld [vmem:[#allocation18 + $0x18] sm:$0xff]
        %v1912 = vld [vmem:[#allocation19] sm:$0x1]
        %v1913 = vpack.c.bf16 %v1899, %v1898
        %v1914 = vpack.c.bf16 %v1901, %v1900
        %v1916 = vperm.slane %v1902, 0
        %1918 = vmatpush.bf16.msra.mxu0 0
        %1919 = vmatpush.bf16.msra.mxu0 0
        %1920 = vmatpush.bf16.msra.mxu0 0
        %1921 = vmatpush.bf16.msra.mxu0 0
        %1922 = vmatpush.bf16.msra.mxu0 0
        %1923 = vmatpush.bf16.msra.mxu0 0
        %1924 = vmatpush.bf16.msra.mxu0 %v1914
        %1925 = vmatpush.bf16.msra.mxu0 %v1913
        %1926 = vmatmul.bf16.gmra.mxu0 %v716
        %v1927 = vpop.f32.mrf.mxu0
        %v1928 = vadd.f32 %v1916, %v1927
        %v1929 = vpop.f32.mrf.mxu0
        %1930 = vdwg.mxu0
        %v1931 = vpack.c.bf16 %v652, %v652
        %v1932 = vpack.c.bf16 %v1904, %v1903
        %v1933 = vpack.c.bf16 %v1906, %v1905
        %v1935 = vperm.slane %v1907, 0
        %v1938 = vsel %vm655, %v1931, 0
        %1940 = vmatpush.bf16.msra.mxu0 0
        %1941 = vmatpush.bf16.msra.mxu0 0
        %1942 = vmatpush.bf16.msra.mxu0 0
        %1943 = vmatpush.bf16.msra.mxu0 0
        %1944 = vmatpush.bf16.msra.mxu0 0
        %1945 = vmatpush.bf16.msra.mxu0 0
        %1946 = vmatpush.bf16.msra.mxu0 %v1933
        %1947 = vmatpush.bf16.msra.mxu0 %v1932
        %1948 = vmatmul.bf16.gmra.mxu0 %v1938
        %v1949 = vpop.f32.mrf.mxu0
        %v1950 = vadd.f32 %v1935, %v1949
        %v1951 = vpop.f32.mrf.mxu0
        %1952 = vdwg.mxu0
        %v1954 = vsel %vm1849, %v1928, 0
        %v1957 = vsel %vm1849, %v1950, 0
        %1959 = vmatpush.xpose.msra.mxu0 0.0
        %1960 = vmatpush.xpose.msra.mxu0 0.0
        %1961 = vmatpush.xpose.msra.mxu0 0.0
        %1962 = vmatpush.xpose.msra.mxu0 0.0
        %1963 = vmatpush.xpose.msra.mxu0 0.0
        %1964 = vmatpush.xpose.msra.mxu0 0.0
        %1965 = vmatpush.xpose.msra.mxu0 0.0
        %1966 = vmatpush.xpose.msra.mxu0 0.0
        %1967 = vmatpush.xpose.msra.mxu0 0.0
        %1968 = vmatpush.xpose.msra.mxu0 0.0
        %1969 = vmatpush.xpose.msra.mxu0 0.0
        %1970 = vmatpush.xpose.msra.mxu0 0.0
        %1971 = vmatpush.xpose.msra.mxu0 0.0
        %1972 = vmatpush.xpose.msra.mxu0 0.0
        %1973 = vmatpush.xpose.msra.mxu0 0.0
        %1974 = vmatpush.xpose.msra.mxu0 %v1957
        %1975 = vmatmul.f32.gmra.mxu0 %v1954
        %v1976 = vpop.f32.mrf.mxu0
        %v1977 = vadd.f32 0.0, %v1976
        %1978 = vdwg.mxu0
        %v1979 = vmul.f32 %v1977, 0.5
        %v1980 = vsel %vm760, %v1979, -inf
        %1981 = vmax.xlane.f32.xlu0 %v1980
        %v1982 = vpop.xlane.xlu0 %1981
        %v1983 = vsub.f32 %v1979, %v1982
        %v1984 = vmul.f32 %v1983, 1.442695
        %v1985 = vpow.pop %v1984
        %v1986 = vsel %vm760, %v1985, 0.0
        %1987 = vadd.xlane.f32.xlu0 %v1986
        %v1988 = vpop.xlane.xlu0 %1987
        %v1989 = vrcp.pop %v1988
        %v1990 = vmul.f32 %v1985, %v1989
        %1991 = vrot.lane.b32.xlu0 %v1950, 96
        %v1992 = vpop.permute.xlu0 %1991
        %v1995 = vsel %vm760, %v1990, 0
        %1997 = vmatpush.msra.mxu0 0.0
        %1998 = vmatpush.msra.mxu0 0.0
        %1999 = vmatpush.msra.mxu0 0.0
        %2000 = vmatpush.msra.mxu0 0.0
        %2001 = vmatpush.msra.mxu0 0.0
        %2002 = vmatpush.msra.mxu0 0.0
        %2003 = vmatpush.msra.mxu0 0.0
        %2004 = vmatpush.msra.mxu0 0.0
        %2005 = vmatpush.msra.mxu0 0.0
        %2006 = vmatpush.msra.mxu0 0.0
        %2007 = vmatpush.msra.mxu0 0.0
        %2008 = vmatpush.msra.mxu0 0.0
        %2009 = vmatpush.msra.mxu0 0.0
        %2010 = vmatpush.msra.mxu0 0.0
        %2011 = vmatpush.msra.mxu0 0.0
        %2012 = vmatpush.msra.mxu0 %v1992
        %2013 = vmatmul.f32.gmra.mxu0 %v1995
        %v2014 = vpop.f32.mrf.mxu0
        %v2015 = vadd.f32 0.0, %v2014
        %2016 = vdwg.mxu0
        %2017 = vrot.lane.b32.xlu0 %v1928, 124
        %v2018 = vpop.permute.xlu0 %2017
        %2019 = vrot.lane.b32.xlu0 %v1950, 124
        %v2020 = vpop.permute.xlu0 %2019
        %v2021 = vsel %vm1849, %v2018, 0
        %v2023 = vsel %vm1849, %v2020, 0
        %2025 = vmatpush.xpose.msra.mxu0 0.0
        %2026 = vmatpush.xpose.msra.mxu0 0.0
        %2027 = vmatpush.xpose.msra.mxu0 0.0
        %2028 = vmatpush.xpose.msra.mxu0 0.0
        %2029 = vmatpush.xpose.msra.mxu0 0.0
        %2030 = vmatpush.xpose.msra.mxu0 0.0
        %2031 = vmatpush.xpose.msra.mxu0 0.0
        %2032 = vmatpush.xpose.msra.mxu0 0.0
        %2033 = vmatpush.xpose.msra.mxu0 0.0
        %2034 = vmatpush.xpose.msra.mxu0 0.0
        %2035 = vmatpush.xpose.msra.mxu0 0.0
        %2036 = vmatpush.xpose.msra.mxu0 0.0
        %2037 = vmatpush.xpose.msra.mxu0 0.0
        %2038 = vmatpush.xpose.msra.mxu0 0.0
        %2039 = vmatpush.xpose.msra.mxu0 0.0
        %2040 = vmatpush.xpose.msra.mxu0 %v2023
        %2041 = vmatmul.f32.gmra.mxu0 %v2021
        %v2042 = vpop.f32.mrf.mxu0
        %v2043 = vadd.f32 0.0, %v2042
        %2044 = vdwg.mxu0
        %v2045 = vmul.f32 %v2043, 0.5
        %v2046 = vsel %vm760, %v2045, -inf
        %2047 = vmax.xlane.f32.xlu0 %v2046
        %v2048 = vpop.xlane.xlu0 %2047
        %v2049 = vsub.f32 %v2045, %v2048
        %v2050 = vmul.f32 %v2049, 1.442695
        %v2051 = vpow.pop %v2050
        %v2052 = vsel %vm760, %v2051, 0.0
        %2053 = vadd.xlane.f32.xlu0 %v2052
        %v2054 = vpop.xlane.xlu0 %2053
        %v2055 = vrcp.pop %v2054
        %v2056 = vmul.f32 %v2051, %v2055
        %2057 = vrot.lane.b32.xlu0 %v1950, 92
        %v2058 = vpop.permute.xlu0 %2057
        %v2061 = vsel %vm760, %v2056, 0
        %2063 = vmatpush.msra.mxu0 0.0
        %2064 = vmatpush.msra.mxu0 0.0
        %2065 = vmatpush.msra.mxu0 0.0
        %2066 = vmatpush.msra.mxu0 0.0
        %2067 = vmatpush.msra.mxu0 0.0
        %2068 = vmatpush.msra.mxu0 0.0
        %2069 = vmatpush.msra.mxu0 0.0
        %2070 = vmatpush.msra.mxu0 0.0
        %2071 = vmatpush.msra.mxu0 0.0
        %2072 = vmatpush.msra.mxu0 0.0
        %2073 = vmatpush.msra.mxu0 0.0
        %2074 = vmatpush.msra.mxu0 0.0
        %2075 = vmatpush.msra.mxu0 0.0
        %2076 = vmatpush.msra.mxu0 0.0
        %2077 = vmatpush.msra.mxu0 0.0
        %2078 = vmatpush.msra.mxu0 %v2058
        %2079 = vmatmul.f32.gmra.mxu0 %v2061
        %v2080 = vpop.f32.mrf.mxu0
        %v2081 = vadd.f32 0.0, %v2080
        %2082 = vdwg.mxu0
        %2083 = vrot.lane.b32.xlu0 %v1928, 120
        %v2084 = vpop.permute.xlu0 %2083
        %2085 = vrot.lane.b32.xlu0 %v1950, 120
        %v2086 = vpop.permute.xlu0 %2085
        %v2087 = vsel %vm1849, %v2084, 0
        %v2089 = vsel %vm1849, %v2086, 0
        %2091 = vmatpush.xpose.msra.mxu0 0.0
        %2092 = vmatpush.xpose.msra.mxu0 0.0
        %2093 = vmatpush.xpose.msra.mxu0 0.0
        %2094 = vmatpush.xpose.msra.mxu0 0.0
        %2095 = vmatpush.xpose.msra.mxu0 0.0
        %2096 = vmatpush.xpose.msra.mxu0 0.0
        %2097 = vmatpush.xpose.msra.mxu0 0.0
        %2098 = vmatpush.xpose.msra.mxu0 0.0
        %2099 = vmatpush.xpose.msra.mxu0 0.0
        %2100 = vmatpush.xpose.msra.mxu0 0.0
        %2101 = vmatpush.xpose.msra.mxu0 0.0
        %2102 = vmatpush.xpose.msra.mxu0 0.0
        %2103 = vmatpush.xpose.msra.mxu0 0.0
        %2104 = vmatpush.xpose.msra.mxu0 0.0
        %2105 = vmatpush.xpose.msra.mxu0 0.0
        %2106 = vmatpush.xpose.msra.mxu0 %v2089
        %2107 = vmatmul.f32.gmra.mxu0 %v2087
        %v2108 = vpop.f32.mrf.mxu0
        %v2109 = vadd.f32 0.0, %v2108
        %2110 = vdwg.mxu0
        %v2111 = vmul.f32 %v2109, 0.5
        %v2112 = vsel %vm760, %v2111, -inf
        %2113 = vmax.xlane.f32.xlu0 %v2112
        %v2114 = vpop.xlane.xlu0 %2113
        %v2115 = vsub.f32 %v2111, %v2114
        %v2116 = vmul.f32 %v2115, 1.442695
        %v2117 = vpow.pop %v2116
        %v2118 = vsel %vm760, %v2117, 0.0
        %2119 = vadd.xlane.f32.xlu0 %v2118
        %v2120 = vpop.xlane.xlu0 %2119
        %v2121 = vrcp.pop %v2120
        %v2122 = vmul.f32 %v2117, %v2121
        %2123 = vrot.lane.b32.xlu0 %v1950, 88
        %v2124 = vpop.permute.xlu0 %2123
        %v2127 = vsel %vm760, %v2122, 0
        %2129 = vmatpush.msra.mxu0 0.0
        %2130 = vmatpush.msra.mxu0 0.0
        %2131 = vmatpush.msra.mxu0 0.0
        %2132 = vmatpush.msra.mxu0 0.0
        %2133 = vmatpush.msra.mxu0 0.0
        %2134 = vmatpush.msra.mxu0 0.0
        %2135 = vmatpush.msra.mxu0 0.0
        %2136 = vmatpush.msra.mxu0 0.0
        %2137 = vmatpush.msra.mxu0 0.0
        %2138 = vmatpush.msra.mxu0 0.0
        %2139 = vmatpush.msra.mxu0 0.0
        %2140 = vmatpush.msra.mxu0 0.0
        %2141 = vmatpush.msra.mxu0 0.0
        %2142 = vmatpush.msra.mxu0 0.0
        %2143 = vmatpush.msra.mxu0 0.0
        %2144 = vmatpush.msra.mxu0 %v2124
        %2145 = vmatmul.f32.gmra.mxu0 %v2127
        %v2146 = vpop.f32.mrf.mxu0
        %v2147 = vadd.f32 0.0, %v2146
        %2148 = vdwg.mxu0
        %2149 = vrot.lane.b32.xlu0 %v1928, 116
        %v2150 = vpop.permute.xlu0 %2149
        %2151 = vrot.lane.b32.xlu0 %v1950, 116
        %v2152 = vpop.permute.xlu0 %2151
        %v2153 = vsel %vm1849, %v2150, 0
        %v2155 = vsel %vm1849, %v2152, 0
        %2157 = vmatpush.xpose.msra.mxu0 0.0
        %2158 = vmatpush.xpose.msra.mxu0 0.0
        %2159 = vmatpush.xpose.msra.mxu0 0.0
        %2160 = vmatpush.xpose.msra.mxu0 0.0
        %2161 = vmatpush.xpose.msra.mxu0 0.0
        %2162 = vmatpush.xpose.msra.mxu0 0.0
        %2163 = vmatpush.xpose.msra.mxu0 0.0
        %2164 = vmatpush.xpose.msra.mxu0 0.0
        %2165 = vmatpush.xpose.msra.mxu0 0.0
        %2166 = vmatpush.xpose.msra.mxu0 0.0
        %2167 = vmatpush.xpose.msra.mxu0 0.0
        %2168 = vmatpush.xpose.msra.mxu0 0.0
        %2169 = vmatpush.xpose.msra.mxu0 0.0
        %2170 = vmatpush.xpose.msra.mxu0 0.0
        %2171 = vmatpush.xpose.msra.mxu0 0.0
        %2172 = vmatpush.xpose.msra.mxu0 %v2155
        %2173 = vmatmul.f32.gmra.mxu0 %v2153
        %v2174 = vpop.f32.mrf.mxu0
        %v2175 = vadd.f32 0.0, %v2174
        %2176 = vdwg.mxu0
        %v2177 = vmul.f32 %v2175, 0.5
        %v2178 = vsel %vm760, %v2177, -inf
        %2179 = vmax.xlane.f32.xlu0 %v2178
        %v2180 = vpop.xlane.xlu0 %2179
        %v2181 = vsub.f32 %v2177, %v2180
        %v2182 = vmul.f32 %v2181, 1.442695
        %v2183 = vpow.pop %v2182
        %v2184 = vsel %vm760, %v2183, 0.0
        %2185 = vadd.xlane.f32.xlu0 %v2184
        %v2186 = vpop.xlane.xlu0 %2185
        %v2187 = vrcp.pop %v2186
        %v2188 = vmul.f32 %v2183, %v2187
        %2189 = vrot.lane.b32.xlu0 %v1950, 84
        %v2190 = vpop.permute.xlu0 %2189
        %v2193 = vsel %vm760, %v2188, 0
        %2195 = vmatpush.msra.mxu0 0.0
        %2196 = vmatpush.msra.mxu0 0.0
        %2197 = vmatpush.msra.mxu0 0.0
        %2198 = vmatpush.msra.mxu0 0.0
        %2199 = vmatpush.msra.mxu0 0.0
        %2200 = vmatpush.msra.mxu0 0.0
        %2201 = vmatpush.msra.mxu0 0.0
        %2202 = vmatpush.msra.mxu0 0.0
        %2203 = vmatpush.msra.mxu0 0.0
        %2204 = vmatpush.msra.mxu0 0.0
        %2205 = vmatpush.msra.mxu0 0.0
        %2206 = vmatpush.msra.mxu0 0.0
        %2207 = vmatpush.msra.mxu0 0.0
        %2208 = vmatpush.msra.mxu0 0.0
        %2209 = vmatpush.msra.mxu0 0.0
        %2210 = vmatpush.msra.mxu0 %v2190
        %2211 = vmatmul.f32.gmra.mxu0 %v2193
        %v2212 = vpop.f32.mrf.mxu0
        %v2213 = vadd.f32 0.0, %v2212
        %2214 = vdwg.mxu0
        %2215 = vrot.lane.b32.xlu0 %v1928, 112
        %v2216 = vpop.permute.xlu0 %2215
        %2217 = vrot.lane.b32.xlu0 %v1950, 112
        %v2218 = vpop.permute.xlu0 %2217
        %v2219 = vsel %vm1849, %v2216, 0
        %v2221 = vsel %vm1849, %v2218, 0
        %2223 = vmatpush.xpose.msra.mxu0 0.0
        %2224 = vmatpush.xpose.msra.mxu0 0.0
        %2225 = vmatpush.xpose.msra.mxu0 0.0
        %2226 = vmatpush.xpose.msra.mxu0 0.0
        %2227 = vmatpush.xpose.msra.mxu0 0.0
        %2228 = vmatpush.xpose.msra.mxu0 0.0
        %2229 = vmatpush.xpose.msra.mxu0 0.0
        %2230 = vmatpush.xpose.msra.mxu0 0.0
        %2231 = vmatpush.xpose.msra.mxu0 0.0
        %2232 = vmatpush.xpose.msra.mxu0 0.0
        %2233 = vmatpush.xpose.msra.mxu0 0.0
        %2234 = vmatpush.xpose.msra.mxu0 0.0
        %2235 = vmatpush.xpose.msra.mxu0 0.0
        %2236 = vmatpush.xpose.msra.mxu0 0.0
        %2237 = vmatpush.xpose.msra.mxu0 0.0
        %2238 = vmatpush.xpose.msra.mxu0 %v2221
        %2239 = vmatmul.f32.gmra.mxu0 %v2219
        %v2240 = vpop.f32.mrf.mxu0
        %v2241 = vadd.f32 0.0, %v2240
        %2242 = vdwg.mxu0
        %v2243 = vmul.f32 %v2241, 0.5
        %v2244 = vsel %vm760, %v2243, -inf
        %2245 = vmax.xlane.f32.xlu0 %v2244
        %v2246 = vpop.xlane.xlu0 %2245
        %v2247 = vsub.f32 %v2243, %v2246
        %v2248 = vmul.f32 %v2247, 1.442695
        %v2249 = vpow.pop %v2248
        %v2250 = vsel %vm760, %v2249, 0.0
        %2251 = vadd.xlane.f32.xlu0 %v2250
        %v2252 = vpop.xlane.xlu0 %2251
        %v2253 = vrcp.pop %v2252
        %v2254 = vmul.f32 %v2249, %v2253
        %2255 = vrot.lane.b32.xlu0 %v1950, 80
        %v2256 = vpop.permute.xlu0 %2255
        %v2259 = vsel %vm760, %v2254, 0
        %2261 = vmatpush.msra.mxu0 0.0
        %2262 = vmatpush.msra.mxu0 0.0
        %2263 = vmatpush.msra.mxu0 0.0
        %2264 = vmatpush.msra.mxu0 0.0
        %2265 = vmatpush.msra.mxu0 0.0
        %2266 = vmatpush.msra.mxu0 0.0
        %2267 = vmatpush.msra.mxu0 0.0
        %2268 = vmatpush.msra.mxu0 0.0
        %2269 = vmatpush.msra.mxu0 0.0
        %2270 = vmatpush.msra.mxu0 0.0
        %2271 = vmatpush.msra.mxu0 0.0
        %2272 = vmatpush.msra.mxu0 0.0
        %2273 = vmatpush.msra.mxu0 0.0
        %2274 = vmatpush.msra.mxu0 0.0
        %2275 = vmatpush.msra.mxu0 0.0
        %2276 = vmatpush.msra.mxu0 %v2256
        %2277 = vmatmul.f32.gmra.mxu0 %v2259
        %v2278 = vpop.f32.mrf.mxu0
        %v2279 = vadd.f32 0.0, %v2278
        %2280 = vdwg.mxu0
        %2281 = vrot.lane.b32.xlu0 %v1928, 108
        %v2282 = vpop.permute.xlu0 %2281
        %2283 = vrot.lane.b32.xlu0 %v1950, 108
        %v2284 = vpop.permute.xlu0 %2283
        %v2285 = vsel %vm1849, %v2282, 0
        %v2287 = vsel %vm1849, %v2284, 0
        %2289 = vmatpush.xpose.msra.mxu0 0.0
        %2290 = vmatpush.xpose.msra.mxu0 0.0
        %2291 = vmatpush.xpose.msra.mxu0 0.0
        %2292 = vmatpush.xpose.msra.mxu0 0.0
        %2293 = vmatpush.xpose.msra.mxu0 0.0
        %2294 = vmatpush.xpose.msra.mxu0 0.0
        %2295 = vmatpush.xpose.msra.mxu0 0.0
        %2296 = vmatpush.xpose.msra.mxu0 0.0
        %2297 = vmatpush.xpose.msra.mxu0 0.0
        %2298 = vmatpush.xpose.msra.mxu0 0.0
        %2299 = vmatpush.xpose.msra.mxu0 0.0
        %2300 = vmatpush.xpose.msra.mxu0 0.0
        %2301 = vmatpush.xpose.msra.mxu0 0.0
        %2302 = vmatpush.xpose.msra.mxu0 0.0
        %2303 = vmatpush.xpose.msra.mxu0 0.0
        %2304 = vmatpush.xpose.msra.mxu0 %v2287
        %2305 = vmatmul.f32.gmra.mxu0 %v2285
        %v2306 = vpop.f32.mrf.mxu0
        %v2307 = vadd.f32 0.0, %v2306
        %2308 = vdwg.mxu0
        %v2309 = vmul.f32 %v2307, 0.5
        %v2310 = vsel %vm760, %v2309, -inf
        %2311 = vmax.xlane.f32.xlu0 %v2310
        %v2312 = vpop.xlane.xlu0 %2311
        %v2313 = vsub.f32 %v2309, %v2312
        %v2314 = vmul.f32 %v2313, 1.442695
        %v2315 = vpow.pop %v2314
        %v2316 = vsel %vm760, %v2315, 0.0
        %2317 = vadd.xlane.f32.xlu0 %v2316
        %v2318 = vpop.xlane.xlu0 %2317
        %v2319 = vrcp.pop %v2318
        %v2320 = vmul.f32 %v2315, %v2319
        %2321 = vrot.lane.b32.xlu0 %v1950, 76
        %v2322 = vpop.permute.xlu0 %2321
        %v2325 = vsel %vm760, %v2320, 0
        %2327 = vmatpush.msra.mxu0 0.0
        %2328 = vmatpush.msra.mxu0 0.0
        %2329 = vmatpush.msra.mxu0 0.0
        %2330 = vmatpush.msra.mxu0 0.0
        %2331 = vmatpush.msra.mxu0 0.0
        %2332 = vmatpush.msra.mxu0 0.0
        %2333 = vmatpush.msra.mxu0 0.0
        %2334 = vmatpush.msra.mxu0 0.0
        %2335 = vmatpush.msra.mxu0 0.0
        %2336 = vmatpush.msra.mxu0 0.0
        %2337 = vmatpush.msra.mxu0 0.0
        %2338 = vmatpush.msra.mxu0 0.0
        %2339 = vmatpush.msra.mxu0 0.0
        %2340 = vmatpush.msra.mxu0 0.0
        %2341 = vmatpush.msra.mxu0 0.0
        %2342 = vmatpush.msra.mxu0 %v2322
        %2343 = vmatmul.f32.gmra.mxu0 %v2325
        %v2344 = vpop.f32.mrf.mxu0
        %v2345 = vadd.f32 0.0, %v2344
        %2346 = vdwg.mxu0
        %2347 = vrot.lane.b32.xlu0 %v1928, 104
        %v2348 = vpop.permute.xlu0 %2347
        %2349 = vrot.lane.b32.xlu0 %v1950, 104
        %v2350 = vpop.permute.xlu0 %2349
        %v2351 = vsel %vm1849, %v2348, 0
        %v2353 = vsel %vm1849, %v2350, 0
        %2355 = vmatpush.xpose.msra.mxu0 0.0
        %2356 = vmatpush.xpose.msra.mxu0 0.0
        %2357 = vmatpush.xpose.msra.mxu0 0.0
        %2358 = vmatpush.xpose.msra.mxu0 0.0
        %2359 = vmatpush.xpose.msra.mxu0 0.0
        %2360 = vmatpush.xpose.msra.mxu0 0.0
        %2361 = vmatpush.xpose.msra.mxu0 0.0
        %2362 = vmatpush.xpose.msra.mxu0 0.0
        %2363 = vmatpush.xpose.msra.mxu0 0.0
        %2364 = vmatpush.xpose.msra.mxu0 0.0
        %2365 = vmatpush.xpose.msra.mxu0 0.0
        %2366 = vmatpush.xpose.msra.mxu0 0.0
        %2367 = vmatpush.xpose.msra.mxu0 0.0
        %2368 = vmatpush.xpose.msra.mxu0 0.0
        %2369 = vmatpush.xpose.msra.mxu0 0.0
        %2370 = vmatpush.xpose.msra.mxu0 %v2353
        %2371 = vmatmul.f32.gmra.mxu0 %v2351
        %v2372 = vpop.f32.mrf.mxu0
        %v2373 = vadd.f32 0.0, %v2372
        %2374 = vdwg.mxu0
        %v2375 = vmul.f32 %v2373, 0.5
        %v2376 = vsel %vm760, %v2375, -inf
        %2377 = vmax.xlane.f32.xlu0 %v2376
        %v2378 = vpop.xlane.xlu0 %2377
        %v2379 = vsub.f32 %v2375, %v2378
        %v2380 = vmul.f32 %v2379, 1.442695
        %v2381 = vpow.pop %v2380
        %v2382 = vsel %vm760, %v2381, 0.0
        %2383 = vadd.xlane.f32.xlu0 %v2382
        %v2384 = vpop.xlane.xlu0 %2383
        %v2385 = vrcp.pop %v2384
        %v2386 = vmul.f32 %v2381, %v2385
        %2387 = vrot.lane.b32.xlu0 %v1950, 72
        %v2388 = vpop.permute.xlu0 %2387
        %v2391 = vsel %vm760, %v2386, 0
        %2393 = vmatpush.msra.mxu0 0.0
        %2394 = vmatpush.msra.mxu0 0.0
        %2395 = vmatpush.msra.mxu0 0.0
        %2396 = vmatpush.msra.mxu0 0.0
        %2397 = vmatpush.msra.mxu0 0.0
        %2398 = vmatpush.msra.mxu0 0.0
        %2399 = vmatpush.msra.mxu0 0.0
        %2400 = vmatpush.msra.mxu0 0.0
        %2401 = vmatpush.msra.mxu0 0.0
        %2402 = vmatpush.msra.mxu0 0.0
        %2403 = vmatpush.msra.mxu0 0.0
        %2404 = vmatpush.msra.mxu0 0.0
        %2405 = vmatpush.msra.mxu0 0.0
        %2406 = vmatpush.msra.mxu0 0.0
        %2407 = vmatpush.msra.mxu0 0.0
        %2408 = vmatpush.msra.mxu0 %v2388
        %2409 = vmatmul.f32.gmra.mxu0 %v2391
        %v2410 = vpop.f32.mrf.mxu0
        %v2411 = vadd.f32 0.0, %v2410
        %2412 = vdwg.mxu0
        %2413 = vrot.lane.b32.xlu0 %v1928, 100
        %v2414 = vpop.permute.xlu0 %2413
        %2415 = vrot.lane.b32.xlu0 %v1950, 100
        %v2416 = vpop.permute.xlu0 %2415
        %v2417 = vsel %vm1849, %v2414, 0
        %v2419 = vsel %vm1849, %v2416, 0
        %2421 = vmatpush.xpose.msra.mxu0 0.0
        %2422 = vmatpush.xpose.msra.mxu0 0.0
        %2423 = vmatpush.xpose.msra.mxu0 0.0
        %2424 = vmatpush.xpose.msra.mxu0 0.0
        %2425 = vmatpush.xpose.msra.mxu0 0.0
        %2426 = vmatpush.xpose.msra.mxu0 0.0
        %2427 = vmatpush.xpose.msra.mxu0 0.0
        %2428 = vmatpush.xpose.msra.mxu0 0.0
        %2429 = vmatpush.xpose.msra.mxu0 0.0
        %2430 = vmatpush.xpose.msra.mxu0 0.0
        %2431 = vmatpush.xpose.msra.mxu0 0.0
        %2432 = vmatpush.xpose.msra.mxu0 0.0
        %2433 = vmatpush.xpose.msra.mxu0 0.0
        %2434 = vmatpush.xpose.msra.mxu0 0.0
        %2435 = vmatpush.xpose.msra.mxu0 0.0
        %2436 = vmatpush.xpose.msra.mxu0 %v2419
        %2437 = vmatmul.f32.gmra.mxu0 %v2417
        %v2438 = vpop.f32.mrf.mxu0
        %v2439 = vadd.f32 0.0, %v2438
        %2440 = vdwg.mxu0
        %v2441 = vmul.f32 %v2439, 0.5
        %v2442 = vsel %vm760, %v2441, -inf
        %2443 = vmax.xlane.f32.xlu0 %v2442
        %v2444 = vpop.xlane.xlu0 %2443
        %v2445 = vsub.f32 %v2441, %v2444
        %v2446 = vmul.f32 %v2445, 1.442695
        %v2447 = vpow.pop %v2446
        %v2448 = vsel %vm760, %v2447, 0.0
        %2449 = vadd.xlane.f32.xlu0 %v2448
        %v2450 = vpop.xlane.xlu0 %2449
        %v2451 = vrcp.pop %v2450
        %v2452 = vmul.f32 %v2447, %v2451
        %2453 = vrot.lane.b32.xlu0 %v1950, 68
        %v2454 = vpop.permute.xlu0 %2453
        %v2457 = vsel %vm760, %v2452, 0
        %2459 = vmatpush.msra.mxu0 0.0
        %2460 = vmatpush.msra.mxu0 0.0
        %2461 = vmatpush.msra.mxu0 0.0
        %2462 = vmatpush.msra.mxu0 0.0
        %2463 = vmatpush.msra.mxu0 0.0
        %2464 = vmatpush.msra.mxu0 0.0
        %2465 = vmatpush.msra.mxu0 0.0
        %2466 = vmatpush.msra.mxu0 0.0
        %2467 = vmatpush.msra.mxu0 0.0
        %2468 = vmatpush.msra.mxu0 0.0
        %2469 = vmatpush.msra.mxu0 0.0
        %2470 = vmatpush.msra.mxu0 0.0
        %2471 = vmatpush.msra.mxu0 0.0
        %2472 = vmatpush.msra.mxu0 0.0
        %2473 = vmatpush.msra.mxu0 0.0
        %2474 = vmatpush.msra.mxu0 %v2454
        %2475 = vmatmul.f32.gmra.mxu0 %v2457
        %v2476 = vpop.f32.mrf.mxu0
        %v2477 = vadd.f32 0.0, %v2476
        %2478 = vdwg.mxu0
        %2480 = vrot.lane.b32.xlu0 %v2081, 4
        %v2481 = vpop.permute.xlu0 %2480
        %2484 = vrot.lane.b32.xlu0 %v2147, 8
        %v2485 = vpop.permute.xlu0 %2484
        %2488 = vrot.lane.b32.xlu0 %v2213, 12
        %v2489 = vpop.permute.xlu0 %2488
        %2492 = vrot.lane.b32.xlu0 %v2279, 16
        %v2493 = vpop.permute.xlu0 %2492
        %2496 = vrot.lane.b32.xlu0 %v2345, 20
        %v2497 = vpop.permute.xlu0 %2496
        %2500 = vrot.lane.b32.xlu0 %v2411, 24
        %v2501 = vpop.permute.xlu0 %2500
        %2504 = vrot.lane.b32.xlu0 %v2477, 28
        %v2505 = vpop.permute.xlu0 %2504
        %v2507 = vsel %vm1849, %v2015, %v2481
        %v2508 = vsel %vm760, %v2507, %v2485
        %v2509 = vsel %vm1856, %v2508, %v2489
        %v2510 = vsel %vm1860, %v2509, %v2493
        %v2511 = vsel %vm1864, %v2510, %v2497
        %v2512 = vsel %vm1868, %v2511, %v2501
        %v2513 = vsel %vm1872, %v2512, %v2505
        %v2514 = vpack.c.bf16 %v2513, %v2513
        %v2515 = vpack.c.bf16 %v1909, %v1908
        %v2516 = vpack.c.bf16 %v1911, %v1910
        %v2518 = vperm.slane %v1912, 0
        %v2521 = vsel %vm655, %v2514, 0
        %2523 = vmatpush.bf16.msra.mxu0 0
        %2524 = vmatpush.bf16.msra.mxu0 0
        %2525 = vmatpush.bf16.msra.mxu0 0
        %2526 = vmatpush.bf16.msra.mxu0 0
        %2527 = vmatpush.bf16.msra.mxu0 0
        %2528 = vmatpush.bf16.msra.mxu0 0
        %2529 = vmatpush.bf16.msra.mxu0 %v2516
        %2530 = vmatpush.bf16.msra.mxu0 %v2515
        %2531 = vmatmul.bf16.gmra.mxu0 %v2521
        %v2532 = vpop.f32.mrf.mxu0
        %v2533 = vadd.f32 %v2518, %v2532
        %v2534 = vpop.f32.mrf.mxu0
        %2535 = vdwg.mxu0
        %v2536 = vadd.f32 %v1895, %v2533
        %v2537 = vadd.f32 %v2536, %v651
        %2538 = vst.msk [vmem:[%s649] sm:$0xff] %vm655, %v2537
        %p2539 = scmp.lt.s32.totalorder %s35, 1
        %s2540 = scalar_select %p2539, %s35, 1
        %s2541 = smul.addr %s2540, 8
        %s2542 = scalar_lea.vmem %s13, %s2541
        // Predicated region
        $region121: #{et_decoder_block.5} parent=71 // pred_check
          %p2543 = pneg %p336
        $region122: #{et_decoder_block.5} parent=71 // pred_check_branch
          %2545 = sbr.rel (%p2543) target = $region124
        $region123: #{et_decoder_block.5} parent=71 // pred_region
          _
        $region124: #{et_decoder_block.5} parent=71 // pred_fallthru
          _
      $region72: #{et_decoder_block.5} parent=5 // pred_fallthru
        _
      %p2546 = scmp.le.s32.totalorder 2, %s30
      // Predicated region
      $region125: #{et_decoder_block.5} parent=5 // pred_check
        %p2547 = pneg %p2546
      $region126: #{et_decoder_block.5} parent=5 // pred_check_branch
        %2549 = sbr.rel (%p2547) target = $region128
      $region127: #{et_decoder_block.5} parent=5 // pred_region
        %s2550 = ssub.s32 %s30, 2
        // Predicated region
        $region129: #{et_decoder_block.5} parent=127 // pred_check
          %p2551 = pneg %p342
        $region130: #{et_decoder_block.5} parent=127 // pred_check_branch
          %2553 = sbr.rel (%p2551) target = $region132
        $region131: #{et_decoder_block.5} parent=127 // pred_region
          %p2554 = scmp.lt.s32.totalorder %s36, 1
          %s2555 = scalar_select %p2554, %s36, 1
          %s2556 = smul.addr %s2555, 8
          %s2557 = scalar_lea.vmem %s13, %s2556
        $region132: #{et_decoder_block.5} parent=127 // pred_fallthru
          _
      $region128: #{et_decoder_block.5} parent=5 // pred_fallthru
        _
    $region6: #{et_decoder_block.5} parent=1 // loop_footer
      %s34 = sadd.s32 1, %s30
    $region7: #{et_decoder_block.5} parent=1 // loop_footer_branch
      %29 = sbr.rel target = $region3
    $region8: #{et_decoder_block.5} parent=1 // loop_exit
      _
    %2558 = vsyncpa [#allocation3], 1
    %s2559 = scalar_lea.sflag [#allocation3], 1
    %2560 = vsyncpa %s2559, 1
    %2561 = vsyncpa [#allocation5], 1
    %s2562 = scalar_lea.sflag [#allocation5], 1
    %2563 = vsyncpa %s2562, 1
    %2564 = vsyncpa [#allocation8], 1
    %2565 = vsyncpa [#allocation11], 1
    %2566 = vsyncpa [#allocation14], 1
    %2567 = vsyncpa [#allocation17], 1
    %2568 = vsyncpa [#allocation20], 1

// kernel: et_decoder_block.9
$region0: #{et_decoder_block.9}
  #allocation0 [shape = 'u32[]', space=smem, size = 0x4, offset = 0x4, fixed_abs, tag = 'smem constant byte address 0x4 - core index']
  #allocation1 [shape = 'u32[72,128]{1,0:T(1,128)}', space=vmem, size = 0x9000, scoped, tag = 'internal scratch']
  %s0 = inlined_call_operand.vmem [shape: f32[16,32], index: 0, kind: input, shape index: {}]
  %s1 = inlined_call_operand.vmem [shape: f32[1,32], index: 1, kind: input, shape index: {}]
  %s2 = inlined_call_operand.vmem [shape: f32[32,128], index: 2, kind: input, shape index: {}]
  %s3 = inlined_call_operand.vmem [shape: f32[1,128], index: 3, kind: input, shape index: {}]
  %s4 = inlined_call_operand.vmem [shape: f32[128,32], index: 4, kind: input, shape index: {}]
  %s5 = inlined_call_operand.vmem [shape: f32[1,32], index: 5, kind: input, shape index: {}]
  %s6 = inlined_call_operand.hbm [shape: f32[16,32], index: 6, kind: output, shape index: {}]
  %s7 = sld [smem:[#allocation0]]
  $region57: #{et_decoder_block.9} parent=0
    _
  %s9 = ssub.s32 1, %s7
  %s10 = scalar_select 0, %s9, %s7
  $region1: #{et_decoder_block.9} parent=0
    #allocation2 [shape = 'u8[8192]{0}', space=vmem, size = 0x2000, scoped, tag = 'output window, operand 0']
    #allocation3 [shape = 's32[2]{0}', space=sflag, size = 0x8, scoped, tag = 'scoped memory for et_decoder_block.9']
    %11 = vsyncpa [#allocation3], 0
    %s12 = scalar_lea.sflag [#allocation3], 1
    %13 = vsyncpa %s12, 0
    loop: start=0, step=1, limit=4
    $region2: #{et_decoder_block.9} parent=1 // loop_pre_header
      _
    $region3: #{et_decoder_block.9} parent=1 // loop_header
      %s15 = sphi 0, %s19
      %p16 = scmp.ge.s32.totalorder %s15, 4
      %s25 = sphi 0, %s27
      %s28 = sphi 0, %s25
      %s29 = sphi 0, %s28
      %s45 = sphi 0, %s29
      %s49 = sphi 0, %s49
      %s51 = sphi 0, %s49
      %s52 = sphi 0, %s51
      %s66 = sphi 0, %s52
      %s70 = sphi 0, %s70
      %s72 = sphi 0, %s70
      %s73 = sphi 0, %s72
      %s87 = sphi 0, %s73
      %s91 = sphi 0, %s91
      %s93 = sphi 0, %s91
      %s94 = sphi 0, %s93
      %s108 = sphi 0, %s94
      %s112 = sphi 0, %s112
      %s114 = sphi 0, %s112
      %s115 = sphi 0, %s114
      %s129 = sphi 0, %s115
      %s133 = sphi 0, %s133
      %s135 = sphi 0, %s133
      %s136 = sphi 0, %s135
      %s150 = sphi 0, %s136
      %s156 = sphi 0, %s158
      %s159 = sphi 0, %s156
      %s160 = sphi 0, %s159
      %s176 = sphi 0, %s160
    $region4: #{et_decoder_block.9} parent=1 // loop_header_branch
      %18 = sbr.rel (%p16) target = $region8
    $region5: #{et_decoder_block.9} parent=1 // loop_body
      %s20 = ssub.s32 %s15, 1
      %s21 = ssub.s32 %s15, 2
      %s22 = sadd.s32 %s15, 1
      %s23 = ssub.s32 %s15, %s22
      %p24 = scmp.eq.s32.totalorder %s23, 0
      %s26 = sadd.s32 %s25, 1
      %s27 = scalar_select %p24, %s25, %s26
      %p30 = pneg %p24
      %p31 = scmp.eq.s32.totalorder %s15, 1
      %p32 = por %p30, %p31
      %p33 = scmp.ne.s32.totalorder %s25, %s28
      %p34 = scmp.eq.s32.totalorder %s15, 0
      %p35 = por %p33, %p34
      %p36 = scmp.ne.s32.totalorder %s25, %s28
      %p37 = scmp.eq.s32.totalorder %s20, 1
      %p38 = por %p36, %p37
      %p39 = scmp.ne.s32.totalorder %s28, %s29
      %p40 = scmp.eq.s32.totalorder %s20, 0
      %p41 = por %p39, %p40
      %p42 = scmp.ne.s32.totalorder %s28, %s29
      %p43 = scmp.eq.s32.totalorder %s21, 1
      %p44 = por %p42, %p43
      %p46 = scmp.ne.s32.totalorder %s29, %s45
      %p47 = scmp.eq.s32.totalorder %s21, 0
      %p48 = por %p46, %p47
      %s50 = sadd.s32 %s49, 1
      %p53 = scmp.eq.s32.totalorder %s15, 1
      %p54 = scmp.ne.s32.totalorder %s49, %s51
      %p55 = scmp.eq.s32.totalorder %s15, 0
      %p56 = por %p54, %p55
      %p57 = scmp.ne.s32.totalorder %s49, %s51
      %p58 = scmp.eq.s32.totalorder %s20, 1
      %p59 = por %p57, %p58
      %p60 = scmp.ne.s32.totalorder %s51, %s52
      %p61 = scmp.eq.s32.totalorder %s20, 0
      %p62 = por %p60, %p61
      %p63 = scmp.ne.s32.totalorder %s51, %s52
      %p64 = scmp.eq.s32.totalorder %s21, 1
      %p65 = por %p63, %p64
      %p67 = scmp.ne.s32.totalorder %s52, %s66
      %p68 = scmp.eq.s32.totalorder %s21, 0
      %p69 = por %p67, %p68
      %s71 = sadd.s32 %s70, 1
      %p74 = scmp.eq.s32.totalorder %s15, 1
      %p75 = scmp.ne.s32.totalorder %s70, %s72
      %p76 = scmp.eq.s32.totalorder %s15, 0
      %p77 = por %p75, %p76
      %p78 = scmp.ne.s32.totalorder %s70, %s72
      %p79 = scmp.eq.s32.totalorder %s20, 1
      %p80 = por %p78, %p79
      %p81 = scmp.ne.s32.totalorder %s72, %s73
      %p82 = scmp.eq.s32.totalorder %s20, 0
      %p83 = por %p81, %p82
      %p84 = scmp.ne.s32.totalorder %s72, %s73
      %p85 = scmp.eq.s32.totalorder %s21, 1
      %p86 = por %p84, %p85
      %p88 = scmp.ne.s32.totalorder %s73, %s87
      %p89 = scmp.eq.s32.totalorder %s21, 0
      %p90 = por %p88, %p89
      %s92 = sadd.s32 %s91, 1
      %p95 = scmp.eq.s32.totalorder %s15, 1
      %p96 = scmp.ne.s32.totalorder %s91, %s93
      %p97 = scmp.eq.s32.totalorder %s15, 0
      %p98 = por %p96, %p97
      %p99 = scmp.ne.s32.totalorder %s91, %s93
      %p100 = scmp.eq.s32.totalorder %s20, 1
      %p101 = por %p99, %p100
      %p102 = scmp.ne.s32.totalorder %s93, %s94
      %p103 = scmp.eq.s32.totalorder %s20, 0
      %p104 = por %p102, %p103
      %p105 = scmp.ne.s32.totalorder %s93, %s94
      %p106 = scmp.eq.s32.totalorder %s21, 1
      %p107 = por %p105, %p106
      %p109 = scmp.ne.s32.totalorder %s94, %s108
      %p110 = scmp.eq.s32.totalorder %s21, 0
      %p111 = por %p109, %p110
      %s113 = sadd.s32 %s112, 1
      %p116 = scmp.eq.s32.totalorder %s15, 1
      %p117 = scmp.ne.s32.totalorder %s112, %s114
      %p118 = scmp.eq.s32.totalorder %s15, 0
      %p119 = por %p117, %p118
      %p120 = scmp.ne.s32.totalorder %s112, %s114
      %p121 = scmp.eq.s32.totalorder %s20, 1
      %p122 = por %p120, %p121
      %p123 = scmp.ne.s32.totalorder %s114, %s115
      %p124 = scmp.eq.s32.totalorder %s20, 0
      %p125 = por %p123, %p124
      %p126 = scmp.ne.s32.totalorder %s114, %s115
      %p127 = scmp.eq.s32.totalorder %s21, 1
      %p128 = por %p126, %p127
      %p130 = scmp.ne.s32.totalorder %s115, %s129
      %p131 = scmp.eq.s32.totalorder %s21, 0
      %p132 = por %p130, %p131
      %s134 = sadd.s32 %s133, 1
      %p137 = scmp.eq.s32.totalorder %s15, 1
      %p138 = scmp.ne.s32.totalorder %s133, %s135
      %p139 = scmp.eq.s32.totalorder %s15, 0
      %p140 = por %p138, %p139
      %p141 = scmp.ne.s32.totalorder %s133, %s135
      %p142 = scmp.eq.s32.totalorder %s20, 1
      %p143 = por %p141, %p142
      %p144 = scmp.ne.s32.totalorder %s135, %s136
      %p145 = scmp.eq.s32.totalorder %s20, 0
      %p146 = por %p144, %p145
      %p147 = scmp.ne.s32.totalorder %s135, %s136
      %p148 = scmp.eq.s32.totalorder %s21, 1
      %p149 = por %p147, %p148
      %p151 = scmp.ne.s32.totalorder %s136, %s150
      %p152 = scmp.eq.s32.totalorder %s21, 0
      %p153 = por %p151, %p152
      %s154 = ssub.s32 %s15, %s22
      %p155 = scmp.eq.s32.totalorder %s154, 0
      %s157 = sadd.s32 %s156, 1
      %s158 = scalar_select %p155, %s156, %s157
      %p161 = pneg %p155
      %p162 = scmp.eq.s32.totalorder %s15, 1
      %p163 = por %p161, %p162
      %p164 = scmp.ne.s32.totalorder %s156, %s159
      %p165 = scmp.eq.s32.totalorder %s15, 0
      %p166 = por %p164, %p165
      %p167 = scmp.ne.s32.totalorder %s156, %s159
      %p168 = scmp.eq.s32.totalorder %s20, 1
      %p169 = por %p167, %p168
      %p170 = scmp.ne.s32.totalorder %s159, %s160
      %p171 = scmp.eq.s32.totalorder %s20, 0
      %p172 = por %p170, %p171
      %p173 = scmp.ne.s32.totalorder %s159, %s160
      %p174 = scmp.eq.s32.totalorder %s21, 1
      %p175 = por %p173, %p174
      %p177 = scmp.ne.s32.totalorder %s160, %s176
      %p178 = scmp.eq.s32.totalorder %s21, 0
      %p179 = por %p177, %p178
      %p180 = scmp.le.s32.totalorder 1, %s15
      %p181 = scmp.lt.s32.totalorder %s15, 3
      %p182 = pnand %p180, %p181
      %p183 = pneg %p182
      // Predicated region
      $region9: #{et_decoder_block.9} parent=5 // pred_check
        _
      $region10: #{et_decoder_block.9} parent=5 // pred_check_branch
        %185 = sbr.rel (%p182) target = $region12
      $region11: #{et_decoder_block.9} parent=5 // pred_region
        %s186 = ssub.s32 %s15, 1
        // Predicated region
        $region13: #{et_decoder_block.9} parent=11 // pred_check
          %p187 = pneg %p62
        $region14: #{et_decoder_block.9} parent=11 // pred_check_branch
          %189 = sbr.rel (%p187) target = $region16
        $region15: #{et_decoder_block.9} parent=11 // pred_region
          _
        $region16: #{et_decoder_block.9} parent=11 // pred_fallthru
          _
        // Predicated region
        $region17: #{et_decoder_block.9} parent=11 // pred_check
          %p190 = pneg %p83
        $region18: #{et_decoder_block.9} parent=11 // pred_check_branch
          %192 = sbr.rel (%p190) target = $region20
        $region19: #{et_decoder_block.9} parent=11 // pred_region
          _
        $region20: #{et_decoder_block.9} parent=11 // pred_fallthru
          _
        // Predicated region
        $region21: #{et_decoder_block.9} parent=11 // pred_check
          %p193 = pneg %p104
        $region22: #{et_decoder_block.9} parent=11 // pred_check_branch
          %195 = sbr.rel (%p193) target = $region24
        $region23: #{et_decoder_block.9} parent=11 // pred_region
          _
        $region24: #{et_decoder_block.9} parent=11 // pred_fallthru
          _
        // Predicated region
        $region25: #{et_decoder_block.9} parent=11 // pred_check
          %p196 = pneg %p125
        $region26: #{et_decoder_block.9} parent=11 // pred_check_branch
          %198 = sbr.rel (%p196) target = $region28
        $region27: #{et_decoder_block.9} parent=11 // pred_region
          _
        $region28: #{et_decoder_block.9} parent=11 // pred_fallthru
          _
        // Predicated region
        $region29: #{et_decoder_block.9} parent=11 // pred_check
          %p199 = pneg %p146
        $region30: #{et_decoder_block.9} parent=11 // pred_check_branch
          %201 = sbr.rel (%p199) target = $region32
        $region31: #{et_decoder_block.9} parent=11 // pred_region
          _
        $region32: #{et_decoder_block.9} parent=11 // pred_fallthru
          _
      $region12: #{et_decoder_block.9} parent=5 // pred_fallthru
        _
      %p202 = scmp.lt.s32.totalorder %s15, 2
      // Predicated region
      $region33: #{et_decoder_block.9} parent=5 // pred_check
        %p203 = pneg %p202
      $region34: #{et_decoder_block.9} parent=5 // pred_check_branch
        %205 = sbr.rel (%p203) target = $region36
      $region35: #{et_decoder_block.9} parent=5 // pred_region
        // Predicated region
        $region37: #{et_decoder_block.9} parent=35 // pred_check
          %p206 = pneg %p35
        $region38: #{et_decoder_block.9} parent=35 // pred_check_branch
          %208 = sbr.rel (%p206) target = $region40
        $region39: #{et_decoder_block.9} parent=35 // pred_region
          %p209 = scmp.lt.s32.totalorder %s15, 1
          %s210 = scalar_select %p209, %s15, 1
          %s211 = smul.addr %s210, 8
          %s212 = scalar_lea.vmem %s0, %s211
        $region40: #{et_decoder_block.9} parent=35 // pred_fallthru
          _
      $region36: #{et_decoder_block.9} parent=5 // pred_fallthru
        _
      %p213 = scmp.le.s32.totalorder 1, %s15
      %p214 = scmp.lt.s32.totalorder %s15, 3
      %p215 = pnand %p213, %p214
      %p216 = pneg %p215
      // Predicated region
      $region41: #{et_decoder_block.9} parent=5 // pred_check
        _
      $region42: #{et_decoder_block.9} parent=5 // pred_check_branch
        %218 = sbr.rel (%p215) target = $region44
      $region43: #{et_decoder_block.9} parent=5 // pred_region
        %s219 = ssub.s32 %s15, 1
        %p220 = scmp.lt.s32.totalorder %s20, 1
        %s221 = scalar_select %p220, %s20, 1
        %s222 = smul.addr %s221, 8
        %s223 = scalar_lea.vmem %s0, %s222
        %p224 = pneg %p41
        %p225 = pneg %p38
        %p226 = pneg %p62
        %p227 = pneg %p59
        %p228 = pneg %p83
        %p229 = pneg %p80
        %p230 = pneg %p104
        %p231 = pneg %p101
        %p232 = pneg %p125
        %p233 = pneg %p122
        %p234 = pneg %p146
        %p235 = pneg %p143
        %p236 = pneg %p172
        %p237 = pneg %p169
        %s238 = sand.u32 %s159, 1
        %s239 = scalar_lea.sflag [#allocation3], %s238
        %s240 = sand.u32 %s159, 1
        %s241 = smul.addr %s240, 8
        %s242 = scalar_lea.vmem [#allocation2], %s241
        %p243 = scmp.lt.s32.totalorder %s20, 1
        %s244 = scalar_select %p243, %s20, 1
        %s245 = smul.addr %s244, 8
        %s246 = scalar_lea.vmem %s0, %s245
        %v248 = vld [vmem:[%s246] sm:$0xff]
        %v249 = vld [vmem:[%s1] sm:$0x1]
        %v250 = vmul.f32 %v248, %v248
        %vm251 = vcmask 261120
        %v252 = vsel %vm251, %v250, 0.0
        %253 = vadd.xlane.f32.xlu0 %v252
        %v254 = vpop.xlane.xlu0 %253
        %v255 = vrcp.pop 32.0
        %v256 = vmul.f32 32.0, %v255
        %v257 = vsub.f32 1.0, %v256
        %v258 = vmul.f32 %v255, %v257
        %v259 = vadd.f32 %v255, %v258
        %vm260 = vweird.f32 %v255
        %v261 = vsel %vm260, %v255, %v259
        %v262 = vmul.f32 %v254, %v261
        %v263 = vrsqrt.pop %v262
        %v264 = vmul.f32 %v263, %v262
        %v265 = vmul.f32 %v264, %v263
        %v266 = vmul.f32 0.5, %v265
        %v267 = vsub.f32 1.5, %v266
        %v268 = vmul.f32 %v263, %v267
        %v269 = vmul.f32 %v262, %v268
        %vm270 = vcmp.eq.f32.partialorder %v262, inf
        %v271 = vsel %vm270, %v262, %v269
        %vm272 = vcmp.eq.f32.partialorder %v262, 0.0
        %v273 = vand.u32 %v262, 2147483648
        %v274 = vsel %vm272, %v273, %v271
        %v275 = vmax.f32 %v274, 1e-08
        %v276 = vrcp.pop %v275
        %v277 = vmul.f32 %v275, %v276
        %v278 = vsub.f32 1.0, %v277
        %v279 = vmul.f32 %v276, %v278
        %v280 = vadd.f32 %v276, %v279
        %vm281 = vweird.f32 %v275
        %vm282 = vweird.f32 %v276
        %vm283 = vmor %vm281, %vm282
        %v284 = vsel %vm283, %v276, %v280
        %v285 = vand.u32 2147483647, %v275
        %vm286 = vcmp.eq.f32.partialorder %v285, 8.507059e+37
        %v287 = vand.u32 %v275, 2147483648
        %v288 = vor.u32 1.1754944e-38, %v287
        %v289 = vsel %vm286, %v288, %v284
        %v290 = vmul.f32 %v248, %v289
        %v292 = vperm.slane %v249, 0
        %v294 = vmul.f32 %v290, %v292
        %v295 = vld [vmem:[%s2] sm:$0xff]
        %v296 = vld [vmem:[%s2 + $0x8] sm:$0xff]
        %v297 = vld [vmem:[%s2 + $0x10] sm:$0xff]
        %v298 = vld [vmem:[%s2 + $0x18] sm:$0xff]
        %v299 = vpack.c.bf16 %v294, %v294
        %v300 = vpack.c.bf16 %v296, %v295
        %v301 = vpack.c.bf16 %v298, %v297
        %v302 = vld [vmem:[%s3] sm:$0x1]
        %v304 = vperm.slane %v302, 0
        %v307 = vsel %vm251, %v299, 0
        %309 = vmatpush.bf16.msra.mxu0 0
        %310 = vmatpush.bf16.msra.mxu0 0
        %311 = vmatpush.bf16.msra.mxu0 0
        %312 = vmatpush.bf16.msra.mxu0 0
        %313 = vmatpush.bf16.msra.mxu0 0
        %314 = vmatpush.bf16.msra.mxu0 0
        %315 = vmatpush.bf16.msra.mxu0 %v301
        %316 = vmatpush.bf16.msra.mxu0 %v300
        %317 = vmatmul.bf16.gmra.mxu0 %v307
        %v318 = vpop.f32.mrf.mxu0
        %v319 = vadd.f32 %v304, %v318
        %v320 = vpop.f32.mrf.mxu0
        %321 = vdwg.mxu0
        %v322 = vsub.f32 0.0, %v319
        %v323 = vmul.f32 %v322, 1.442695
        %v324 = vpow.pop %v323
        %v325 = vadd.f32 %v324, 1.0
        %v326 = vrcp.pop %v325
        %v327 = vmul.f32 %v325, %v326
        %v328 = vsub.f32 1.0, %v327
        %v329 = vmul.f32 %v326, %v328
        %v330 = vadd.f32 %v326, %v329
        %vm331 = vweird.f32 %v325
        %vm332 = vweird.f32 %v326
        %vm333 = vmor %vm331, %vm332
        %v334 = vsel %vm333, %v326, %v330
        %v335 = vand.u32 2147483647, %v325
        %vm336 = vcmp.eq.f32.partialorder %v335, 8.507059e+37
        %v337 = vand.u32 %v325, 2147483648
        %v338 = vor.u32 1.1754944e-38, %v337
        %v339 = vsel %vm336, %v338, %v334
        %v340 = vmul.f32 1.0, %v339
        %v341 = vmul.f32 %v319, %v340
        %v342 = vld [vmem:[%s4] sm:$0xff]
        %v343 = vld [vmem:[%s4 + $0x8] sm:$0xff]
        %v344 = vld [vmem:[%s4 + $0x10] sm:$0xff]
        %v345 = vld [vmem:[%s4 + $0x18] sm:$0xff]
        %v346 = vld [vmem:[%s4 + $0x20] sm:$0xff]
        %v347 = vld [vmem:[%s4 + $0x28] sm:$0xff]
        %v348 = vld [vmem:[%s4 + $0x30] sm:$0xff]
        %v349 = vld [vmem:[%s4 + $0x38] sm:$0xff]
        %v350 = vld [vmem:[%s4 + $0x40] sm:$0xff]
        %v351 = vld [vmem:[%s4 + $0x48] sm:$0xff]
        %v352 = vld [vmem:[%s4 + $0x50] sm:$0xff]
        %v353 = vld [vmem:[%s4 + $0x58] sm:$0xff]
        %v354 = vld [vmem:[%s4 + $0x60] sm:$0xff]
        %v355 = vld [vmem:[%s4 + $0x68] sm:$0xff]
        %v356 = vld [vmem:[%s4 + $0x70] sm:$0xff]
        %v357 = vld [vmem:[%s4 + $0x78] sm:$0xff]
        %v358 = vpack.c.bf16 %v341, %v341
        %v359 = vpack.c.bf16 %v343, %v342
        %v360 = vpack.c.bf16 %v345, %v344
        %v361 = vpack.c.bf16 %v347, %v346
        %v362 = vpack.c.bf16 %v349, %v348
        %v363 = vpack.c.bf16 %v351, %v350
        %v364 = vpack.c.bf16 %v353, %v352
        %v365 = vpack.c.bf16 %v355, %v354
        %v366 = vpack.c.bf16 %v357, %v356
        %v367 = vld [vmem:[%s5] sm:$0x1]
        %v369 = vperm.slane %v367, 0
        %371 = vmatpush.bf16.msra.mxu0 %v366
        %372 = vmatpush.bf16.msra.mxu0 %v365
        %373 = vmatpush.bf16.msra.mxu0 %v364
        %374 = vmatpush.bf16.msra.mxu0 %v363
        %375 = vmatpush.bf16.msra.mxu0 %v362
        %376 = vmatpush.bf16.msra.mxu0 %v361
        %377 = vmatpush.bf16.msra.mxu0 %v360
        %378 = vmatpush.bf16.msra.mxu0 %v359
        %379 = vmatmul.bf16.gmra.mxu0 %v358
        %v380 = vpop.f32.mrf.mxu0
        %v381 = vadd.f32 %v369, %v380
        %v382 = vpop.f32.mrf.mxu0
        %383 = vdwg.mxu0
        %v384 = vadd.f32 %v381, %v248
        %385 = vst.msk [vmem:[%s242] sm:$0xff] %vm251, %v384
        %s386 = sand.u32 %s159, 1
        %s387 = scalar_lea.sflag [#allocation3], %s386
        %s388 = sand.u32 %s159, 1
        %s389 = smul.addr %s388, 8
        %s390 = scalar_lea.vmem [#allocation2], %s389
        // Predicated region
        $region45: #{et_decoder_block.9} parent=43 // pred_check
          %p391 = pneg %p169
        $region46: #{et_decoder_block.9} parent=43 // pred_check_branch
          %393 = sbr.rel (%p391) target = $region48
        $region47: #{et_decoder_block.9} parent=43 // pred_region
          %395 = vsyncadd %s387, 0
          %s396 = smul.addr %s20, 8
          %s397 = scalar_lea.hbm %s6, %s396
          %s399 = sshll.u32 %s390, 4
          %s400 = int_to_ptr.vmem [resolvable:$true] %s399
          %s401 = sshll.u32 %s397, 4
          %s402 = int_to_ptr.hbm [resolvable:$true] %s401
          %404 = dma.vmem_to_hbm [thread:$0]  %s400, 128, %s402, %s387
        $region48: #{et_decoder_block.9} parent=43 // pred_fallthru
          _
      $region44: #{et_decoder_block.9} parent=5 // pred_fallthru
        _
      %p405 = scmp.le.s32.totalorder 2, %s15
      // Predicated region
      $region49: #{et_decoder_block.9} parent=5 // pred_check
        %p406 = pneg %p405
      $region50: #{et_decoder_block.9} parent=5 // pred_check_branch
        %408 = sbr.rel (%p406) target = $region52
      $region51: #{et_decoder_block.9} parent=5 // pred_region
        %s409 = ssub.s32 %s15, 2
        // Predicated region
        $region53: #{et_decoder_block.9} parent=51 // pred_check
          %p410 = pneg %p175
        $region54: #{et_decoder_block.9} parent=51 // pred_check_branch
          %412 = sbr.rel (%p410) target = $region56
        $region55: #{et_decoder_block.9} parent=51 // pred_region
          %s413 = sand.u32 %s160, 1
          %s414 = scalar_lea.sflag [#allocation3], %s413
          %s415 = sand.u32 %s160, 1
          %s416 = smul.addr %s415, 8
          %s417 = scalar_lea.vmem [#allocation2], %s416
          %419 = dma.done %s414, 128
        $region56: #{et_decoder_block.9} parent=51 // pred_fallthru
          _
      $region52: #{et_decoder_block.9} parent=5 // pred_fallthru
        _
    $region6: #{et_decoder_block.9} parent=1 // loop_footer
      %s19 = sadd.s32 1, %s15
    $region7: #{et_decoder_block.9} parent=1 // loop_footer_branch
      %14 = sbr.rel target = $region3
    $region8: #{et_decoder_block.9} parent=1 // loop_exit
      _
    %420 = vsyncpa [#allocation3], 1
    %s421 = scalar_lea.sflag [#allocation3], 1
    %422 = vsyncpa %s421, 1

</llo_original>
